<compile_context>
chip_gen: v5e
topology: v5e:2x2
jax: 0.10.0
libtpu: 0.0.40
codegen_flags: <defaults>
</compile_context>

<pallas_src>
import jax
import jax.numpy as jnp
from jax import lax
from jax.experimental import pallas as pl
from jax.experimental.pallas import tpu as pltpu


def _round8(n):
    return ((n + 7) // 8) * 8


def cataract_net_fused(x_nhwc, params):
    """All ConvBlocks (Conv3x3 VALID -> ReLU -> MaxPool 2x2) in one pallas_call.

    x_nhwc : (N, H, W, Cin) float32
    params : list of (w_hwio (3,3,Cin,Cout) f32, b (Cout,) f32)
    returns: (N, Hp_last*Wp_last, Cout_last) float32 (NHWC rows, channels on lanes)
    """
    N, H0, W0, C0 = x_nhwc.shape
    nl = len(params)

    # Per-layer geometry.
    dims = []
    h, w, c = H0, W0, C0
    for (wgt, _b) in params:
        assert wgt.shape[:3] == (3, 3, c), (wgt.shape, c)
        cout = wgt.shape[-1]
        hp, wp = (h - 2) // 2, (w - 2) // 2
        dims.append(dict(H=h, W=w, Cin=c, Cout=cout, Hp=hp, Wp=wp))
        h, w, c = hp, wp, cout
    sp_out, c_out = dims[-1]["Hp"] * dims[-1]["Wp"], dims[-1]["Cout"]

    # Layer-1 input: per-image flattened (H*W, Cin) plane (rows padded to 8).
    rpad0 = _round8(H0 * W0)
    x_flat = x_nhwc.reshape(N, H0 * W0, C0)
    x_flat = jnp.pad(x_flat, ((0, 0), (0, rpad0 - H0 * W0), (0, 0)))

    # VMEM scratch: pooled activation planes (inputs of layers 2..nl) and the
    # per-layer vertically-pooled planes.  Everything fits in well under 2 MiB.
    act_shapes = [pltpu.VMEM((_round8(d["H"] * d["W"]), d["Cin"]), jnp.float32)
                  for d in dims[1:]]
    vp_shapes = [pltpu.VMEM((_round8(d["Hp"] * 2 * d["Wp"]), d["Cout"]), jnp.float32)
                 for d in dims]

    def kernel(*refs):
        x_ref = refs[0]
        wb_refs = refs[1:1 + 2 * nl]
        o_ref = refs[1 + 2 * nl]
        scratch = refs[2 + 2 * nl:]
        act_refs = scratch[:nl - 1]
        vp_refs = scratch[nl - 1:]

        def conv_block(load_in, w_ref, b_ref, vp_ref, store_out, d):
            W, Cout, Hp, Wp = d["W"], d["Cout"], d["Hp"], d["Wp"]
            M = 2 * Wp                       # conv columns the pool actually reads
            bias = b_ref[...]                # (1, Cout)

            def chunk(hp):
                # Conv output rows (2*hp, 2*hp+1), columns [0, 2*Wp):
                # 9 taps x 2 rows = 18 small MXU matmuls, accumulated in vregs.
                base = 2 * hp * W
                acc0 = jnp.zeros((M, Cout), jnp.float32)
                acc1 = jnp.zeros((M, Cout), jnp.float32)
                for kh in range(3):
                    for kw in range(3):
                        w_tap = w_ref[kh, kw]            # (Cin, Cout)
                        off = base + kh * W + kw
                        acc0 = acc0 + jnp.dot(load_in(off, M), w_tap,
                                              preferred_element_type=jnp.float32)
                        acc1 = acc1 + jnp.dot(load_in(off + W, M), w_tap,
                                              preferred_element_type=jnp.float32)
                # Vertical 2-max fused with bias + ReLU (both commute with max).
                v = jnp.maximum(jnp.maximum(acc0, acc1) + bias, 0.0)  # (M, Cout)
                vp_ref[pl.ds(hp * M, M), :] = v

            if Hp <= 4:                      # tiny layers: static offsets
                for hp in range(Hp):
                    chunk(hp)
            else:                            # big layers: compact scf.for
                @pl.loop(0, Hp)
                def _(hp):
                    chunk(hp)

            # Horizontal 2-max over the whole plane: two stride-2 reads and one
            # dense store of the pooled (Hp*Wp, Cout) plane.
            left = vp_ref[pl.ds(0, Hp * Wp, stride=2), :]
            right = vp_ref[pl.ds(1, Hp * Wp, stride=2), :]
            store_out(jnp.maximum(left, right))

        def make_loader(layer):
            if layer == 0:
                return lambda off, n: x_ref[0, pl.ds(off, n), :]
            a = act_refs[layer - 1]
            return lambda off, n, a=a: a[pl.ds(off, n), :]

        def make_storer(layer):
            if layer == nl - 1:
                def store_last(p):
                    o_ref[0, :, :] = p       # lane-dense (Sp, 128) HBM store
                return store_last
            a = act_refs[layer]
            rows = dims[layer]["Hp"] * dims[layer]["Wp"]

            def store_mid(p, a=a, rows=rows):
                a[pl.ds(0, rows), :] = p     # next layer's input plane (VMEM)
            return store_mid

        for layer, d in enumerate(dims):
            conv_block(make_loader(layer), wb_refs[2 * layer],
                       wb_refs[2 * layer + 1], vp_refs[layer],
                       make_storer(layer), d)

    inputs = [x_flat]
    in_specs = [pl.BlockSpec((1, rpad0, C0), lambda n: (n, 0, 0))]
    for (wgt, b) in params:
        cout = wgt.shape[-1]
        inputs.append(wgt)
        in_specs.append(pl.BlockSpec(wgt.shape, lambda n: (0, 0, 0, 0)))
        inputs.append(b.reshape(1, cout))
        in_specs.append(pl.BlockSpec((1, cout), lambda n: (0, 0)))

    return pl.pallas_call(
        kernel,
        out_shape=jax.ShapeDtypeStruct((N, sp_out, c_out), jnp.float32),
        grid_spec=pltpu.PrefetchScalarGridSpec(
            num_scalar_prefetch=0,
            grid=(N,),
            in_specs=in_specs,
            out_specs=pl.BlockSpec((1, sp_out, c_out), lambda n: (n, 0, 0)),
            scratch_shapes=act_shapes + vp_shapes,
        ),
        compiler_params=pltpu.CompilerParams(
            dimension_semantics=("parallel",)),
    )(*inputs)


def cataract_net_forward(x_nchw, params):
    """CataractNet.forward with out_indices=None: 4 ConvBlocks, then flatten(1)."""
    x = jnp.transpose(x_nchw, (0, 2, 3, 1))          # NCHW -> NHWC
    y = cataract_net_fused(x, params)                # (N, Hp*Wp, C)
    n, h, w = x.shape[0], x.shape[1], x.shape[2]
    for _ in params:
        h, w = (h - 2) // 2, (w - 2) // 2
    c = params[-1][0].shape[-1]
    # Match torch's x.flatten(1) on an NCHW tensor.
    y = y.reshape(n, h, w, c).transpose(0, 3, 1, 2)
    return y.reshape(n, -1)
    # TODO(synk): out_indices != None (returning intermediate feature maps) is
    # not implemented; the default forward (out_indices=None) is.


def _ref_forward(x_nchw, params):
    """Pure-JAX reference (lax conv + reduce_window) for verification."""
    x = jnp.transpose(x_nchw, (0, 2, 3, 1))
    for w, b in params:
        y = lax.conv_general_dilated(
            x, w, window_strides=(1, 1), padding="VALID",
            dimension_numbers=("NHWC", "HWIO", "NHWC"))
        y = jnp.maximum(y + b, 0.0)
        x = lax.reduce_window(y, -jnp.inf, lax.max,
                              (1, 2, 2, 1), (1, 2, 2, 1), "VALID")
    x = jnp.transpose(x, (0, 3, 1, 2))
    return x.reshape(x.shape[0], -1)


def init_params(key, in_channels=3, arch=(32, 32, 64, 128)):
    """Deterministic synthetic weights: HWIO conv kernels (3,3,Cin,Cout) + bias."""
    params = []
    cin = in_channels
    for cout in arch:
        key, kw, kb = jax.random.split(key, 3)
        scale = 1.0 / jnp.sqrt(9.0 * cin)
        w = jax.random.normal(kw, (3, 3, cin, cout), jnp.float32) * scale
        b = jax.random.normal(kb, (cout,), jnp.float32) * 0.01
        params.append((w, b))
        cin = cout
    return params


if __name__ == "__main__":
    key = jax.random.PRNGKey(0)
    kx, kp = jax.random.split(key)

    # Small input consistent with the module: NCHW, 3 channels.
    # 50 -> conv 48 -> pool 24 -> 22 -> 11 -> 9 -> 4 -> 2 -> 1 (final 128x1x1).
    N, C, H, W = 2, 3, 50, 50
    x = jax.random.normal(kx, (N, C, H, W), jnp.float32)
    params = init_params(kp, in_channels=C)

    out = jax.block_until_ready(cataract_net_forward(x, params))

    ref = _ref_forward(x, params)
    assert out.shape == ref.shape == (N, 128), out.shape
    err = float(jnp.max(jnp.abs(out - ref)))
    assert jnp.allclose(out, ref, atol=1e-3, rtol=1e-3), err

    print("KERNEL_OK")
</pallas_src>

<mosaic_0001>
module attributes {stable_mosaic.version = 11 : i64} {
  func.func @kernel(%arg0: i32, %arg1: memref<1x2504x3xf32, #tpu.memory_space<vmem>>, %arg2: memref<3x3x3x32xf32, #tpu.memory_space<vmem>>, %arg3: memref<1x32xf32, #tpu.memory_space<vmem>>, %arg4: memref<3x3x32x32xf32, #tpu.memory_space<vmem>>, %arg5: memref<1x32xf32, #tpu.memory_space<vmem>>, %arg6: memref<3x3x32x64xf32, #tpu.memory_space<vmem>>, %arg7: memref<1x64xf32, #tpu.memory_space<vmem>>, %arg8: memref<3x3x64x128xf32, #tpu.memory_space<vmem>>, %arg9: memref<1x128xf32, #tpu.memory_space<vmem>>, %arg10: memref<1x1x128xf32, #tpu.memory_space<vmem>>, %arg11: memref<576x32xf32, #tpu.memory_space<vmem>>, %arg12: memref<128x32xf32, #tpu.memory_space<vmem>>, %arg13: memref<16x64xf32, #tpu.memory_space<vmem>>, %arg14: memref<1152x32xf32, #tpu.memory_space<vmem>>, %arg15: memref<248x32xf32, #tpu.memory_space<vmem>>, %arg16: memref<32x64xf32, #tpu.memory_space<vmem>>, %arg17: memref<8x128xf32, #tpu.memory_space<vmem>>) attributes {dimension_semantics = [#tpu.dimension_semantics<parallel>], iteration_bounds = array<i64: 2>, scalar_prefetch = 0 : i64, scratch_operands = 7 : i64, tpu.core_type = #tpu.core_type<tc>, window_params = [{transform_indices = @transform_0, window_bounds = array<i64: 1, 2504, 3>}, {pipeline_mode = #tpu.pipeline_mode<synchronous>, transform_indices = @transform_1, window_bounds = array<i64: 3, 3, 3, 32>}, {pipeline_mode = #tpu.pipeline_mode<synchronous>, transform_indices = @transform_2, window_bounds = array<i64: 1, 32>}, {pipeline_mode = #tpu.pipeline_mode<synchronous>, transform_indices = @transform_3, window_bounds = array<i64: 3, 3, 32, 32>}, {pipeline_mode = #tpu.pipeline_mode<synchronous>, transform_indices = @transform_4, window_bounds = array<i64: 1, 32>}, {pipeline_mode = #tpu.pipeline_mode<synchronous>, transform_indices = @transform_5, window_bounds = array<i64: 3, 3, 32, 64>}, {pipeline_mode = #tpu.pipeline_mode<synchronous>, transform_indices = @transform_6, window_bounds = array<i64: 1, 64>}, {pipeline_mode = #tpu.pipeline_mode<synchronous>, transform_indices = @transform_7, window_bounds = array<i64: 3, 3, 64, 128>}, {pipeline_mode = #tpu.pipeline_mode<synchronous>, transform_indices = @transform_8, window_bounds = array<i64: 1, 128>}, {transform_indices = @transform_9, window_bounds = array<i64: 1, 1, 128>}]} {
    %c0 = arith.constant 0 : index
    %c0_0 = arith.constant 0 : index
    %0 = vector.load %arg3[%c0, %c0_0] : memref<1x32xf32, #tpu.memory_space<vmem>>, vector<1x32xf32>
    %c0_i32 = arith.constant 0 : i32
    %c24_i32 = arith.constant 24 : i32
    %1 = arith.addi %c0_i32, %c24_i32 : i32
    %c1_i32 = arith.constant 1 : i32
    scf.for %arg18 = %c0_i32 to %1 step %c1_i32  : i32 {
      %c1_i32_473 = arith.constant 1 : i32
      %424 = arith.muli %arg18, %c1_i32_473 : i32
      %c0_i32_474 = arith.constant 0 : i32
      %425 = arith.addi %c0_i32_474, %424 : i32
      %c2_i32 = arith.constant 2 : i32
      %426 = arith.muli %c2_i32, %425 : i32
      %c50_i32 = arith.constant 50 : i32
      %427 = arith.muli %426, %c50_i32 : i32
      %cst_475 = arith.constant 0.000000e+00 : f32
      %428 = vector.broadcast %cst_475 : f32 to vector<48x32xf32>
      %cst_476 = arith.constant 0.000000e+00 : f32
      %429 = vector.broadcast %cst_476 : f32 to vector<48x32xf32>
      %c0_477 = arith.constant 0 : index
      %c0_478 = arith.constant 0 : index
      %c0_479 = arith.constant 0 : index
      %c0_480 = arith.constant 0 : index
      %430 = vector.load %arg2[%c0_477, %c0_478, %c0_479, %c0_480] : memref<3x3x3x32xf32, #tpu.memory_space<vmem>>, vector<1x1x3x32xf32>
      %431 = vector.shape_cast %430 : vector<1x1x3x32xf32> to vector<3x32xf32>
      %c0_i32_481 = arith.constant 0 : i32
      %432 = arith.addi %427, %c0_i32_481 : i32
      %c0_i32_482 = arith.constant 0 : i32
      %433 = arith.addi %432, %c0_i32_482 : i32
      %c0_483 = arith.constant 0 : index
      %434 = arith.index_cast %433 : i32 to index
      %c0_484 = arith.constant 0 : index
      %435 = vector.load %arg1[%c0_483, %434, %c0_484] : memref<1x2504x3xf32, #tpu.memory_space<vmem>>, vector<1x48x3xf32>
      %436 = vector.shape_cast %435 : vector<1x48x3xf32> to vector<48x3xf32>
      %cst_485 = arith.constant dense<0.000000e+00> : vector<48x32xf32>
      %437 = tpu.matmul %436, %431, %cst_485 {dimension_numbers = #tpu.dot_dimension_numbers<[1], [0], [0], [1], [0, 0, 1, 1], [], []>} : vector<48x3xf32>, vector<3x32xf32>, vector<48x32xf32> -> vector<48x32xf32>
      %438 = arith.addf %428, %437 : vector<48x32xf32>
      %c50_i32_486 = arith.constant 50 : i32
      %439 = arith.addi %433, %c50_i32_486 : i32
      %c0_487 = arith.constant 0 : index
      %440 = arith.index_cast %439 : i32 to index
      %c0_488 = arith.constant 0 : index
      %441 = vector.load %arg1[%c0_487, %440, %c0_488] : memref<1x2504x3xf32, #tpu.memory_space<vmem>>, vector<1x48x3xf32>
      %442 = vector.shape_cast %441 : vector<1x48x3xf32> to vector<48x3xf32>
      %cst_489 = arith.constant dense<0.000000e+00> : vector<48x32xf32>
      %443 = tpu.matmul %442, %431, %cst_489 {dimension_numbers = #tpu.dot_dimension_numbers<[1], [0], [0], [1], [0, 0, 1, 1], [], []>} : vector<48x3xf32>, vector<3x32xf32>, vector<48x32xf32> -> vector<48x32xf32>
      %444 = arith.addf %429, %443 : vector<48x32xf32>
      %c0_490 = arith.constant 0 : index
      %c1_491 = arith.constant 1 : index
      %c0_492 = arith.constant 0 : index
      %c0_493 = arith.constant 0 : index
      %445 = vector.load %arg2[%c0_490, %c1_491, %c0_492, %c0_493] : memref<3x3x3x32xf32, #tpu.memory_space<vmem>>, vector<1x1x3x32xf32>
      %446 = vector.shape_cast %445 : vector<1x1x3x32xf32> to vector<3x32xf32>
      %c0_i32_494 = arith.constant 0 : i32
      %447 = arith.addi %427, %c0_i32_494 : i32
      %c1_i32_495 = arith.constant 1 : i32
      %448 = arith.addi %447, %c1_i32_495 : i32
      %c0_496 = arith.constant 0 : index
      %449 = arith.index_cast %448 : i32 to index
      %c0_497 = arith.constant 0 : index
      %450 = vector.load %arg1[%c0_496, %449, %c0_497] : memref<1x2504x3xf32, #tpu.memory_space<vmem>>, vector<1x48x3xf32>
      %451 = vector.shape_cast %450 : vector<1x48x3xf32> to vector<48x3xf32>
      %cst_498 = arith.constant dense<0.000000e+00> : vector<48x32xf32>
      %452 = tpu.matmul %451, %446, %cst_498 {dimension_numbers = #tpu.dot_dimension_numbers<[1], [0], [0], [1], [0, 0, 1, 1], [], []>} : vector<48x3xf32>, vector<3x32xf32>, vector<48x32xf32> -> vector<48x32xf32>
      %453 = arith.addf %438, %452 : vector<48x32xf32>
      %c50_i32_499 = arith.constant 50 : i32
      %454 = arith.addi %448, %c50_i32_499 : i32
      %c0_500 = arith.constant 0 : index
      %455 = arith.index_cast %454 : i32 to index
      %c0_501 = arith.constant 0 : index
      %456 = vector.load %arg1[%c0_500, %455, %c0_501] : memref<1x2504x3xf32, #tpu.memory_space<vmem>>, vector<1x48x3xf32>
      %457 = vector.shape_cast %456 : vector<1x48x3xf32> to vector<48x3xf32>
      %cst_502 = arith.constant dense<0.000000e+00> : vector<48x32xf32>
      %458 = tpu.matmul %457, %446, %cst_502 {dimension_numbers = #tpu.dot_dimension_numbers<[1], [0], [0], [1], [0, 0, 1, 1], [], []>} : vector<48x3xf32>, vector<3x32xf32>, vector<48x32xf32> -> vector<48x32xf32>
      %459 = arith.addf %444, %458 : vector<48x32xf32>
      %c0_503 = arith.constant 0 : index
      %c2_504 = arith.constant 2 : index
      %c0_505 = arith.constant 0 : index
      %c0_506 = arith.constant 0 : index
      %460 = vector.load %arg2[%c0_503, %c2_504, %c0_505, %c0_506] : memref<3x3x3x32xf32, #tpu.memory_space<vmem>>, vector<1x1x3x32xf32>
      %461 = vector.shape_cast %460 : vector<1x1x3x32xf32> to vector<3x32xf32>
      %c0_i32_507 = arith.constant 0 : i32
      %462 = arith.addi %427, %c0_i32_507 : i32
      %c2_i32_508 = arith.constant 2 : i32
      %463 = arith.addi %462, %c2_i32_508 : i32
      %c0_509 = arith.constant 0 : index
      %464 = arith.index_cast %463 : i32 to index
      %c0_510 = arith.constant 0 : index
      %465 = vector.load %arg1[%c0_509, %464, %c0_510] : memref<1x2504x3xf32, #tpu.memory_space<vmem>>, vector<1x48x3xf32>
      %466 = vector.shape_cast %465 : vector<1x48x3xf32> to vector<48x3xf32>
      %cst_511 = arith.constant dense<0.000000e+00> : vector<48x32xf32>
      %467 = tpu.matmul %466, %461, %cst_511 {dimension_numbers = #tpu.dot_dimension_numbers<[1], [0], [0], [1], [0, 0, 1, 1], [], []>} : vector<48x3xf32>, vector<3x32xf32>, vector<48x32xf32> -> vector<48x32xf32>
      %468 = arith.addf %453, %467 : vector<48x32xf32>
      %c50_i32_512 = arith.constant 50 : i32
      %469 = arith.addi %463, %c50_i32_512 : i32
      %c0_513 = arith.constant 0 : index
      %470 = arith.index_cast %469 : i32 to index
      %c0_514 = arith.constant 0 : index
      %471 = vector.load %arg1[%c0_513, %470, %c0_514] : memref<1x2504x3xf32, #tpu.memory_space<vmem>>, vector<1x48x3xf32>
      %472 = vector.shape_cast %471 : vector<1x48x3xf32> to vector<48x3xf32>
      %cst_515 = arith.constant dense<0.000000e+00> : vector<48x32xf32>
      %473 = tpu.matmul %472, %461, %cst_515 {dimension_numbers = #tpu.dot_dimension_numbers<[1], [0], [0], [1], [0, 0, 1, 1], [], []>} : vector<48x3xf32>, vector<3x32xf32>, vector<48x32xf32> -> vector<48x32xf32>
      %474 = arith.addf %459, %473 : vector<48x32xf32>
      %c1_516 = arith.constant 1 : index
      %c0_517 = arith.constant 0 : index
      %c0_518 = arith.constant 0 : index
      %c0_519 = arith.constant 0 : index
      %475 = vector.load %arg2[%c1_516, %c0_517, %c0_518, %c0_519] : memref<3x3x3x32xf32, #tpu.memory_space<vmem>>, vector<1x1x3x32xf32>
      %476 = vector.shape_cast %475 : vector<1x1x3x32xf32> to vector<3x32xf32>
      %c50_i32_520 = arith.constant 50 : i32
      %477 = arith.addi %427, %c50_i32_520 : i32
      %c0_i32_521 = arith.constant 0 : i32
      %478 = arith.addi %477, %c0_i32_521 : i32
      %c0_522 = arith.constant 0 : index
      %479 = arith.index_cast %478 : i32 to index
      %c0_523 = arith.constant 0 : index
      %480 = vector.load %arg1[%c0_522, %479, %c0_523] : memref<1x2504x3xf32, #tpu.memory_space<vmem>>, vector<1x48x3xf32>
      %481 = vector.shape_cast %480 : vector<1x48x3xf32> to vector<48x3xf32>
      %cst_524 = arith.constant dense<0.000000e+00> : vector<48x32xf32>
      %482 = tpu.matmul %481, %476, %cst_524 {dimension_numbers = #tpu.dot_dimension_numbers<[1], [0], [0], [1], [0, 0, 1, 1], [], []>} : vector<48x3xf32>, vector<3x32xf32>, vector<48x32xf32> -> vector<48x32xf32>
      %483 = arith.addf %468, %482 : vector<48x32xf32>
      %c50_i32_525 = arith.constant 50 : i32
      %484 = arith.addi %478, %c50_i32_525 : i32
      %c0_526 = arith.constant 0 : index
      %485 = arith.index_cast %484 : i32 to index
      %c0_527 = arith.constant 0 : index
      %486 = vector.load %arg1[%c0_526, %485, %c0_527] : memref<1x2504x3xf32, #tpu.memory_space<vmem>>, vector<1x48x3xf32>
      %487 = vector.shape_cast %486 : vector<1x48x3xf32> to vector<48x3xf32>
      %cst_528 = arith.constant dense<0.000000e+00> : vector<48x32xf32>
      %488 = tpu.matmul %487, %476, %cst_528 {dimension_numbers = #tpu.dot_dimension_numbers<[1], [0], [0], [1], [0, 0, 1, 1], [], []>} : vector<48x3xf32>, vector<3x32xf32>, vector<48x32xf32> -> vector<48x32xf32>
      %489 = arith.addf %474, %488 : vector<48x32xf32>
      %c1_529 = arith.constant 1 : index
      %c1_530 = arith.constant 1 : index
      %c0_531 = arith.constant 0 : index
      %c0_532 = arith.constant 0 : index
      %490 = vector.load %arg2[%c1_529, %c1_530, %c0_531, %c0_532] : memref<3x3x3x32xf32, #tpu.memory_space<vmem>>, vector<1x1x3x32xf32>
      %491 = vector.shape_cast %490 : vector<1x1x3x32xf32> to vector<3x32xf32>
      %c50_i32_533 = arith.constant 50 : i32
      %492 = arith.addi %427, %c50_i32_533 : i32
      %c1_i32_534 = arith.constant 1 : i32
      %493 = arith.addi %492, %c1_i32_534 : i32
      %c0_535 = arith.constant 0 : index
      %494 = arith.index_cast %493 : i32 to index
      %c0_536 = arith.constant 0 : index
      %495 = vector.load %arg1[%c0_535, %494, %c0_536] : memref<1x2504x3xf32, #tpu.memory_space<vmem>>, vector<1x48x3xf32>
      %496 = vector.shape_cast %495 : vector<1x48x3xf32> to vector<48x3xf32>
      %cst_537 = arith.constant dense<0.000000e+00> : vector<48x32xf32>
      %497 = tpu.matmul %496, %491, %cst_537 {dimension_numbers = #tpu.dot_dimension_numbers<[1], [0], [0], [1], [0, 0, 1, 1], [], []>} : vector<48x3xf32>, vector<3x32xf32>, vector<48x32xf32> -> vector<48x32xf32>
      %498 = arith.addf %483, %497 : vector<48x32xf32>
      %c50_i32_538 = arith.constant 50 : i32
      %499 = arith.addi %493, %c50_i32_538 : i32
      %c0_539 = arith.constant 0 : index
      %500 = arith.index_cast %499 : i32 to index
      %c0_540 = arith.constant 0 : index
      %501 = vector.load %arg1[%c0_539, %500, %c0_540] : memref<1x2504x3xf32, #tpu.memory_space<vmem>>, vector<1x48x3xf32>
      %502 = vector.shape_cast %501 : vector<1x48x3xf32> to vector<48x3xf32>
      %cst_541 = arith.constant dense<0.000000e+00> : vector<48x32xf32>
      %503 = tpu.matmul %502, %491, %cst_541 {dimension_numbers = #tpu.dot_dimension_numbers<[1], [0], [0], [1], [0, 0, 1, 1], [], []>} : vector<48x3xf32>, vector<3x32xf32>, vector<48x32xf32> -> vector<48x32xf32>
      %504 = arith.addf %489, %503 : vector<48x32xf32>
      %c1_542 = arith.constant 1 : index
      %c2_543 = arith.constant 2 : index
      %c0_544 = arith.constant 0 : index
      %c0_545 = arith.constant 0 : index
      %505 = vector.load %arg2[%c1_542, %c2_543, %c0_544, %c0_545] : memref<3x3x3x32xf32, #tpu.memory_space<vmem>>, vector<1x1x3x32xf32>
      %506 = vector.shape_cast %505 : vector<1x1x3x32xf32> to vector<3x32xf32>
      %c50_i32_546 = arith.constant 50 : i32
      %507 = arith.addi %427, %c50_i32_546 : i32
      %c2_i32_547 = arith.constant 2 : i32
      %508 = arith.addi %507, %c2_i32_547 : i32
      %c0_548 = arith.constant 0 : index
      %509 = arith.index_cast %508 : i32 to index
      %c0_549 = arith.constant 0 : index
      %510 = vector.load %arg1[%c0_548, %509, %c0_549] : memref<1x2504x3xf32, #tpu.memory_space<vmem>>, vector<1x48x3xf32>
      %511 = vector.shape_cast %510 : vector<1x48x3xf32> to vector<48x3xf32>
      %cst_550 = arith.constant dense<0.000000e+00> : vector<48x32xf32>
      %512 = tpu.matmul %511, %506, %cst_550 {dimension_numbers = #tpu.dot_dimension_numbers<[1], [0], [0], [1], [0, 0, 1, 1], [], []>} : vector<48x3xf32>, vector<3x32xf32>, vector<48x32xf32> -> vector<48x32xf32>
      %513 = arith.addf %498, %512 : vector<48x32xf32>
      %c50_i32_551 = arith.constant 50 : i32
      %514 = arith.addi %508, %c50_i32_551 : i32
      %c0_552 = arith.constant 0 : index
      %515 = arith.index_cast %514 : i32 to index
      %c0_553 = arith.constant 0 : index
      %516 = vector.load %arg1[%c0_552, %515, %c0_553] : memref<1x2504x3xf32, #tpu.memory_space<vmem>>, vector<1x48x3xf32>
      %517 = vector.shape_cast %516 : vector<1x48x3xf32> to vector<48x3xf32>
      %cst_554 = arith.constant dense<0.000000e+00> : vector<48x32xf32>
      %518 = tpu.matmul %517, %506, %cst_554 {dimension_numbers = #tpu.dot_dimension_numbers<[1], [0], [0], [1], [0, 0, 1, 1], [], []>} : vector<48x3xf32>, vector<3x32xf32>, vector<48x32xf32> -> vector<48x32xf32>
      %519 = arith.addf %504, %518 : vector<48x32xf32>
      %c2_555 = arith.constant 2 : index
      %c0_556 = arith.constant 0 : index
      %c0_557 = arith.constant 0 : index
      %c0_558 = arith.constant 0 : index
      %520 = vector.load %arg2[%c2_555, %c0_556, %c0_557, %c0_558] : memref<3x3x3x32xf32, #tpu.memory_space<vmem>>, vector<1x1x3x32xf32>
      %521 = vector.shape_cast %520 : vector<1x1x3x32xf32> to vector<3x32xf32>
      %c100_i32 = arith.constant 100 : i32
      %522 = arith.addi %427, %c100_i32 : i32
      %c0_i32_559 = arith.constant 0 : i32
      %523 = arith.addi %522, %c0_i32_559 : i32
      %c0_560 = arith.constant 0 : index
      %524 = arith.index_cast %523 : i32 to index
      %c0_561 = arith.constant 0 : index
      %525 = vector.load %arg1[%c0_560, %524, %c0_561] : memref<1x2504x3xf32, #tpu.memory_space<vmem>>, vector<1x48x3xf32>
      %526 = vector.shape_cast %525 : vector<1x48x3xf32> to vector<48x3xf32>
      %cst_562 = arith.constant dense<0.000000e+00> : vector<48x32xf32>
      %527 = tpu.matmul %526, %521, %cst_562 {dimension_numbers = #tpu.dot_dimension_numbers<[1], [0], [0], [1], [0, 0, 1, 1], [], []>} : vector<48x3xf32>, vector<3x32xf32>, vector<48x32xf32> -> vector<48x32xf32>
      %528 = arith.addf %513, %527 : vector<48x32xf32>
      %c50_i32_563 = arith.constant 50 : i32
      %529 = arith.addi %523, %c50_i32_563 : i32
      %c0_564 = arith.constant 0 : index
      %530 = arith.index_cast %529 : i32 to index
      %c0_565 = arith.constant 0 : index
      %531 = vector.load %arg1[%c0_564, %530, %c0_565] : memref<1x2504x3xf32, #tpu.memory_space<vmem>>, vector<1x48x3xf32>
      %532 = vector.shape_cast %531 : vector<1x48x3xf32> to vector<48x3xf32>
      %cst_566 = arith.constant dense<0.000000e+00> : vector<48x32xf32>
      %533 = tpu.matmul %532, %521, %cst_566 {dimension_numbers = #tpu.dot_dimension_numbers<[1], [0], [0], [1], [0, 0, 1, 1], [], []>} : vector<48x3xf32>, vector<3x32xf32>, vector<48x32xf32> -> vector<48x32xf32>
      %534 = arith.addf %519, %533 : vector<48x32xf32>
      %c2_567 = arith.constant 2 : index
      %c1_568 = arith.constant 1 : index
      %c0_569 = arith.constant 0 : index
      %c0_570 = arith.constant 0 : index
      %535 = vector.load %arg2[%c2_567, %c1_568, %c0_569, %c0_570] : memref<3x3x3x32xf32, #tpu.memory_space<vmem>>, vector<1x1x3x32xf32>
      %536 = vector.shape_cast %535 : vector<1x1x3x32xf32> to vector<3x32xf32>
      %c100_i32_571 = arith.constant 100 : i32
      %537 = arith.addi %427, %c100_i32_571 : i32
      %c1_i32_572 = arith.constant 1 : i32
      %538 = arith.addi %537, %c1_i32_572 : i32
      %c0_573 = arith.constant 0 : index
      %539 = arith.index_cast %538 : i32 to index
      %c0_574 = arith.constant 0 : index
      %540 = vector.load %arg1[%c0_573, %539, %c0_574] : memref<1x2504x3xf32, #tpu.memory_space<vmem>>, vector<1x48x3xf32>
      %541 = vector.shape_cast %540 : vector<1x48x3xf32> to vector<48x3xf32>
      %cst_575 = arith.constant dense<0.000000e+00> : vector<48x32xf32>
      %542 = tpu.matmul %541, %536, %cst_575 {dimension_numbers = #tpu.dot_dimension_numbers<[1], [0], [0], [1], [0, 0, 1, 1], [], []>} : vector<48x3xf32>, vector<3x32xf32>, vector<48x32xf32> -> vector<48x32xf32>
      %543 = arith.addf %528, %542 : vector<48x32xf32>
      %c50_i32_576 = arith.constant 50 : i32
      %544 = arith.addi %538, %c50_i32_576 : i32
      %c0_577 = arith.constant 0 : index
      %545 = arith.index_cast %544 : i32 to index
      %c0_578 = arith.constant 0 : index
      %546 = vector.load %arg1[%c0_577, %545, %c0_578] : memref<1x2504x3xf32, #tpu.memory_space<vmem>>, vector<1x48x3xf32>
      %547 = vector.shape_cast %546 : vector<1x48x3xf32> to vector<48x3xf32>
      %cst_579 = arith.constant dense<0.000000e+00> : vector<48x32xf32>
      %548 = tpu.matmul %547, %536, %cst_579 {dimension_numbers = #tpu.dot_dimension_numbers<[1], [0], [0], [1], [0, 0, 1, 1], [], []>} : vector<48x3xf32>, vector<3x32xf32>, vector<48x32xf32> -> vector<48x32xf32>
      %549 = arith.addf %534, %548 : vector<48x32xf32>
      %c2_580 = arith.constant 2 : index
      %c2_581 = arith.constant 2 : index
      %c0_582 = arith.constant 0 : index
      %c0_583 = arith.constant 0 : index
      %550 = vector.load %arg2[%c2_580, %c2_581, %c0_582, %c0_583] : memref<3x3x3x32xf32, #tpu.memory_space<vmem>>, vector<1x1x3x32xf32>
      %551 = vector.shape_cast %550 : vector<1x1x3x32xf32> to vector<3x32xf32>
      %c100_i32_584 = arith.constant 100 : i32
      %552 = arith.addi %427, %c100_i32_584 : i32
      %c2_i32_585 = arith.constant 2 : i32
      %553 = arith.addi %552, %c2_i32_585 : i32
      %c0_586 = arith.constant 0 : index
      %554 = arith.index_cast %553 : i32 to index
      %c0_587 = arith.constant 0 : index
      %555 = vector.load %arg1[%c0_586, %554, %c0_587] : memref<1x2504x3xf32, #tpu.memory_space<vmem>>, vector<1x48x3xf32>
      %556 = vector.shape_cast %555 : vector<1x48x3xf32> to vector<48x3xf32>
      %cst_588 = arith.constant dense<0.000000e+00> : vector<48x32xf32>
      %557 = tpu.matmul %556, %551, %cst_588 {dimension_numbers = #tpu.dot_dimension_numbers<[1], [0], [0], [1], [0, 0, 1, 1], [], []>} : vector<48x3xf32>, vector<3x32xf32>, vector<48x32xf32> -> vector<48x32xf32>
      %558 = arith.addf %543, %557 : vector<48x32xf32>
      %c50_i32_589 = arith.constant 50 : i32
      %559 = arith.addi %553, %c50_i32_589 : i32
      %c0_590 = arith.constant 0 : index
      %560 = arith.index_cast %559 : i32 to index
      %c0_591 = arith.constant 0 : index
      %561 = vector.load %arg1[%c0_590, %560, %c0_591] : memref<1x2504x3xf32, #tpu.memory_space<vmem>>, vector<1x48x3xf32>
      %562 = vector.shape_cast %561 : vector<1x48x3xf32> to vector<48x3xf32>
      %cst_592 = arith.constant dense<0.000000e+00> : vector<48x32xf32>
      %563 = tpu.matmul %562, %551, %cst_592 {dimension_numbers = #tpu.dot_dimension_numbers<[1], [0], [0], [1], [0, 0, 1, 1], [], []>} : vector<48x3xf32>, vector<3x32xf32>, vector<48x32xf32> -> vector<48x32xf32>
      %564 = arith.addf %549, %563 : vector<48x32xf32>
      %565 = arith.maximumf %558, %564 : vector<48x32xf32>
      %566 = vector.broadcast %0 : vector<1x32xf32> to vector<48x32xf32>
      %567 = arith.addf %565, %566 : vector<48x32xf32>
      %cst_593 = arith.constant 0.000000e+00 : f32
      %568 = vector.broadcast %cst_593 : f32 to vector<48x32xf32>
      %569 = arith.maximumf %567, %568 : vector<48x32xf32>
      %c48_i32 = arith.constant 48 : i32
      %570 = arith.muli %425, %c48_i32 : i32
      %571 = arith.index_cast %570 : i32 to index
      %c0_594 = arith.constant 0 : index
      %572 = vector.load %arg14[%571, %c0_594] : memref<1152x32xf32, #tpu.memory_space<vmem>>, vector<48x32xf32>
      tpu.vector_store %arg14[%571, %c0_594], %569 {strides = array<i32>} : memref<1152x32xf32, #tpu.memory_space<vmem>>, vector<48x32xf32>,
    }
    %c24_i32_1 = arith.constant 24 : i32
    %c0_2 = arith.constant 0 : index
    %c0_3 = arith.constant 0 : index
    %2 = tpu.strided_load %arg14[%c0_2, %c0_3] {strides = array<i32: 2, 1>} : memref<1152x32xf32, #tpu.memory_space<vmem>>, vector<576x32xf32>
    %c1 = arith.constant 1 : index
    %c0_4 = arith.constant 0 : index
    %3 = tpu.strided_load %arg14[%c1, %c0_4] {strides = array<i32: 2, 1>} : memref<1152x32xf32, #tpu.memory_space<vmem>>, vector<576x32xf32>
    %4 = arith.maximumf %2, %3 : vector<576x32xf32>
    %c0_5 = arith.constant 0 : index
    %c0_6 = arith.constant 0 : index
    %5 = vector.load %arg11[%c0_5, %c0_6] : memref<576x32xf32, #tpu.memory_space<vmem>>, vector<576x32xf32>
    tpu.vector_store %arg11[%c0_5, %c0_6], %4 {strides = array<i32>} : memref<576x32xf32, #tpu.memory_space<vmem>>, vector<576x32xf32>,
    %c0_7 = arith.constant 0 : index
    %c0_8 = arith.constant 0 : index
    %6 = vector.load %arg5[%c0_7, %c0_8] : memref<1x32xf32, #tpu.memory_space<vmem>>, vector<1x32xf32>
    %c0_i32_9 = arith.constant 0 : i32
    %c11_i32 = arith.constant 11 : i32
    %7 = arith.addi %c0_i32_9, %c11_i32 : i32
    %c1_i32_10 = arith.constant 1 : i32
    scf.for %arg18 = %c0_i32_9 to %7 step %c1_i32_10  : i32 {
      %c1_i32_473 = arith.constant 1 : i32
      %424 = arith.muli %arg18, %c1_i32_473 : i32
      %c0_i32_474 = arith.constant 0 : i32
      %425 = arith.addi %c0_i32_474, %424 : i32
      %c2_i32 = arith.constant 2 : i32
      %426 = arith.muli %c2_i32, %425 : i32
      %c24_i32_475 = arith.constant 24 : i32
      %427 = arith.muli %426, %c24_i32_475 : i32
      %cst_476 = arith.constant 0.000000e+00 : f32
      %428 = vector.broadcast %cst_476 : f32 to vector<22x32xf32>
      %cst_477 = arith.constant 0.000000e+00 : f32
      %429 = vector.broadcast %cst_477 : f32 to vector<22x32xf32>
      %c0_478 = arith.constant 0 : index
      %c0_479 = arith.constant 0 : index
      %c0_480 = arith.constant 0 : index
      %c0_481 = arith.constant 0 : index
      %430 = vector.load %arg4[%c0_478, %c0_479, %c0_480, %c0_481] : memref<3x3x32x32xf32, #tpu.memory_space<vmem>>, vector<1x1x32x32xf32>
      %431 = vector.shape_cast %430 : vector<1x1x32x32xf32> to vector<32x32xf32>
      %c0_i32_482 = arith.constant 0 : i32
      %432 = arith.addi %427, %c0_i32_482 : i32
      %c0_i32_483 = arith.constant 0 : i32
      %433 = arith.addi %432, %c0_i32_483 : i32
      %434 = arith.index_cast %433 : i32 to index
      %c0_484 = arith.constant 0 : index
      %435 = vector.load %arg11[%434, %c0_484] : memref<576x32xf32, #tpu.memory_space<vmem>>, vector<22x32xf32>
      %cst_485 = arith.constant dense<0.000000e+00> : vector<22x32xf32>
      %436 = tpu.matmul %435, %431, %cst_485 {dimension_numbers = #tpu.dot_dimension_numbers<[1], [0], [0], [1], [0, 0, 1, 1], [], []>} : vector<22x32xf32>, vector<32x32xf32>, vector<22x32xf32> -> vector<22x32xf32>
      %437 = arith.addf %428, %436 : vector<22x32xf32>
      %c24_i32_486 = arith.constant 24 : i32
      %438 = arith.addi %433, %c24_i32_486 : i32
      %439 = arith.index_cast %438 : i32 to index
      %c0_487 = arith.constant 0 : index
      %440 = vector.load %arg11[%439, %c0_487] : memref<576x32xf32, #tpu.memory_space<vmem>>, vector<22x32xf32>
      %cst_488 = arith.constant dense<0.000000e+00> : vector<22x32xf32>
      %441 = tpu.matmul %440, %431, %cst_488 {dimension_numbers = #tpu.dot_dimension_numbers<[1], [0], [0], [1], [0, 0, 1, 1], [], []>} : vector<22x32xf32>, vector<32x32xf32>, vector<22x32xf32> -> vector<22x32xf32>
      %442 = arith.addf %429, %441 : vector<22x32xf32>
      %c0_489 = arith.constant 0 : index
      %c1_490 = arith.constant 1 : index
      %c0_491 = arith.constant 0 : index
      %c0_492 = arith.constant 0 : index
      %443 = vector.load %arg4[%c0_489, %c1_490, %c0_491, %c0_492] : memref<3x3x32x32xf32, #tpu.memory_space<vmem>>, vector<1x1x32x32xf32>
      %444 = vector.shape_cast %443 : vector<1x1x32x32xf32> to vector<32x32xf32>
      %c0_i32_493 = arith.constant 0 : i32
      %445 = arith.addi %427, %c0_i32_493 : i32
      %c1_i32_494 = arith.constant 1 : i32
      %446 = arith.addi %445, %c1_i32_494 : i32
      %447 = arith.index_cast %446 : i32 to index
      %c0_495 = arith.constant 0 : index
      %448 = vector.load %arg11[%447, %c0_495] : memref<576x32xf32, #tpu.memory_space<vmem>>, vector<22x32xf32>
      %cst_496 = arith.constant dense<0.000000e+00> : vector<22x32xf32>
      %449 = tpu.matmul %448, %444, %cst_496 {dimension_numbers = #tpu.dot_dimension_numbers<[1], [0], [0], [1], [0, 0, 1, 1], [], []>} : vector<22x32xf32>, vector<32x32xf32>, vector<22x32xf32> -> vector<22x32xf32>
      %450 = arith.addf %437, %449 : vector<22x32xf32>
      %c24_i32_497 = arith.constant 24 : i32
      %451 = arith.addi %446, %c24_i32_497 : i32
      %452 = arith.index_cast %451 : i32 to index
      %c0_498 = arith.constant 0 : index
      %453 = vector.load %arg11[%452, %c0_498] : memref<576x32xf32, #tpu.memory_space<vmem>>, vector<22x32xf32>
      %cst_499 = arith.constant dense<0.000000e+00> : vector<22x32xf32>
      %454 = tpu.matmul %453, %444, %cst_499 {dimension_numbers = #tpu.dot_dimension_numbers<[1], [0], [0], [1], [0, 0, 1, 1], [], []>} : vector<22x32xf32>, vector<32x32xf32>, vector<22x32xf32> -> vector<22x32xf32>
      %455 = arith.addf %442, %454 : vector<22x32xf32>
      %c0_500 = arith.constant 0 : index
      %c2_501 = arith.constant 2 : index
      %c0_502 = arith.constant 0 : index
      %c0_503 = arith.constant 0 : index
      %456 = vector.load %arg4[%c0_500, %c2_501, %c0_502, %c0_503] : memref<3x3x32x32xf32, #tpu.memory_space<vmem>>, vector<1x1x32x32xf32>
      %457 = vector.shape_cast %456 : vector<1x1x32x32xf32> to vector<32x32xf32>
      %c0_i32_504 = arith.constant 0 : i32
      %458 = arith.addi %427, %c0_i32_504 : i32
      %c2_i32_505 = arith.constant 2 : i32
      %459 = arith.addi %458, %c2_i32_505 : i32
      %460 = arith.index_cast %459 : i32 to index
      %c0_506 = arith.constant 0 : index
      %461 = vector.load %arg11[%460, %c0_506] : memref<576x32xf32, #tpu.memory_space<vmem>>, vector<22x32xf32>
      %cst_507 = arith.constant dense<0.000000e+00> : vector<22x32xf32>
      %462 = tpu.matmul %461, %457, %cst_507 {dimension_numbers = #tpu.dot_dimension_numbers<[1], [0], [0], [1], [0, 0, 1, 1], [], []>} : vector<22x32xf32>, vector<32x32xf32>, vector<22x32xf32> -> vector<22x32xf32>
      %463 = arith.addf %450, %462 : vector<22x32xf32>
      %c24_i32_508 = arith.constant 24 : i32
      %464 = arith.addi %459, %c24_i32_508 : i32
      %465 = arith.index_cast %464 : i32 to index
      %c0_509 = arith.constant 0 : index
      %466 = vector.load %arg11[%465, %c0_509] : memref<576x32xf32, #tpu.memory_space<vmem>>, vector<22x32xf32>
      %cst_510 = arith.constant dense<0.000000e+00> : vector<22x32xf32>
      %467 = tpu.matmul %466, %457, %cst_510 {dimension_numbers = #tpu.dot_dimension_numbers<[1], [0], [0], [1], [0, 0, 1, 1], [], []>} : vector<22x32xf32>, vector<32x32xf32>, vector<22x32xf32> -> vector<22x32xf32>
      %468 = arith.addf %455, %467 : vector<22x32xf32>
      %c1_511 = arith.constant 1 : index
      %c0_512 = arith.constant 0 : index
      %c0_513 = arith.constant 0 : index
      %c0_514 = arith.constant 0 : index
      %469 = vector.load %arg4[%c1_511, %c0_512, %c0_513, %c0_514] : memref<3x3x32x32xf32, #tpu.memory_space<vmem>>, vector<1x1x32x32xf32>
      %470 = vector.shape_cast %469 : vector<1x1x32x32xf32> to vector<32x32xf32>
      %c24_i32_515 = arith.constant 24 : i32
      %471 = arith.addi %427, %c24_i32_515 : i32
      %c0_i32_516 = arith.constant 0 : i32
      %472 = arith.addi %471, %c0_i32_516 : i32
      %473 = arith.index_cast %472 : i32 to index
      %c0_517 = arith.constant 0 : index
      %474 = vector.load %arg11[%473, %c0_517] : memref<576x32xf32, #tpu.memory_space<vmem>>, vector<22x32xf32>
      %cst_518 = arith.constant dense<0.000000e+00> : vector<22x32xf32>
      %475 = tpu.matmul %474, %470, %cst_518 {dimension_numbers = #tpu.dot_dimension_numbers<[1], [0], [0], [1], [0, 0, 1, 1], [], []>} : vector<22x32xf32>, vector<32x32xf32>, vector<22x32xf32> -> vector<22x32xf32>
      %476 = arith.addf %463, %475 : vector<22x32xf32>
      %c24_i32_519 = arith.constant 24 : i32
      %477 = arith.addi %472, %c24_i32_519 : i32
      %478 = arith.index_cast %477 : i32 to index
      %c0_520 = arith.constant 0 : index
      %479 = vector.load %arg11[%478, %c0_520] : memref<576x32xf32, #tpu.memory_space<vmem>>, vector<22x32xf32>
      %cst_521 = arith.constant dense<0.000000e+00> : vector<22x32xf32>
      %480 = tpu.matmul %479, %470, %cst_521 {dimension_numbers = #tpu.dot_dimension_numbers<[1], [0], [0], [1], [0, 0, 1, 1], [], []>} : vector<22x32xf32>, vector<32x32xf32>, vector<22x32xf32> -> vector<22x32xf32>
      %481 = arith.addf %468, %480 : vector<22x32xf32>
      %c1_522 = arith.constant 1 : index
      %c1_523 = arith.constant 1 : index
      %c0_524 = arith.constant 0 : index
      %c0_525 = arith.constant 0 : index
      %482 = vector.load %arg4[%c1_522, %c1_523, %c0_524, %c0_525] : memref<3x3x32x32xf32, #tpu.memory_space<vmem>>, vector<1x1x32x32xf32>
      %483 = vector.shape_cast %482 : vector<1x1x32x32xf32> to vector<32x32xf32>
      %c24_i32_526 = arith.constant 24 : i32
      %484 = arith.addi %427, %c24_i32_526 : i32
      %c1_i32_527 = arith.constant 1 : i32
      %485 = arith.addi %484, %c1_i32_527 : i32
      %486 = arith.index_cast %485 : i32 to index
      %c0_528 = arith.constant 0 : index
      %487 = vector.load %arg11[%486, %c0_528] : memref<576x32xf32, #tpu.memory_space<vmem>>, vector<22x32xf32>
      %cst_529 = arith.constant dense<0.000000e+00> : vector<22x32xf32>
      %488 = tpu.matmul %487, %483, %cst_529 {dimension_numbers = #tpu.dot_dimension_numbers<[1], [0], [0], [1], [0, 0, 1, 1], [], []>} : vector<22x32xf32>, vector<32x32xf32>, vector<22x32xf32> -> vector<22x32xf32>
      %489 = arith.addf %476, %488 : vector<22x32xf32>
      %c24_i32_530 = arith.constant 24 : i32
      %490 = arith.addi %485, %c24_i32_530 : i32
      %491 = arith.index_cast %490 : i32 to index
      %c0_531 = arith.constant 0 : index
      %492 = vector.load %arg11[%491, %c0_531] : memref<576x32xf32, #tpu.memory_space<vmem>>, vector<22x32xf32>
      %cst_532 = arith.constant dense<0.000000e+00> : vector<22x32xf32>
      %493 = tpu.matmul %492, %483, %cst_532 {dimension_numbers = #tpu.dot_dimension_numbers<[1], [0], [0], [1], [0, 0, 1, 1], [], []>} : vector<22x32xf32>, vector<32x32xf32>, vector<22x32xf32> -> vector<22x32xf32>
      %494 = arith.addf %481, %493 : vector<22x32xf32>
      %c1_533 = arith.constant 1 : index
      %c2_534 = arith.constant 2 : index
      %c0_535 = arith.constant 0 : index
      %c0_536 = arith.constant 0 : index
      %495 = vector.load %arg4[%c1_533, %c2_534, %c0_535, %c0_536] : memref<3x3x32x32xf32, #tpu.memory_space<vmem>>, vector<1x1x32x32xf32>
      %496 = vector.shape_cast %495 : vector<1x1x32x32xf32> to vector<32x32xf32>
      %c24_i32_537 = arith.constant 24 : i32
      %497 = arith.addi %427, %c24_i32_537 : i32
      %c2_i32_538 = arith.constant 2 : i32
      %498 = arith.addi %497, %c2_i32_538 : i32
      %499 = arith.index_cast %498 : i32 to index
      %c0_539 = arith.constant 0 : index
      %500 = vector.load %arg11[%499, %c0_539] : memref<576x32xf32, #tpu.memory_space<vmem>>, vector<22x32xf32>
      %cst_540 = arith.constant dense<0.000000e+00> : vector<22x32xf32>
      %501 = tpu.matmul %500, %496, %cst_540 {dimension_numbers = #tpu.dot_dimension_numbers<[1], [0], [0], [1], [0, 0, 1, 1], [], []>} : vector<22x32xf32>, vector<32x32xf32>, vector<22x32xf32> -> vector<22x32xf32>
      %502 = arith.addf %489, %501 : vector<22x32xf32>
      %c24_i32_541 = arith.constant 24 : i32
      %503 = arith.addi %498, %c24_i32_541 : i32
      %504 = arith.index_cast %503 : i32 to index
      %c0_542 = arith.constant 0 : index
      %505 = vector.load %arg11[%504, %c0_542] : memref<576x32xf32, #tpu.memory_space<vmem>>, vector<22x32xf32>
      %cst_543 = arith.constant dense<0.000000e+00> : vector<22x32xf32>
      %506 = tpu.matmul %505, %496, %cst_543 {dimension_numbers = #tpu.dot_dimension_numbers<[1], [0], [0], [1], [0, 0, 1, 1], [], []>} : vector<22x32xf32>, vector<32x32xf32>, vector<22x32xf32> -> vector<22x32xf32>
      %507 = arith.addf %494, %506 : vector<22x32xf32>
      %c2_544 = arith.constant 2 : index
      %c0_545 = arith.constant 0 : index
      %c0_546 = arith.constant 0 : index
      %c0_547 = arith.constant 0 : index
      %508 = vector.load %arg4[%c2_544, %c0_545, %c0_546, %c0_547] : memref<3x3x32x32xf32, #tpu.memory_space<vmem>>, vector<1x1x32x32xf32>
      %509 = vector.shape_cast %508 : vector<1x1x32x32xf32> to vector<32x32xf32>
      %c48_i32 = arith.constant 48 : i32
      %510 = arith.addi %427, %c48_i32 : i32
      %c0_i32_548 = arith.constant 0 : i32
      %511 = arith.addi %510, %c0_i32_548 : i32
      %512 = arith.index_cast %511 : i32 to index
      %c0_549 = arith.constant 0 : index
      %513 = vector.load %arg11[%512, %c0_549] : memref<576x32xf32, #tpu.memory_space<vmem>>, vector<22x32xf32>
      %cst_550 = arith.constant dense<0.000000e+00> : vector<22x32xf32>
      %514 = tpu.matmul %513, %509, %cst_550 {dimension_numbers = #tpu.dot_dimension_numbers<[1], [0], [0], [1], [0, 0, 1, 1], [], []>} : vector<22x32xf32>, vector<32x32xf32>, vector<22x32xf32> -> vector<22x32xf32>
      %515 = arith.addf %502, %514 : vector<22x32xf32>
      %c24_i32_551 = arith.constant 24 : i32
      %516 = arith.addi %511, %c24_i32_551 : i32
      %517 = arith.index_cast %516 : i32 to index
      %c0_552 = arith.constant 0 : index
      %518 = vector.load %arg11[%517, %c0_552] : memref<576x32xf32, #tpu.memory_space<vmem>>, vector<22x32xf32>
      %cst_553 = arith.constant dense<0.000000e+00> : vector<22x32xf32>
      %519 = tpu.matmul %518, %509, %cst_553 {dimension_numbers = #tpu.dot_dimension_numbers<[1], [0], [0], [1], [0, 0, 1, 1], [], []>} : vector<22x32xf32>, vector<32x32xf32>, vector<22x32xf32> -> vector<22x32xf32>
      %520 = arith.addf %507, %519 : vector<22x32xf32>
      %c2_554 = arith.constant 2 : index
      %c1_555 = arith.constant 1 : index
      %c0_556 = arith.constant 0 : index
      %c0_557 = arith.constant 0 : index
      %521 = vector.load %arg4[%c2_554, %c1_555, %c0_556, %c0_557] : memref<3x3x32x32xf32, #tpu.memory_space<vmem>>, vector<1x1x32x32xf32>
      %522 = vector.shape_cast %521 : vector<1x1x32x32xf32> to vector<32x32xf32>
      %c48_i32_558 = arith.constant 48 : i32
      %523 = arith.addi %427, %c48_i32_558 : i32
      %c1_i32_559 = arith.constant 1 : i32
      %524 = arith.addi %523, %c1_i32_559 : i32
      %525 = arith.index_cast %524 : i32 to index
      %c0_560 = arith.constant 0 : index
      %526 = vector.load %arg11[%525, %c0_560] : memref<576x32xf32, #tpu.memory_space<vmem>>, vector<22x32xf32>
      %cst_561 = arith.constant dense<0.000000e+00> : vector<22x32xf32>
      %527 = tpu.matmul %526, %522, %cst_561 {dimension_numbers = #tpu.dot_dimension_numbers<[1], [0], [0], [1], [0, 0, 1, 1], [], []>} : vector<22x32xf32>, vector<32x32xf32>, vector<22x32xf32> -> vector<22x32xf32>
      %528 = arith.addf %515, %527 : vector<22x32xf32>
      %c24_i32_562 = arith.constant 24 : i32
      %529 = arith.addi %524, %c24_i32_562 : i32
      %530 = arith.index_cast %529 : i32 to index
      %c0_563 = arith.constant 0 : index
      %531 = vector.load %arg11[%530, %c0_563] : memref<576x32xf32, #tpu.memory_space<vmem>>, vector<22x32xf32>
      %cst_564 = arith.constant dense<0.000000e+00> : vector<22x32xf32>
      %532 = tpu.matmul %531, %522, %cst_564 {dimension_numbers = #tpu.dot_dimension_numbers<[1], [0], [0], [1], [0, 0, 1, 1], [], []>} : vector<22x32xf32>, vector<32x32xf32>, vector<22x32xf32> -> vector<22x32xf32>
      %533 = arith.addf %520, %532 : vector<22x32xf32>
      %c2_565 = arith.constant 2 : index
      %c2_566 = arith.constant 2 : index
      %c0_567 = arith.constant 0 : index
      %c0_568 = arith.constant 0 : index
      %534 = vector.load %arg4[%c2_565, %c2_566, %c0_567, %c0_568] : memref<3x3x32x32xf32, #tpu.memory_space<vmem>>, vector<1x1x32x32xf32>
      %535 = vector.shape_cast %534 : vector<1x1x32x32xf32> to vector<32x32xf32>
      %c48_i32_569 = arith.constant 48 : i32
      %536 = arith.addi %427, %c48_i32_569 : i32
      %c2_i32_570 = arith.constant 2 : i32
      %537 = arith.addi %536, %c2_i32_570 : i32
      %538 = arith.index_cast %537 : i32 to index
      %c0_571 = arith.constant 0 : index
      %539 = vector.load %arg11[%538, %c0_571] : memref<576x32xf32, #tpu.memory_space<vmem>>, vector<22x32xf32>
      %cst_572 = arith.constant dense<0.000000e+00> : vector<22x32xf32>
      %540 = tpu.matmul %539, %535, %cst_572 {dimension_numbers = #tpu.dot_dimension_numbers<[1], [0], [0], [1], [0, 0, 1, 1], [], []>} : vector<22x32xf32>, vector<32x32xf32>, vector<22x32xf32> -> vector<22x32xf32>
      %541 = arith.addf %528, %540 : vector<22x32xf32>
      %c24_i32_573 = arith.constant 24 : i32
      %542 = arith.addi %537, %c24_i32_573 : i32
      %543 = arith.index_cast %542 : i32 to index
      %c0_574 = arith.constant 0 : index
      %544 = vector.load %arg11[%543, %c0_574] : memref<576x32xf32, #tpu.memory_space<vmem>>, vector<22x32xf32>
      %cst_575 = arith.constant dense<0.000000e+00> : vector<22x32xf32>
      %545 = tpu.matmul %544, %535, %cst_575 {dimension_numbers = #tpu.dot_dimension_numbers<[1], [0], [0], [1], [0, 0, 1, 1], [], []>} : vector<22x32xf32>, vector<32x32xf32>, vector<22x32xf32> -> vector<22x32xf32>
      %546 = arith.addf %533, %545 : vector<22x32xf32>
      %547 = arith.maximumf %541, %546 : vector<22x32xf32>
      %548 = vector.broadcast %6 : vector<1x32xf32> to vector<22x32xf32>
      %549 = arith.addf %547, %548 : vector<22x32xf32>
      %cst_576 = arith.constant 0.000000e+00 : f32
      %550 = vector.broadcast %cst_576 : f32 to vector<22x32xf32>
      %551 = arith.maximumf %549, %550 : vector<22x32xf32>
      %c22_i32 = arith.constant 22 : i32
      %552 = arith.muli %425, %c22_i32 : i32
      %553 = arith.index_cast %552 : i32 to index
      %c0_577 = arith.constant 0 : index
      %554 = vector.load %arg15[%553, %c0_577] : memref<248x32xf32, #tpu.memory_space<vmem>>, vector<22x32xf32>
      tpu.vector_store %arg15[%553, %c0_577], %551 {strides = array<i32>} : memref<248x32xf32, #tpu.memory_space<vmem>>, vector<22x32xf32>,
    }
    %c11_i32_11 = arith.constant 11 : i32
    %c0_12 = arith.constant 0 : index
    %c0_13 = arith.constant 0 : index
    %8 = tpu.strided_load %arg15[%c0_12, %c0_13] {strides = array<i32: 2, 1>} : memref<248x32xf32, #tpu.memory_space<vmem>>, vector<121x32xf32>
    %c1_14 = arith.constant 1 : index
    %c0_15 = arith.constant 0 : index
    %9 = tpu.strided_load %arg15[%c1_14, %c0_15] {strides = array<i32: 2, 1>} : memref<248x32xf32, #tpu.memory_space<vmem>>, vector<121x32xf32>
    %10 = arith.maximumf %8, %9 : vector<121x32xf32>
    %c0_16 = arith.constant 0 : index
    %c0_17 = arith.constant 0 : index
    %11 = vector.load %arg12[%c0_16, %c0_17] : memref<128x32xf32, #tpu.memory_space<vmem>>, vector<121x32xf32>
    tpu.vector_store %arg12[%c0_16, %c0_17], %10 {strides = array<i32>} : memref<128x32xf32, #tpu.memory_space<vmem>>, vector<121x32xf32>,
    %c0_18 = arith.constant 0 : index
    %c0_19 = arith.constant 0 : index
    %12 = vector.load %arg7[%c0_18, %c0_19] : memref<1x64xf32, #tpu.memory_space<vmem>>, vector<1x64xf32>
    %cst = arith.constant 0.000000e+00 : f32
    %13 = vector.broadcast %cst : f32 to vector<8x64xf32>
    %cst_20 = arith.constant 0.000000e+00 : f32
    %14 = vector.broadcast %cst_20 : f32 to vector<8x64xf32>
    %c0_21 = arith.constant 0 : index
    %c0_22 = arith.constant 0 : index
    %c0_23 = arith.constant 0 : index
    %c0_24 = arith.constant 0 : index
    %15 = vector.load %arg6[%c0_21, %c0_22, %c0_23, %c0_24] : memref<3x3x32x64xf32, #tpu.memory_space<vmem>>, vector<1x1x32x64xf32>
    %16 = vector.shape_cast %15 : vector<1x1x32x64xf32> to vector<32x64xf32>
    %c0_25 = arith.constant 0 : index
    %c0_26 = arith.constant 0 : index
    %17 = vector.load %arg12[%c0_25, %c0_26] : memref<128x32xf32, #tpu.memory_space<vmem>>, vector<8x32xf32>
    %cst_27 = arith.constant dense<0.000000e+00> : vector<8x64xf32>
    %18 = tpu.matmul %17, %16, %cst_27 {dimension_numbers = #tpu.dot_dimension_numbers<[1], [0], [0], [1], [0, 0, 1, 1], [], []>} : vector<8x32xf32>, vector<32x64xf32>, vector<8x64xf32> -> vector<8x64xf32>
    %19 = arith.addf %13, %18 : vector<8x64xf32>
    %c11 = arith.constant 11 : index
    %c0_28 = arith.constant 0 : index
    %20 = vector.load %arg12[%c11, %c0_28] : memref<128x32xf32, #tpu.memory_space<vmem>>, vector<8x32xf32>
    %cst_29 = arith.constant dense<0.000000e+00> : vector<8x64xf32>
    %21 = tpu.matmul %20, %16, %cst_29 {dimension_numbers = #tpu.dot_dimension_numbers<[1], [0], [0], [1], [0, 0, 1, 1], [], []>} : vector<8x32xf32>, vector<32x64xf32>, vector<8x64xf32> -> vector<8x64xf32>
    %22 = arith.addf %14, %21 : vector<8x64xf32>
    %c0_30 = arith.constant 0 : index
    %c1_31 = arith.constant 1 : index
    %c0_32 = arith.constant 0 : index
    %c0_33 = arith.constant 0 : index
    %23 = vector.load %arg6[%c0_30, %c1_31, %c0_32, %c0_33] : memref<3x3x32x64xf32, #tpu.memory_space<vmem>>, vector<1x1x32x64xf32>
    %24 = vector.shape_cast %23 : vector<1x1x32x64xf32> to vector<32x64xf32>
    %c1_34 = arith.constant 1 : index
    %c0_35 = arith.constant 0 : index
    %25 = vector.load %arg12[%c1_34, %c0_35] : memref<128x32xf32, #tpu.memory_space<vmem>>, vector<8x32xf32>
    %cst_36 = arith.constant dense<0.000000e+00> : vector<8x64xf32>
    %26 = tpu.matmul %25, %24, %cst_36 {dimension_numbers = #tpu.dot_dimension_numbers<[1], [0], [0], [1], [0, 0, 1, 1], [], []>} : vector<8x32xf32>, vector<32x64xf32>, vector<8x64xf32> -> vector<8x64xf32>
    %27 = arith.addf %19, %26 : vector<8x64xf32>
    %c12 = arith.constant 12 : index
    %c0_37 = arith.constant 0 : index
    %28 = vector.load %arg12[%c12, %c0_37] : memref<128x32xf32, #tpu.memory_space<vmem>>, vector<8x32xf32>
    %cst_38 = arith.constant dense<0.000000e+00> : vector<8x64xf32>
    %29 = tpu.matmul %28, %24, %cst_38 {dimension_numbers = #tpu.dot_dimension_numbers<[1], [0], [0], [1], [0, 0, 1, 1], [], []>} : vector<8x32xf32>, vector<32x64xf32>, vector<8x64xf32> -> vector<8x64xf32>
    %30 = arith.addf %22, %29 : vector<8x64xf32>
    %c0_39 = arith.constant 0 : index
    %c2 = arith.constant 2 : index
    %c0_40 = arith.constant 0 : index
    %c0_41 = arith.constant 0 : index
    %31 = vector.load %arg6[%c0_39, %c2, %c0_40, %c0_41] : memref<3x3x32x64xf32, #tpu.memory_space<vmem>>, vector<1x1x32x64xf32>
    %32 = vector.shape_cast %31 : vector<1x1x32x64xf32> to vector<32x64xf32>
    %c2_42 = arith.constant 2 : index
    %c0_43 = arith.constant 0 : index
    %33 = vector.load %arg12[%c2_42, %c0_43] : memref<128x32xf32, #tpu.memory_space<vmem>>, vector<8x32xf32>
    %cst_44 = arith.constant dense<0.000000e+00> : vector<8x64xf32>
    %34 = tpu.matmul %33, %32, %cst_44 {dimension_numbers = #tpu.dot_dimension_numbers<[1], [0], [0], [1], [0, 0, 1, 1], [], []>} : vector<8x32xf32>, vector<32x64xf32>, vector<8x64xf32> -> vector<8x64xf32>
    %35 = arith.addf %27, %34 : vector<8x64xf32>
    %c13 = arith.constant 13 : index
    %c0_45 = arith.constant 0 : index
    %36 = vector.load %arg12[%c13, %c0_45] : memref<128x32xf32, #tpu.memory_space<vmem>>, vector<8x32xf32>
    %cst_46 = arith.constant dense<0.000000e+00> : vector<8x64xf32>
    %37 = tpu.matmul %36, %32, %cst_46 {dimension_numbers = #tpu.dot_dimension_numbers<[1], [0], [0], [1], [0, 0, 1, 1], [], []>} : vector<8x32xf32>, vector<32x64xf32>, vector<8x64xf32> -> vector<8x64xf32>
    %38 = arith.addf %30, %37 : vector<8x64xf32>
    %c1_47 = arith.constant 1 : index
    %c0_48 = arith.constant 0 : index
    %c0_49 = arith.constant 0 : index
    %c0_50 = arith.constant 0 : index
    %39 = vector.load %arg6[%c1_47, %c0_48, %c0_49, %c0_50] : memref<3x3x32x64xf32, #tpu.memory_space<vmem>>, vector<1x1x32x64xf32>
    %40 = vector.shape_cast %39 : vector<1x1x32x64xf32> to vector<32x64xf32>
    %c11_51 = arith.constant 11 : index
    %c0_52 = arith.constant 0 : index
    %41 = vector.load %arg12[%c11_51, %c0_52] : memref<128x32xf32, #tpu.memory_space<vmem>>, vector<8x32xf32>
    %cst_53 = arith.constant dense<0.000000e+00> : vector<8x64xf32>
    %42 = tpu.matmul %41, %40, %cst_53 {dimension_numbers = #tpu.dot_dimension_numbers<[1], [0], [0], [1], [0, 0, 1, 1], [], []>} : vector<8x32xf32>, vector<32x64xf32>, vector<8x64xf32> -> vector<8x64xf32>
    %43 = arith.addf %35, %42 : vector<8x64xf32>
    %c22 = arith.constant 22 : index
    %c0_54 = arith.constant 0 : index
    %44 = vector.load %arg12[%c22, %c0_54] : memref<128x32xf32, #tpu.memory_space<vmem>>, vector<8x32xf32>
    %cst_55 = arith.constant dense<0.000000e+00> : vector<8x64xf32>
    %45 = tpu.matmul %44, %40, %cst_55 {dimension_numbers = #tpu.dot_dimension_numbers<[1], [0], [0], [1], [0, 0, 1, 1], [], []>} : vector<8x32xf32>, vector<32x64xf32>, vector<8x64xf32> -> vector<8x64xf32>
    %46 = arith.addf %38, %45 : vector<8x64xf32>
    %c1_56 = arith.constant 1 : index
    %c1_57 = arith.constant 1 : index
    %c0_58 = arith.constant 0 : index
    %c0_59 = arith.constant 0 : index
    %47 = vector.load %arg6[%c1_56, %c1_57, %c0_58, %c0_59] : memref<3x3x32x64xf32, #tpu.memory_space<vmem>>, vector<1x1x32x64xf32>
    %48 = vector.shape_cast %47 : vector<1x1x32x64xf32> to vector<32x64xf32>
    %c12_60 = arith.constant 12 : index
    %c0_61 = arith.constant 0 : index
    %49 = vector.load %arg12[%c12_60, %c0_61] : memref<128x32xf32, #tpu.memory_space<vmem>>, vector<8x32xf32>
    %cst_62 = arith.constant dense<0.000000e+00> : vector<8x64xf32>
    %50 = tpu.matmul %49, %48, %cst_62 {dimension_numbers = #tpu.dot_dimension_numbers<[1], [0], [0], [1], [0, 0, 1, 1], [], []>} : vector<8x32xf32>, vector<32x64xf32>, vector<8x64xf32> -> vector<8x64xf32>
    %51 = arith.addf %43, %50 : vector<8x64xf32>
    %c23 = arith.constant 23 : index
    %c0_63 = arith.constant 0 : index
    %52 = vector.load %arg12[%c23, %c0_63] : memref<128x32xf32, #tpu.memory_space<vmem>>, vector<8x32xf32>
    %cst_64 = arith.constant dense<0.000000e+00> : vector<8x64xf32>
    %53 = tpu.matmul %52, %48, %cst_64 {dimension_numbers = #tpu.dot_dimension_numbers<[1], [0], [0], [1], [0, 0, 1, 1], [], []>} : vector<8x32xf32>, vector<32x64xf32>, vector<8x64xf32> -> vector<8x64xf32>
    %54 = arith.addf %46, %53 : vector<8x64xf32>
    %c1_65 = arith.constant 1 : index
    %c2_66 = arith.constant 2 : index
    %c0_67 = arith.constant 0 : index
    %c0_68 = arith.constant 0 : index
    %55 = vector.load %arg6[%c1_65, %c2_66, %c0_67, %c0_68] : memref<3x3x32x64xf32, #tpu.memory_space<vmem>>, vector<1x1x32x64xf32>
    %56 = vector.shape_cast %55 : vector<1x1x32x64xf32> to vector<32x64xf32>
    %c13_69 = arith.constant 13 : index
    %c0_70 = arith.constant 0 : index
    %57 = vector.load %arg12[%c13_69, %c0_70] : memref<128x32xf32, #tpu.memory_space<vmem>>, vector<8x32xf32>
    %cst_71 = arith.constant dense<0.000000e+00> : vector<8x64xf32>
    %58 = tpu.matmul %57, %56, %cst_71 {dimension_numbers = #tpu.dot_dimension_numbers<[1], [0], [0], [1], [0, 0, 1, 1], [], []>} : vector<8x32xf32>, vector<32x64xf32>, vector<8x64xf32> -> vector<8x64xf32>
    %59 = arith.addf %51, %58 : vector<8x64xf32>
    %c24 = arith.constant 24 : index
    %c0_72 = arith.constant 0 : index
    %60 = vector.load %arg12[%c24, %c0_72] : memref<128x32xf32, #tpu.memory_space<vmem>>, vector<8x32xf32>
    %cst_73 = arith.constant dense<0.000000e+00> : vector<8x64xf32>
    %61 = tpu.matmul %60, %56, %cst_73 {dimension_numbers = #tpu.dot_dimension_numbers<[1], [0], [0], [1], [0, 0, 1, 1], [], []>} : vector<8x32xf32>, vector<32x64xf32>, vector<8x64xf32> -> vector<8x64xf32>
    %62 = arith.addf %54, %61 : vector<8x64xf32>
    %c2_74 = arith.constant 2 : index
    %c0_75 = arith.constant 0 : index
    %c0_76 = arith.constant 0 : index
    %c0_77 = arith.constant 0 : index
    %63 = vector.load %arg6[%c2_74, %c0_75, %c0_76, %c0_77] : memref<3x3x32x64xf32, #tpu.memory_space<vmem>>, vector<1x1x32x64xf32>
    %64 = vector.shape_cast %63 : vector<1x1x32x64xf32> to vector<32x64xf32>
    %c22_78 = arith.constant 22 : index
    %c0_79 = arith.constant 0 : index
    %65 = vector.load %arg12[%c22_78, %c0_79] : memref<128x32xf32, #tpu.memory_space<vmem>>, vector<8x32xf32>
    %cst_80 = arith.constant dense<0.000000e+00> : vector<8x64xf32>
    %66 = tpu.matmul %65, %64, %cst_80 {dimension_numbers = #tpu.dot_dimension_numbers<[1], [0], [0], [1], [0, 0, 1, 1], [], []>} : vector<8x32xf32>, vector<32x64xf32>, vector<8x64xf32> -> vector<8x64xf32>
    %67 = arith.addf %59, %66 : vector<8x64xf32>
    %c33 = arith.constant 33 : index
    %c0_81 = arith.constant 0 : index
    %68 = vector.load %arg12[%c33, %c0_81] : memref<128x32xf32, #tpu.memory_space<vmem>>, vector<8x32xf32>
    %cst_82 = arith.constant dense<0.000000e+00> : vector<8x64xf32>
    %69 = tpu.matmul %68, %64, %cst_82 {dimension_numbers = #tpu.dot_dimension_numbers<[1], [0], [0], [1], [0, 0, 1, 1], [], []>} : vector<8x32xf32>, vector<32x64xf32>, vector<8x64xf32> -> vector<8x64xf32>
    %70 = arith.addf %62, %69 : vector<8x64xf32>
    %c2_83 = arith.constant 2 : index
    %c1_84 = arith.constant 1 : index
    %c0_85 = arith.constant 0 : index
    %c0_86 = arith.constant 0 : index
    %71 = vector.load %arg6[%c2_83, %c1_84, %c0_85, %c0_86] : memref<3x3x32x64xf32, #tpu.memory_space<vmem>>, vector<1x1x32x64xf32>
    %72 = vector.shape_cast %71 : vector<1x1x32x64xf32> to vector<32x64xf32>
    %c23_87 = arith.constant 23 : index
    %c0_88 = arith.constant 0 : index
    %73 = vector.load %arg12[%c23_87, %c0_88] : memref<128x32xf32, #tpu.memory_space<vmem>>, vector<8x32xf32>
    %cst_89 = arith.constant dense<0.000000e+00> : vector<8x64xf32>
    %74 = tpu.matmul %73, %72, %cst_89 {dimension_numbers = #tpu.dot_dimension_numbers<[1], [0], [0], [1], [0, 0, 1, 1], [], []>} : vector<8x32xf32>, vector<32x64xf32>, vector<8x64xf32> -> vector<8x64xf32>
    %75 = arith.addf %67, %74 : vector<8x64xf32>
    %c34 = arith.constant 34 : index
    %c0_90 = arith.constant 0 : index
    %76 = vector.load %arg12[%c34, %c0_90] : memref<128x32xf32, #tpu.memory_space<vmem>>, vector<8x32xf32>
    %cst_91 = arith.constant dense<0.000000e+00> : vector<8x64xf32>
    %77 = tpu.matmul %76, %72, %cst_91 {dimension_numbers = #tpu.dot_dimension_numbers<[1], [0], [0], [1], [0, 0, 1, 1], [], []>} : vector<8x32xf32>, vector<32x64xf32>, vector<8x64xf32> -> vector<8x64xf32>
    %78 = arith.addf %70, %77 : vector<8x64xf32>
    %c2_92 = arith.constant 2 : index
    %c2_93 = arith.constant 2 : index
    %c0_94 = arith.constant 0 : index
    %c0_95 = arith.constant 0 : index
    %79 = vector.load %arg6[%c2_92, %c2_93, %c0_94, %c0_95] : memref<3x3x32x64xf32, #tpu.memory_space<vmem>>, vector<1x1x32x64xf32>
    %80 = vector.shape_cast %79 : vector<1x1x32x64xf32> to vector<32x64xf32>
    %c24_96 = arith.constant 24 : index
    %c0_97 = arith.constant 0 : index
    %81 = vector.load %arg12[%c24_96, %c0_97] : memref<128x32xf32, #tpu.memory_space<vmem>>, vector<8x32xf32>
    %cst_98 = arith.constant dense<0.000000e+00> : vector<8x64xf32>
    %82 = tpu.matmul %81, %80, %cst_98 {dimension_numbers = #tpu.dot_dimension_numbers<[1], [0], [0], [1], [0, 0, 1, 1], [], []>} : vector<8x32xf32>, vector<32x64xf32>, vector<8x64xf32> -> vector<8x64xf32>
    %83 = arith.addf %75, %82 : vector<8x64xf32>
    %c35 = arith.constant 35 : index
    %c0_99 = arith.constant 0 : index
    %84 = vector.load %arg12[%c35, %c0_99] : memref<128x32xf32, #tpu.memory_space<vmem>>, vector<8x32xf32>
    %cst_100 = arith.constant dense<0.000000e+00> : vector<8x64xf32>
    %85 = tpu.matmul %84, %80, %cst_100 {dimension_numbers = #tpu.dot_dimension_numbers<[1], [0], [0], [1], [0, 0, 1, 1], [], []>} : vector<8x32xf32>, vector<32x64xf32>, vector<8x64xf32> -> vector<8x64xf32>
    %86 = arith.addf %78, %85 : vector<8x64xf32>
    %87 = arith.maximumf %83, %86 : vector<8x64xf32>
    %88 = vector.broadcast %12 : vector<1x64xf32> to vector<8x64xf32>
    %89 = arith.addf %87, %88 : vector<8x64xf32>
    %cst_101 = arith.constant 0.000000e+00 : f32
    %90 = vector.broadcast %cst_101 : f32 to vector<8x64xf32>
    %91 = arith.maximumf %89, %90 : vector<8x64xf32>
    %c0_102 = arith.constant 0 : index
    %c0_103 = arith.constant 0 : index
    %92 = vector.load %arg16[%c0_102, %c0_103] : memref<32x64xf32, #tpu.memory_space<vmem>>, vector<8x64xf32>
    tpu.vector_store %arg16[%c0_102, %c0_103], %91 {strides = array<i32>} : memref<32x64xf32, #tpu.memory_space<vmem>>, vector<8x64xf32>,
    %cst_104 = arith.constant 0.000000e+00 : f32
    %93 = vector.broadcast %cst_104 : f32 to vector<8x64xf32>
    %cst_105 = arith.constant 0.000000e+00 : f32
    %94 = vector.broadcast %cst_105 : f32 to vector<8x64xf32>
    %c0_106 = arith.constant 0 : index
    %c0_107 = arith.constant 0 : index
    %c0_108 = arith.constant 0 : index
    %c0_109 = arith.constant 0 : index
    %95 = vector.load %arg6[%c0_106, %c0_107, %c0_108, %c0_109] : memref<3x3x32x64xf32, #tpu.memory_space<vmem>>, vector<1x1x32x64xf32>
    %96 = vector.shape_cast %95 : vector<1x1x32x64xf32> to vector<32x64xf32>
    %c22_110 = arith.constant 22 : index
    %c0_111 = arith.constant 0 : index
    %97 = vector.load %arg12[%c22_110, %c0_111] : memref<128x32xf32, #tpu.memory_space<vmem>>, vector<8x32xf32>
    %cst_112 = arith.constant dense<0.000000e+00> : vector<8x64xf32>
    %98 = tpu.matmul %97, %96, %cst_112 {dimension_numbers = #tpu.dot_dimension_numbers<[1], [0], [0], [1], [0, 0, 1, 1], [], []>} : vector<8x32xf32>, vector<32x64xf32>, vector<8x64xf32> -> vector<8x64xf32>
    %99 = arith.addf %93, %98 : vector<8x64xf32>
    %c33_113 = arith.constant 33 : index
    %c0_114 = arith.constant 0 : index
    %100 = vector.load %arg12[%c33_113, %c0_114] : memref<128x32xf32, #tpu.memory_space<vmem>>, vector<8x32xf32>
    %cst_115 = arith.constant dense<0.000000e+00> : vector<8x64xf32>
    %101 = tpu.matmul %100, %96, %cst_115 {dimension_numbers = #tpu.dot_dimension_numbers<[1], [0], [0], [1], [0, 0, 1, 1], [], []>} : vector<8x32xf32>, vector<32x64xf32>, vector<8x64xf32> -> vector<8x64xf32>
    %102 = arith.addf %94, %101 : vector<8x64xf32>
    %c0_116 = arith.constant 0 : index
    %c1_117 = arith.constant 1 : index
    %c0_118 = arith.constant 0 : index
    %c0_119 = arith.constant 0 : index
    %103 = vector.load %arg6[%c0_116, %c1_117, %c0_118, %c0_119] : memref<3x3x32x64xf32, #tpu.memory_space<vmem>>, vector<1x1x32x64xf32>
    %104 = vector.shape_cast %103 : vector<1x1x32x64xf32> to vector<32x64xf32>
    %c23_120 = arith.constant 23 : index
    %c0_121 = arith.constant 0 : index
    %105 = vector.load %arg12[%c23_120, %c0_121] : memref<128x32xf32, #tpu.memory_space<vmem>>, vector<8x32xf32>
    %cst_122 = arith.constant dense<0.000000e+00> : vector<8x64xf32>
    %106 = tpu.matmul %105, %104, %cst_122 {dimension_numbers = #tpu.dot_dimension_numbers<[1], [0], [0], [1], [0, 0, 1, 1], [], []>} : vector<8x32xf32>, vector<32x64xf32>, vector<8x64xf32> -> vector<8x64xf32>
    %107 = arith.addf %99, %106 : vector<8x64xf32>
    %c34_123 = arith.constant 34 : index
    %c0_124 = arith.constant 0 : index
    %108 = vector.load %arg12[%c34_123, %c0_124] : memref<128x32xf32, #tpu.memory_space<vmem>>, vector<8x32xf32>
    %cst_125 = arith.constant dense<0.000000e+00> : vector<8x64xf32>
    %109 = tpu.matmul %108, %104, %cst_125 {dimension_numbers = #tpu.dot_dimension_numbers<[1], [0], [0], [1], [0, 0, 1, 1], [], []>} : vector<8x32xf32>, vector<32x64xf32>, vector<8x64xf32> -> vector<8x64xf32>
    %110 = arith.addf %102, %109 : vector<8x64xf32>
    %c0_126 = arith.constant 0 : index
    %c2_127 = arith.constant 2 : index
    %c0_128 = arith.constant 0 : index
    %c0_129 = arith.constant 0 : index
    %111 = vector.load %arg6[%c0_126, %c2_127, %c0_128, %c0_129] : memref<3x3x32x64xf32, #tpu.memory_space<vmem>>, vector<1x1x32x64xf32>
    %112 = vector.shape_cast %111 : vector<1x1x32x64xf32> to vector<32x64xf32>
    %c24_130 = arith.constant 24 : index
    %c0_131 = arith.constant 0 : index
    %113 = vector.load %arg12[%c24_130, %c0_131] : memref<128x32xf32, #tpu.memory_space<vmem>>, vector<8x32xf32>
    %cst_132 = arith.constant dense<0.000000e+00> : vector<8x64xf32>
    %114 = tpu.matmul %113, %112, %cst_132 {dimension_numbers = #tpu.dot_dimension_numbers<[1], [0], [0], [1], [0, 0, 1, 1], [], []>} : vector<8x32xf32>, vector<32x64xf32>, vector<8x64xf32> -> vector<8x64xf32>
    %115 = arith.addf %107, %114 : vector<8x64xf32>
    %c35_133 = arith.constant 35 : index
    %c0_134 = arith.constant 0 : index
    %116 = vector.load %arg12[%c35_133, %c0_134] : memref<128x32xf32, #tpu.memory_space<vmem>>, vector<8x32xf32>
    %cst_135 = arith.constant dense<0.000000e+00> : vector<8x64xf32>
    %117 = tpu.matmul %116, %112, %cst_135 {dimension_numbers = #tpu.dot_dimension_numbers<[1], [0], [0], [1], [0, 0, 1, 1], [], []>} : vector<8x32xf32>, vector<32x64xf32>, vector<8x64xf32> -> vector<8x64xf32>
    %118 = arith.addf %110, %117 : vector<8x64xf32>
    %c1_136 = arith.constant 1 : index
    %c0_137 = arith.constant 0 : index
    %c0_138 = arith.constant 0 : index
    %c0_139 = arith.constant 0 : index
    %119 = vector.load %arg6[%c1_136, %c0_137, %c0_138, %c0_139] : memref<3x3x32x64xf32, #tpu.memory_space<vmem>>, vector<1x1x32x64xf32>
    %120 = vector.shape_cast %119 : vector<1x1x32x64xf32> to vector<32x64xf32>
    %c33_140 = arith.constant 33 : index
    %c0_141 = arith.constant 0 : index
    %121 = vector.load %arg12[%c33_140, %c0_141] : memref<128x32xf32, #tpu.memory_space<vmem>>, vector<8x32xf32>
    %cst_142 = arith.constant dense<0.000000e+00> : vector<8x64xf32>
    %122 = tpu.matmul %121, %120, %cst_142 {dimension_numbers = #tpu.dot_dimension_numbers<[1], [0], [0], [1], [0, 0, 1, 1], [], []>} : vector<8x32xf32>, vector<32x64xf32>, vector<8x64xf32> -> vector<8x64xf32>
    %123 = arith.addf %115, %122 : vector<8x64xf32>
    %c44 = arith.constant 44 : index
    %c0_143 = arith.constant 0 : index
    %124 = vector.load %arg12[%c44, %c0_143] : memref<128x32xf32, #tpu.memory_space<vmem>>, vector<8x32xf32>
    %cst_144 = arith.constant dense<0.000000e+00> : vector<8x64xf32>
    %125 = tpu.matmul %124, %120, %cst_144 {dimension_numbers = #tpu.dot_dimension_numbers<[1], [0], [0], [1], [0, 0, 1, 1], [], []>} : vector<8x32xf32>, vector<32x64xf32>, vector<8x64xf32> -> vector<8x64xf32>
    %126 = arith.addf %118, %125 : vector<8x64xf32>
    %c1_145 = arith.constant 1 : index
    %c1_146 = arith.constant 1 : index
    %c0_147 = arith.constant 0 : index
    %c0_148 = arith.constant 0 : index
    %127 = vector.load %arg6[%c1_145, %c1_146, %c0_147, %c0_148] : memref<3x3x32x64xf32, #tpu.memory_space<vmem>>, vector<1x1x32x64xf32>
    %128 = vector.shape_cast %127 : vector<1x1x32x64xf32> to vector<32x64xf32>
    %c34_149 = arith.constant 34 : index
    %c0_150 = arith.constant 0 : index
    %129 = vector.load %arg12[%c34_149, %c0_150] : memref<128x32xf32, #tpu.memory_space<vmem>>, vector<8x32xf32>
    %cst_151 = arith.constant dense<0.000000e+00> : vector<8x64xf32>
    %130 = tpu.matmul %129, %128, %cst_151 {dimension_numbers = #tpu.dot_dimension_numbers<[1], [0], [0], [1], [0, 0, 1, 1], [], []>} : vector<8x32xf32>, vector<32x64xf32>, vector<8x64xf32> -> vector<8x64xf32>
    %131 = arith.addf %123, %130 : vector<8x64xf32>
    %c45 = arith.constant 45 : index
    %c0_152 = arith.constant 0 : index
    %132 = vector.load %arg12[%c45, %c0_152] : memref<128x32xf32, #tpu.memory_space<vmem>>, vector<8x32xf32>
    %cst_153 = arith.constant dense<0.000000e+00> : vector<8x64xf32>
    %133 = tpu.matmul %132, %128, %cst_153 {dimension_numbers = #tpu.dot_dimension_numbers<[1], [0], [0], [1], [0, 0, 1, 1], [], []>} : vector<8x32xf32>, vector<32x64xf32>, vector<8x64xf32> -> vector<8x64xf32>
    %134 = arith.addf %126, %133 : vector<8x64xf32>
    %c1_154 = arith.constant 1 : index
    %c2_155 = arith.constant 2 : index
    %c0_156 = arith.constant 0 : index
    %c0_157 = arith.constant 0 : index
    %135 = vector.load %arg6[%c1_154, %c2_155, %c0_156, %c0_157] : memref<3x3x32x64xf32, #tpu.memory_space<vmem>>, vector<1x1x32x64xf32>
    %136 = vector.shape_cast %135 : vector<1x1x32x64xf32> to vector<32x64xf32>
    %c35_158 = arith.constant 35 : index
    %c0_159 = arith.constant 0 : index
    %137 = vector.load %arg12[%c35_158, %c0_159] : memref<128x32xf32, #tpu.memory_space<vmem>>, vector<8x32xf32>
    %cst_160 = arith.constant dense<0.000000e+00> : vector<8x64xf32>
    %138 = tpu.matmul %137, %136, %cst_160 {dimension_numbers = #tpu.dot_dimension_numbers<[1], [0], [0], [1], [0, 0, 1, 1], [], []>} : vector<8x32xf32>, vector<32x64xf32>, vector<8x64xf32> -> vector<8x64xf32>
    %139 = arith.addf %131, %138 : vector<8x64xf32>
    %c46 = arith.constant 46 : index
    %c0_161 = arith.constant 0 : index
    %140 = vector.load %arg12[%c46, %c0_161] : memref<128x32xf32, #tpu.memory_space<vmem>>, vector<8x32xf32>
    %cst_162 = arith.constant dense<0.000000e+00> : vector<8x64xf32>
    %141 = tpu.matmul %140, %136, %cst_162 {dimension_numbers = #tpu.dot_dimension_numbers<[1], [0], [0], [1], [0, 0, 1, 1], [], []>} : vector<8x32xf32>, vector<32x64xf32>, vector<8x64xf32> -> vector<8x64xf32>
    %142 = arith.addf %134, %141 : vector<8x64xf32>
    %c2_163 = arith.constant 2 : index
    %c0_164 = arith.constant 0 : index
    %c0_165 = arith.constant 0 : index
    %c0_166 = arith.constant 0 : index
    %143 = vector.load %arg6[%c2_163, %c0_164, %c0_165, %c0_166] : memref<3x3x32x64xf32, #tpu.memory_space<vmem>>, vector<1x1x32x64xf32>
    %144 = vector.shape_cast %143 : vector<1x1x32x64xf32> to vector<32x64xf32>
    %c44_167 = arith.constant 44 : index
    %c0_168 = arith.constant 0 : index
    %145 = vector.load %arg12[%c44_167, %c0_168] : memref<128x32xf32, #tpu.memory_space<vmem>>, vector<8x32xf32>
    %cst_169 = arith.constant dense<0.000000e+00> : vector<8x64xf32>
    %146 = tpu.matmul %145, %144, %cst_169 {dimension_numbers = #tpu.dot_dimension_numbers<[1], [0], [0], [1], [0, 0, 1, 1], [], []>} : vector<8x32xf32>, vector<32x64xf32>, vector<8x64xf32> -> vector<8x64xf32>
    %147 = arith.addf %139, %146 : vector<8x64xf32>
    %c55 = arith.constant 55 : index
    %c0_170 = arith.constant 0 : index
    %148 = vector.load %arg12[%c55, %c0_170] : memref<128x32xf32, #tpu.memory_space<vmem>>, vector<8x32xf32>
    %cst_171 = arith.constant dense<0.000000e+00> : vector<8x64xf32>
    %149 = tpu.matmul %148, %144, %cst_171 {dimension_numbers = #tpu.dot_dimension_numbers<[1], [0], [0], [1], [0, 0, 1, 1], [], []>} : vector<8x32xf32>, vector<32x64xf32>, vector<8x64xf32> -> vector<8x64xf32>
    %150 = arith.addf %142, %149 : vector<8x64xf32>
    %c2_172 = arith.constant 2 : index
    %c1_173 = arith.constant 1 : index
    %c0_174 = arith.constant 0 : index
    %c0_175 = arith.constant 0 : index
    %151 = vector.load %arg6[%c2_172, %c1_173, %c0_174, %c0_175] : memref<3x3x32x64xf32, #tpu.memory_space<vmem>>, vector<1x1x32x64xf32>
    %152 = vector.shape_cast %151 : vector<1x1x32x64xf32> to vector<32x64xf32>
    %c45_176 = arith.constant 45 : index
    %c0_177 = arith.constant 0 : index
    %153 = vector.load %arg12[%c45_176, %c0_177] : memref<128x32xf32, #tpu.memory_space<vmem>>, vector<8x32xf32>
    %cst_178 = arith.constant dense<0.000000e+00> : vector<8x64xf32>
    %154 = tpu.matmul %153, %152, %cst_178 {dimension_numbers = #tpu.dot_dimension_numbers<[1], [0], [0], [1], [0, 0, 1, 1], [], []>} : vector<8x32xf32>, vector<32x64xf32>, vector<8x64xf32> -> vector<8x64xf32>
    %155 = arith.addf %147, %154 : vector<8x64xf32>
    %c56 = arith.constant 56 : index
    %c0_179 = arith.constant 0 : index
    %156 = vector.load %arg12[%c56, %c0_179] : memref<128x32xf32, #tpu.memory_space<vmem>>, vector<8x32xf32>
    %cst_180 = arith.constant dense<0.000000e+00> : vector<8x64xf32>
    %157 = tpu.matmul %156, %152, %cst_180 {dimension_numbers = #tpu.dot_dimension_numbers<[1], [0], [0], [1], [0, 0, 1, 1], [], []>} : vector<8x32xf32>, vector<32x64xf32>, vector<8x64xf32> -> vector<8x64xf32>
    %158 = arith.addf %150, %157 : vector<8x64xf32>
    %c2_181 = arith.constant 2 : index
    %c2_182 = arith.constant 2 : index
    %c0_183 = arith.constant 0 : index
    %c0_184 = arith.constant 0 : index
    %159 = vector.load %arg6[%c2_181, %c2_182, %c0_183, %c0_184] : memref<3x3x32x64xf32, #tpu.memory_space<vmem>>, vector<1x1x32x64xf32>
    %160 = vector.shape_cast %159 : vector<1x1x32x64xf32> to vector<32x64xf32>
    %c46_185 = arith.constant 46 : index
    %c0_186 = arith.constant 0 : index
    %161 = vector.load %arg12[%c46_185, %c0_186] : memref<128x32xf32, #tpu.memory_space<vmem>>, vector<8x32xf32>
    %cst_187 = arith.constant dense<0.000000e+00> : vector<8x64xf32>
    %162 = tpu.matmul %161, %160, %cst_187 {dimension_numbers = #tpu.dot_dimension_numbers<[1], [0], [0], [1], [0, 0, 1, 1], [], []>} : vector<8x32xf32>, vector<32x64xf32>, vector<8x64xf32> -> vector<8x64xf32>
    %163 = arith.addf %155, %162 : vector<8x64xf32>
    %c57 = arith.constant 57 : index
    %c0_188 = arith.constant 0 : index
    %164 = vector.load %arg12[%c57, %c0_188] : memref<128x32xf32, #tpu.memory_space<vmem>>, vector<8x32xf32>
    %cst_189 = arith.constant dense<0.000000e+00> : vector<8x64xf32>
    %165 = tpu.matmul %164, %160, %cst_189 {dimension_numbers = #tpu.dot_dimension_numbers<[1], [0], [0], [1], [0, 0, 1, 1], [], []>} : vector<8x32xf32>, vector<32x64xf32>, vector<8x64xf32> -> vector<8x64xf32>
    %166 = arith.addf %158, %165 : vector<8x64xf32>
    %167 = arith.maximumf %163, %166 : vector<8x64xf32>
    %168 = vector.broadcast %12 : vector<1x64xf32> to vector<8x64xf32>
    %169 = arith.addf %167, %168 : vector<8x64xf32>
    %cst_190 = arith.constant 0.000000e+00 : f32
    %170 = vector.broadcast %cst_190 : f32 to vector<8x64xf32>
    %171 = arith.maximumf %169, %170 : vector<8x64xf32>
    %c8 = arith.constant 8 : index
    %c0_191 = arith.constant 0 : index
    %172 = vector.load %arg16[%c8, %c0_191] : memref<32x64xf32, #tpu.memory_space<vmem>>, vector<8x64xf32>
    tpu.vector_store %arg16[%c8, %c0_191], %171 {strides = array<i32>} : memref<32x64xf32, #tpu.memory_space<vmem>>, vector<8x64xf32>,
    %cst_192 = arith.constant 0.000000e+00 : f32
    %173 = vector.broadcast %cst_192 : f32 to vector<8x64xf32>
    %cst_193 = arith.constant 0.000000e+00 : f32
    %174 = vector.broadcast %cst_193 : f32 to vector<8x64xf32>
    %c0_194 = arith.constant 0 : index
    %c0_195 = arith.constant 0 : index
    %c0_196 = arith.constant 0 : index
    %c0_197 = arith.constant 0 : index
    %175 = vector.load %arg6[%c0_194, %c0_195, %c0_196, %c0_197] : memref<3x3x32x64xf32, #tpu.memory_space<vmem>>, vector<1x1x32x64xf32>
    %176 = vector.shape_cast %175 : vector<1x1x32x64xf32> to vector<32x64xf32>
    %c44_198 = arith.constant 44 : index
    %c0_199 = arith.constant 0 : index
    %177 = vector.load %arg12[%c44_198, %c0_199] : memref<128x32xf32, #tpu.memory_space<vmem>>, vector<8x32xf32>
    %cst_200 = arith.constant dense<0.000000e+00> : vector<8x64xf32>
    %178 = tpu.matmul %177, %176, %cst_200 {dimension_numbers = #tpu.dot_dimension_numbers<[1], [0], [0], [1], [0, 0, 1, 1], [], []>} : vector<8x32xf32>, vector<32x64xf32>, vector<8x64xf32> -> vector<8x64xf32>
    %179 = arith.addf %173, %178 : vector<8x64xf32>
    %c55_201 = arith.constant 55 : index
    %c0_202 = arith.constant 0 : index
    %180 = vector.load %arg12[%c55_201, %c0_202] : memref<128x32xf32, #tpu.memory_space<vmem>>, vector<8x32xf32>
    %cst_203 = arith.constant dense<0.000000e+00> : vector<8x64xf32>
    %181 = tpu.matmul %180, %176, %cst_203 {dimension_numbers = #tpu.dot_dimension_numbers<[1], [0], [0], [1], [0, 0, 1, 1], [], []>} : vector<8x32xf32>, vector<32x64xf32>, vector<8x64xf32> -> vector<8x64xf32>
    %182 = arith.addf %174, %181 : vector<8x64xf32>
    %c0_204 = arith.constant 0 : index
    %c1_205 = arith.constant 1 : index
    %c0_206 = arith.constant 0 : index
    %c0_207 = arith.constant 0 : index
    %183 = vector.load %arg6[%c0_204, %c1_205, %c0_206, %c0_207] : memref<3x3x32x64xf32, #tpu.memory_space<vmem>>, vector<1x1x32x64xf32>
    %184 = vector.shape_cast %183 : vector<1x1x32x64xf32> to vector<32x64xf32>
    %c45_208 = arith.constant 45 : index
    %c0_209 = arith.constant 0 : index
    %185 = vector.load %arg12[%c45_208, %c0_209] : memref<128x32xf32, #tpu.memory_space<vmem>>, vector<8x32xf32>
    %cst_210 = arith.constant dense<0.000000e+00> : vector<8x64xf32>
    %186 = tpu.matmul %185, %184, %cst_210 {dimension_numbers = #tpu.dot_dimension_numbers<[1], [0], [0], [1], [0, 0, 1, 1], [], []>} : vector<8x32xf32>, vector<32x64xf32>, vector<8x64xf32> -> vector<8x64xf32>
    %187 = arith.addf %179, %186 : vector<8x64xf32>
    %c56_211 = arith.constant 56 : index
    %c0_212 = arith.constant 0 : index
    %188 = vector.load %arg12[%c56_211, %c0_212] : memref<128x32xf32, #tpu.memory_space<vmem>>, vector<8x32xf32>
    %cst_213 = arith.constant dense<0.000000e+00> : vector<8x64xf32>
    %189 = tpu.matmul %188, %184, %cst_213 {dimension_numbers = #tpu.dot_dimension_numbers<[1], [0], [0], [1], [0, 0, 1, 1], [], []>} : vector<8x32xf32>, vector<32x64xf32>, vector<8x64xf32> -> vector<8x64xf32>
    %190 = arith.addf %182, %189 : vector<8x64xf32>
    %c0_214 = arith.constant 0 : index
    %c2_215 = arith.constant 2 : index
    %c0_216 = arith.constant 0 : index
    %c0_217 = arith.constant 0 : index
    %191 = vector.load %arg6[%c0_214, %c2_215, %c0_216, %c0_217] : memref<3x3x32x64xf32, #tpu.memory_space<vmem>>, vector<1x1x32x64xf32>
    %192 = vector.shape_cast %191 : vector<1x1x32x64xf32> to vector<32x64xf32>
    %c46_218 = arith.constant 46 : index
    %c0_219 = arith.constant 0 : index
    %193 = vector.load %arg12[%c46_218, %c0_219] : memref<128x32xf32, #tpu.memory_space<vmem>>, vector<8x32xf32>
    %cst_220 = arith.constant dense<0.000000e+00> : vector<8x64xf32>
    %194 = tpu.matmul %193, %192, %cst_220 {dimension_numbers = #tpu.dot_dimension_numbers<[1], [0], [0], [1], [0, 0, 1, 1], [], []>} : vector<8x32xf32>, vector<32x64xf32>, vector<8x64xf32> -> vector<8x64xf32>
    %195 = arith.addf %187, %194 : vector<8x64xf32>
    %c57_221 = arith.constant 57 : index
    %c0_222 = arith.constant 0 : index
    %196 = vector.load %arg12[%c57_221, %c0_222] : memref<128x32xf32, #tpu.memory_space<vmem>>, vector<8x32xf32>
    %cst_223 = arith.constant dense<0.000000e+00> : vector<8x64xf32>
    %197 = tpu.matmul %196, %192, %cst_223 {dimension_numbers = #tpu.dot_dimension_numbers<[1], [0], [0], [1], [0, 0, 1, 1], [], []>} : vector<8x32xf32>, vector<32x64xf32>, vector<8x64xf32> -> vector<8x64xf32>
    %198 = arith.addf %190, %197 : vector<8x64xf32>
    %c1_224 = arith.constant 1 : index
    %c0_225 = arith.constant 0 : index
    %c0_226 = arith.constant 0 : index
    %c0_227 = arith.constant 0 : index
    %199 = vector.load %arg6[%c1_224, %c0_225, %c0_226, %c0_227] : memref<3x3x32x64xf32, #tpu.memory_space<vmem>>, vector<1x1x32x64xf32>
    %200 = vector.shape_cast %199 : vector<1x1x32x64xf32> to vector<32x64xf32>
    %c55_228 = arith.constant 55 : index
    %c0_229 = arith.constant 0 : index
    %201 = vector.load %arg12[%c55_228, %c0_229] : memref<128x32xf32, #tpu.memory_space<vmem>>, vector<8x32xf32>
    %cst_230 = arith.constant dense<0.000000e+00> : vector<8x64xf32>
    %202 = tpu.matmul %201, %200, %cst_230 {dimension_numbers = #tpu.dot_dimension_numbers<[1], [0], [0], [1], [0, 0, 1, 1], [], []>} : vector<8x32xf32>, vector<32x64xf32>, vector<8x64xf32> -> vector<8x64xf32>
    %203 = arith.addf %195, %202 : vector<8x64xf32>
    %c66 = arith.constant 66 : index
    %c0_231 = arith.constant 0 : index
    %204 = vector.load %arg12[%c66, %c0_231] : memref<128x32xf32, #tpu.memory_space<vmem>>, vector<8x32xf32>
    %cst_232 = arith.constant dense<0.000000e+00> : vector<8x64xf32>
    %205 = tpu.matmul %204, %200, %cst_232 {dimension_numbers = #tpu.dot_dimension_numbers<[1], [0], [0], [1], [0, 0, 1, 1], [], []>} : vector<8x32xf32>, vector<32x64xf32>, vector<8x64xf32> -> vector<8x64xf32>
    %206 = arith.addf %198, %205 : vector<8x64xf32>
    %c1_233 = arith.constant 1 : index
    %c1_234 = arith.constant 1 : index
    %c0_235 = arith.constant 0 : index
    %c0_236 = arith.constant 0 : index
    %207 = vector.load %arg6[%c1_233, %c1_234, %c0_235, %c0_236] : memref<3x3x32x64xf32, #tpu.memory_space<vmem>>, vector<1x1x32x64xf32>
    %208 = vector.shape_cast %207 : vector<1x1x32x64xf32> to vector<32x64xf32>
    %c56_237 = arith.constant 56 : index
    %c0_238 = arith.constant 0 : index
    %209 = vector.load %arg12[%c56_237, %c0_238] : memref<128x32xf32, #tpu.memory_space<vmem>>, vector<8x32xf32>
    %cst_239 = arith.constant dense<0.000000e+00> : vector<8x64xf32>
    %210 = tpu.matmul %209, %208, %cst_239 {dimension_numbers = #tpu.dot_dimension_numbers<[1], [0], [0], [1], [0, 0, 1, 1], [], []>} : vector<8x32xf32>, vector<32x64xf32>, vector<8x64xf32> -> vector<8x64xf32>
    %211 = arith.addf %203, %210 : vector<8x64xf32>
    %c67 = arith.constant 67 : index
    %c0_240 = arith.constant 0 : index
    %212 = vector.load %arg12[%c67, %c0_240] : memref<128x32xf32, #tpu.memory_space<vmem>>, vector<8x32xf32>
    %cst_241 = arith.constant dense<0.000000e+00> : vector<8x64xf32>
    %213 = tpu.matmul %212, %208, %cst_241 {dimension_numbers = #tpu.dot_dimension_numbers<[1], [0], [0], [1], [0, 0, 1, 1], [], []>} : vector<8x32xf32>, vector<32x64xf32>, vector<8x64xf32> -> vector<8x64xf32>
    %214 = arith.addf %206, %213 : vector<8x64xf32>
    %c1_242 = arith.constant 1 : index
    %c2_243 = arith.constant 2 : index
    %c0_244 = arith.constant 0 : index
    %c0_245 = arith.constant 0 : index
    %215 = vector.load %arg6[%c1_242, %c2_243, %c0_244, %c0_245] : memref<3x3x32x64xf32, #tpu.memory_space<vmem>>, vector<1x1x32x64xf32>
    %216 = vector.shape_cast %215 : vector<1x1x32x64xf32> to vector<32x64xf32>
    %c57_246 = arith.constant 57 : index
    %c0_247 = arith.constant 0 : index
    %217 = vector.load %arg12[%c57_246, %c0_247] : memref<128x32xf32, #tpu.memory_space<vmem>>, vector<8x32xf32>
    %cst_248 = arith.constant dense<0.000000e+00> : vector<8x64xf32>
    %218 = tpu.matmul %217, %216, %cst_248 {dimension_numbers = #tpu.dot_dimension_numbers<[1], [0], [0], [1], [0, 0, 1, 1], [], []>} : vector<8x32xf32>, vector<32x64xf32>, vector<8x64xf32> -> vector<8x64xf32>
    %219 = arith.addf %211, %218 : vector<8x64xf32>
    %c68 = arith.constant 68 : index
    %c0_249 = arith.constant 0 : index
    %220 = vector.load %arg12[%c68, %c0_249] : memref<128x32xf32, #tpu.memory_space<vmem>>, vector<8x32xf32>
    %cst_250 = arith.constant dense<0.000000e+00> : vector<8x64xf32>
    %221 = tpu.matmul %220, %216, %cst_250 {dimension_numbers = #tpu.dot_dimension_numbers<[1], [0], [0], [1], [0, 0, 1, 1], [], []>} : vector<8x32xf32>, vector<32x64xf32>, vector<8x64xf32> -> vector<8x64xf32>
    %222 = arith.addf %214, %221 : vector<8x64xf32>
    %c2_251 = arith.constant 2 : index
    %c0_252 = arith.constant 0 : index
    %c0_253 = arith.constant 0 : index
    %c0_254 = arith.constant 0 : index
    %223 = vector.load %arg6[%c2_251, %c0_252, %c0_253, %c0_254] : memref<3x3x32x64xf32, #tpu.memory_space<vmem>>, vector<1x1x32x64xf32>
    %224 = vector.shape_cast %223 : vector<1x1x32x64xf32> to vector<32x64xf32>
    %c66_255 = arith.constant 66 : index
    %c0_256 = arith.constant 0 : index
    %225 = vector.load %arg12[%c66_255, %c0_256] : memref<128x32xf32, #tpu.memory_space<vmem>>, vector<8x32xf32>
    %cst_257 = arith.constant dense<0.000000e+00> : vector<8x64xf32>
    %226 = tpu.matmul %225, %224, %cst_257 {dimension_numbers = #tpu.dot_dimension_numbers<[1], [0], [0], [1], [0, 0, 1, 1], [], []>} : vector<8x32xf32>, vector<32x64xf32>, vector<8x64xf32> -> vector<8x64xf32>
    %227 = arith.addf %219, %226 : vector<8x64xf32>
    %c77 = arith.constant 77 : index
    %c0_258 = arith.constant 0 : index
    %228 = vector.load %arg12[%c77, %c0_258] : memref<128x32xf32, #tpu.memory_space<vmem>>, vector<8x32xf32>
    %cst_259 = arith.constant dense<0.000000e+00> : vector<8x64xf32>
    %229 = tpu.matmul %228, %224, %cst_259 {dimension_numbers = #tpu.dot_dimension_numbers<[1], [0], [0], [1], [0, 0, 1, 1], [], []>} : vector<8x32xf32>, vector<32x64xf32>, vector<8x64xf32> -> vector<8x64xf32>
    %230 = arith.addf %222, %229 : vector<8x64xf32>
    %c2_260 = arith.constant 2 : index
    %c1_261 = arith.constant 1 : index
    %c0_262 = arith.constant 0 : index
    %c0_263 = arith.constant 0 : index
    %231 = vector.load %arg6[%c2_260, %c1_261, %c0_262, %c0_263] : memref<3x3x32x64xf32, #tpu.memory_space<vmem>>, vector<1x1x32x64xf32>
    %232 = vector.shape_cast %231 : vector<1x1x32x64xf32> to vector<32x64xf32>
    %c67_264 = arith.constant 67 : index
    %c0_265 = arith.constant 0 : index
    %233 = vector.load %arg12[%c67_264, %c0_265] : memref<128x32xf32, #tpu.memory_space<vmem>>, vector<8x32xf32>
    %cst_266 = arith.constant dense<0.000000e+00> : vector<8x64xf32>
    %234 = tpu.matmul %233, %232, %cst_266 {dimension_numbers = #tpu.dot_dimension_numbers<[1], [0], [0], [1], [0, 0, 1, 1], [], []>} : vector<8x32xf32>, vector<32x64xf32>, vector<8x64xf32> -> vector<8x64xf32>
    %235 = arith.addf %227, %234 : vector<8x64xf32>
    %c78 = arith.constant 78 : index
    %c0_267 = arith.constant 0 : index
    %236 = vector.load %arg12[%c78, %c0_267] : memref<128x32xf32, #tpu.memory_space<vmem>>, vector<8x32xf32>
    %cst_268 = arith.constant dense<0.000000e+00> : vector<8x64xf32>
    %237 = tpu.matmul %236, %232, %cst_268 {dimension_numbers = #tpu.dot_dimension_numbers<[1], [0], [0], [1], [0, 0, 1, 1], [], []>} : vector<8x32xf32>, vector<32x64xf32>, vector<8x64xf32> -> vector<8x64xf32>
    %238 = arith.addf %230, %237 : vector<8x64xf32>
    %c2_269 = arith.constant 2 : index
    %c2_270 = arith.constant 2 : index
    %c0_271 = arith.constant 0 : index
    %c0_272 = arith.constant 0 : index
    %239 = vector.load %arg6[%c2_269, %c2_270, %c0_271, %c0_272] : memref<3x3x32x64xf32, #tpu.memory_space<vmem>>, vector<1x1x32x64xf32>
    %240 = vector.shape_cast %239 : vector<1x1x32x64xf32> to vector<32x64xf32>
    %c68_273 = arith.constant 68 : index
    %c0_274 = arith.constant 0 : index
    %241 = vector.load %arg12[%c68_273, %c0_274] : memref<128x32xf32, #tpu.memory_space<vmem>>, vector<8x32xf32>
    %cst_275 = arith.constant dense<0.000000e+00> : vector<8x64xf32>
    %242 = tpu.matmul %241, %240, %cst_275 {dimension_numbers = #tpu.dot_dimension_numbers<[1], [0], [0], [1], [0, 0, 1, 1], [], []>} : vector<8x32xf32>, vector<32x64xf32>, vector<8x64xf32> -> vector<8x64xf32>
    %243 = arith.addf %235, %242 : vector<8x64xf32>
    %c79 = arith.constant 79 : index
    %c0_276 = arith.constant 0 : index
    %244 = vector.load %arg12[%c79, %c0_276] : memref<128x32xf32, #tpu.memory_space<vmem>>, vector<8x32xf32>
    %cst_277 = arith.constant dense<0.000000e+00> : vector<8x64xf32>
    %245 = tpu.matmul %244, %240, %cst_277 {dimension_numbers = #tpu.dot_dimension_numbers<[1], [0], [0], [1], [0, 0, 1, 1], [], []>} : vector<8x32xf32>, vector<32x64xf32>, vector<8x64xf32> -> vector<8x64xf32>
    %246 = arith.addf %238, %245 : vector<8x64xf32>
    %247 = arith.maximumf %243, %246 : vector<8x64xf32>
    %248 = vector.broadcast %12 : vector<1x64xf32> to vector<8x64xf32>
    %249 = arith.addf %247, %248 : vector<8x64xf32>
    %cst_278 = arith.constant 0.000000e+00 : f32
    %250 = vector.broadcast %cst_278 : f32 to vector<8x64xf32>
    %251 = arith.maximumf %249, %250 : vector<8x64xf32>
    %c16 = arith.constant 16 : index
    %c0_279 = arith.constant 0 : index
    %252 = vector.load %arg16[%c16, %c0_279] : memref<32x64xf32, #tpu.memory_space<vmem>>, vector<8x64xf32>
    tpu.vector_store %arg16[%c16, %c0_279], %251 {strides = array<i32>} : memref<32x64xf32, #tpu.memory_space<vmem>>, vector<8x64xf32>,
    %cst_280 = arith.constant 0.000000e+00 : f32
    %253 = vector.broadcast %cst_280 : f32 to vector<8x64xf32>
    %cst_281 = arith.constant 0.000000e+00 : f32
    %254 = vector.broadcast %cst_281 : f32 to vector<8x64xf32>
    %c0_282 = arith.constant 0 : index
    %c0_283 = arith.constant 0 : index
    %c0_284 = arith.constant 0 : index
    %c0_285 = arith.constant 0 : index
    %255 = vector.load %arg6[%c0_282, %c0_283, %c0_284, %c0_285] : memref<3x3x32x64xf32, #tpu.memory_space<vmem>>, vector<1x1x32x64xf32>
    %256 = vector.shape_cast %255 : vector<1x1x32x64xf32> to vector<32x64xf32>
    %c66_286 = arith.constant 66 : index
    %c0_287 = arith.constant 0 : index
    %257 = vector.load %arg12[%c66_286, %c0_287] : memref<128x32xf32, #tpu.memory_space<vmem>>, vector<8x32xf32>
    %cst_288 = arith.constant dense<0.000000e+00> : vector<8x64xf32>
    %258 = tpu.matmul %257, %256, %cst_288 {dimension_numbers = #tpu.dot_dimension_numbers<[1], [0], [0], [1], [0, 0, 1, 1], [], []>} : vector<8x32xf32>, vector<32x64xf32>, vector<8x64xf32> -> vector<8x64xf32>
    %259 = arith.addf %253, %258 : vector<8x64xf32>
    %c77_289 = arith.constant 77 : index
    %c0_290 = arith.constant 0 : index
    %260 = vector.load %arg12[%c77_289, %c0_290] : memref<128x32xf32, #tpu.memory_space<vmem>>, vector<8x32xf32>
    %cst_291 = arith.constant dense<0.000000e+00> : vector<8x64xf32>
    %261 = tpu.matmul %260, %256, %cst_291 {dimension_numbers = #tpu.dot_dimension_numbers<[1], [0], [0], [1], [0, 0, 1, 1], [], []>} : vector<8x32xf32>, vector<32x64xf32>, vector<8x64xf32> -> vector<8x64xf32>
    %262 = arith.addf %254, %261 : vector<8x64xf32>
    %c0_292 = arith.constant 0 : index
    %c1_293 = arith.constant 1 : index
    %c0_294 = arith.constant 0 : index
    %c0_295 = arith.constant 0 : index
    %263 = vector.load %arg6[%c0_292, %c1_293, %c0_294, %c0_295] : memref<3x3x32x64xf32, #tpu.memory_space<vmem>>, vector<1x1x32x64xf32>
    %264 = vector.shape_cast %263 : vector<1x1x32x64xf32> to vector<32x64xf32>
    %c67_296 = arith.constant 67 : index
    %c0_297 = arith.constant 0 : index
    %265 = vector.load %arg12[%c67_296, %c0_297] : memref<128x32xf32, #tpu.memory_space<vmem>>, vector<8x32xf32>
    %cst_298 = arith.constant dense<0.000000e+00> : vector<8x64xf32>
    %266 = tpu.matmul %265, %264, %cst_298 {dimension_numbers = #tpu.dot_dimension_numbers<[1], [0], [0], [1], [0, 0, 1, 1], [], []>} : vector<8x32xf32>, vector<32x64xf32>, vector<8x64xf32> -> vector<8x64xf32>
    %267 = arith.addf %259, %266 : vector<8x64xf32>
    %c78_299 = arith.constant 78 : index
    %c0_300 = arith.constant 0 : index
    %268 = vector.load %arg12[%c78_299, %c0_300] : memref<128x32xf32, #tpu.memory_space<vmem>>, vector<8x32xf32>
    %cst_301 = arith.constant dense<0.000000e+00> : vector<8x64xf32>
    %269 = tpu.matmul %268, %264, %cst_301 {dimension_numbers = #tpu.dot_dimension_numbers<[1], [0], [0], [1], [0, 0, 1, 1], [], []>} : vector<8x32xf32>, vector<32x64xf32>, vector<8x64xf32> -> vector<8x64xf32>
    %270 = arith.addf %262, %269 : vector<8x64xf32>
    %c0_302 = arith.constant 0 : index
    %c2_303 = arith.constant 2 : index
    %c0_304 = arith.constant 0 : index
    %c0_305 = arith.constant 0 : index
    %271 = vector.load %arg6[%c0_302, %c2_303, %c0_304, %c0_305] : memref<3x3x32x64xf32, #tpu.memory_space<vmem>>, vector<1x1x32x64xf32>
    %272 = vector.shape_cast %271 : vector<1x1x32x64xf32> to vector<32x64xf32>
    %c68_306 = arith.constant 68 : index
    %c0_307 = arith.constant 0 : index
    %273 = vector.load %arg12[%c68_306, %c0_307] : memref<128x32xf32, #tpu.memory_space<vmem>>, vector<8x32xf32>
    %cst_308 = arith.constant dense<0.000000e+00> : vector<8x64xf32>
    %274 = tpu.matmul %273, %272, %cst_308 {dimension_numbers = #tpu.dot_dimension_numbers<[1], [0], [0], [1], [0, 0, 1, 1], [], []>} : vector<8x32xf32>, vector<32x64xf32>, vector<8x64xf32> -> vector<8x64xf32>
    %275 = arith.addf %267, %274 : vector<8x64xf32>
    %c79_309 = arith.constant 79 : index
    %c0_310 = arith.constant 0 : index
    %276 = vector.load %arg12[%c79_309, %c0_310] : memref<128x32xf32, #tpu.memory_space<vmem>>, vector<8x32xf32>
    %cst_311 = arith.constant dense<0.000000e+00> : vector<8x64xf32>
    %277 = tpu.matmul %276, %272, %cst_311 {dimension_numbers = #tpu.dot_dimension_numbers<[1], [0], [0], [1], [0, 0, 1, 1], [], []>} : vector<8x32xf32>, vector<32x64xf32>, vector<8x64xf32> -> vector<8x64xf32>
    %278 = arith.addf %270, %277 : vector<8x64xf32>
    %c1_312 = arith.constant 1 : index
    %c0_313 = arith.constant 0 : index
    %c0_314 = arith.constant 0 : index
    %c0_315 = arith.constant 0 : index
    %279 = vector.load %arg6[%c1_312, %c0_313, %c0_314, %c0_315] : memref<3x3x32x64xf32, #tpu.memory_space<vmem>>, vector<1x1x32x64xf32>
    %280 = vector.shape_cast %279 : vector<1x1x32x64xf32> to vector<32x64xf32>
    %c77_316 = arith.constant 77 : index
    %c0_317 = arith.constant 0 : index
    %281 = vector.load %arg12[%c77_316, %c0_317] : memref<128x32xf32, #tpu.memory_space<vmem>>, vector<8x32xf32>
    %cst_318 = arith.constant dense<0.000000e+00> : vector<8x64xf32>
    %282 = tpu.matmul %281, %280, %cst_318 {dimension_numbers = #tpu.dot_dimension_numbers<[1], [0], [0], [1], [0, 0, 1, 1], [], []>} : vector<8x32xf32>, vector<32x64xf32>, vector<8x64xf32> -> vector<8x64xf32>
    %283 = arith.addf %275, %282 : vector<8x64xf32>
    %c88 = arith.constant 88 : index
    %c0_319 = arith.constant 0 : index
    %284 = vector.load %arg12[%c88, %c0_319] : memref<128x32xf32, #tpu.memory_space<vmem>>, vector<8x32xf32>
    %cst_320 = arith.constant dense<0.000000e+00> : vector<8x64xf32>
    %285 = tpu.matmul %284, %280, %cst_320 {dimension_numbers = #tpu.dot_dimension_numbers<[1], [0], [0], [1], [0, 0, 1, 1], [], []>} : vector<8x32xf32>, vector<32x64xf32>, vector<8x64xf32> -> vector<8x64xf32>
    %286 = arith.addf %278, %285 : vector<8x64xf32>
    %c1_321 = arith.constant 1 : index
    %c1_322 = arith.constant 1 : index
    %c0_323 = arith.constant 0 : index
    %c0_324 = arith.constant 0 : index
    %287 = vector.load %arg6[%c1_321, %c1_322, %c0_323, %c0_324] : memref<3x3x32x64xf32, #tpu.memory_space<vmem>>, vector<1x1x32x64xf32>
    %288 = vector.shape_cast %287 : vector<1x1x32x64xf32> to vector<32x64xf32>
    %c78_325 = arith.constant 78 : index
    %c0_326 = arith.constant 0 : index
    %289 = vector.load %arg12[%c78_325, %c0_326] : memref<128x32xf32, #tpu.memory_space<vmem>>, vector<8x32xf32>
    %cst_327 = arith.constant dense<0.000000e+00> : vector<8x64xf32>
    %290 = tpu.matmul %289, %288, %cst_327 {dimension_numbers = #tpu.dot_dimension_numbers<[1], [0], [0], [1], [0, 0, 1, 1], [], []>} : vector<8x32xf32>, vector<32x64xf32>, vector<8x64xf32> -> vector<8x64xf32>
    %291 = arith.addf %283, %290 : vector<8x64xf32>
    %c89 = arith.constant 89 : index
    %c0_328 = arith.constant 0 : index
    %292 = vector.load %arg12[%c89, %c0_328] : memref<128x32xf32, #tpu.memory_space<vmem>>, vector<8x32xf32>
    %cst_329 = arith.constant dense<0.000000e+00> : vector<8x64xf32>
    %293 = tpu.matmul %292, %288, %cst_329 {dimension_numbers = #tpu.dot_dimension_numbers<[1], [0], [0], [1], [0, 0, 1, 1], [], []>} : vector<8x32xf32>, vector<32x64xf32>, vector<8x64xf32> -> vector<8x64xf32>
    %294 = arith.addf %286, %293 : vector<8x64xf32>
    %c1_330 = arith.constant 1 : index
    %c2_331 = arith.constant 2 : index
    %c0_332 = arith.constant 0 : index
    %c0_333 = arith.constant 0 : index
    %295 = vector.load %arg6[%c1_330, %c2_331, %c0_332, %c0_333] : memref<3x3x32x64xf32, #tpu.memory_space<vmem>>, vector<1x1x32x64xf32>
    %296 = vector.shape_cast %295 : vector<1x1x32x64xf32> to vector<32x64xf32>
    %c79_334 = arith.constant 79 : index
    %c0_335 = arith.constant 0 : index
    %297 = vector.load %arg12[%c79_334, %c0_335] : memref<128x32xf32, #tpu.memory_space<vmem>>, vector<8x32xf32>
    %cst_336 = arith.constant dense<0.000000e+00> : vector<8x64xf32>
    %298 = tpu.matmul %297, %296, %cst_336 {dimension_numbers = #tpu.dot_dimension_numbers<[1], [0], [0], [1], [0, 0, 1, 1], [], []>} : vector<8x32xf32>, vector<32x64xf32>, vector<8x64xf32> -> vector<8x64xf32>
    %299 = arith.addf %291, %298 : vector<8x64xf32>
    %c90 = arith.constant 90 : index
    %c0_337 = arith.constant 0 : index
    %300 = vector.load %arg12[%c90, %c0_337] : memref<128x32xf32, #tpu.memory_space<vmem>>, vector<8x32xf32>
    %cst_338 = arith.constant dense<0.000000e+00> : vector<8x64xf32>
    %301 = tpu.matmul %300, %296, %cst_338 {dimension_numbers = #tpu.dot_dimension_numbers<[1], [0], [0], [1], [0, 0, 1, 1], [], []>} : vector<8x32xf32>, vector<32x64xf32>, vector<8x64xf32> -> vector<8x64xf32>
    %302 = arith.addf %294, %301 : vector<8x64xf32>
    %c2_339 = arith.constant 2 : index
    %c0_340 = arith.constant 0 : index
    %c0_341 = arith.constant 0 : index
    %c0_342 = arith.constant 0 : index
    %303 = vector.load %arg6[%c2_339, %c0_340, %c0_341, %c0_342] : memref<3x3x32x64xf32, #tpu.memory_space<vmem>>, vector<1x1x32x64xf32>
    %304 = vector.shape_cast %303 : vector<1x1x32x64xf32> to vector<32x64xf32>
    %c88_343 = arith.constant 88 : index
    %c0_344 = arith.constant 0 : index
    %305 = vector.load %arg12[%c88_343, %c0_344] : memref<128x32xf32, #tpu.memory_space<vmem>>, vector<8x32xf32>
    %cst_345 = arith.constant dense<0.000000e+00> : vector<8x64xf32>
    %306 = tpu.matmul %305, %304, %cst_345 {dimension_numbers = #tpu.dot_dimension_numbers<[1], [0], [0], [1], [0, 0, 1, 1], [], []>} : vector<8x32xf32>, vector<32x64xf32>, vector<8x64xf32> -> vector<8x64xf32>
    %307 = arith.addf %299, %306 : vector<8x64xf32>
    %c99 = arith.constant 99 : index
    %c0_346 = arith.constant 0 : index
    %308 = vector.load %arg12[%c99, %c0_346] : memref<128x32xf32, #tpu.memory_space<vmem>>, vector<8x32xf32>
    %cst_347 = arith.constant dense<0.000000e+00> : vector<8x64xf32>
    %309 = tpu.matmul %308, %304, %cst_347 {dimension_numbers = #tpu.dot_dimension_numbers<[1], [0], [0], [1], [0, 0, 1, 1], [], []>} : vector<8x32xf32>, vector<32x64xf32>, vector<8x64xf32> -> vector<8x64xf32>
    %310 = arith.addf %302, %309 : vector<8x64xf32>
    %c2_348 = arith.constant 2 : index
    %c1_349 = arith.constant 1 : index
    %c0_350 = arith.constant 0 : index
    %c0_351 = arith.constant 0 : index
    %311 = vector.load %arg6[%c2_348, %c1_349, %c0_350, %c0_351] : memref<3x3x32x64xf32, #tpu.memory_space<vmem>>, vector<1x1x32x64xf32>
    %312 = vector.shape_cast %311 : vector<1x1x32x64xf32> to vector<32x64xf32>
    %c89_352 = arith.constant 89 : index
    %c0_353 = arith.constant 0 : index
    %313 = vector.load %arg12[%c89_352, %c0_353] : memref<128x32xf32, #tpu.memory_space<vmem>>, vector<8x32xf32>
    %cst_354 = arith.constant dense<0.000000e+00> : vector<8x64xf32>
    %314 = tpu.matmul %313, %312, %cst_354 {dimension_numbers = #tpu.dot_dimension_numbers<[1], [0], [0], [1], [0, 0, 1, 1], [], []>} : vector<8x32xf32>, vector<32x64xf32>, vector<8x64xf32> -> vector<8x64xf32>
    %315 = arith.addf %307, %314 : vector<8x64xf32>
    %c100 = arith.constant 100 : index
    %c0_355 = arith.constant 0 : index
    %316 = vector.load %arg12[%c100, %c0_355] : memref<128x32xf32, #tpu.memory_space<vmem>>, vector<8x32xf32>
    %cst_356 = arith.constant dense<0.000000e+00> : vector<8x64xf32>
    %317 = tpu.matmul %316, %312, %cst_356 {dimension_numbers = #tpu.dot_dimension_numbers<[1], [0], [0], [1], [0, 0, 1, 1], [], []>} : vector<8x32xf32>, vector<32x64xf32>, vector<8x64xf32> -> vector<8x64xf32>
    %318 = arith.addf %310, %317 : vector<8x64xf32>
    %c2_357 = arith.constant 2 : index
    %c2_358 = arith.constant 2 : index
    %c0_359 = arith.constant 0 : index
    %c0_360 = arith.constant 0 : index
    %319 = vector.load %arg6[%c2_357, %c2_358, %c0_359, %c0_360] : memref<3x3x32x64xf32, #tpu.memory_space<vmem>>, vector<1x1x32x64xf32>
    %320 = vector.shape_cast %319 : vector<1x1x32x64xf32> to vector<32x64xf32>
    %c90_361 = arith.constant 90 : index
    %c0_362 = arith.constant 0 : index
    %321 = vector.load %arg12[%c90_361, %c0_362] : memref<128x32xf32, #tpu.memory_space<vmem>>, vector<8x32xf32>
    %cst_363 = arith.constant dense<0.000000e+00> : vector<8x64xf32>
    %322 = tpu.matmul %321, %320, %cst_363 {dimension_numbers = #tpu.dot_dimension_numbers<[1], [0], [0], [1], [0, 0, 1, 1], [], []>} : vector<8x32xf32>, vector<32x64xf32>, vector<8x64xf32> -> vector<8x64xf32>
    %323 = arith.addf %315, %322 : vector<8x64xf32>
    %c101 = arith.constant 101 : index
    %c0_364 = arith.constant 0 : index
    %324 = vector.load %arg12[%c101, %c0_364] : memref<128x32xf32, #tpu.memory_space<vmem>>, vector<8x32xf32>
    %cst_365 = arith.constant dense<0.000000e+00> : vector<8x64xf32>
    %325 = tpu.matmul %324, %320, %cst_365 {dimension_numbers = #tpu.dot_dimension_numbers<[1], [0], [0], [1], [0, 0, 1, 1], [], []>} : vector<8x32xf32>, vector<32x64xf32>, vector<8x64xf32> -> vector<8x64xf32>
    %326 = arith.addf %318, %325 : vector<8x64xf32>
    %327 = arith.maximumf %323, %326 : vector<8x64xf32>
    %328 = vector.broadcast %12 : vector<1x64xf32> to vector<8x64xf32>
    %329 = arith.addf %327, %328 : vector<8x64xf32>
    %cst_366 = arith.constant 0.000000e+00 : f32
    %330 = vector.broadcast %cst_366 : f32 to vector<8x64xf32>
    %331 = arith.maximumf %329, %330 : vector<8x64xf32>
    %c24_367 = arith.constant 24 : index
    %c0_368 = arith.constant 0 : index
    %332 = vector.load %arg16[%c24_367, %c0_368] : memref<32x64xf32, #tpu.memory_space<vmem>>, vector<8x64xf32>
    tpu.vector_store %arg16[%c24_367, %c0_368], %331 {strides = array<i32>} : memref<32x64xf32, #tpu.memory_space<vmem>>, vector<8x64xf32>,
    %c0_369 = arith.constant 0 : index
    %c0_370 = arith.constant 0 : index
    %333 = tpu.strided_load %arg16[%c0_369, %c0_370] {strides = array<i32: 2, 1>} : memref<32x64xf32, #tpu.memory_space<vmem>>, vector<16x64xf32>
    %c1_371 = arith.constant 1 : index
    %c0_372 = arith.constant 0 : index
    %334 = tpu.strided_load %arg16[%c1_371, %c0_372] {strides = array<i32: 2, 1>} : memref<32x64xf32, #tpu.memory_space<vmem>>, vector<16x64xf32>
    %335 = arith.maximumf %333, %334 : vector<16x64xf32>
    %c0_373 = arith.constant 0 : index
    %c0_374 = arith.constant 0 : index
    %336 = vector.load %arg13[%c0_373, %c0_374] : memref<16x64xf32, #tpu.memory_space<vmem>>, vector<16x64xf32>
    tpu.vector_store %arg13[%c0_373, %c0_374], %335 {strides = array<i32>} : memref<16x64xf32, #tpu.memory_space<vmem>>, vector<16x64xf32>,
    %c0_375 = arith.constant 0 : index
    %c0_376 = arith.constant 0 : index
    %337 = vector.load %arg9[%c0_375, %c0_376] : memref<1x128xf32, #tpu.memory_space<vmem>>, vector<1x128xf32>
    %cst_377 = arith.constant 0.000000e+00 : f32
    %338 = vector.broadcast %cst_377 : f32 to vector<2x128xf32>
    %cst_378 = arith.constant 0.000000e+00 : f32
    %339 = vector.broadcast %cst_378 : f32 to vector<2x128xf32>
    %c0_379 = arith.constant 0 : index
    %c0_380 = arith.constant 0 : index
    %c0_381 = arith.constant 0 : index
    %c0_382 = arith.constant 0 : index
    %340 = vector.load %arg8[%c0_379, %c0_380, %c0_381, %c0_382] : memref<3x3x64x128xf32, #tpu.memory_space<vmem>>, vector<1x1x64x128xf32>
    %341 = vector.shape_cast %340 : vector<1x1x64x128xf32> to vector<64x128xf32>
    %c0_383 = arith.constant 0 : index
    %c0_384 = arith.constant 0 : index
    %342 = vector.load %arg13[%c0_383, %c0_384] : memref<16x64xf32, #tpu.memory_space<vmem>>, vector<2x64xf32>
    %cst_385 = arith.constant dense<0.000000e+00> : vector<2x128xf32>
    %343 = tpu.matmul %342, %341, %cst_385 {dimension_numbers = #tpu.dot_dimension_numbers<[1], [0], [0], [1], [0, 0, 1, 1], [], []>} : vector<2x64xf32>, vector<64x128xf32>, vector<2x128xf32> -> vector<2x128xf32>
    %344 = arith.addf %338, %343 : vector<2x128xf32>
    %c4 = arith.constant 4 : index
    %c0_386 = arith.constant 0 : index
    %345 = vector.load %arg13[%c4, %c0_386] : memref<16x64xf32, #tpu.memory_space<vmem>>, vector<2x64xf32>
    %cst_387 = arith.constant dense<0.000000e+00> : vector<2x128xf32>
    %346 = tpu.matmul %345, %341, %cst_387 {dimension_numbers = #tpu.dot_dimension_numbers<[1], [0], [0], [1], [0, 0, 1, 1], [], []>} : vector<2x64xf32>, vector<64x128xf32>, vector<2x128xf32> -> vector<2x128xf32>
    %347 = arith.addf %339, %346 : vector<2x128xf32>
    %c0_388 = arith.constant 0 : index
    %c1_389 = arith.constant 1 : index
    %c0_390 = arith.constant 0 : index
    %c0_391 = arith.constant 0 : index
    %348 = vector.load %arg8[%c0_388, %c1_389, %c0_390, %c0_391] : memref<3x3x64x128xf32, #tpu.memory_space<vmem>>, vector<1x1x64x128xf32>
    %349 = vector.shape_cast %348 : vector<1x1x64x128xf32> to vector<64x128xf32>
    %c1_392 = arith.constant 1 : index
    %c0_393 = arith.constant 0 : index
    %350 = vector.load %arg13[%c1_392, %c0_393] : memref<16x64xf32, #tpu.memory_space<vmem>>, vector<2x64xf32>
    %cst_394 = arith.constant dense<0.000000e+00> : vector<2x128xf32>
    %351 = tpu.matmul %350, %349, %cst_394 {dimension_numbers = #tpu.dot_dimension_numbers<[1], [0], [0], [1], [0, 0, 1, 1], [], []>} : vector<2x64xf32>, vector<64x128xf32>, vector<2x128xf32> -> vector<2x128xf32>
    %352 = arith.addf %344, %351 : vector<2x128xf32>
    %c5 = arith.constant 5 : index
    %c0_395 = arith.constant 0 : index
    %353 = vector.load %arg13[%c5, %c0_395] : memref<16x64xf32, #tpu.memory_space<vmem>>, vector<2x64xf32>
    %cst_396 = arith.constant dense<0.000000e+00> : vector<2x128xf32>
    %354 = tpu.matmul %353, %349, %cst_396 {dimension_numbers = #tpu.dot_dimension_numbers<[1], [0], [0], [1], [0, 0, 1, 1], [], []>} : vector<2x64xf32>, vector<64x128xf32>, vector<2x128xf32> -> vector<2x128xf32>
    %355 = arith.addf %347, %354 : vector<2x128xf32>
    %c0_397 = arith.constant 0 : index
    %c2_398 = arith.constant 2 : index
    %c0_399 = arith.constant 0 : index
    %c0_400 = arith.constant 0 : index
    %356 = vector.load %arg8[%c0_397, %c2_398, %c0_399, %c0_400] : memref<3x3x64x128xf32, #tpu.memory_space<vmem>>, vector<1x1x64x128xf32>
    %357 = vector.shape_cast %356 : vector<1x1x64x128xf32> to vector<64x128xf32>
    %c2_401 = arith.constant 2 : index
    %c0_402 = arith.constant 0 : index
    %358 = vector.load %arg13[%c2_401, %c0_402] : memref<16x64xf32, #tpu.memory_space<vmem>>, vector<2x64xf32>
    %cst_403 = arith.constant dense<0.000000e+00> : vector<2x128xf32>
    %359 = tpu.matmul %358, %357, %cst_403 {dimension_numbers = #tpu.dot_dimension_numbers<[1], [0], [0], [1], [0, 0, 1, 1], [], []>} : vector<2x64xf32>, vector<64x128xf32>, vector<2x128xf32> -> vector<2x128xf32>
    %360 = arith.addf %352, %359 : vector<2x128xf32>
    %c6 = arith.constant 6 : index
    %c0_404 = arith.constant 0 : index
    %361 = vector.load %arg13[%c6, %c0_404] : memref<16x64xf32, #tpu.memory_space<vmem>>, vector<2x64xf32>
    %cst_405 = arith.constant dense<0.000000e+00> : vector<2x128xf32>
    %362 = tpu.matmul %361, %357, %cst_405 {dimension_numbers = #tpu.dot_dimension_numbers<[1], [0], [0], [1], [0, 0, 1, 1], [], []>} : vector<2x64xf32>, vector<64x128xf32>, vector<2x128xf32> -> vector<2x128xf32>
    %363 = arith.addf %355, %362 : vector<2x128xf32>
    %c1_406 = arith.constant 1 : index
    %c0_407 = arith.constant 0 : index
    %c0_408 = arith.constant 0 : index
    %c0_409 = arith.constant 0 : index
    %364 = vector.load %arg8[%c1_406, %c0_407, %c0_408, %c0_409] : memref<3x3x64x128xf32, #tpu.memory_space<vmem>>, vector<1x1x64x128xf32>
    %365 = vector.shape_cast %364 : vector<1x1x64x128xf32> to vector<64x128xf32>
    %c4_410 = arith.constant 4 : index
    %c0_411 = arith.constant 0 : index
    %366 = vector.load %arg13[%c4_410, %c0_411] : memref<16x64xf32, #tpu.memory_space<vmem>>, vector<2x64xf32>
    %cst_412 = arith.constant dense<0.000000e+00> : vector<2x128xf32>
    %367 = tpu.matmul %366, %365, %cst_412 {dimension_numbers = #tpu.dot_dimension_numbers<[1], [0], [0], [1], [0, 0, 1, 1], [], []>} : vector<2x64xf32>, vector<64x128xf32>, vector<2x128xf32> -> vector<2x128xf32>
    %368 = arith.addf %360, %367 : vector<2x128xf32>
    %c8_413 = arith.constant 8 : index
    %c0_414 = arith.constant 0 : index
    %369 = vector.load %arg13[%c8_413, %c0_414] : memref<16x64xf32, #tpu.memory_space<vmem>>, vector<2x64xf32>
    %cst_415 = arith.constant dense<0.000000e+00> : vector<2x128xf32>
    %370 = tpu.matmul %369, %365, %cst_415 {dimension_numbers = #tpu.dot_dimension_numbers<[1], [0], [0], [1], [0, 0, 1, 1], [], []>} : vector<2x64xf32>, vector<64x128xf32>, vector<2x128xf32> -> vector<2x128xf32>
    %371 = arith.addf %363, %370 : vector<2x128xf32>
    %c1_416 = arith.constant 1 : index
    %c1_417 = arith.constant 1 : index
    %c0_418 = arith.constant 0 : index
    %c0_419 = arith.constant 0 : index
    %372 = vector.load %arg8[%c1_416, %c1_417, %c0_418, %c0_419] : memref<3x3x64x128xf32, #tpu.memory_space<vmem>>, vector<1x1x64x128xf32>
    %373 = vector.shape_cast %372 : vector<1x1x64x128xf32> to vector<64x128xf32>
    %c5_420 = arith.constant 5 : index
    %c0_421 = arith.constant 0 : index
    %374 = vector.load %arg13[%c5_420, %c0_421] : memref<16x64xf32, #tpu.memory_space<vmem>>, vector<2x64xf32>
    %cst_422 = arith.constant dense<0.000000e+00> : vector<2x128xf32>
    %375 = tpu.matmul %374, %373, %cst_422 {dimension_numbers = #tpu.dot_dimension_numbers<[1], [0], [0], [1], [0, 0, 1, 1], [], []>} : vector<2x64xf32>, vector<64x128xf32>, vector<2x128xf32> -> vector<2x128xf32>
    %376 = arith.addf %368, %375 : vector<2x128xf32>
    %c9 = arith.constant 9 : index
    %c0_423 = arith.constant 0 : index
    %377 = vector.load %arg13[%c9, %c0_423] : memref<16x64xf32, #tpu.memory_space<vmem>>, vector<2x64xf32>
    %cst_424 = arith.constant dense<0.000000e+00> : vector<2x128xf32>
    %378 = tpu.matmul %377, %373, %cst_424 {dimension_numbers = #tpu.dot_dimension_numbers<[1], [0], [0], [1], [0, 0, 1, 1], [], []>} : vector<2x64xf32>, vector<64x128xf32>, vector<2x128xf32> -> vector<2x128xf32>
    %379 = arith.addf %371, %378 : vector<2x128xf32>
    %c1_425 = arith.constant 1 : index
    %c2_426 = arith.constant 2 : index
    %c0_427 = arith.constant 0 : index
    %c0_428 = arith.constant 0 : index
    %380 = vector.load %arg8[%c1_425, %c2_426, %c0_427, %c0_428] : memref<3x3x64x128xf32, #tpu.memory_space<vmem>>, vector<1x1x64x128xf32>
    %381 = vector.shape_cast %380 : vector<1x1x64x128xf32> to vector<64x128xf32>
    %c6_429 = arith.constant 6 : index
    %c0_430 = arith.constant 0 : index
    %382 = vector.load %arg13[%c6_429, %c0_430] : memref<16x64xf32, #tpu.memory_space<vmem>>, vector<2x64xf32>
    %cst_431 = arith.constant dense<0.000000e+00> : vector<2x128xf32>
    %383 = tpu.matmul %382, %381, %cst_431 {dimension_numbers = #tpu.dot_dimension_numbers<[1], [0], [0], [1], [0, 0, 1, 1], [], []>} : vector<2x64xf32>, vector<64x128xf32>, vector<2x128xf32> -> vector<2x128xf32>
    %384 = arith.addf %376, %383 : vector<2x128xf32>
    %c10 = arith.constant 10 : index
    %c0_432 = arith.constant 0 : index
    %385 = vector.load %arg13[%c10, %c0_432] : memref<16x64xf32, #tpu.memory_space<vmem>>, vector<2x64xf32>
    %cst_433 = arith.constant dense<0.000000e+00> : vector<2x128xf32>
    %386 = tpu.matmul %385, %381, %cst_433 {dimension_numbers = #tpu.dot_dimension_numbers<[1], [0], [0], [1], [0, 0, 1, 1], [], []>} : vector<2x64xf32>, vector<64x128xf32>, vector<2x128xf32> -> vector<2x128xf32>
    %387 = arith.addf %379, %386 : vector<2x128xf32>
    %c2_434 = arith.constant 2 : index
    %c0_435 = arith.constant 0 : index
    %c0_436 = arith.constant 0 : index
    %c0_437 = arith.constant 0 : index
    %388 = vector.load %arg8[%c2_434, %c0_435, %c0_436, %c0_437] : memref<3x3x64x128xf32, #tpu.memory_space<vmem>>, vector<1x1x64x128xf32>
    %389 = vector.shape_cast %388 : vector<1x1x64x128xf32> to vector<64x128xf32>
    %c8_438 = arith.constant 8 : index
    %c0_439 = arith.constant 0 : index
    %390 = vector.load %arg13[%c8_438, %c0_439] : memref<16x64xf32, #tpu.memory_space<vmem>>, vector<2x64xf32>
    %cst_440 = arith.constant dense<0.000000e+00> : vector<2x128xf32>
    %391 = tpu.matmul %390, %389, %cst_440 {dimension_numbers = #tpu.dot_dimension_numbers<[1], [0], [0], [1], [0, 0, 1, 1], [], []>} : vector<2x64xf32>, vector<64x128xf32>, vector<2x128xf32> -> vector<2x128xf32>
    %392 = arith.addf %384, %391 : vector<2x128xf32>
    %c12_441 = arith.constant 12 : index
    %c0_442 = arith.constant 0 : index
    %393 = vector.load %arg13[%c12_441, %c0_442] : memref<16x64xf32, #tpu.memory_space<vmem>>, vector<2x64xf32>
    %cst_443 = arith.constant dense<0.000000e+00> : vector<2x128xf32>
    %394 = tpu.matmul %393, %389, %cst_443 {dimension_numbers = #tpu.dot_dimension_numbers<[1], [0], [0], [1], [0, 0, 1, 1], [], []>} : vector<2x64xf32>, vector<64x128xf32>, vector<2x128xf32> -> vector<2x128xf32>
    %395 = arith.addf %387, %394 : vector<2x128xf32>
    %c2_444 = arith.constant 2 : index
    %c1_445 = arith.constant 1 : index
    %c0_446 = arith.constant 0 : index
    %c0_447 = arith.constant 0 : index
    %396 = vector.load %arg8[%c2_444, %c1_445, %c0_446, %c0_447] : memref<3x3x64x128xf32, #tpu.memory_space<vmem>>, vector<1x1x64x128xf32>
    %397 = vector.shape_cast %396 : vector<1x1x64x128xf32> to vector<64x128xf32>
    %c9_448 = arith.constant 9 : index
    %c0_449 = arith.constant 0 : index
    %398 = vector.load %arg13[%c9_448, %c0_449] : memref<16x64xf32, #tpu.memory_space<vmem>>, vector<2x64xf32>
    %cst_450 = arith.constant dense<0.000000e+00> : vector<2x128xf32>
    %399 = tpu.matmul %398, %397, %cst_450 {dimension_numbers = #tpu.dot_dimension_numbers<[1], [0], [0], [1], [0, 0, 1, 1], [], []>} : vector<2x64xf32>, vector<64x128xf32>, vector<2x128xf32> -> vector<2x128xf32>
    %400 = arith.addf %392, %399 : vector<2x128xf32>
    %c13_451 = arith.constant 13 : index
    %c0_452 = arith.constant 0 : index
    %401 = vector.load %arg13[%c13_451, %c0_452] : memref<16x64xf32, #tpu.memory_space<vmem>>, vector<2x64xf32>
    %cst_453 = arith.constant dense<0.000000e+00> : vector<2x128xf32>
    %402 = tpu.matmul %401, %397, %cst_453 {dimension_numbers = #tpu.dot_dimension_numbers<[1], [0], [0], [1], [0, 0, 1, 1], [], []>} : vector<2x64xf32>, vector<64x128xf32>, vector<2x128xf32> -> vector<2x128xf32>
    %403 = arith.addf %395, %402 : vector<2x128xf32>
    %c2_454 = arith.constant 2 : index
    %c2_455 = arith.constant 2 : index
    %c0_456 = arith.constant 0 : index
    %c0_457 = arith.constant 0 : index
    %404 = vector.load %arg8[%c2_454, %c2_455, %c0_456, %c0_457] : memref<3x3x64x128xf32, #tpu.memory_space<vmem>>, vector<1x1x64x128xf32>
    %405 = vector.shape_cast %404 : vector<1x1x64x128xf32> to vector<64x128xf32>
    %c10_458 = arith.constant 10 : index
    %c0_459 = arith.constant 0 : index
    %406 = vector.load %arg13[%c10_458, %c0_459] : memref<16x64xf32, #tpu.memory_space<vmem>>, vector<2x64xf32>
    %cst_460 = arith.constant dense<0.000000e+00> : vector<2x128xf32>
    %407 = tpu.matmul %406, %405, %cst_460 {dimension_numbers = #tpu.dot_dimension_numbers<[1], [0], [0], [1], [0, 0, 1, 1], [], []>} : vector<2x64xf32>, vector<64x128xf32>, vector<2x128xf32> -> vector<2x128xf32>
    %408 = arith.addf %400, %407 : vector<2x128xf32>
    %c14 = arith.constant 14 : index
    %c0_461 = arith.constant 0 : index
    %409 = vector.load %arg13[%c14, %c0_461] : memref<16x64xf32, #tpu.memory_space<vmem>>, vector<2x64xf32>
    %cst_462 = arith.constant dense<0.000000e+00> : vector<2x128xf32>
    %410 = tpu.matmul %409, %405, %cst_462 {dimension_numbers = #tpu.dot_dimension_numbers<[1], [0], [0], [1], [0, 0, 1, 1], [], []>} : vector<2x64xf32>, vector<64x128xf32>, vector<2x128xf32> -> vector<2x128xf32>
    %411 = arith.addf %403, %410 : vector<2x128xf32>
    %412 = arith.maximumf %408, %411 : vector<2x128xf32>
    %413 = vector.broadcast %337 : vector<1x128xf32> to vector<2x128xf32>
    %414 = arith.addf %412, %413 : vector<2x128xf32>
    %cst_463 = arith.constant 0.000000e+00 : f32
    %415 = vector.broadcast %cst_463 : f32 to vector<2x128xf32>
    %416 = arith.maximumf %414, %415 : vector<2x128xf32>
    %c0_464 = arith.constant 0 : index
    %c0_465 = arith.constant 0 : index
    %417 = vector.load %arg17[%c0_464, %c0_465] : memref<8x128xf32, #tpu.memory_space<vmem>>, vector<2x128xf32>
    tpu.vector_store %arg17[%c0_464, %c0_465], %416 {strides = array<i32>} : memref<8x128xf32, #tpu.memory_space<vmem>>, vector<2x128xf32>,
    %c0_466 = arith.constant 0 : index
    %c0_467 = arith.constant 0 : index
    %418 = tpu.strided_load %arg17[%c0_466, %c0_467] {strides = array<i32: 2, 1>} : memref<8x128xf32, #tpu.memory_space<vmem>>, vector<1x128xf32>
    %c1_468 = arith.constant 1 : index
    %c0_469 = arith.constant 0 : index
    %419 = tpu.strided_load %arg17[%c1_468, %c0_469] {strides = array<i32: 2, 1>} : memref<8x128xf32, #tpu.memory_space<vmem>>, vector<1x128xf32>
    %420 = arith.maximumf %418, %419 : vector<1x128xf32>
    %c0_470 = arith.constant 0 : index
    %c0_471 = arith.constant 0 : index
    %c0_472 = arith.constant 0 : index
    %421 = vector.load %arg10[%c0_470, %c0_471, %c0_472] : memref<1x1x128xf32, #tpu.memory_space<vmem>>, vector<1x1x128xf32>
    %422 = vector.shape_cast %421 : vector<1x1x128xf32> to vector<1x128xf32>
    %423 = vector.shape_cast %420 : vector<1x128xf32> to vector<1x1x128xf32>
    tpu.vector_store %arg10[%c0_470, %c0_471, %c0_472], %423 {strides = array<i32>} : memref<1x1x128xf32, #tpu.memory_space<vmem>>, vector<1x1x128xf32>,
    return
  }
  func.func @transform_0(%arg0: i32) -> (i32, i32, i32) {
    %c0_i32 = arith.constant 0 : i32
    %c0_i32_0 = arith.constant 0 : i32
    %c0_i32_1 = arith.constant 0 : i32
    return %arg0, %c0_i32, %c0_i32_0 : i32, i32, i32
  }
  func.func @transform_1(%arg0: i32) -> (i32, i32, i32, i32) {
    %c0_i32 = arith.constant 0 : i32
    %c0_i32_0 = arith.constant 0 : i32
    %c0_i32_1 = arith.constant 0 : i32
    %c0_i32_2 = arith.constant 0 : i32
    %c0_i32_3 = arith.constant 0 : i32
    return %c0_i32, %c0_i32_0, %c0_i32_1, %c0_i32_2 : i32, i32, i32, i32
  }
  func.func @transform_2(%arg0: i32) -> (i32, i32) {
    %c0_i32 = arith.constant 0 : i32
    %c0_i32_0 = arith.constant 0 : i32
    %c0_i32_1 = arith.constant 0 : i32
    return %c0_i32, %c0_i32_0 : i32, i32
  }
  func.func @transform_3(%arg0: i32) -> (i32, i32, i32, i32) {
    %c0_i32 = arith.constant 0 : i32
    %c0_i32_0 = arith.constant 0 : i32
    %c0_i32_1 = arith.constant 0 : i32
    %c0_i32_2 = arith.constant 0 : i32
    %c0_i32_3 = arith.constant 0 : i32
    return %c0_i32, %c0_i32_0, %c0_i32_1, %c0_i32_2 : i32, i32, i32, i32
  }
  func.func @transform_4(%arg0: i32) -> (i32, i32) {
    %c0_i32 = arith.constant 0 : i32
    %c0_i32_0 = arith.constant 0 : i32
    %c0_i32_1 = arith.constant 0 : i32
    return %c0_i32, %c0_i32_0 : i32, i32
  }
  func.func @transform_5(%arg0: i32) -> (i32, i32, i32, i32) {
    %c0_i32 = arith.constant 0 : i32
    %c0_i32_0 = arith.constant 0 : i32
    %c0_i32_1 = arith.constant 0 : i32
    %c0_i32_2 = arith.constant 0 : i32
    %c0_i32_3 = arith.constant 0 : i32
    return %c0_i32, %c0_i32_0, %c0_i32_1, %c0_i32_2 : i32, i32, i32, i32
  }
  func.func @transform_6(%arg0: i32) -> (i32, i32) {
    %c0_i32 = arith.constant 0 : i32
    %c0_i32_0 = arith.constant 0 : i32
    %c0_i32_1 = arith.constant 0 : i32
    return %c0_i32, %c0_i32_0 : i32, i32
  }
  func.func @transform_7(%arg0: i32) -> (i32, i32, i32, i32) {
    %c0_i32 = arith.constant 0 : i32
    %c0_i32_0 = arith.constant 0 : i32
    %c0_i32_1 = arith.constant 0 : i32
    %c0_i32_2 = arith.constant 0 : i32
    %c0_i32_3 = arith.constant 0 : i32
    return %c0_i32, %c0_i32_0, %c0_i32_1, %c0_i32_2 : i32, i32, i32, i32
  }
  func.func @transform_8(%arg0: i32) -> (i32, i32) {
    %c0_i32 = arith.constant 0 : i32
    %c0_i32_0 = arith.constant 0 : i32
    %c0_i32_1 = arith.constant 0 : i32
    return %c0_i32, %c0_i32_0 : i32, i32
  }
  func.func @transform_9(%arg0: i32) -> (i32, i32, i32) {
    %c0_i32 = arith.constant 0 : i32
    %c0_i32_0 = arith.constant 0 : i32
    %c0_i32_1 = arith.constant 0 : i32
    return %arg0, %c0_i32, %c0_i32_0 : i32, i32, i32
  }
}

</mosaic_0001>

<llo_original>
// kernel: tpu_custom_call.1
$region0: #{tpu_custom_call.1}
  #allocation0 [shape = 'u32[]', space=smem, size = 0x4, offset = 0x4, fixed_abs, tag = 'smem constant byte address 0x4 - core index']
  #allocation1 [shape = 'u32[72,128]{1,0:T(1,128)}', space=vmem, size = 0x9000, scoped, tag = 'internal scratch']
  #allocation2 [shape = 'f32[576,32]{1,0:T(8,128)}', space=vmem, size = 0x48000, scoped, tag = 'scratch operand']
  #allocation3 [shape = 'f32[128,32]{1,0:T(8,128)}', space=vmem, size = 0x10000, scoped, tag = 'scratch operand']
  #allocation4 [shape = 'f32[16,64]{1,0:T(8,128)}', space=vmem, size = 0x2000, scoped, tag = 'scratch operand']
  #allocation5 [shape = 'f32[1152,32]{1,0:T(8,128)}', space=vmem, size = 0x90000, scoped, tag = 'scratch operand']
  #allocation6 [shape = 'f32[248,32]{1,0:T(8,128)}', space=vmem, size = 0x1f000, scoped, tag = 'scratch operand']
  #allocation7 [shape = 'f32[32,64]{1,0:T(8,128)}', space=vmem, size = 0x4000, scoped, tag = 'scratch operand']
  #allocation8 [shape = 'f32[8,128]{1,0:T(8,128)}', space=vmem, size = 0x1000, scoped, tag = 'scratch operand']
  %s0 = inlined_call_operand.vmem [shape: f32[2,2504,3], index: 0, kind: input, shape index: {}]
  %s1 = inlined_call_operand.vmem [shape: f32[3,3,3,32], index: 1, kind: input, shape index: {}]
  %s2 = inlined_call_operand.vmem [shape: f32[1,32], index: 2, kind: input, shape index: {}]
  %s3 = inlined_call_operand.vmem [shape: f32[3,3,32,32], index: 3, kind: input, shape index: {}]
  %s4 = inlined_call_operand.vmem [shape: f32[1,32], index: 4, kind: input, shape index: {}]
  %s5 = inlined_call_operand.vmem [shape: f32[3,3,32,64], index: 5, kind: input, shape index: {}]
  %s6 = inlined_call_operand.vmem [shape: f32[1,64], index: 6, kind: input, shape index: {}]
  %s7 = inlined_call_operand.vmem [shape: f32[3,3,64,128], index: 7, kind: input, shape index: {}]
  %s8 = inlined_call_operand.vmem [shape: f32[1,128], index: 8, kind: input, shape index: {}]
  %s9 = inlined_call_operand.hbm [shape: f32[2,1,128], index: 9, kind: output, shape index: {}]
  %s10 = sld [smem:[#allocation0]]
  $region83: #{tpu_custom_call.1} parent=0
    _
  %s12 = ssub.s32 1, %s10
  %s13 = scalar_select 0, %s12, %s10
  $region1: #{tpu_custom_call.1} parent=0
    #allocation9 [shape = 'u8[1024]{0}', space=vmem, size = 0x400, scoped, tag = 'output window, operand 0']
    #allocation10 [shape = 's32[2]{0}', space=sflag, size = 0x8, scoped, tag = 'scoped memory for tpu_custom_call.1']
    %14 = vsyncpa [#allocation10], 0
    %s15 = scalar_lea.sflag [#allocation10], 1
    %16 = vsyncpa %s15, 0
    loop: start=0, step=1, limit=4
    $region2: #{tpu_custom_call.1} parent=1 // loop_pre_header
      _
    $region3: #{tpu_custom_call.1} parent=1 // loop_header
      %s18 = sphi 0, %s22
      %p19 = scmp.ge.s32.totalorder %s18, 4
      %s28 = sphi 0, %s30
      %s31 = sphi 0, %s28
      %s32 = sphi 0, %s31
      %s48 = sphi 0, %s32
      %s52 = sphi 0, %s52
      %s54 = sphi 0, %s52
      %s55 = sphi 0, %s54
      %s69 = sphi 0, %s55
      %s73 = sphi 0, %s73
      %s75 = sphi 0, %s73
      %s76 = sphi 0, %s75
      %s90 = sphi 0, %s76
      %s94 = sphi 0, %s94
      %s96 = sphi 0, %s94
      %s97 = sphi 0, %s96
      %s111 = sphi 0, %s97
      %s115 = sphi 0, %s115
      %s117 = sphi 0, %s115
      %s118 = sphi 0, %s117
      %s132 = sphi 0, %s118
      %s136 = sphi 0, %s136
      %s138 = sphi 0, %s136
      %s139 = sphi 0, %s138
      %s153 = sphi 0, %s139
      %s157 = sphi 0, %s157
      %s159 = sphi 0, %s157
      %s160 = sphi 0, %s159
      %s174 = sphi 0, %s160
      %s178 = sphi 0, %s178
      %s180 = sphi 0, %s178
      %s181 = sphi 0, %s180
      %s195 = sphi 0, %s181
      %s199 = sphi 0, %s199
      %s201 = sphi 0, %s199
      %s202 = sphi 0, %s201
      %s216 = sphi 0, %s202
      %s222 = sphi 0, %s224
      %s225 = sphi 0, %s222
      %s226 = sphi 0, %s225
      %s242 = sphi 0, %s226
    $region4: #{tpu_custom_call.1} parent=1 // loop_header_branch
      %21 = sbr.rel (%p19) target = $region8
    $region5: #{tpu_custom_call.1} parent=1 // loop_body
      %s23 = ssub.s32 %s18, 1
      %s24 = ssub.s32 %s18, 2
      %s25 = sadd.s32 %s18, 1
      %s26 = ssub.s32 %s18, %s25
      %p27 = scmp.eq.s32.totalorder %s26, 0
      %s29 = sadd.s32 %s28, 1
      %s30 = scalar_select %p27, %s28, %s29
      %p33 = pneg %p27
      %p34 = scmp.eq.s32.totalorder %s18, 1
      %p35 = por %p33, %p34
      %p36 = scmp.ne.s32.totalorder %s28, %s31
      %p37 = scmp.eq.s32.totalorder %s18, 0
      %p38 = por %p36, %p37
      %p39 = scmp.ne.s32.totalorder %s28, %s31
      %p40 = scmp.eq.s32.totalorder %s23, 1
      %p41 = por %p39, %p40
      %p42 = scmp.ne.s32.totalorder %s31, %s32
      %p43 = scmp.eq.s32.totalorder %s23, 0
      %p44 = por %p42, %p43
      %p45 = scmp.ne.s32.totalorder %s31, %s32
      %p46 = scmp.eq.s32.totalorder %s24, 1
      %p47 = por %p45, %p46
      %p49 = scmp.ne.s32.totalorder %s32, %s48
      %p50 = scmp.eq.s32.totalorder %s24, 0
      %p51 = por %p49, %p50
      %s53 = sadd.s32 %s52, 1
      %p56 = scmp.eq.s32.totalorder %s18, 1
      %p57 = scmp.ne.s32.totalorder %s52, %s54
      %p58 = scmp.eq.s32.totalorder %s18, 0
      %p59 = por %p57, %p58
      %p60 = scmp.ne.s32.totalorder %s52, %s54
      %p61 = scmp.eq.s32.totalorder %s23, 1
      %p62 = por %p60, %p61
      %p63 = scmp.ne.s32.totalorder %s54, %s55
      %p64 = scmp.eq.s32.totalorder %s23, 0
      %p65 = por %p63, %p64
      %p66 = scmp.ne.s32.totalorder %s54, %s55
      %p67 = scmp.eq.s32.totalorder %s24, 1
      %p68 = por %p66, %p67
      %p70 = scmp.ne.s32.totalorder %s55, %s69
      %p71 = scmp.eq.s32.totalorder %s24, 0
      %p72 = por %p70, %p71
      %s74 = sadd.s32 %s73, 1
      %p77 = scmp.eq.s32.totalorder %s18, 1
      %p78 = scmp.ne.s32.totalorder %s73, %s75
      %p79 = scmp.eq.s32.totalorder %s18, 0
      %p80 = por %p78, %p79
      %p81 = scmp.ne.s32.totalorder %s73, %s75
      %p82 = scmp.eq.s32.totalorder %s23, 1
      %p83 = por %p81, %p82
      %p84 = scmp.ne.s32.totalorder %s75, %s76
      %p85 = scmp.eq.s32.totalorder %s23, 0
      %p86 = por %p84, %p85
      %p87 = scmp.ne.s32.totalorder %s75, %s76
      %p88 = scmp.eq.s32.totalorder %s24, 1
      %p89 = por %p87, %p88
      %p91 = scmp.ne.s32.totalorder %s76, %s90
      %p92 = scmp.eq.s32.totalorder %s24, 0
      %p93 = por %p91, %p92
      %s95 = sadd.s32 %s94, 1
      %p98 = scmp.eq.s32.totalorder %s18, 1
      %p99 = scmp.ne.s32.totalorder %s94, %s96
      %p100 = scmp.eq.s32.totalorder %s18, 0
      %p101 = por %p99, %p100
      %p102 = scmp.ne.s32.totalorder %s94, %s96
      %p103 = scmp.eq.s32.totalorder %s23, 1
      %p104 = por %p102, %p103
      %p105 = scmp.ne.s32.totalorder %s96, %s97
      %p106 = scmp.eq.s32.totalorder %s23, 0
      %p107 = por %p105, %p106
      %p108 = scmp.ne.s32.totalorder %s96, %s97
      %p109 = scmp.eq.s32.totalorder %s24, 1
      %p110 = por %p108, %p109
      %p112 = scmp.ne.s32.totalorder %s97, %s111
      %p113 = scmp.eq.s32.totalorder %s24, 0
      %p114 = por %p112, %p113
      %s116 = sadd.s32 %s115, 1
      %p119 = scmp.eq.s32.totalorder %s18, 1
      %p120 = scmp.ne.s32.totalorder %s115, %s117
      %p121 = scmp.eq.s32.totalorder %s18, 0
      %p122 = por %p120, %p121
      %p123 = scmp.ne.s32.totalorder %s115, %s117
      %p124 = scmp.eq.s32.totalorder %s23, 1
      %p125 = por %p123, %p124
      %p126 = scmp.ne.s32.totalorder %s117, %s118
      %p127 = scmp.eq.s32.totalorder %s23, 0
      %p128 = por %p126, %p127
      %p129 = scmp.ne.s32.totalorder %s117, %s118
      %p130 = scmp.eq.s32.totalorder %s24, 1
      %p131 = por %p129, %p130
      %p133 = scmp.ne.s32.totalorder %s118, %s132
      %p134 = scmp.eq.s32.totalorder %s24, 0
      %p135 = por %p133, %p134
      %s137 = sadd.s32 %s136, 1
      %p140 = scmp.eq.s32.totalorder %s18, 1
      %p141 = scmp.ne.s32.totalorder %s136, %s138
      %p142 = scmp.eq.s32.totalorder %s18, 0
      %p143 = por %p141, %p142
      %p144 = scmp.ne.s32.totalorder %s136, %s138
      %p145 = scmp.eq.s32.totalorder %s23, 1
      %p146 = por %p144, %p145
      %p147 = scmp.ne.s32.totalorder %s138, %s139
      %p148 = scmp.eq.s32.totalorder %s23, 0
      %p149 = por %p147, %p148
      %p150 = scmp.ne.s32.totalorder %s138, %s139
      %p151 = scmp.eq.s32.totalorder %s24, 1
      %p152 = por %p150, %p151
      %p154 = scmp.ne.s32.totalorder %s139, %s153
      %p155 = scmp.eq.s32.totalorder %s24, 0
      %p156 = por %p154, %p155
      %s158 = sadd.s32 %s157, 1
      %p161 = scmp.eq.s32.totalorder %s18, 1
      %p162 = scmp.ne.s32.totalorder %s157, %s159
      %p163 = scmp.eq.s32.totalorder %s18, 0
      %p164 = por %p162, %p163
      %p165 = scmp.ne.s32.totalorder %s157, %s159
      %p166 = scmp.eq.s32.totalorder %s23, 1
      %p167 = por %p165, %p166
      %p168 = scmp.ne.s32.totalorder %s159, %s160
      %p169 = scmp.eq.s32.totalorder %s23, 0
      %p170 = por %p168, %p169
      %p171 = scmp.ne.s32.totalorder %s159, %s160
      %p172 = scmp.eq.s32.totalorder %s24, 1
      %p173 = por %p171, %p172
      %p175 = scmp.ne.s32.totalorder %s160, %s174
      %p176 = scmp.eq.s32.totalorder %s24, 0
      %p177 = por %p175, %p176
      %s179 = sadd.s32 %s178, 1
      %p182 = scmp.eq.s32.totalorder %s18, 1
      %p183 = scmp.ne.s32.totalorder %s178, %s180
      %p184 = scmp.eq.s32.totalorder %s18, 0
      %p185 = por %p183, %p184
      %p186 = scmp.ne.s32.totalorder %s178, %s180
      %p187 = scmp.eq.s32.totalorder %s23, 1
      %p188 = por %p186, %p187
      %p189 = scmp.ne.s32.totalorder %s180, %s181
      %p190 = scmp.eq.s32.totalorder %s23, 0
      %p191 = por %p189, %p190
      %p192 = scmp.ne.s32.totalorder %s180, %s181
      %p193 = scmp.eq.s32.totalorder %s24, 1
      %p194 = por %p192, %p193
      %p196 = scmp.ne.s32.totalorder %s181, %s195
      %p197 = scmp.eq.s32.totalorder %s24, 0
      %p198 = por %p196, %p197
      %s200 = sadd.s32 %s199, 1
      %p203 = scmp.eq.s32.totalorder %s18, 1
      %p204 = scmp.ne.s32.totalorder %s199, %s201
      %p205 = scmp.eq.s32.totalorder %s18, 0
      %p206 = por %p204, %p205
      %p207 = scmp.ne.s32.totalorder %s199, %s201
      %p208 = scmp.eq.s32.totalorder %s23, 1
      %p209 = por %p207, %p208
      %p210 = scmp.ne.s32.totalorder %s201, %s202
      %p211 = scmp.eq.s32.totalorder %s23, 0
      %p212 = por %p210, %p211
      %p213 = scmp.ne.s32.totalorder %s201, %s202
      %p214 = scmp.eq.s32.totalorder %s24, 1
      %p215 = por %p213, %p214
      %p217 = scmp.ne.s32.totalorder %s202, %s216
      %p218 = scmp.eq.s32.totalorder %s24, 0
      %p219 = por %p217, %p218
      %s220 = ssub.s32 %s18, %s25
      %p221 = scmp.eq.s32.totalorder %s220, 0
      %s223 = sadd.s32 %s222, 1
      %s224 = scalar_select %p221, %s222, %s223
      %p227 = pneg %p221
      %p228 = scmp.eq.s32.totalorder %s18, 1
      %p229 = por %p227, %p228
      %p230 = scmp.ne.s32.totalorder %s222, %s225
      %p231 = scmp.eq.s32.totalorder %s18, 0
      %p232 = por %p230, %p231
      %p233 = scmp.ne.s32.totalorder %s222, %s225
      %p234 = scmp.eq.s32.totalorder %s23, 1
      %p235 = por %p233, %p234
      %p236 = scmp.ne.s32.totalorder %s225, %s226
      %p237 = scmp.eq.s32.totalorder %s23, 0
      %p238 = por %p236, %p237
      %p239 = scmp.ne.s32.totalorder %s225, %s226
      %p240 = scmp.eq.s32.totalorder %s24, 1
      %p241 = por %p239, %p240
      %p243 = scmp.ne.s32.totalorder %s226, %s242
      %p244 = scmp.eq.s32.totalorder %s24, 0
      %p245 = por %p243, %p244
      %p246 = scmp.le.s32.totalorder 1, %s18
      %p247 = scmp.lt.s32.totalorder %s18, 3
      %p248 = pnand %p246, %p247
      %p249 = pneg %p248
      // Predicated region
      $region9: #{tpu_custom_call.1} parent=5 // pred_check
        _
      $region10: #{tpu_custom_call.1} parent=5 // pred_check_branch
        %251 = sbr.rel (%p248) target = $region12
      $region11: #{tpu_custom_call.1} parent=5 // pred_region
        %s252 = ssub.s32 %s18, 1
        // Predicated region
        $region13: #{tpu_custom_call.1} parent=11 // pred_check
          %p253 = pneg %p65
        $region14: #{tpu_custom_call.1} parent=11 // pred_check_branch
          %255 = sbr.rel (%p253) target = $region16
        $region15: #{tpu_custom_call.1} parent=11 // pred_region
          _
        $region16: #{tpu_custom_call.1} parent=11 // pred_fallthru
          _
        // Predicated region
        $region17: #{tpu_custom_call.1} parent=11 // pred_check
          %p256 = pneg %p86
        $region18: #{tpu_custom_call.1} parent=11 // pred_check_branch
          %258 = sbr.rel (%p256) target = $region20
        $region19: #{tpu_custom_call.1} parent=11 // pred_region
          _
        $region20: #{tpu_custom_call.1} parent=11 // pred_fallthru
          _
        // Predicated region
        $region21: #{tpu_custom_call.1} parent=11 // pred_check
          %p259 = pneg %p107
        $region22: #{tpu_custom_call.1} parent=11 // pred_check_branch
          %261 = sbr.rel (%p259) target = $region24
        $region23: #{tpu_custom_call.1} parent=11 // pred_region
          _
        $region24: #{tpu_custom_call.1} parent=11 // pred_fallthru
          _
        // Predicated region
        $region25: #{tpu_custom_call.1} parent=11 // pred_check
          %p262 = pneg %p128
        $region26: #{tpu_custom_call.1} parent=11 // pred_check_branch
          %264 = sbr.rel (%p262) target = $region28
        $region27: #{tpu_custom_call.1} parent=11 // pred_region
          _
        $region28: #{tpu_custom_call.1} parent=11 // pred_fallthru
          _
        // Predicated region
        $region29: #{tpu_custom_call.1} parent=11 // pred_check
          %p265 = pneg %p149
        $region30: #{tpu_custom_call.1} parent=11 // pred_check_branch
          %267 = sbr.rel (%p265) target = $region32
        $region31: #{tpu_custom_call.1} parent=11 // pred_region
          _
        $region32: #{tpu_custom_call.1} parent=11 // pred_fallthru
          _
        // Predicated region
        $region33: #{tpu_custom_call.1} parent=11 // pred_check
          %p268 = pneg %p170
        $region34: #{tpu_custom_call.1} parent=11 // pred_check_branch
          %270 = sbr.rel (%p268) target = $region36
        $region35: #{tpu_custom_call.1} parent=11 // pred_region
          _
        $region36: #{tpu_custom_call.1} parent=11 // pred_fallthru
          _
        // Predicated region
        $region37: #{tpu_custom_call.1} parent=11 // pred_check
          %p271 = pneg %p191
        $region38: #{tpu_custom_call.1} parent=11 // pred_check_branch
          %273 = sbr.rel (%p271) target = $region40
        $region39: #{tpu_custom_call.1} parent=11 // pred_region
          _
        $region40: #{tpu_custom_call.1} parent=11 // pred_fallthru
          _
        // Predicated region
        $region41: #{tpu_custom_call.1} parent=11 // pred_check
          %p274 = pneg %p212
        $region42: #{tpu_custom_call.1} parent=11 // pred_check_branch
          %276 = sbr.rel (%p274) target = $region44
        $region43: #{tpu_custom_call.1} parent=11 // pred_region
          _
        $region44: #{tpu_custom_call.1} parent=11 // pred_fallthru
          _
      $region12: #{tpu_custom_call.1} parent=5 // pred_fallthru
        _
      %p277 = scmp.lt.s32.totalorder %s18, 2
      // Predicated region
      $region45: #{tpu_custom_call.1} parent=5 // pred_check
        %p278 = pneg %p277
      $region46: #{tpu_custom_call.1} parent=5 // pred_check_branch
        %280 = sbr.rel (%p278) target = $region48
      $region47: #{tpu_custom_call.1} parent=5 // pred_region
        // Predicated region
        $region49: #{tpu_custom_call.1} parent=47 // pred_check
          %p281 = pneg %p38
        $region50: #{tpu_custom_call.1} parent=47 // pred_check_branch
          %283 = sbr.rel (%p281) target = $region52
        $region51: #{tpu_custom_call.1} parent=47 // pred_region
          %p284 = scmp.lt.s32.totalorder %s18, 1
          %s285 = scalar_select %p284, %s18, 1
          %s286 = smul.addr %s285, 313
          %s287 = smul.addr %s286, 8
          %s288 = scalar_lea.vmem %s0, %s287
        $region52: #{tpu_custom_call.1} parent=47 // pred_fallthru
          _
      $region48: #{tpu_custom_call.1} parent=5 // pred_fallthru
        _
      %p289 = scmp.le.s32.totalorder 1, %s18
      %p290 = scmp.lt.s32.totalorder %s18, 3
      %p291 = pnand %p289, %p290
      %p292 = pneg %p291
      // Predicated region
      $region53: #{tpu_custom_call.1} parent=5 // pred_check
        _
      $region54: #{tpu_custom_call.1} parent=5 // pred_check_branch
        %294 = sbr.rel (%p291) target = $region56
      $region55: #{tpu_custom_call.1} parent=5 // pred_region
        %s295 = ssub.s32 %s18, 1
        %p296 = scmp.lt.s32.totalorder %s23, 1
        %s297 = scalar_select %p296, %s23, 1
        %s298 = smul.addr %s297, 313
        %s299 = smul.addr %s298, 8
        %s300 = scalar_lea.vmem %s0, %s299
        %p301 = pneg %p44
        %p302 = pneg %p41
        %p303 = pneg %p65
        %p304 = pneg %p62
        %p305 = pneg %p86
        %p306 = pneg %p83
        %p307 = pneg %p107
        %p308 = pneg %p104
        %p309 = pneg %p128
        %p310 = pneg %p125
        %p311 = pneg %p149
        %p312 = pneg %p146
        %p313 = pneg %p170
        %p314 = pneg %p167
        %p315 = pneg %p191
        %p316 = pneg %p188
        %p317 = pneg %p212
        %p318 = pneg %p209
        %p319 = pneg %p238
        %p320 = pneg %p235
        %s321 = sand.u32 %s225, 1
        %s322 = scalar_lea.sflag [#allocation10], %s321
        %s323 = sand.u32 %s225, 1
        %s324 = scalar_lea.vmem [#allocation9], %s323
        %p325 = scmp.lt.s32.totalorder %s23, 1
        %s326 = scalar_select %p325, %s23, 1
        %s327 = smul.addr %s326, 313
        %s328 = smul.addr %s327, 8
        %s329 = scalar_lea.vmem %s0, %s328
        %v330 = vld [vmem:[%s2] sm:$0x1]
        loop: start=0, step=1, limit=24
        $region57: #{tpu_custom_call.1} parent=55 // loop_pre_header
          _
        $region58: #{tpu_custom_call.1} parent=55 // loop_header
          %s332 = sphi 0, %s336
          %p333 = scmp.ge.s32.totalorder %s332, 24
        $region59: #{tpu_custom_call.1} parent=55 // loop_header_branch
          %335 = sbr.rel (%p333) target = $region63
        $region60: #{tpu_custom_call.1} parent=55 // loop_body
          %s337 = smul.u32 %s332, 100
          %v338 = vld [vmem:[%s1] sm:$0x7]
          %s339 = scalar_lea.vmem %s329, %s337
          %v340 = vld [vmem:[%s339] sm:$0xff]
          %v341 = vld [vmem:[%s339 + $0x8] sm:$0xff]
          %v342 = vld [vmem:[%s339 + $0x10] sm:$0xff]
          %v343 = vld [vmem:[%s339 + $0x18] sm:$0xff]
          %v344 = vld [vmem:[%s339 + $0x20] sm:$0xff]
          %v345 = vld [vmem:[%s339 + $0x28] sm:$0xff]
          %s346 = sadd.s32 %s337, 50
          %s347 = scalar_lea.vmem %s329, %s346
          %v348 = vld [vmem:[%s347] sm:$0xff]
          %v349 = vld [vmem:[%s347 + $0x8] sm:$0xff]
          %v350 = vld [vmem:[%s347 + $0x10] sm:$0xff]
          %v351 = vld [vmem:[%s347 + $0x18] sm:$0xff]
          %v352 = vld [vmem:[%s347 + $0x20] sm:$0xff]
          %v353 = vld [vmem:[%s347 + $0x28] sm:$0xff]
          %s354 = scalar_lea.vmem %s1, 4
          %v355 = vld [vmem:[%s354] sm:$0x7]
          %s356 = sadd.s32 %s337, 1
          %s357 = scalar_lea.vmem %s329, %s356
          %v358 = vld [vmem:[%s357] sm:$0xff]
          %v359 = vld [vmem:[%s357 + $0x8] sm:$0xff]
          %v360 = vld [vmem:[%s357 + $0x10] sm:$0xff]
          %v361 = vld [vmem:[%s357 + $0x18] sm:$0xff]
          %v362 = vld [vmem:[%s357 + $0x20] sm:$0xff]
          %v363 = vld [vmem:[%s357 + $0x28] sm:$0xff]
          %vm364 = vcmask 23552
          %v366 = vsel %vm364, %v358, 0
          %v369 = vsel %vm364, %v359, 0
          %v372 = vsel %vm364, %v360, 0
          %v375 = vsel %vm364, %v361, 0
          %v378 = vsel %vm364, %v362, 0
          %v381 = vsel %vm364, %v363, 0
          %vm383 = vcmask 1042432
          %v385 = vsel %vm383, %v355, 0
          %387 = vmatpush.msra.mxu0 0.0
          %388 = vmatpush.msra.mxu0 0.0
          %389 = vmatpush.msra.mxu0 0.0
          %390 = vmatpush.msra.mxu0 0.0
          %391 = vmatpush.msra.mxu0 0.0
          %392 = vmatpush.msra.mxu0 0.0
          %393 = vmatpush.msra.mxu0 0.0
          %394 = vmatpush.msra.mxu0 0.0
          %395 = vmatpush.msra.mxu0 0.0
          %396 = vmatpush.msra.mxu0 0.0
          %397 = vmatpush.msra.mxu0 0.0
          %398 = vmatpush.msra.mxu0 0.0
          %399 = vmatpush.msra.mxu0 0.0
          %400 = vmatpush.msra.mxu0 0.0
          %401 = vmatpush.msra.mxu0 0.0
          %402 = vmatpush.msra.mxu0 %v385
          %403 = vmatmul.f32.gmra.mxu0 %v366
          %v404 = vpop.f32.mrf.mxu0
          %v405 = vadd.f32 0.0, %v404
          %406 = vmatmul.f32.gmra.mxu0 %v369
          %v407 = vpop.f32.mrf.mxu0
          %v408 = vadd.f32 0.0, %v407
          %409 = vmatmul.f32.gmra.mxu0 %v372
          %v410 = vpop.f32.mrf.mxu0
          %v411 = vadd.f32 0.0, %v410
          %412 = vmatmul.f32.gmra.mxu0 %v375
          %v413 = vpop.f32.mrf.mxu0
          %v414 = vadd.f32 0.0, %v413
          %415 = vmatmul.f32.gmra.mxu0 %v378
          %v416 = vpop.f32.mrf.mxu0
          %v417 = vadd.f32 0.0, %v416
          %418 = vmatmul.f32.gmra.mxu0 %v381
          %v419 = vpop.f32.mrf.mxu0
          %v420 = vadd.f32 0.0, %v419
          %421 = vdwg.mxu0
          %v423 = vsel %vm364, %v340, 0
          %v426 = vsel %vm364, %v341, 0
          %v429 = vsel %vm364, %v342, 0
          %v432 = vsel %vm364, %v343, 0
          %v435 = vsel %vm364, %v344, 0
          %v438 = vsel %vm364, %v345, 0
          %v441 = vsel %vm383, %v338, 0
          %443 = vmatpush.msra.mxu0 0.0
          %444 = vmatpush.msra.mxu0 0.0
          %445 = vmatpush.msra.mxu0 0.0
          %446 = vmatpush.msra.mxu0 0.0
          %447 = vmatpush.msra.mxu0 0.0
          %448 = vmatpush.msra.mxu0 0.0
          %449 = vmatpush.msra.mxu0 0.0
          %450 = vmatpush.msra.mxu0 0.0
          %451 = vmatpush.msra.mxu0 0.0
          %452 = vmatpush.msra.mxu0 0.0
          %453 = vmatpush.msra.mxu0 0.0
          %454 = vmatpush.msra.mxu0 0.0
          %455 = vmatpush.msra.mxu0 0.0
          %456 = vmatpush.msra.mxu0 0.0
          %457 = vmatpush.msra.mxu0 0.0
          %458 = vmatpush.msra.mxu0 %v441
          %459 = vmatmul.f32.gmra.mxu0 %v423
          %v460 = vpop.f32.mrf.mxu0
          %v461 = vadd.f32 %v405, %v460
          %462 = vmatmul.f32.gmra.mxu0 %v426
          %v463 = vpop.f32.mrf.mxu0
          %v464 = vadd.f32 %v408, %v463
          %465 = vmatmul.f32.gmra.mxu0 %v429
          %v466 = vpop.f32.mrf.mxu0
          %v467 = vadd.f32 %v411, %v466
          %468 = vmatmul.f32.gmra.mxu0 %v432
          %v469 = vpop.f32.mrf.mxu0
          %v470 = vadd.f32 %v414, %v469
          %471 = vmatmul.f32.gmra.mxu0 %v435
          %v472 = vpop.f32.mrf.mxu0
          %v473 = vadd.f32 %v417, %v472
          %474 = vmatmul.f32.gmra.mxu0 %v438
          %v475 = vpop.f32.mrf.mxu0
          %v476 = vadd.f32 %v420, %v475
          %477 = vdwg.mxu0
          %s478 = sadd.s32 %s337, 51
          %s479 = scalar_lea.vmem %s329, %s478
          %v480 = vld [vmem:[%s479] sm:$0xff]
          %v481 = vld [vmem:[%s479 + $0x8] sm:$0xff]
          %v482 = vld [vmem:[%s479 + $0x10] sm:$0xff]
          %v483 = vld [vmem:[%s479 + $0x18] sm:$0xff]
          %v484 = vld [vmem:[%s479 + $0x20] sm:$0xff]
          %v485 = vld [vmem:[%s479 + $0x28] sm:$0xff]
          %v487 = vsel %vm364, %v480, 0
          %v490 = vsel %vm364, %v481, 0
          %v493 = vsel %vm364, %v482, 0
          %v496 = vsel %vm364, %v483, 0
          %v499 = vsel %vm364, %v484, 0
          %v502 = vsel %vm364, %v485, 0
          %504 = vmatpush.msra.mxu0 0.0
          %505 = vmatpush.msra.mxu0 0.0
          %506 = vmatpush.msra.mxu0 0.0
          %507 = vmatpush.msra.mxu0 0.0
          %508 = vmatpush.msra.mxu0 0.0
          %509 = vmatpush.msra.mxu0 0.0
          %510 = vmatpush.msra.mxu0 0.0
          %511 = vmatpush.msra.mxu0 0.0
          %512 = vmatpush.msra.mxu0 0.0
          %513 = vmatpush.msra.mxu0 0.0
          %514 = vmatpush.msra.mxu0 0.0
          %515 = vmatpush.msra.mxu0 0.0
          %516 = vmatpush.msra.mxu0 0.0
          %517 = vmatpush.msra.mxu0 0.0
          %518 = vmatpush.msra.mxu0 0.0
          %519 = vmatpush.msra.mxu0 %v385
          %520 = vmatmul.f32.gmra.mxu0 %v487
          %v521 = vpop.f32.mrf.mxu0
          %v522 = vadd.f32 0.0, %v521
          %523 = vmatmul.f32.gmra.mxu0 %v490
          %v524 = vpop.f32.mrf.mxu0
          %v525 = vadd.f32 0.0, %v524
          %526 = vmatmul.f32.gmra.mxu0 %v493
          %v527 = vpop.f32.mrf.mxu0
          %v528 = vadd.f32 0.0, %v527
          %529 = vmatmul.f32.gmra.mxu0 %v496
          %v530 = vpop.f32.mrf.mxu0
          %v531 = vadd.f32 0.0, %v530
          %532 = vmatmul.f32.gmra.mxu0 %v499
          %v533 = vpop.f32.mrf.mxu0
          %v534 = vadd.f32 0.0, %v533
          %535 = vmatmul.f32.gmra.mxu0 %v502
          %v536 = vpop.f32.mrf.mxu0
          %v537 = vadd.f32 0.0, %v536
          %538 = vdwg.mxu0
          %v540 = vsel %vm364, %v348, 0
          %v543 = vsel %vm364, %v349, 0
          %v546 = vsel %vm364, %v350, 0
          %v549 = vsel %vm364, %v351, 0
          %v552 = vsel %vm364, %v352, 0
          %v555 = vsel %vm364, %v353, 0
          %557 = vmatpush.msra.mxu0 0.0
          %558 = vmatpush.msra.mxu0 0.0
          %559 = vmatpush.msra.mxu0 0.0
          %560 = vmatpush.msra.mxu0 0.0
          %561 = vmatpush.msra.mxu0 0.0
          %562 = vmatpush.msra.mxu0 0.0
          %563 = vmatpush.msra.mxu0 0.0
          %564 = vmatpush.msra.mxu0 0.0
          %565 = vmatpush.msra.mxu0 0.0
          %566 = vmatpush.msra.mxu0 0.0
          %567 = vmatpush.msra.mxu0 0.0
          %568 = vmatpush.msra.mxu0 0.0
          %569 = vmatpush.msra.mxu0 0.0
          %570 = vmatpush.msra.mxu0 0.0
          %571 = vmatpush.msra.mxu0 0.0
          %572 = vmatpush.msra.mxu0 %v441
          %573 = vmatmul.f32.gmra.mxu0 %v540
          %v574 = vpop.f32.mrf.mxu0
          %v575 = vadd.f32 %v522, %v574
          %576 = vmatmul.f32.gmra.mxu0 %v543
          %v577 = vpop.f32.mrf.mxu0
          %v578 = vadd.f32 %v525, %v577
          %579 = vmatmul.f32.gmra.mxu0 %v546
          %v580 = vpop.f32.mrf.mxu0
          %v581 = vadd.f32 %v528, %v580
          %582 = vmatmul.f32.gmra.mxu0 %v549
          %v583 = vpop.f32.mrf.mxu0
          %v584 = vadd.f32 %v531, %v583
          %585 = vmatmul.f32.gmra.mxu0 %v552
          %v586 = vpop.f32.mrf.mxu0
          %v587 = vadd.f32 %v534, %v586
          %588 = vmatmul.f32.gmra.mxu0 %v555
          %v589 = vpop.f32.mrf.mxu0
          %v590 = vadd.f32 %v537, %v589
          %591 = vdwg.mxu0
          %s592 = scalar_lea.vmem %s1, 8
          %v593 = vld [vmem:[%s592] sm:$0x7]
          %s594 = sadd.s32 %s337, 2
          %s595 = scalar_lea.vmem %s329, %s594
          %v596 = vld [vmem:[%s595] sm:$0xff]
          %v597 = vld [vmem:[%s595 + $0x8] sm:$0xff]
          %v598 = vld [vmem:[%s595 + $0x10] sm:$0xff]
          %v599 = vld [vmem:[%s595 + $0x18] sm:$0xff]
          %v600 = vld [vmem:[%s595 + $0x20] sm:$0xff]
          %v601 = vld [vmem:[%s595 + $0x28] sm:$0xff]
          %v603 = vsel %vm364, %v596, 0
          %v606 = vsel %vm364, %v597, 0
          %v609 = vsel %vm364, %v598, 0
          %v612 = vsel %vm364, %v599, 0
          %v615 = vsel %vm364, %v600, 0
          %v618 = vsel %vm364, %v601, 0
          %v621 = vsel %vm383, %v593, 0
          %623 = vmatpush.msra.mxu0 0.0
          %624 = vmatpush.msra.mxu0 0.0
          %625 = vmatpush.msra.mxu0 0.0
          %626 = vmatpush.msra.mxu0 0.0
          %627 = vmatpush.msra.mxu0 0.0
          %628 = vmatpush.msra.mxu0 0.0
          %629 = vmatpush.msra.mxu0 0.0
          %630 = vmatpush.msra.mxu0 0.0
          %631 = vmatpush.msra.mxu0 0.0
          %632 = vmatpush.msra.mxu0 0.0
          %633 = vmatpush.msra.mxu0 0.0
          %634 = vmatpush.msra.mxu0 0.0
          %635 = vmatpush.msra.mxu0 0.0
          %636 = vmatpush.msra.mxu0 0.0
          %637 = vmatpush.msra.mxu0 0.0
          %638 = vmatpush.msra.mxu0 %v621
          %639 = vmatmul.f32.gmra.mxu0 %v603
          %v640 = vpop.f32.mrf.mxu0
          %v641 = vadd.f32 0.0, %v640
          %642 = vmatmul.f32.gmra.mxu0 %v606
          %v643 = vpop.f32.mrf.mxu0
          %v644 = vadd.f32 0.0, %v643
          %645 = vmatmul.f32.gmra.mxu0 %v609
          %v646 = vpop.f32.mrf.mxu0
          %v647 = vadd.f32 0.0, %v646
          %648 = vmatmul.f32.gmra.mxu0 %v612
          %v649 = vpop.f32.mrf.mxu0
          %v650 = vadd.f32 0.0, %v649
          %651 = vmatmul.f32.gmra.mxu0 %v615
          %v652 = vpop.f32.mrf.mxu0
          %v653 = vadd.f32 0.0, %v652
          %654 = vmatmul.f32.gmra.mxu0 %v618
          %v655 = vpop.f32.mrf.mxu0
          %v656 = vadd.f32 0.0, %v655
          %657 = vdwg.mxu0
          %v658 = vadd.f32 %v461, %v641
          %v659 = vadd.f32 %v464, %v644
          %v660 = vadd.f32 %v467, %v647
          %v661 = vadd.f32 %v470, %v650
          %v662 = vadd.f32 %v473, %v653
          %v663 = vadd.f32 %v476, %v656
          %s664 = sadd.s32 %s337, 52
          %s665 = scalar_lea.vmem %s329, %s664
          %v666 = vld [vmem:[%s665] sm:$0xff]
          %v667 = vld [vmem:[%s665 + $0x8] sm:$0xff]
          %v668 = vld [vmem:[%s665 + $0x10] sm:$0xff]
          %v669 = vld [vmem:[%s665 + $0x18] sm:$0xff]
          %v670 = vld [vmem:[%s665 + $0x20] sm:$0xff]
          %v671 = vld [vmem:[%s665 + $0x28] sm:$0xff]
          %v673 = vsel %vm364, %v666, 0
          %v676 = vsel %vm364, %v667, 0
          %v679 = vsel %vm364, %v668, 0
          %v682 = vsel %vm364, %v669, 0
          %v685 = vsel %vm364, %v670, 0
          %v688 = vsel %vm364, %v671, 0
          %690 = vmatpush.msra.mxu0 0.0
          %691 = vmatpush.msra.mxu0 0.0
          %692 = vmatpush.msra.mxu0 0.0
          %693 = vmatpush.msra.mxu0 0.0
          %694 = vmatpush.msra.mxu0 0.0
          %695 = vmatpush.msra.mxu0 0.0
          %696 = vmatpush.msra.mxu0 0.0
          %697 = vmatpush.msra.mxu0 0.0
          %698 = vmatpush.msra.mxu0 0.0
          %699 = vmatpush.msra.mxu0 0.0
          %700 = vmatpush.msra.mxu0 0.0
          %701 = vmatpush.msra.mxu0 0.0
          %702 = vmatpush.msra.mxu0 0.0
          %703 = vmatpush.msra.mxu0 0.0
          %704 = vmatpush.msra.mxu0 0.0
          %705 = vmatpush.msra.mxu0 %v621
          %706 = vmatmul.f32.gmra.mxu0 %v673
          %v707 = vpop.f32.mrf.mxu0
          %v708 = vadd.f32 0.0, %v707
          %709 = vmatmul.f32.gmra.mxu0 %v676
          %v710 = vpop.f32.mrf.mxu0
          %v711 = vadd.f32 0.0, %v710
          %712 = vmatmul.f32.gmra.mxu0 %v679
          %v713 = vpop.f32.mrf.mxu0
          %v714 = vadd.f32 0.0, %v713
          %715 = vmatmul.f32.gmra.mxu0 %v682
          %v716 = vpop.f32.mrf.mxu0
          %v717 = vadd.f32 0.0, %v716
          %718 = vmatmul.f32.gmra.mxu0 %v685
          %v719 = vpop.f32.mrf.mxu0
          %v720 = vadd.f32 0.0, %v719
          %721 = vmatmul.f32.gmra.mxu0 %v688
          %v722 = vpop.f32.mrf.mxu0
          %v723 = vadd.f32 0.0, %v722
          %724 = vdwg.mxu0
          %v725 = vadd.f32 %v575, %v708
          %v726 = vadd.f32 %v578, %v711
          %v727 = vadd.f32 %v581, %v714
          %v728 = vadd.f32 %v584, %v717
          %v729 = vadd.f32 %v587, %v720
          %v730 = vadd.f32 %v590, %v723
          %s731 = scalar_lea.vmem %s1, 12
          %v732 = vld [vmem:[%s731] sm:$0x7]
          %v734 = vsel %vm383, %v732, 0
          %736 = vmatpush.msra.mxu0 0.0
          %737 = vmatpush.msra.mxu0 0.0
          %738 = vmatpush.msra.mxu0 0.0
          %739 = vmatpush.msra.mxu0 0.0
          %740 = vmatpush.msra.mxu0 0.0
          %741 = vmatpush.msra.mxu0 0.0
          %742 = vmatpush.msra.mxu0 0.0
          %743 = vmatpush.msra.mxu0 0.0
          %744 = vmatpush.msra.mxu0 0.0
          %745 = vmatpush.msra.mxu0 0.0
          %746 = vmatpush.msra.mxu0 0.0
          %747 = vmatpush.msra.mxu0 0.0
          %748 = vmatpush.msra.mxu0 0.0
          %749 = vmatpush.msra.mxu0 0.0
          %750 = vmatpush.msra.mxu0 0.0
          %751 = vmatpush.msra.mxu0 %v734
          %752 = vmatmul.f32.gmra.mxu0 %v540
          %v753 = vpop.f32.mrf.mxu0
          %v754 = vadd.f32 0.0, %v753
          %755 = vmatmul.f32.gmra.mxu0 %v543
          %v756 = vpop.f32.mrf.mxu0
          %v757 = vadd.f32 0.0, %v756
          %758 = vmatmul.f32.gmra.mxu0 %v546
          %v759 = vpop.f32.mrf.mxu0
          %v760 = vadd.f32 0.0, %v759
          %761 = vmatmul.f32.gmra.mxu0 %v549
          %v762 = vpop.f32.mrf.mxu0
          %v763 = vadd.f32 0.0, %v762
          %764 = vmatmul.f32.gmra.mxu0 %v552
          %v765 = vpop.f32.mrf.mxu0
          %v766 = vadd.f32 0.0, %v765
          %767 = vmatmul.f32.gmra.mxu0 %v555
          %v768 = vpop.f32.mrf.mxu0
          %v769 = vadd.f32 0.0, %v768
          %770 = vdwg.mxu0
          %v771 = vadd.f32 %v658, %v754
          %v772 = vadd.f32 %v659, %v757
          %v773 = vadd.f32 %v660, %v760
          %v774 = vadd.f32 %v661, %v763
          %v775 = vadd.f32 %v662, %v766
          %v776 = vadd.f32 %v663, %v769
          %s777 = sadd.s32 %s337, 100
          %s778 = scalar_lea.vmem %s329, %s777
          %v779 = vld [vmem:[%s778] sm:$0xff]
          %v780 = vld [vmem:[%s778 + $0x8] sm:$0xff]
          %v781 = vld [vmem:[%s778 + $0x10] sm:$0xff]
          %v782 = vld [vmem:[%s778 + $0x18] sm:$0xff]
          %v783 = vld [vmem:[%s778 + $0x20] sm:$0xff]
          %v784 = vld [vmem:[%s778 + $0x28] sm:$0xff]
          %v786 = vsel %vm364, %v779, 0
          %v789 = vsel %vm364, %v780, 0
          %v792 = vsel %vm364, %v781, 0
          %v795 = vsel %vm364, %v782, 0
          %v798 = vsel %vm364, %v783, 0
          %v801 = vsel %vm364, %v784, 0
          %803 = vmatpush.msra.mxu0 0.0
          %804 = vmatpush.msra.mxu0 0.0
          %805 = vmatpush.msra.mxu0 0.0
          %806 = vmatpush.msra.mxu0 0.0
          %807 = vmatpush.msra.mxu0 0.0
          %808 = vmatpush.msra.mxu0 0.0
          %809 = vmatpush.msra.mxu0 0.0
          %810 = vmatpush.msra.mxu0 0.0
          %811 = vmatpush.msra.mxu0 0.0
          %812 = vmatpush.msra.mxu0 0.0
          %813 = vmatpush.msra.mxu0 0.0
          %814 = vmatpush.msra.mxu0 0.0
          %815 = vmatpush.msra.mxu0 0.0
          %816 = vmatpush.msra.mxu0 0.0
          %817 = vmatpush.msra.mxu0 0.0
          %818 = vmatpush.msra.mxu0 %v734
          %819 = vmatmul.f32.gmra.mxu0 %v786
          %v820 = vpop.f32.mrf.mxu0
          %v821 = vadd.f32 0.0, %v820
          %822 = vmatmul.f32.gmra.mxu0 %v789
          %v823 = vpop.f32.mrf.mxu0
          %v824 = vadd.f32 0.0, %v823
          %825 = vmatmul.f32.gmra.mxu0 %v792
          %v826 = vpop.f32.mrf.mxu0
          %v827 = vadd.f32 0.0, %v826
          %828 = vmatmul.f32.gmra.mxu0 %v795
          %v829 = vpop.f32.mrf.mxu0
          %v830 = vadd.f32 0.0, %v829
          %831 = vmatmul.f32.gmra.mxu0 %v798
          %v832 = vpop.f32.mrf.mxu0
          %v833 = vadd.f32 0.0, %v832
          %834 = vmatmul.f32.gmra.mxu0 %v801
          %v835 = vpop.f32.mrf.mxu0
          %v836 = vadd.f32 0.0, %v835
          %837 = vdwg.mxu0
          %v838 = vadd.f32 %v725, %v821
          %v839 = vadd.f32 %v726, %v824
          %v840 = vadd.f32 %v727, %v827
          %v841 = vadd.f32 %v728, %v830
          %v842 = vadd.f32 %v729, %v833
          %v843 = vadd.f32 %v730, %v836
          %s844 = scalar_lea.vmem %s1, 16
          %v845 = vld [vmem:[%s844] sm:$0x7]
          %v847 = vsel %vm383, %v845, 0
          %849 = vmatpush.msra.mxu0 0.0
          %850 = vmatpush.msra.mxu0 0.0
          %851 = vmatpush.msra.mxu0 0.0
          %852 = vmatpush.msra.mxu0 0.0
          %853 = vmatpush.msra.mxu0 0.0
          %854 = vmatpush.msra.mxu0 0.0
          %855 = vmatpush.msra.mxu0 0.0
          %856 = vmatpush.msra.mxu0 0.0
          %857 = vmatpush.msra.mxu0 0.0
          %858 = vmatpush.msra.mxu0 0.0
          %859 = vmatpush.msra.mxu0 0.0
          %860 = vmatpush.msra.mxu0 0.0
          %861 = vmatpush.msra.mxu0 0.0
          %862 = vmatpush.msra.mxu0 0.0
          %863 = vmatpush.msra.mxu0 0.0
          %864 = vmatpush.msra.mxu0 %v847
          %865 = vmatmul.f32.gmra.mxu0 %v487
          %v866 = vpop.f32.mrf.mxu0
          %v867 = vadd.f32 0.0, %v866
          %868 = vmatmul.f32.gmra.mxu0 %v490
          %v869 = vpop.f32.mrf.mxu0
          %v870 = vadd.f32 0.0, %v869
          %871 = vmatmul.f32.gmra.mxu0 %v493
          %v872 = vpop.f32.mrf.mxu0
          %v873 = vadd.f32 0.0, %v872
          %874 = vmatmul.f32.gmra.mxu0 %v496
          %v875 = vpop.f32.mrf.mxu0
          %v876 = vadd.f32 0.0, %v875
          %877 = vmatmul.f32.gmra.mxu0 %v499
          %v878 = vpop.f32.mrf.mxu0
          %v879 = vadd.f32 0.0, %v878
          %880 = vmatmul.f32.gmra.mxu0 %v502
          %v881 = vpop.f32.mrf.mxu0
          %v882 = vadd.f32 0.0, %v881
          %883 = vdwg.mxu0
          %v884 = vadd.f32 %v771, %v867
          %v885 = vadd.f32 %v772, %v870
          %v886 = vadd.f32 %v773, %v873
          %v887 = vadd.f32 %v774, %v876
          %v888 = vadd.f32 %v775, %v879
          %v889 = vadd.f32 %v776, %v882
          %s890 = sadd.s32 %s337, 101
          %s891 = scalar_lea.vmem %s329, %s890
          %v892 = vld [vmem:[%s891] sm:$0xff]
          %v893 = vld [vmem:[%s891 + $0x8] sm:$0xff]
          %v894 = vld [vmem:[%s891 + $0x10] sm:$0xff]
          %v895 = vld [vmem:[%s891 + $0x18] sm:$0xff]
          %v896 = vld [vmem:[%s891 + $0x20] sm:$0xff]
          %v897 = vld [vmem:[%s891 + $0x28] sm:$0xff]
          %v899 = vsel %vm364, %v892, 0
          %v902 = vsel %vm364, %v893, 0
          %v905 = vsel %vm364, %v894, 0
          %v908 = vsel %vm364, %v895, 0
          %v911 = vsel %vm364, %v896, 0
          %v914 = vsel %vm364, %v897, 0
          %916 = vmatpush.msra.mxu0 0.0
          %917 = vmatpush.msra.mxu0 0.0
          %918 = vmatpush.msra.mxu0 0.0
          %919 = vmatpush.msra.mxu0 0.0
          %920 = vmatpush.msra.mxu0 0.0
          %921 = vmatpush.msra.mxu0 0.0
          %922 = vmatpush.msra.mxu0 0.0
          %923 = vmatpush.msra.mxu0 0.0
          %924 = vmatpush.msra.mxu0 0.0
          %925 = vmatpush.msra.mxu0 0.0
          %926 = vmatpush.msra.mxu0 0.0
          %927 = vmatpush.msra.mxu0 0.0
          %928 = vmatpush.msra.mxu0 0.0
          %929 = vmatpush.msra.mxu0 0.0
          %930 = vmatpush.msra.mxu0 0.0
          %931 = vmatpush.msra.mxu0 %v847
          %932 = vmatmul.f32.gmra.mxu0 %v899
          %v933 = vpop.f32.mrf.mxu0
          %v934 = vadd.f32 0.0, %v933
          %935 = vmatmul.f32.gmra.mxu0 %v902
          %v936 = vpop.f32.mrf.mxu0
          %v937 = vadd.f32 0.0, %v936
          %938 = vmatmul.f32.gmra.mxu0 %v905
          %v939 = vpop.f32.mrf.mxu0
          %v940 = vadd.f32 0.0, %v939
          %941 = vmatmul.f32.gmra.mxu0 %v908
          %v942 = vpop.f32.mrf.mxu0
          %v943 = vadd.f32 0.0, %v942
          %944 = vmatmul.f32.gmra.mxu0 %v911
          %v945 = vpop.f32.mrf.mxu0
          %v946 = vadd.f32 0.0, %v945
          %947 = vmatmul.f32.gmra.mxu0 %v914
          %v948 = vpop.f32.mrf.mxu0
          %v949 = vadd.f32 0.0, %v948
          %950 = vdwg.mxu0
          %v951 = vadd.f32 %v838, %v934
          %v952 = vadd.f32 %v839, %v937
          %v953 = vadd.f32 %v840, %v940
          %v954 = vadd.f32 %v841, %v943
          %v955 = vadd.f32 %v842, %v946
          %v956 = vadd.f32 %v843, %v949
          %s957 = scalar_lea.vmem %s1, 20
          %v958 = vld [vmem:[%s957] sm:$0x7]
          %v960 = vsel %vm383, %v958, 0
          %962 = vmatpush.msra.mxu0 0.0
          %963 = vmatpush.msra.mxu0 0.0
          %964 = vmatpush.msra.mxu0 0.0
          %965 = vmatpush.msra.mxu0 0.0
          %966 = vmatpush.msra.mxu0 0.0
          %967 = vmatpush.msra.mxu0 0.0
          %968 = vmatpush.msra.mxu0 0.0
          %969 = vmatpush.msra.mxu0 0.0
          %970 = vmatpush.msra.mxu0 0.0
          %971 = vmatpush.msra.mxu0 0.0
          %972 = vmatpush.msra.mxu0 0.0
          %973 = vmatpush.msra.mxu0 0.0
          %974 = vmatpush.msra.mxu0 0.0
          %975 = vmatpush.msra.mxu0 0.0
          %976 = vmatpush.msra.mxu0 0.0
          %977 = vmatpush.msra.mxu0 %v960
          %978 = vmatmul.f32.gmra.mxu0 %v673
          %v979 = vpop.f32.mrf.mxu0
          %v980 = vadd.f32 0.0, %v979
          %981 = vmatmul.f32.gmra.mxu0 %v676
          %v982 = vpop.f32.mrf.mxu0
          %v983 = vadd.f32 0.0, %v982
          %984 = vmatmul.f32.gmra.mxu0 %v679
          %v985 = vpop.f32.mrf.mxu0
          %v986 = vadd.f32 0.0, %v985
          %987 = vmatmul.f32.gmra.mxu0 %v682
          %v988 = vpop.f32.mrf.mxu0
          %v989 = vadd.f32 0.0, %v988
          %990 = vmatmul.f32.gmra.mxu0 %v685
          %v991 = vpop.f32.mrf.mxu0
          %v992 = vadd.f32 0.0, %v991
          %993 = vmatmul.f32.gmra.mxu0 %v688
          %v994 = vpop.f32.mrf.mxu0
          %v995 = vadd.f32 0.0, %v994
          %996 = vdwg.mxu0
          %v997 = vadd.f32 %v884, %v980
          %v998 = vadd.f32 %v885, %v983
          %v999 = vadd.f32 %v886, %v986
          %v1000 = vadd.f32 %v887, %v989
          %v1001 = vadd.f32 %v888, %v992
          %v1002 = vadd.f32 %v889, %v995
          %s1003 = sadd.s32 %s337, 102
          %s1004 = scalar_lea.vmem %s329, %s1003
          %v1005 = vld [vmem:[%s1004] sm:$0xff]
          %v1006 = vld [vmem:[%s1004 + $0x8] sm:$0xff]
          %v1007 = vld [vmem:[%s1004 + $0x10] sm:$0xff]
          %v1008 = vld [vmem:[%s1004 + $0x18] sm:$0xff]
          %v1009 = vld [vmem:[%s1004 + $0x20] sm:$0xff]
          %v1010 = vld [vmem:[%s1004 + $0x28] sm:$0xff]
          %v1012 = vsel %vm364, %v1005, 0
          %v1015 = vsel %vm364, %v1006, 0
          %v1018 = vsel %vm364, %v1007, 0
          %v1021 = vsel %vm364, %v1008, 0
          %v1024 = vsel %vm364, %v1009, 0
          %v1027 = vsel %vm364, %v1010, 0
          %1029 = vmatpush.msra.mxu0 0.0
          %1030 = vmatpush.msra.mxu0 0.0
          %1031 = vmatpush.msra.mxu0 0.0
          %1032 = vmatpush.msra.mxu0 0.0
          %1033 = vmatpush.msra.mxu0 0.0
          %1034 = vmatpush.msra.mxu0 0.0
          %1035 = vmatpush.msra.mxu0 0.0
          %1036 = vmatpush.msra.mxu0 0.0
          %1037 = vmatpush.msra.mxu0 0.0
          %1038 = vmatpush.msra.mxu0 0.0
          %1039 = vmatpush.msra.mxu0 0.0
          %1040 = vmatpush.msra.mxu0 0.0
          %1041 = vmatpush.msra.mxu0 0.0
          %1042 = vmatpush.msra.mxu0 0.0
          %1043 = vmatpush.msra.mxu0 0.0
          %1044 = vmatpush.msra.mxu0 %v960
          %1045 = vmatmul.f32.gmra.mxu0 %v1012
          %v1046 = vpop.f32.mrf.mxu0
          %v1047 = vadd.f32 0.0, %v1046
          %1048 = vmatmul.f32.gmra.mxu0 %v1015
          %v1049 = vpop.f32.mrf.mxu0
          %v1050 = vadd.f32 0.0, %v1049
          %1051 = vmatmul.f32.gmra.mxu0 %v1018
          %v1052 = vpop.f32.mrf.mxu0
          %v1053 = vadd.f32 0.0, %v1052
          %1054 = vmatmul.f32.gmra.mxu0 %v1021
          %v1055 = vpop.f32.mrf.mxu0
          %v1056 = vadd.f32 0.0, %v1055
          %1057 = vmatmul.f32.gmra.mxu0 %v1024
          %v1058 = vpop.f32.mrf.mxu0
          %v1059 = vadd.f32 0.0, %v1058
          %1060 = vmatmul.f32.gmra.mxu0 %v1027
          %v1061 = vpop.f32.mrf.mxu0
          %v1062 = vadd.f32 0.0, %v1061
          %1063 = vdwg.mxu0
          %v1064 = vadd.f32 %v951, %v1047
          %v1065 = vadd.f32 %v952, %v1050
          %v1066 = vadd.f32 %v953, %v1053
          %v1067 = vadd.f32 %v954, %v1056
          %v1068 = vadd.f32 %v955, %v1059
          %v1069 = vadd.f32 %v956, %v1062
          %s1070 = scalar_lea.vmem %s1, 24
          %v1071 = vld [vmem:[%s1070] sm:$0x7]
          %v1073 = vsel %vm383, %v1071, 0
          %1075 = vmatpush.msra.mxu0 0.0
          %1076 = vmatpush.msra.mxu0 0.0
          %1077 = vmatpush.msra.mxu0 0.0
          %1078 = vmatpush.msra.mxu0 0.0
          %1079 = vmatpush.msra.mxu0 0.0
          %1080 = vmatpush.msra.mxu0 0.0
          %1081 = vmatpush.msra.mxu0 0.0
          %1082 = vmatpush.msra.mxu0 0.0
          %1083 = vmatpush.msra.mxu0 0.0
          %1084 = vmatpush.msra.mxu0 0.0
          %1085 = vmatpush.msra.mxu0 0.0
          %1086 = vmatpush.msra.mxu0 0.0
          %1087 = vmatpush.msra.mxu0 0.0
          %1088 = vmatpush.msra.mxu0 0.0
          %1089 = vmatpush.msra.mxu0 0.0
          %1090 = vmatpush.msra.mxu0 %v1073
          %1091 = vmatmul.f32.gmra.mxu0 %v786
          %v1092 = vpop.f32.mrf.mxu0
          %v1093 = vadd.f32 0.0, %v1092
          %1094 = vmatmul.f32.gmra.mxu0 %v789
          %v1095 = vpop.f32.mrf.mxu0
          %v1096 = vadd.f32 0.0, %v1095
          %1097 = vmatmul.f32.gmra.mxu0 %v792
          %v1098 = vpop.f32.mrf.mxu0
          %v1099 = vadd.f32 0.0, %v1098
          %1100 = vmatmul.f32.gmra.mxu0 %v795
          %v1101 = vpop.f32.mrf.mxu0
          %v1102 = vadd.f32 0.0, %v1101
          %1103 = vmatmul.f32.gmra.mxu0 %v798
          %v1104 = vpop.f32.mrf.mxu0
          %v1105 = vadd.f32 0.0, %v1104
          %1106 = vmatmul.f32.gmra.mxu0 %v801
          %v1107 = vpop.f32.mrf.mxu0
          %v1108 = vadd.f32 0.0, %v1107
          %1109 = vdwg.mxu0
          %v1110 = vadd.f32 %v997, %v1093
          %v1111 = vadd.f32 %v998, %v1096
          %v1112 = vadd.f32 %v999, %v1099
          %v1113 = vadd.f32 %v1000, %v1102
          %v1114 = vadd.f32 %v1001, %v1105
          %v1115 = vadd.f32 %v1002, %v1108
          %s1116 = sadd.s32 %s337, 150
          %s1117 = scalar_lea.vmem %s329, %s1116
          %v1118 = vld [vmem:[%s1117] sm:$0xff]
          %v1119 = vld [vmem:[%s1117 + $0x8] sm:$0xff]
          %v1120 = vld [vmem:[%s1117 + $0x10] sm:$0xff]
          %v1121 = vld [vmem:[%s1117 + $0x18] sm:$0xff]
          %v1122 = vld [vmem:[%s1117 + $0x20] sm:$0xff]
          %v1123 = vld [vmem:[%s1117 + $0x28] sm:$0xff]
          %v1125 = vsel %vm364, %v1118, 0
          %v1128 = vsel %vm364, %v1119, 0
          %v1131 = vsel %vm364, %v1120, 0
          %v1134 = vsel %vm364, %v1121, 0
          %v1137 = vsel %vm364, %v1122, 0
          %v1140 = vsel %vm364, %v1123, 0
          %1142 = vmatpush.msra.mxu0 0.0
          %1143 = vmatpush.msra.mxu0 0.0
          %1144 = vmatpush.msra.mxu0 0.0
          %1145 = vmatpush.msra.mxu0 0.0
          %1146 = vmatpush.msra.mxu0 0.0
          %1147 = vmatpush.msra.mxu0 0.0
          %1148 = vmatpush.msra.mxu0 0.0
          %1149 = vmatpush.msra.mxu0 0.0
          %1150 = vmatpush.msra.mxu0 0.0
          %1151 = vmatpush.msra.mxu0 0.0
          %1152 = vmatpush.msra.mxu0 0.0
          %1153 = vmatpush.msra.mxu0 0.0
          %1154 = vmatpush.msra.mxu0 0.0
          %1155 = vmatpush.msra.mxu0 0.0
          %1156 = vmatpush.msra.mxu0 0.0
          %1157 = vmatpush.msra.mxu0 %v1073
          %1158 = vmatmul.f32.gmra.mxu0 %v1125
          %v1159 = vpop.f32.mrf.mxu0
          %v1160 = vadd.f32 0.0, %v1159
          %1161 = vmatmul.f32.gmra.mxu0 %v1128
          %v1162 = vpop.f32.mrf.mxu0
          %v1163 = vadd.f32 0.0, %v1162
          %1164 = vmatmul.f32.gmra.mxu0 %v1131
          %v1165 = vpop.f32.mrf.mxu0
          %v1166 = vadd.f32 0.0, %v1165
          %1167 = vmatmul.f32.gmra.mxu0 %v1134
          %v1168 = vpop.f32.mrf.mxu0
          %v1169 = vadd.f32 0.0, %v1168
          %1170 = vmatmul.f32.gmra.mxu0 %v1137
          %v1171 = vpop.f32.mrf.mxu0
          %v1172 = vadd.f32 0.0, %v1171
          %1173 = vmatmul.f32.gmra.mxu0 %v1140
          %v1174 = vpop.f32.mrf.mxu0
          %v1175 = vadd.f32 0.0, %v1174
          %1176 = vdwg.mxu0
          %v1177 = vadd.f32 %v1064, %v1160
          %v1178 = vadd.f32 %v1065, %v1163
          %v1179 = vadd.f32 %v1066, %v1166
          %v1180 = vadd.f32 %v1067, %v1169
          %v1181 = vadd.f32 %v1068, %v1172
          %v1182 = vadd.f32 %v1069, %v1175
          %s1183 = scalar_lea.vmem %s1, 28
          %v1184 = vld [vmem:[%s1183] sm:$0x7]
          %v1186 = vsel %vm383, %v1184, 0
          %1188 = vmatpush.msra.mxu0 0.0
          %1189 = vmatpush.msra.mxu0 0.0
          %1190 = vmatpush.msra.mxu0 0.0
          %1191 = vmatpush.msra.mxu0 0.0
          %1192 = vmatpush.msra.mxu0 0.0
          %1193 = vmatpush.msra.mxu0 0.0
          %1194 = vmatpush.msra.mxu0 0.0
          %1195 = vmatpush.msra.mxu0 0.0
          %1196 = vmatpush.msra.mxu0 0.0
          %1197 = vmatpush.msra.mxu0 0.0
          %1198 = vmatpush.msra.mxu0 0.0
          %1199 = vmatpush.msra.mxu0 0.0
          %1200 = vmatpush.msra.mxu0 0.0
          %1201 = vmatpush.msra.mxu0 0.0
          %1202 = vmatpush.msra.mxu0 0.0
          %1203 = vmatpush.msra.mxu0 %v1186
          %1204 = vmatmul.f32.gmra.mxu0 %v899
          %v1205 = vpop.f32.mrf.mxu0
          %v1206 = vadd.f32 0.0, %v1205
          %1207 = vmatmul.f32.gmra.mxu0 %v902
          %v1208 = vpop.f32.mrf.mxu0
          %v1209 = vadd.f32 0.0, %v1208
          %1210 = vmatmul.f32.gmra.mxu0 %v905
          %v1211 = vpop.f32.mrf.mxu0
          %v1212 = vadd.f32 0.0, %v1211
          %1213 = vmatmul.f32.gmra.mxu0 %v908
          %v1214 = vpop.f32.mrf.mxu0
          %v1215 = vadd.f32 0.0, %v1214
          %1216 = vmatmul.f32.gmra.mxu0 %v911
          %v1217 = vpop.f32.mrf.mxu0
          %v1218 = vadd.f32 0.0, %v1217
          %1219 = vmatmul.f32.gmra.mxu0 %v914
          %v1220 = vpop.f32.mrf.mxu0
          %v1221 = vadd.f32 0.0, %v1220
          %1222 = vdwg.mxu0
          %v1223 = vadd.f32 %v1110, %v1206
          %v1224 = vadd.f32 %v1111, %v1209
          %v1225 = vadd.f32 %v1112, %v1212
          %v1226 = vadd.f32 %v1113, %v1215
          %v1227 = vadd.f32 %v1114, %v1218
          %v1228 = vadd.f32 %v1115, %v1221
          %s1229 = sadd.s32 %s337, 151
          %s1230 = scalar_lea.vmem %s329, %s1229
          %v1231 = vld [vmem:[%s1230] sm:$0xff]
          %v1232 = vld [vmem:[%s1230 + $0x8] sm:$0xff]
          %v1233 = vld [vmem:[%s1230 + $0x10] sm:$0xff]
          %v1234 = vld [vmem:[%s1230 + $0x18] sm:$0xff]
          %v1235 = vld [vmem:[%s1230 + $0x20] sm:$0xff]
          %v1236 = vld [vmem:[%s1230 + $0x28] sm:$0xff]
          %v1238 = vsel %vm364, %v1231, 0
          %v1241 = vsel %vm364, %v1232, 0
          %v1244 = vsel %vm364, %v1233, 0
          %v1247 = vsel %vm364, %v1234, 0
          %v1250 = vsel %vm364, %v1235, 0
          %v1253 = vsel %vm364, %v1236, 0
          %1255 = vmatpush.msra.mxu0 0.0
          %1256 = vmatpush.msra.mxu0 0.0
          %1257 = vmatpush.msra.mxu0 0.0
          %1258 = vmatpush.msra.mxu0 0.0
          %1259 = vmatpush.msra.mxu0 0.0
          %1260 = vmatpush.msra.mxu0 0.0
          %1261 = vmatpush.msra.mxu0 0.0
          %1262 = vmatpush.msra.mxu0 0.0
          %1263 = vmatpush.msra.mxu0 0.0
          %1264 = vmatpush.msra.mxu0 0.0
          %1265 = vmatpush.msra.mxu0 0.0
          %1266 = vmatpush.msra.mxu0 0.0
          %1267 = vmatpush.msra.mxu0 0.0
          %1268 = vmatpush.msra.mxu0 0.0
          %1269 = vmatpush.msra.mxu0 0.0
          %1270 = vmatpush.msra.mxu0 %v1186
          %1271 = vmatmul.f32.gmra.mxu0 %v1238
          %v1272 = vpop.f32.mrf.mxu0
          %v1273 = vadd.f32 0.0, %v1272
          %1274 = vmatmul.f32.gmra.mxu0 %v1241
          %v1275 = vpop.f32.mrf.mxu0
          %v1276 = vadd.f32 0.0, %v1275
          %1277 = vmatmul.f32.gmra.mxu0 %v1244
          %v1278 = vpop.f32.mrf.mxu0
          %v1279 = vadd.f32 0.0, %v1278
          %1280 = vmatmul.f32.gmra.mxu0 %v1247
          %v1281 = vpop.f32.mrf.mxu0
          %v1282 = vadd.f32 0.0, %v1281
          %1283 = vmatmul.f32.gmra.mxu0 %v1250
          %v1284 = vpop.f32.mrf.mxu0
          %v1285 = vadd.f32 0.0, %v1284
          %1286 = vmatmul.f32.gmra.mxu0 %v1253
          %v1287 = vpop.f32.mrf.mxu0
          %v1288 = vadd.f32 0.0, %v1287
          %1289 = vdwg.mxu0
          %v1290 = vadd.f32 %v1177, %v1273
          %v1291 = vadd.f32 %v1178, %v1276
          %v1292 = vadd.f32 %v1179, %v1279
          %v1293 = vadd.f32 %v1180, %v1282
          %v1294 = vadd.f32 %v1181, %v1285
          %v1295 = vadd.f32 %v1182, %v1288
          %s1296 = scalar_lea.vmem %s1, 32
          %v1297 = vld [vmem:[%s1296] sm:$0x7]
          %v1299 = vsel %vm383, %v1297, 0
          %1301 = vmatpush.msra.mxu0 0.0
          %1302 = vmatpush.msra.mxu0 0.0
          %1303 = vmatpush.msra.mxu0 0.0
          %1304 = vmatpush.msra.mxu0 0.0
          %1305 = vmatpush.msra.mxu0 0.0
          %1306 = vmatpush.msra.mxu0 0.0
          %1307 = vmatpush.msra.mxu0 0.0
          %1308 = vmatpush.msra.mxu0 0.0
          %1309 = vmatpush.msra.mxu0 0.0
          %1310 = vmatpush.msra.mxu0 0.0
          %1311 = vmatpush.msra.mxu0 0.0
          %1312 = vmatpush.msra.mxu0 0.0
          %1313 = vmatpush.msra.mxu0 0.0
          %1314 = vmatpush.msra.mxu0 0.0
          %1315 = vmatpush.msra.mxu0 0.0
          %1316 = vmatpush.msra.mxu0 %v1299
          %1317 = vmatmul.f32.gmra.mxu0 %v1012
          %v1318 = vpop.f32.mrf.mxu0
          %v1319 = vadd.f32 0.0, %v1318
          %1320 = vmatmul.f32.gmra.mxu0 %v1015
          %v1321 = vpop.f32.mrf.mxu0
          %v1322 = vadd.f32 0.0, %v1321
          %1323 = vmatmul.f32.gmra.mxu0 %v1018
          %v1324 = vpop.f32.mrf.mxu0
          %v1325 = vadd.f32 0.0, %v1324
          %1326 = vmatmul.f32.gmra.mxu0 %v1021
          %v1327 = vpop.f32.mrf.mxu0
          %v1328 = vadd.f32 0.0, %v1327
          %1329 = vmatmul.f32.gmra.mxu0 %v1024
          %v1330 = vpop.f32.mrf.mxu0
          %v1331 = vadd.f32 0.0, %v1330
          %1332 = vmatmul.f32.gmra.mxu0 %v1027
          %v1333 = vpop.f32.mrf.mxu0
          %v1334 = vadd.f32 0.0, %v1333
          %1335 = vdwg.mxu0
          %v1336 = vadd.f32 %v1223, %v1319
          %v1337 = vadd.f32 %v1224, %v1322
          %v1338 = vadd.f32 %v1225, %v1325
          %v1339 = vadd.f32 %v1226, %v1328
          %v1340 = vadd.f32 %v1227, %v1331
          %v1341 = vadd.f32 %v1228, %v1334
          %s1342 = sadd.s32 %s337, 152
          %s1343 = scalar_lea.vmem %s329, %s1342
          %v1344 = vld [vmem:[%s1343] sm:$0xff]
          %v1345 = vld [vmem:[%s1343 + $0x8] sm:$0xff]
          %v1346 = vld [vmem:[%s1343 + $0x10] sm:$0xff]
          %v1347 = vld [vmem:[%s1343 + $0x18] sm:$0xff]
          %v1348 = vld [vmem:[%s1343 + $0x20] sm:$0xff]
          %v1349 = vld [vmem:[%s1343 + $0x28] sm:$0xff]
          %v1351 = vsel %vm364, %v1344, 0
          %v1354 = vsel %vm364, %v1345, 0
          %v1357 = vsel %vm364, %v1346, 0
          %v1360 = vsel %vm364, %v1347, 0
          %v1363 = vsel %vm364, %v1348, 0
          %v1366 = vsel %vm364, %v1349, 0
          %1368 = vmatpush.msra.mxu0 0.0
          %1369 = vmatpush.msra.mxu0 0.0
          %1370 = vmatpush.msra.mxu0 0.0
          %1371 = vmatpush.msra.mxu0 0.0
          %1372 = vmatpush.msra.mxu0 0.0
          %1373 = vmatpush.msra.mxu0 0.0
          %1374 = vmatpush.msra.mxu0 0.0
          %1375 = vmatpush.msra.mxu0 0.0
          %1376 = vmatpush.msra.mxu0 0.0
          %1377 = vmatpush.msra.mxu0 0.0
          %1378 = vmatpush.msra.mxu0 0.0
          %1379 = vmatpush.msra.mxu0 0.0
          %1380 = vmatpush.msra.mxu0 0.0
          %1381 = vmatpush.msra.mxu0 0.0
          %1382 = vmatpush.msra.mxu0 0.0
          %1383 = vmatpush.msra.mxu0 %v1299
          %1384 = vmatmul.f32.gmra.mxu0 %v1351
          %v1385 = vpop.f32.mrf.mxu0
          %v1386 = vadd.f32 0.0, %v1385
          %1387 = vmatmul.f32.gmra.mxu0 %v1354
          %v1388 = vpop.f32.mrf.mxu0
          %v1389 = vadd.f32 0.0, %v1388
          %1390 = vmatmul.f32.gmra.mxu0 %v1357
          %v1391 = vpop.f32.mrf.mxu0
          %v1392 = vadd.f32 0.0, %v1391
          %1393 = vmatmul.f32.gmra.mxu0 %v1360
          %v1394 = vpop.f32.mrf.mxu0
          %v1395 = vadd.f32 0.0, %v1394
          %1396 = vmatmul.f32.gmra.mxu0 %v1363
          %v1397 = vpop.f32.mrf.mxu0
          %v1398 = vadd.f32 0.0, %v1397
          %1399 = vmatmul.f32.gmra.mxu0 %v1366
          %v1400 = vpop.f32.mrf.mxu0
          %v1401 = vadd.f32 0.0, %v1400
          %1402 = vdwg.mxu0
          %v1403 = vadd.f32 %v1290, %v1386
          %v1404 = vadd.f32 %v1291, %v1389
          %v1405 = vadd.f32 %v1292, %v1392
          %v1406 = vadd.f32 %v1293, %v1395
          %v1407 = vadd.f32 %v1294, %v1398
          %v1408 = vadd.f32 %v1295, %v1401
          %v1409 = vmax.f32 %v1336, %v1403
          %v1410 = vmax.f32 %v1337, %v1404
          %v1411 = vmax.f32 %v1338, %v1405
          %v1412 = vmax.f32 %v1339, %v1406
          %v1413 = vmax.f32 %v1340, %v1407
          %v1414 = vmax.f32 %v1341, %v1408
          %v1416 = vperm.slane %v330, 0
          %v1418 = vadd.f32 %v1409, %v1416
          %v1419 = vadd.f32 %v1410, %v1416
          %v1420 = vadd.f32 %v1411, %v1416
          %v1421 = vadd.f32 %v1412, %v1416
          %v1422 = vadd.f32 %v1413, %v1416
          %v1423 = vadd.f32 %v1414, %v1416
          %v1424 = vmax.f32 %v1418, 0.0
          %v1425 = vmax.f32 %v1419, 0.0
          %v1426 = vmax.f32 %v1420, 0.0
          %v1427 = vmax.f32 %v1421, 0.0
          %v1428 = vmax.f32 %v1422, 0.0
          %v1429 = vmax.f32 %v1423, 0.0
          %s1430 = smul.u32 %s332, 48
          %s1431 = scalar_lea.vmem [#allocation5], %s1430
          %vm1432 = vcmask 261120
          %1433 = vst.msk [vmem:[%s1431] sm:$0xff] %vm1432, %v1424
          %1434 = vst.msk [vmem:[%s1431 + $0x8] sm:$0xff] %vm1432, %v1425
          %1435 = vst.msk [vmem:[%s1431 + $0x10] sm:$0xff] %vm1432, %v1426
          %1436 = vst.msk [vmem:[%s1431 + $0x18] sm:$0xff] %vm1432, %v1427
          %1437 = vst.msk [vmem:[%s1431 + $0x20] sm:$0xff] %vm1432, %v1428
          %1438 = vst.msk [vmem:[%s1431 + $0x28] sm:$0xff] %vm1432, %v1429
        $region61: #{tpu_custom_call.1} parent=55 // loop_footer
          %s336 = sadd.s32 1, %s332
        $region62: #{tpu_custom_call.1} parent=55 // loop_footer_branch
          %331 = sbr.rel target = $region58
        $region63: #{tpu_custom_call.1} parent=55 // loop_exit
          _
        %v1439 = vld [vmem:[#allocation5] ss:$2 sm:$0xff]
        %s1440 = scalar_lea.vmem [#allocation5], 16
        %v1441 = vld [vmem:[%s1440] ss:$2 sm:$0xff]
        %s1442 = scalar_lea.vmem [#allocation5], 32
        %v1443 = vld [vmem:[%s1442] ss:$2 sm:$0xff]
        %s1444 = scalar_lea.vmem [#allocation5], 48
        %v1445 = vld [vmem:[%s1444] ss:$2 sm:$0xff]
        %s1446 = scalar_lea.vmem [#allocation5], 64
        %v1447 = vld [vmem:[%s1446] ss:$2 sm:$0xff]
        %s1448 = scalar_lea.vmem [#allocation5], 80
        %v1449 = vld [vmem:[%s1448] ss:$2 sm:$0xff]
        %s1450 = scalar_lea.vmem [#allocation5], 96
        %v1451 = vld [vmem:[%s1450] ss:$2 sm:$0xff]
        %s1452 = scalar_lea.vmem [#allocation5], 112
        %v1453 = vld [vmem:[%s1452] ss:$2 sm:$0xff]
        %s1454 = scalar_lea.vmem [#allocation5], 128
        %v1455 = vld [vmem:[%s1454] ss:$2 sm:$0xff]
        %s1456 = scalar_lea.vmem [#allocation5], 144
        %v1457 = vld [vmem:[%s1456] ss:$2 sm:$0xff]
        %s1458 = scalar_lea.vmem [#allocation5], 160
        %v1459 = vld [vmem:[%s1458] ss:$2 sm:$0xff]
        %s1460 = scalar_lea.vmem [#allocation5], 176
        %v1461 = vld [vmem:[%s1460] ss:$2 sm:$0xff]
        %s1462 = scalar_lea.vmem [#allocation5], 192
        %v1463 = vld [vmem:[%s1462] ss:$2 sm:$0xff]
        %s1464 = scalar_lea.vmem [#allocation5], 208
        %v1465 = vld [vmem:[%s1464] ss:$2 sm:$0xff]
        %s1466 = scalar_lea.vmem [#allocation5], 224
        %v1467 = vld [vmem:[%s1466] ss:$2 sm:$0xff]
        %s1468 = scalar_lea.vmem [#allocation5], 240
        %v1469 = vld [vmem:[%s1468] ss:$2 sm:$0xff]
        %s1470 = scalar_lea.vmem [#allocation5], 256
        %v1471 = vld [vmem:[%s1470] ss:$2 sm:$0xff]
        %s1472 = scalar_lea.vmem [#allocation5], 272
        %v1473 = vld [vmem:[%s1472] ss:$2 sm:$0xff]
        %s1474 = scalar_lea.vmem [#allocation5], 288
        %v1475 = vld [vmem:[%s1474] ss:$2 sm:$0xff]
        %s1476 = scalar_lea.vmem [#allocation5], 304
        %v1477 = vld [vmem:[%s1476] ss:$2 sm:$0xff]
        %s1478 = scalar_lea.vmem [#allocation5], 320
        %v1479 = vld [vmem:[%s1478] ss:$2 sm:$0xff]
        %s1480 = scalar_lea.vmem [#allocation5], 336
        %v1481 = vld [vmem:[%s1480] ss:$2 sm:$0xff]
        %s1482 = scalar_lea.vmem [#allocation5], 352
        %v1483 = vld [vmem:[%s1482] ss:$2 sm:$0xff]
        %s1484 = scalar_lea.vmem [#allocation5], 368
        %v1485 = vld [vmem:[%s1484] ss:$2 sm:$0xff]
        %s1486 = scalar_lea.vmem [#allocation5], 384
        %v1487 = vld [vmem:[%s1486] ss:$2 sm:$0xff]
        %s1488 = scalar_lea.vmem [#allocation5], 400
        %v1489 = vld [vmem:[%s1488] ss:$2 sm:$0xff]
        %s1490 = scalar_lea.vmem [#allocation5], 416
        %v1491 = vld [vmem:[%s1490] ss:$2 sm:$0xff]
        %s1492 = scalar_lea.vmem [#allocation5], 432
        %v1493 = vld [vmem:[%s1492] ss:$2 sm:$0xff]
        %s1494 = scalar_lea.vmem [#allocation5], 448
        %v1495 = vld [vmem:[%s1494] ss:$2 sm:$0xff]
        %s1496 = scalar_lea.vmem [#allocation5], 464
        %v1497 = vld [vmem:[%s1496] ss:$2 sm:$0xff]
        %s1498 = scalar_lea.vmem [#allocation5], 480
        %v1499 = vld [vmem:[%s1498] ss:$2 sm:$0xff]
        %s1500 = scalar_lea.vmem [#allocation5], 496
        %v1501 = vld [vmem:[%s1500] ss:$2 sm:$0xff]
        %s1502 = scalar_lea.vmem [#allocation5], 512
        %v1503 = vld [vmem:[%s1502] ss:$2 sm:$0xff]
        %s1504 = scalar_lea.vmem [#allocation5], 528
        %v1505 = vld [vmem:[%s1504] ss:$2 sm:$0xff]
        %s1506 = scalar_lea.vmem [#allocation5], 544
        %v1507 = vld [vmem:[%s1506] ss:$2 sm:$0xff]
        %s1508 = scalar_lea.vmem [#allocation5], 560
        %v1509 = vld [vmem:[%s1508] ss:$2 sm:$0xff]
        %s1510 = scalar_lea.vmem [#allocation5], 576
        %v1511 = vld [vmem:[%s1510] ss:$2 sm:$0xff]
        %s1512 = scalar_lea.vmem [#allocation5], 592
        %v1513 = vld [vmem:[%s1512] ss:$2 sm:$0xff]
        %s1514 = scalar_lea.vmem [#allocation5], 608
        %v1515 = vld [vmem:[%s1514] ss:$2 sm:$0xff]
        %s1516 = scalar_lea.vmem [#allocation5], 624
        %v1517 = vld [vmem:[%s1516] ss:$2 sm:$0xff]
        %s1518 = scalar_lea.vmem [#allocation5], 640
        %v1519 = vld [vmem:[%s1518] ss:$2 sm:$0xff]
        %s1520 = scalar_lea.vmem [#allocation5], 656
        %v1521 = vld [vmem:[%s1520] ss:$2 sm:$0xff]
        %s1522 = scalar_lea.vmem [#allocation5], 672
        %v1523 = vld [vmem:[%s1522] ss:$2 sm:$0xff]
        %s1524 = scalar_lea.vmem [#allocation5], 688
        %v1525 = vld [vmem:[%s1524] ss:$2 sm:$0xff]
        %s1526 = scalar_lea.vmem [#allocation5], 704
        %v1527 = vld [vmem:[%s1526] ss:$2 sm:$0xff]
        %s1528 = scalar_lea.vmem [#allocation5], 720
        %v1529 = vld [vmem:[%s1528] ss:$2 sm:$0xff]
        %s1530 = scalar_lea.vmem [#allocation5], 736
        %v1531 = vld [vmem:[%s1530] ss:$2 sm:$0xff]
        %s1532 = scalar_lea.vmem [#allocation5], 752
        %v1533 = vld [vmem:[%s1532] ss:$2 sm:$0xff]
        %s1534 = scalar_lea.vmem [#allocation5], 768
        %v1535 = vld [vmem:[%s1534] ss:$2 sm:$0xff]
        %s1536 = scalar_lea.vmem [#allocation5], 784
        %v1537 = vld [vmem:[%s1536] ss:$2 sm:$0xff]
        %s1538 = scalar_lea.vmem [#allocation5], 800
        %v1539 = vld [vmem:[%s1538] ss:$2 sm:$0xff]
        %s1540 = scalar_lea.vmem [#allocation5], 816
        %v1541 = vld [vmem:[%s1540] ss:$2 sm:$0xff]
        %s1542 = scalar_lea.vmem [#allocation5], 832
        %v1543 = vld [vmem:[%s1542] ss:$2 sm:$0xff]
        %s1544 = scalar_lea.vmem [#allocation5], 848
        %v1545 = vld [vmem:[%s1544] ss:$2 sm:$0xff]
        %s1546 = scalar_lea.vmem [#allocation5], 864
        %v1547 = vld [vmem:[%s1546] ss:$2 sm:$0xff]
        %s1548 = scalar_lea.vmem [#allocation5], 880
        %v1549 = vld [vmem:[%s1548] ss:$2 sm:$0xff]
        %s1550 = scalar_lea.vmem [#allocation5], 896
        %v1551 = vld [vmem:[%s1550] ss:$2 sm:$0xff]
        %s1552 = scalar_lea.vmem [#allocation5], 912
        %v1553 = vld [vmem:[%s1552] ss:$2 sm:$0xff]
        %s1554 = scalar_lea.vmem [#allocation5], 928
        %v1555 = vld [vmem:[%s1554] ss:$2 sm:$0xff]
        %s1556 = scalar_lea.vmem [#allocation5], 944
        %v1557 = vld [vmem:[%s1556] ss:$2 sm:$0xff]
        %s1558 = scalar_lea.vmem [#allocation5], 960
        %v1559 = vld [vmem:[%s1558] ss:$2 sm:$0xff]
        %s1560 = scalar_lea.vmem [#allocation5], 976
        %v1561 = vld [vmem:[%s1560] ss:$2 sm:$0xff]
        %s1562 = scalar_lea.vmem [#allocation5], 992
        %v1563 = vld [vmem:[%s1562] ss:$2 sm:$0xff]
        %s1564 = scalar_lea.vmem [#allocation5], 1008
        %v1565 = vld [vmem:[%s1564] ss:$2 sm:$0xff]
        %s1566 = scalar_lea.vmem [#allocation5], 1024
        %v1567 = vld [vmem:[%s1566] ss:$2 sm:$0xff]
        %s1568 = scalar_lea.vmem [#allocation5], 1040
        %v1569 = vld [vmem:[%s1568] ss:$2 sm:$0xff]
        %s1570 = scalar_lea.vmem [#allocation5], 1056
        %v1571 = vld [vmem:[%s1570] ss:$2 sm:$0xff]
        %s1572 = scalar_lea.vmem [#allocation5], 1072
        %v1573 = vld [vmem:[%s1572] ss:$2 sm:$0xff]
        %s1574 = scalar_lea.vmem [#allocation5], 1088
        %v1575 = vld [vmem:[%s1574] ss:$2 sm:$0xff]
        %s1576 = scalar_lea.vmem [#allocation5], 1104
        %v1577 = vld [vmem:[%s1576] ss:$2 sm:$0xff]
        %s1578 = scalar_lea.vmem [#allocation5], 1120
        %v1579 = vld [vmem:[%s1578] ss:$2 sm:$0xff]
        %s1580 = scalar_lea.vmem [#allocation5], 1136
        %v1581 = vld [vmem:[%s1580] ss:$2 sm:$0xff]
        %s1582 = scalar_lea.vmem [#allocation5], 1
        %v1583 = vld [vmem:[%s1582] ss:$2 sm:$0xff]
        %s1584 = scalar_lea.vmem [#allocation5], 17
        %v1585 = vld [vmem:[%s1584] ss:$2 sm:$0xff]
        %s1586 = scalar_lea.vmem [#allocation5], 33
        %v1587 = vld [vmem:[%s1586] ss:$2 sm:$0xff]
        %s1588 = scalar_lea.vmem [#allocation5], 49
        %v1589 = vld [vmem:[%s1588] ss:$2 sm:$0xff]
        %s1590 = scalar_lea.vmem [#allocation5], 65
        %v1591 = vld [vmem:[%s1590] ss:$2 sm:$0xff]
        %s1592 = scalar_lea.vmem [#allocation5], 81
        %v1593 = vld [vmem:[%s1592] ss:$2 sm:$0xff]
        %s1594 = scalar_lea.vmem [#allocation5], 97
        %v1595 = vld [vmem:[%s1594] ss:$2 sm:$0xff]
        %s1596 = scalar_lea.vmem [#allocation5], 113
        %v1597 = vld [vmem:[%s1596] ss:$2 sm:$0xff]
        %s1598 = scalar_lea.vmem [#allocation5], 129
        %v1599 = vld [vmem:[%s1598] ss:$2 sm:$0xff]
        %s1600 = scalar_lea.vmem [#allocation5], 145
        %v1601 = vld [vmem:[%s1600] ss:$2 sm:$0xff]
        %s1602 = scalar_lea.vmem [#allocation5], 161
        %v1603 = vld [vmem:[%s1602] ss:$2 sm:$0xff]
        %s1604 = scalar_lea.vmem [#allocation5], 177
        %v1605 = vld [vmem:[%s1604] ss:$2 sm:$0xff]
        %s1606 = scalar_lea.vmem [#allocation5], 193
        %v1607 = vld [vmem:[%s1606] ss:$2 sm:$0xff]
        %s1608 = scalar_lea.vmem [#allocation5], 209
        %v1609 = vld [vmem:[%s1608] ss:$2 sm:$0xff]
        %s1610 = scalar_lea.vmem [#allocation5], 225
        %v1611 = vld [vmem:[%s1610] ss:$2 sm:$0xff]
        %s1612 = scalar_lea.vmem [#allocation5], 241
        %v1613 = vld [vmem:[%s1612] ss:$2 sm:$0xff]
        %s1614 = scalar_lea.vmem [#allocation5], 257
        %v1615 = vld [vmem:[%s1614] ss:$2 sm:$0xff]
        %s1616 = scalar_lea.vmem [#allocation5], 273
        %v1617 = vld [vmem:[%s1616] ss:$2 sm:$0xff]
        %s1618 = scalar_lea.vmem [#allocation5], 289
        %v1619 = vld [vmem:[%s1618] ss:$2 sm:$0xff]
        %s1620 = scalar_lea.vmem [#allocation5], 305
        %v1621 = vld [vmem:[%s1620] ss:$2 sm:$0xff]
        %s1622 = scalar_lea.vmem [#allocation5], 321
        %v1623 = vld [vmem:[%s1622] ss:$2 sm:$0xff]
        %s1624 = scalar_lea.vmem [#allocation5], 337
        %v1625 = vld [vmem:[%s1624] ss:$2 sm:$0xff]
        %s1626 = scalar_lea.vmem [#allocation5], 353
        %v1627 = vld [vmem:[%s1626] ss:$2 sm:$0xff]
        %s1628 = scalar_lea.vmem [#allocation5], 369
        %v1629 = vld [vmem:[%s1628] ss:$2 sm:$0xff]
        %s1630 = scalar_lea.vmem [#allocation5], 385
        %v1631 = vld [vmem:[%s1630] ss:$2 sm:$0xff]
        %s1632 = scalar_lea.vmem [#allocation5], 401
        %v1633 = vld [vmem:[%s1632] ss:$2 sm:$0xff]
        %s1634 = scalar_lea.vmem [#allocation5], 417
        %v1635 = vld [vmem:[%s1634] ss:$2 sm:$0xff]
        %s1636 = scalar_lea.vmem [#allocation5], 433
        %v1637 = vld [vmem:[%s1636] ss:$2 sm:$0xff]
        %s1638 = scalar_lea.vmem [#allocation5], 449
        %v1639 = vld [vmem:[%s1638] ss:$2 sm:$0xff]
        %s1640 = scalar_lea.vmem [#allocation5], 465
        %v1641 = vld [vmem:[%s1640] ss:$2 sm:$0xff]
        %s1642 = scalar_lea.vmem [#allocation5], 481
        %v1643 = vld [vmem:[%s1642] ss:$2 sm:$0xff]
        %s1644 = scalar_lea.vmem [#allocation5], 497
        %v1645 = vld [vmem:[%s1644] ss:$2 sm:$0xff]
        %s1646 = scalar_lea.vmem [#allocation5], 513
        %v1647 = vld [vmem:[%s1646] ss:$2 sm:$0xff]
        %s1648 = scalar_lea.vmem [#allocation5], 529
        %v1649 = vld [vmem:[%s1648] ss:$2 sm:$0xff]
        %s1650 = scalar_lea.vmem [#allocation5], 545
        %v1651 = vld [vmem:[%s1650] ss:$2 sm:$0xff]
        %s1652 = scalar_lea.vmem [#allocation5], 561
        %v1653 = vld [vmem:[%s1652] ss:$2 sm:$0xff]
        %s1654 = scalar_lea.vmem [#allocation5], 577
        %v1655 = vld [vmem:[%s1654] ss:$2 sm:$0xff]
        %s1656 = scalar_lea.vmem [#allocation5], 593
        %v1657 = vld [vmem:[%s1656] ss:$2 sm:$0xff]
        %s1658 = scalar_lea.vmem [#allocation5], 609
        %v1659 = vld [vmem:[%s1658] ss:$2 sm:$0xff]
        %s1660 = scalar_lea.vmem [#allocation5], 625
        %v1661 = vld [vmem:[%s1660] ss:$2 sm:$0xff]
        %s1662 = scalar_lea.vmem [#allocation5], 641
        %v1663 = vld [vmem:[%s1662] ss:$2 sm:$0xff]
        %s1664 = scalar_lea.vmem [#allocation5], 657
        %v1665 = vld [vmem:[%s1664] ss:$2 sm:$0xff]
        %s1666 = scalar_lea.vmem [#allocation5], 673
        %v1667 = vld [vmem:[%s1666] ss:$2 sm:$0xff]
        %s1668 = scalar_lea.vmem [#allocation5], 689
        %v1669 = vld [vmem:[%s1668] ss:$2 sm:$0xff]
        %s1670 = scalar_lea.vmem [#allocation5], 705
        %v1671 = vld [vmem:[%s1670] ss:$2 sm:$0xff]
        %s1672 = scalar_lea.vmem [#allocation5], 721
        %v1673 = vld [vmem:[%s1672] ss:$2 sm:$0xff]
        %s1674 = scalar_lea.vmem [#allocation5], 737
        %v1675 = vld [vmem:[%s1674] ss:$2 sm:$0xff]
        %s1676 = scalar_lea.vmem [#allocation5], 753
        %v1677 = vld [vmem:[%s1676] ss:$2 sm:$0xff]
        %s1678 = scalar_lea.vmem [#allocation5], 769
        %v1679 = vld [vmem:[%s1678] ss:$2 sm:$0xff]
        %s1680 = scalar_lea.vmem [#allocation5], 785
        %v1681 = vld [vmem:[%s1680] ss:$2 sm:$0xff]
        %s1682 = scalar_lea.vmem [#allocation5], 801
        %v1683 = vld [vmem:[%s1682] ss:$2 sm:$0xff]
        %s1684 = scalar_lea.vmem [#allocation5], 817
        %v1685 = vld [vmem:[%s1684] ss:$2 sm:$0xff]
        %s1686 = scalar_lea.vmem [#allocation5], 833
        %v1687 = vld [vmem:[%s1686] ss:$2 sm:$0xff]
        %s1688 = scalar_lea.vmem [#allocation5], 849
        %v1689 = vld [vmem:[%s1688] ss:$2 sm:$0xff]
        %s1690 = scalar_lea.vmem [#allocation5], 865
        %v1691 = vld [vmem:[%s1690] ss:$2 sm:$0xff]
        %s1692 = scalar_lea.vmem [#allocation5], 881
        %v1693 = vld [vmem:[%s1692] ss:$2 sm:$0xff]
        %s1694 = scalar_lea.vmem [#allocation5], 897
        %v1695 = vld [vmem:[%s1694] ss:$2 sm:$0xff]
        %s1696 = scalar_lea.vmem [#allocation5], 913
        %v1697 = vld [vmem:[%s1696] ss:$2 sm:$0xff]
        %s1698 = scalar_lea.vmem [#allocation5], 929
        %v1699 = vld [vmem:[%s1698] ss:$2 sm:$0xff]
        %s1700 = scalar_lea.vmem [#allocation5], 945
        %v1701 = vld [vmem:[%s1700] ss:$2 sm:$0xff]
        %s1702 = scalar_lea.vmem [#allocation5], 961
        %v1703 = vld [vmem:[%s1702] ss:$2 sm:$0xff]
        %s1704 = scalar_lea.vmem [#allocation5], 977
        %v1705 = vld [vmem:[%s1704] ss:$2 sm:$0xff]
        %s1706 = scalar_lea.vmem [#allocation5], 993
        %v1707 = vld [vmem:[%s1706] ss:$2 sm:$0xff]
        %s1708 = scalar_lea.vmem [#allocation5], 1009
        %v1709 = vld [vmem:[%s1708] ss:$2 sm:$0xff]
        %s1710 = scalar_lea.vmem [#allocation5], 1025
        %v1711 = vld [vmem:[%s1710] ss:$2 sm:$0xff]
        %s1712 = scalar_lea.vmem [#allocation5], 1041
        %v1713 = vld [vmem:[%s1712] ss:$2 sm:$0xff]
        %s1714 = scalar_lea.vmem [#allocation5], 1057
        %v1715 = vld [vmem:[%s1714] ss:$2 sm:$0xff]
        %s1716 = scalar_lea.vmem [#allocation5], 1073
        %v1717 = vld [vmem:[%s1716] ss:$2 sm:$0xff]
        %s1718 = scalar_lea.vmem [#allocation5], 1089
        %v1719 = vld [vmem:[%s1718] ss:$2 sm:$0xff]
        %s1720 = scalar_lea.vmem [#allocation5], 1105
        %v1721 = vld [vmem:[%s1720] ss:$2 sm:$0xff]
        %s1722 = scalar_lea.vmem [#allocation5], 1121
        %v1723 = vld [vmem:[%s1722] ss:$2 sm:$0xff]
        %s1724 = scalar_lea.vmem [#allocation5], 1137
        %v1725 = vld [vmem:[%s1724] ss:$2 sm:$0xff]
        %v1726 = vmax.f32 %v1439, %v1583
        %v1727 = vmax.f32 %v1441, %v1585
        %v1728 = vmax.f32 %v1443, %v1587
        %v1729 = vmax.f32 %v1445, %v1589
        %v1730 = vmax.f32 %v1447, %v1591
        %v1731 = vmax.f32 %v1449, %v1593
        %v1732 = vmax.f32 %v1451, %v1595
        %v1733 = vmax.f32 %v1453, %v1597
        %v1734 = vmax.f32 %v1455, %v1599
        %v1735 = vmax.f32 %v1457, %v1601
        %v1736 = vmax.f32 %v1459, %v1603
        %v1737 = vmax.f32 %v1461, %v1605
        %v1738 = vmax.f32 %v1463, %v1607
        %v1739 = vmax.f32 %v1465, %v1609
        %v1740 = vmax.f32 %v1467, %v1611
        %v1741 = vmax.f32 %v1469, %v1613
        %v1742 = vmax.f32 %v1471, %v1615
        %v1743 = vmax.f32 %v1473, %v1617
        %v1744 = vmax.f32 %v1475, %v1619
        %v1745 = vmax.f32 %v1477, %v1621
        %v1746 = vmax.f32 %v1479, %v1623
        %v1747 = vmax.f32 %v1481, %v1625
        %v1748 = vmax.f32 %v1483, %v1627
        %v1749 = vmax.f32 %v1485, %v1629
        %v1750 = vmax.f32 %v1487, %v1631
        %v1751 = vmax.f32 %v1489, %v1633
        %v1752 = vmax.f32 %v1491, %v1635
        %v1753 = vmax.f32 %v1493, %v1637
        %v1754 = vmax.f32 %v1495, %v1639
        %v1755 = vmax.f32 %v1497, %v1641
        %v1756 = vmax.f32 %v1499, %v1643
        %v1757 = vmax.f32 %v1501, %v1645
        %v1758 = vmax.f32 %v1503, %v1647
        %v1759 = vmax.f32 %v1505, %v1649
        %v1760 = vmax.f32 %v1507, %v1651
        %v1761 = vmax.f32 %v1509, %v1653
        %v1762 = vmax.f32 %v1511, %v1655
        %v1763 = vmax.f32 %v1513, %v1657
        %v1764 = vmax.f32 %v1515, %v1659
        %v1765 = vmax.f32 %v1517, %v1661
        %v1766 = vmax.f32 %v1519, %v1663
        %v1767 = vmax.f32 %v1521, %v1665
        %v1768 = vmax.f32 %v1523, %v1667
        %v1769 = vmax.f32 %v1525, %v1669
        %v1770 = vmax.f32 %v1527, %v1671
        %v1771 = vmax.f32 %v1529, %v1673
        %v1772 = vmax.f32 %v1531, %v1675
        %v1773 = vmax.f32 %v1533, %v1677
        %v1774 = vmax.f32 %v1535, %v1679
        %v1775 = vmax.f32 %v1537, %v1681
        %v1776 = vmax.f32 %v1539, %v1683
        %v1777 = vmax.f32 %v1541, %v1685
        %v1778 = vmax.f32 %v1543, %v1687
        %v1779 = vmax.f32 %v1545, %v1689
        %v1780 = vmax.f32 %v1547, %v1691
        %v1781 = vmax.f32 %v1549, %v1693
        %v1782 = vmax.f32 %v1551, %v1695
        %v1783 = vmax.f32 %v1553, %v1697
        %v1784 = vmax.f32 %v1555, %v1699
        %v1785 = vmax.f32 %v1557, %v1701
        %v1786 = vmax.f32 %v1559, %v1703
        %v1787 = vmax.f32 %v1561, %v1705
        %v1788 = vmax.f32 %v1563, %v1707
        %v1789 = vmax.f32 %v1565, %v1709
        %v1790 = vmax.f32 %v1567, %v1711
        %v1791 = vmax.f32 %v1569, %v1713
        %v1792 = vmax.f32 %v1571, %v1715
        %v1793 = vmax.f32 %v1573, %v1717
        %v1794 = vmax.f32 %v1575, %v1719
        %v1795 = vmax.f32 %v1577, %v1721
        %v1796 = vmax.f32 %v1579, %v1723
        %v1797 = vmax.f32 %v1581, %v1725
        %vm1798 = vcmask 261120
        %1799 = vst.msk [vmem:[#allocation2] sm:$0xff] %vm1798, %v1726
        %1800 = vst.msk [vmem:[#allocation2 + $0x8] sm:$0xff] %vm1798, %v1727
        %1801 = vst.msk [vmem:[#allocation2 + $0x10] sm:$0xff] %vm1798, %v1728
        %1802 = vst.msk [vmem:[#allocation2 + $0x18] sm:$0xff] %vm1798, %v1729
        %1803 = vst.msk [vmem:[#allocation2 + $0x20] sm:$0xff] %vm1798, %v1730
        %1804 = vst.msk [vmem:[#allocation2 + $0x28] sm:$0xff] %vm1798, %v1731
        %1805 = vst.msk [vmem:[#allocation2 + $0x30] sm:$0xff] %vm1798, %v1732
        %1806 = vst.msk [vmem:[#allocation2 + $0x38] sm:$0xff] %vm1798, %v1733
        %1807 = vst.msk [vmem:[#allocation2 + $0x40] sm:$0xff] %vm1798, %v1734
        %1808 = vst.msk [vmem:[#allocation2 + $0x48] sm:$0xff] %vm1798, %v1735
        %1809 = vst.msk [vmem:[#allocation2 + $0x50] sm:$0xff] %vm1798, %v1736
        %1810 = vst.msk [vmem:[#allocation2 + $0x58] sm:$0xff] %vm1798, %v1737
        %1811 = vst.msk [vmem:[#allocation2 + $0x60] sm:$0xff] %vm1798, %v1738
        %1812 = vst.msk [vmem:[#allocation2 + $0x68] sm:$0xff] %vm1798, %v1739
        %1813 = vst.msk [vmem:[#allocation2 + $0x70] sm:$0xff] %vm1798, %v1740
        %1814 = vst.msk [vmem:[#allocation2 + $0x78] sm:$0xff] %vm1798, %v1741
        %1815 = vst.msk [vmem:[#allocation2 + $0x80] sm:$0xff] %vm1798, %v1742
        %1816 = vst.msk [vmem:[#allocation2 + $0x88] sm:$0xff] %vm1798, %v1743
        %1817 = vst.msk [vmem:[#allocation2 + $0x90] sm:$0xff] %vm1798, %v1744
        %1818 = vst.msk [vmem:[#allocation2 + $0x98] sm:$0xff] %vm1798, %v1745
        %1819 = vst.msk [vmem:[#allocation2 + $0xa0] sm:$0xff] %vm1798, %v1746
        %1820 = vst.msk [vmem:[#allocation2 + $0xa8] sm:$0xff] %vm1798, %v1747
        %1821 = vst.msk [vmem:[#allocation2 + $0xb0] sm:$0xff] %vm1798, %v1748
        %1822 = vst.msk [vmem:[#allocation2 + $0xb8] sm:$0xff] %vm1798, %v1749
        %1823 = vst.msk [vmem:[#allocation2 + $0xc0] sm:$0xff] %vm1798, %v1750
        %1824 = vst.msk [vmem:[#allocation2 + $0xc8] sm:$0xff] %vm1798, %v1751
        %1825 = vst.msk [vmem:[#allocation2 + $0xd0] sm:$0xff] %vm1798, %v1752
        %1826 = vst.msk [vmem:[#allocation2 + $0xd8] sm:$0xff] %vm1798, %v1753
        %1827 = vst.msk [vmem:[#allocation2 + $0xe0] sm:$0xff] %vm1798, %v1754
        %1828 = vst.msk [vmem:[#allocation2 + $0xe8] sm:$0xff] %vm1798, %v1755
        %1829 = vst.msk [vmem:[#allocation2 + $0xf0] sm:$0xff] %vm1798, %v1756
        %1830 = vst.msk [vmem:[#allocation2 + $0xf8] sm:$0xff] %vm1798, %v1757
        %1831 = vst.msk [vmem:[#allocation2 + $0x100] sm:$0xff] %vm1798, %v1758
        %1832 = vst.msk [vmem:[#allocation2 + $0x108] sm:$0xff] %vm1798, %v1759
        %1833 = vst.msk [vmem:[#allocation2 + $0x110] sm:$0xff] %vm1798, %v1760
        %1834 = vst.msk [vmem:[#allocation2 + $0x118] sm:$0xff] %vm1798, %v1761
        %1835 = vst.msk [vmem:[#allocation2 + $0x120] sm:$0xff] %vm1798, %v1762
        %1836 = vst.msk [vmem:[#allocation2 + $0x128] sm:$0xff] %vm1798, %v1763
        %1837 = vst.msk [vmem:[#allocation2 + $0x130] sm:$0xff] %vm1798, %v1764
        %1838 = vst.msk [vmem:[#allocation2 + $0x138] sm:$0xff] %vm1798, %v1765
        %1839 = vst.msk [vmem:[#allocation2 + $0x140] sm:$0xff] %vm1798, %v1766
        %1840 = vst.msk [vmem:[#allocation2 + $0x148] sm:$0xff] %vm1798, %v1767
        %1841 = vst.msk [vmem:[#allocation2 + $0x150] sm:$0xff] %vm1798, %v1768
        %1842 = vst.msk [vmem:[#allocation2 + $0x158] sm:$0xff] %vm1798, %v1769
        %1843 = vst.msk [vmem:[#allocation2 + $0x160] sm:$0xff] %vm1798, %v1770
        %1844 = vst.msk [vmem:[#allocation2 + $0x168] sm:$0xff] %vm1798, %v1771
        %1845 = vst.msk [vmem:[#allocation2 + $0x170] sm:$0xff] %vm1798, %v1772
        %1846 = vst.msk [vmem:[#allocation2 + $0x178] sm:$0xff] %vm1798, %v1773
        %1847 = vst.msk [vmem:[#allocation2 + $0x180] sm:$0xff] %vm1798, %v1774
        %1848 = vst.msk [vmem:[#allocation2 + $0x188] sm:$0xff] %vm1798, %v1775
        %1849 = vst.msk [vmem:[#allocation2 + $0x190] sm:$0xff] %vm1798, %v1776
        %1850 = vst.msk [vmem:[#allocation2 + $0x198] sm:$0xff] %vm1798, %v1777
        %1851 = vst.msk [vmem:[#allocation2 + $0x1a0] sm:$0xff] %vm1798, %v1778
        %1852 = vst.msk [vmem:[#allocation2 + $0x1a8] sm:$0xff] %vm1798, %v1779
        %1853 = vst.msk [vmem:[#allocation2 + $0x1b0] sm:$0xff] %vm1798, %v1780
        %1854 = vst.msk [vmem:[#allocation2 + $0x1b8] sm:$0xff] %vm1798, %v1781
        %1855 = vst.msk [vmem:[#allocation2 + $0x1c0] sm:$0xff] %vm1798, %v1782
        %1856 = vst.msk [vmem:[#allocation2 + $0x1c8] sm:$0xff] %vm1798, %v1783
        %1857 = vst.msk [vmem:[#allocation2 + $0x1d0] sm:$0xff] %vm1798, %v1784
        %1858 = vst.msk [vmem:[#allocation2 + $0x1d8] sm:$0xff] %vm1798, %v1785
        %1859 = vst.msk [vmem:[#allocation2 + $0x1e0] sm:$0xff] %vm1798, %v1786
        %1860 = vst.msk [vmem:[#allocation2 + $0x1e8] sm:$0xff] %vm1798, %v1787
        %1861 = vst.msk [vmem:[#allocation2 + $0x1f0] sm:$0xff] %vm1798, %v1788
        %1862 = vst.msk [vmem:[#allocation2 + $0x1f8] sm:$0xff] %vm1798, %v1789
        %1863 = vst.msk [vmem:[#allocation2 + $0x200] sm:$0xff] %vm1798, %v1790
        %1864 = vst.msk [vmem:[#allocation2 + $0x208] sm:$0xff] %vm1798, %v1791
        %1865 = vst.msk [vmem:[#allocation2 + $0x210] sm:$0xff] %vm1798, %v1792
        %1866 = vst.msk [vmem:[#allocation2 + $0x218] sm:$0xff] %vm1798, %v1793
        %1867 = vst.msk [vmem:[#allocation2 + $0x220] sm:$0xff] %vm1798, %v1794
        %1868 = vst.msk [vmem:[#allocation2 + $0x228] sm:$0xff] %vm1798, %v1795
        %1869 = vst.msk [vmem:[#allocation2 + $0x230] sm:$0xff] %vm1798, %v1796
        %1870 = vst.msk [vmem:[#allocation2 + $0x238] sm:$0xff] %vm1798, %v1797
        %v1871 = vld [vmem:[%s4] sm:$0x1]
        loop: start=0, step=1, limit=11
        $region64: #{tpu_custom_call.1} parent=55 // loop_pre_header
          _
        $region65: #{tpu_custom_call.1} parent=55 // loop_header
          %s1873 = sphi 0, %s1877
          %p1874 = scmp.ge.s32.totalorder %s1873, 11
        $region66: #{tpu_custom_call.1} parent=55 // loop_header_branch
          %1876 = sbr.rel (%p1874) target = $region70
        $region67: #{tpu_custom_call.1} parent=55 // loop_body
          %s1878 = smul.u32 %s1873, 48
          %v1879 = vld [vmem:[%s3] sm:$0xff]
          %v1880 = vld [vmem:[%s3 + $0x8] sm:$0xff]
          %v1881 = vld [vmem:[%s3 + $0x10] sm:$0xff]
          %v1882 = vld [vmem:[%s3 + $0x18] sm:$0xff]
          %s1883 = scalar_lea.vmem [#allocation2], %s1878
          %v1884 = vld [vmem:[%s1883] sm:$0xff]
          %v1885 = vld [vmem:[%s1883 + $0x8] sm:$0xff]
          %v1886 = vld [vmem:[%s1883 + $0x10] sm:$0x3f]
          %s1887 = sadd.s32 %s1878, 24
          %s1888 = scalar_lea.vmem [#allocation2], %s1887
          %v1889 = vld [vmem:[%s1888] sm:$0xff]
          %v1890 = vld [vmem:[%s1888 + $0x8] sm:$0xff]
          %v1891 = vld [vmem:[%s1888 + $0x10] sm:$0x3f]
          %s1892 = scalar_lea.vmem %s3, 32
          %v1893 = vld [vmem:[%s1892] sm:$0xff]
          %v1894 = vld [vmem:[%s1892 + $0x8] sm:$0xff]
          %v1895 = vld [vmem:[%s1892 + $0x10] sm:$0xff]
          %v1896 = vld [vmem:[%s1892 + $0x18] sm:$0xff]
          %s1897 = sadd.s32 %s1878, 1
          %s1898 = scalar_lea.vmem [#allocation2], %s1897
          %v1899 = vld [vmem:[%s1898] sm:$0xff]
          %v1900 = vld [vmem:[%s1898 + $0x8] sm:$0xff]
          %v1901 = vld [vmem:[%s1898 + $0x10] sm:$0x3f]
          %v1903 = vsel %vm1798, %v1899, 0
          %v1906 = vsel %vm1798, %v1900, 0
          %v1909 = vsel %vm1798, %v1901, 0
          %1911 = vmatpush.msra.mxu0 0.0
          %1912 = vmatpush.msra.mxu0 0.0
          %1913 = vmatpush.msra.mxu0 0.0
          %1914 = vmatpush.msra.mxu0 0.0
          %1915 = vmatpush.msra.mxu0 0.0
          %1916 = vmatpush.msra.mxu0 0.0
          %1917 = vmatpush.msra.mxu0 0.0
          %1918 = vmatpush.msra.mxu0 0.0
          %1919 = vmatpush.msra.mxu0 0.0
          %1920 = vmatpush.msra.mxu0 0.0
          %1921 = vmatpush.msra.mxu0 0.0
          %1922 = vmatpush.msra.mxu0 0.0
          %1923 = vmatpush.msra.mxu0 %v1896
          %1924 = vmatpush.msra.mxu0 %v1895
          %1925 = vmatpush.msra.mxu0 %v1894
          %1926 = vmatpush.msra.mxu0 %v1893
          %1927 = vmatmul.f32.gmra.mxu0 %v1903
          %v1928 = vpop.f32.mrf.mxu0
          %v1929 = vadd.f32 0.0, %v1928
          %1930 = vmatmul.f32.gmra.mxu0 %v1906
          %v1931 = vpop.f32.mrf.mxu0
          %v1932 = vadd.f32 0.0, %v1931
          %1933 = vmatmul.f32.gmra.mxu0 %v1909
          %v1934 = vpop.f32.mrf.mxu0
          %v1935 = vadd.f32 0.0, %v1934
          %1936 = vdwg.mxu0
          %v1938 = vsel %vm1798, %v1884, 0
          %v1941 = vsel %vm1798, %v1885, 0
          %v1944 = vsel %vm1798, %v1886, 0
          %1946 = vmatpush.msra.mxu0 0.0
          %1947 = vmatpush.msra.mxu0 0.0
          %1948 = vmatpush.msra.mxu0 0.0
          %1949 = vmatpush.msra.mxu0 0.0
          %1950 = vmatpush.msra.mxu0 0.0
          %1951 = vmatpush.msra.mxu0 0.0
          %1952 = vmatpush.msra.mxu0 0.0
          %1953 = vmatpush.msra.mxu0 0.0
          %1954 = vmatpush.msra.mxu0 0.0
          %1955 = vmatpush.msra.mxu0 0.0
          %1956 = vmatpush.msra.mxu0 0.0
          %1957 = vmatpush.msra.mxu0 0.0
          %1958 = vmatpush.msra.mxu0 %v1882
          %1959 = vmatpush.msra.mxu0 %v1881
          %1960 = vmatpush.msra.mxu0 %v1880
          %1961 = vmatpush.msra.mxu0 %v1879
          %1962 = vmatmul.f32.gmra.mxu0 %v1938
          %v1963 = vpop.f32.mrf.mxu0
          %v1964 = vadd.f32 %v1929, %v1963
          %1965 = vmatmul.f32.gmra.mxu0 %v1941
          %v1966 = vpop.f32.mrf.mxu0
          %v1967 = vadd.f32 %v1932, %v1966
          %1968 = vmatmul.f32.gmra.mxu0 %v1944
          %v1969 = vpop.f32.mrf.mxu0
          %v1970 = vadd.f32 %v1935, %v1969
          %1971 = vdwg.mxu0
          %s1972 = sadd.s32 %s1878, 25
          %s1973 = scalar_lea.vmem [#allocation2], %s1972
          %v1974 = vld [vmem:[%s1973] sm:$0xff]
          %v1975 = vld [vmem:[%s1973 + $0x8] sm:$0xff]
          %v1976 = vld [vmem:[%s1973 + $0x10] sm:$0x3f]
          %v1978 = vsel %vm1798, %v1974, 0
          %v1981 = vsel %vm1798, %v1975, 0
          %v1984 = vsel %vm1798, %v1976, 0
          %1986 = vmatpush.msra.mxu0 0.0
          %1987 = vmatpush.msra.mxu0 0.0
          %1988 = vmatpush.msra.mxu0 0.0
          %1989 = vmatpush.msra.mxu0 0.0
          %1990 = vmatpush.msra.mxu0 0.0
          %1991 = vmatpush.msra.mxu0 0.0
          %1992 = vmatpush.msra.mxu0 0.0
          %1993 = vmatpush.msra.mxu0 0.0
          %1994 = vmatpush.msra.mxu0 0.0
          %1995 = vmatpush.msra.mxu0 0.0
          %1996 = vmatpush.msra.mxu0 0.0
          %1997 = vmatpush.msra.mxu0 0.0
          %1998 = vmatpush.msra.mxu0 %v1896
          %1999 = vmatpush.msra.mxu0 %v1895
          %2000 = vmatpush.msra.mxu0 %v1894
          %2001 = vmatpush.msra.mxu0 %v1893
          %2002 = vmatmul.f32.gmra.mxu0 %v1978
          %v2003 = vpop.f32.mrf.mxu0
          %v2004 = vadd.f32 0.0, %v2003
          %2005 = vmatmul.f32.gmra.mxu0 %v1981
          %v2006 = vpop.f32.mrf.mxu0
          %v2007 = vadd.f32 0.0, %v2006
          %2008 = vmatmul.f32.gmra.mxu0 %v1984
          %v2009 = vpop.f32.mrf.mxu0
          %v2010 = vadd.f32 0.0, %v2009
          %2011 = vdwg.mxu0
          %v2013 = vsel %vm1798, %v1889, 0
          %v2016 = vsel %vm1798, %v1890, 0
          %v2019 = vsel %vm1798, %v1891, 0
          %2021 = vmatpush.msra.mxu0 0.0
          %2022 = vmatpush.msra.mxu0 0.0
          %2023 = vmatpush.msra.mxu0 0.0
          %2024 = vmatpush.msra.mxu0 0.0
          %2025 = vmatpush.msra.mxu0 0.0
          %2026 = vmatpush.msra.mxu0 0.0
          %2027 = vmatpush.msra.mxu0 0.0
          %2028 = vmatpush.msra.mxu0 0.0
          %2029 = vmatpush.msra.mxu0 0.0
          %2030 = vmatpush.msra.mxu0 0.0
          %2031 = vmatpush.msra.mxu0 0.0
          %2032 = vmatpush.msra.mxu0 0.0
          %2033 = vmatpush.msra.mxu0 %v1882
          %2034 = vmatpush.msra.mxu0 %v1881
          %2035 = vmatpush.msra.mxu0 %v1880
          %2036 = vmatpush.msra.mxu0 %v1879
          %2037 = vmatmul.f32.gmra.mxu0 %v2013
          %v2038 = vpop.f32.mrf.mxu0
          %v2039 = vadd.f32 %v2004, %v2038
          %2040 = vmatmul.f32.gmra.mxu0 %v2016
          %v2041 = vpop.f32.mrf.mxu0
          %v2042 = vadd.f32 %v2007, %v2041
          %2043 = vmatmul.f32.gmra.mxu0 %v2019
          %v2044 = vpop.f32.mrf.mxu0
          %v2045 = vadd.f32 %v2010, %v2044
          %2046 = vdwg.mxu0
          %s2047 = scalar_lea.vmem %s3, 64
          %v2048 = vld [vmem:[%s2047] sm:$0xff]
          %v2049 = vld [vmem:[%s2047 + $0x8] sm:$0xff]
          %v2050 = vld [vmem:[%s2047 + $0x10] sm:$0xff]
          %v2051 = vld [vmem:[%s2047 + $0x18] sm:$0xff]
          %s2052 = sadd.s32 %s1878, 2
          %s2053 = scalar_lea.vmem [#allocation2], %s2052
          %v2054 = vld [vmem:[%s2053] sm:$0xff]
          %v2055 = vld [vmem:[%s2053 + $0x8] sm:$0xff]
          %v2056 = vld [vmem:[%s2053 + $0x10] sm:$0x3f]
          %v2058 = vsel %vm1798, %v2054, 0
          %v2061 = vsel %vm1798, %v2055, 0
          %v2064 = vsel %vm1798, %v2056, 0
          %2066 = vmatpush.msra.mxu0 0.0
          %2067 = vmatpush.msra.mxu0 0.0
          %2068 = vmatpush.msra.mxu0 0.0
          %2069 = vmatpush.msra.mxu0 0.0
          %2070 = vmatpush.msra.mxu0 0.0
          %2071 = vmatpush.msra.mxu0 0.0
          %2072 = vmatpush.msra.mxu0 0.0
          %2073 = vmatpush.msra.mxu0 0.0
          %2074 = vmatpush.msra.mxu0 0.0
          %2075 = vmatpush.msra.mxu0 0.0
          %2076 = vmatpush.msra.mxu0 0.0
          %2077 = vmatpush.msra.mxu0 0.0
          %2078 = vmatpush.msra.mxu0 %v2051
          %2079 = vmatpush.msra.mxu0 %v2050
          %2080 = vmatpush.msra.mxu0 %v2049
          %2081 = vmatpush.msra.mxu0 %v2048
          %2082 = vmatmul.f32.gmra.mxu0 %v2058
          %v2083 = vpop.f32.mrf.mxu0
          %v2084 = vadd.f32 0.0, %v2083
          %2085 = vmatmul.f32.gmra.mxu0 %v2061
          %v2086 = vpop.f32.mrf.mxu0
          %v2087 = vadd.f32 0.0, %v2086
          %2088 = vmatmul.f32.gmra.mxu0 %v2064
          %v2089 = vpop.f32.mrf.mxu0
          %v2090 = vadd.f32 0.0, %v2089
          %2091 = vdwg.mxu0
          %v2092 = vadd.f32 %v1964, %v2084
          %v2093 = vadd.f32 %v1967, %v2087
          %v2094 = vadd.f32 %v1970, %v2090
          %s2095 = sadd.s32 %s1878, 26
          %s2096 = scalar_lea.vmem [#allocation2], %s2095
          %v2097 = vld [vmem:[%s2096] sm:$0xff]
          %v2098 = vld [vmem:[%s2096 + $0x8] sm:$0xff]
          %v2099 = vld [vmem:[%s2096 + $0x10] sm:$0x3f]
          %v2101 = vsel %vm1798, %v2097, 0
          %v2104 = vsel %vm1798, %v2098, 0
          %v2107 = vsel %vm1798, %v2099, 0
          %2109 = vmatpush.msra.mxu0 0.0
          %2110 = vmatpush.msra.mxu0 0.0
          %2111 = vmatpush.msra.mxu0 0.0
          %2112 = vmatpush.msra.mxu0 0.0
          %2113 = vmatpush.msra.mxu0 0.0
          %2114 = vmatpush.msra.mxu0 0.0
          %2115 = vmatpush.msra.mxu0 0.0
          %2116 = vmatpush.msra.mxu0 0.0
          %2117 = vmatpush.msra.mxu0 0.0
          %2118 = vmatpush.msra.mxu0 0.0
          %2119 = vmatpush.msra.mxu0 0.0
          %2120 = vmatpush.msra.mxu0 0.0
          %2121 = vmatpush.msra.mxu0 %v2051
          %2122 = vmatpush.msra.mxu0 %v2050
          %2123 = vmatpush.msra.mxu0 %v2049
          %2124 = vmatpush.msra.mxu0 %v2048
          %2125 = vmatmul.f32.gmra.mxu0 %v2101
          %v2126 = vpop.f32.mrf.mxu0
          %v2127 = vadd.f32 0.0, %v2126
          %2128 = vmatmul.f32.gmra.mxu0 %v2104
          %v2129 = vpop.f32.mrf.mxu0
          %v2130 = vadd.f32 0.0, %v2129
          %2131 = vmatmul.f32.gmra.mxu0 %v2107
          %v2132 = vpop.f32.mrf.mxu0
          %v2133 = vadd.f32 0.0, %v2132
          %2134 = vdwg.mxu0
          %v2135 = vadd.f32 %v2039, %v2127
          %v2136 = vadd.f32 %v2042, %v2130
          %v2137 = vadd.f32 %v2045, %v2133
          %s2138 = scalar_lea.vmem %s3, 96
          %v2139 = vld [vmem:[%s2138] sm:$0xff]
          %v2140 = vld [vmem:[%s2138 + $0x8] sm:$0xff]
          %v2141 = vld [vmem:[%s2138 + $0x10] sm:$0xff]
          %v2142 = vld [vmem:[%s2138 + $0x18] sm:$0xff]
          %2143 = vmatpush.msra.mxu0 0.0
          %2144 = vmatpush.msra.mxu0 0.0
          %2145 = vmatpush.msra.mxu0 0.0
          %2146 = vmatpush.msra.mxu0 0.0
          %2147 = vmatpush.msra.mxu0 0.0
          %2148 = vmatpush.msra.mxu0 0.0
          %2149 = vmatpush.msra.mxu0 0.0
          %2150 = vmatpush.msra.mxu0 0.0
          %2151 = vmatpush.msra.mxu0 0.0
          %2152 = vmatpush.msra.mxu0 0.0
          %2153 = vmatpush.msra.mxu0 0.0
          %2154 = vmatpush.msra.mxu0 0.0
          %2155 = vmatpush.msra.mxu0 %v2142
          %2156 = vmatpush.msra.mxu0 %v2141
          %2157 = vmatpush.msra.mxu0 %v2140
          %2158 = vmatpush.msra.mxu0 %v2139
          %2159 = vmatmul.f32.gmra.mxu0 %v2013
          %v2160 = vpop.f32.mrf.mxu0
          %v2161 = vadd.f32 0.0, %v2160
          %2162 = vmatmul.f32.gmra.mxu0 %v2016
          %v2163 = vpop.f32.mrf.mxu0
          %v2164 = vadd.f32 0.0, %v2163
          %2165 = vmatmul.f32.gmra.mxu0 %v2019
          %v2166 = vpop.f32.mrf.mxu0
          %v2167 = vadd.f32 0.0, %v2166
          %2168 = vdwg.mxu0
          %v2169 = vadd.f32 %v2092, %v2161
          %v2170 = vadd.f32 %v2093, %v2164
          %v2171 = vadd.f32 %v2094, %v2167
          %s2172 = sadd.s32 %s1878, 48
          %s2173 = scalar_lea.vmem [#allocation2], %s2172
          %v2174 = vld [vmem:[%s2173] sm:$0xff]
          %v2175 = vld [vmem:[%s2173 + $0x8] sm:$0xff]
          %v2176 = vld [vmem:[%s2173 + $0x10] sm:$0x3f]
          %v2178 = vsel %vm1798, %v2174, 0
          %v2181 = vsel %vm1798, %v2175, 0
          %v2184 = vsel %vm1798, %v2176, 0
          %2186 = vmatpush.msra.mxu0 0.0
          %2187 = vmatpush.msra.mxu0 0.0
          %2188 = vmatpush.msra.mxu0 0.0
          %2189 = vmatpush.msra.mxu0 0.0
          %2190 = vmatpush.msra.mxu0 0.0
          %2191 = vmatpush.msra.mxu0 0.0
          %2192 = vmatpush.msra.mxu0 0.0
          %2193 = vmatpush.msra.mxu0 0.0
          %2194 = vmatpush.msra.mxu0 0.0
          %2195 = vmatpush.msra.mxu0 0.0
          %2196 = vmatpush.msra.mxu0 0.0
          %2197 = vmatpush.msra.mxu0 0.0
          %2198 = vmatpush.msra.mxu0 %v2142
          %2199 = vmatpush.msra.mxu0 %v2141
          %2200 = vmatpush.msra.mxu0 %v2140
          %2201 = vmatpush.msra.mxu0 %v2139
          %2202 = vmatmul.f32.gmra.mxu0 %v2178
          %v2203 = vpop.f32.mrf.mxu0
          %v2204 = vadd.f32 0.0, %v2203
          %2205 = vmatmul.f32.gmra.mxu0 %v2181
          %v2206 = vpop.f32.mrf.mxu0
          %v2207 = vadd.f32 0.0, %v2206
          %2208 = vmatmul.f32.gmra.mxu0 %v2184
          %v2209 = vpop.f32.mrf.mxu0
          %v2210 = vadd.f32 0.0, %v2209
          %2211 = vdwg.mxu0
          %v2212 = vadd.f32 %v2135, %v2204
          %v2213 = vadd.f32 %v2136, %v2207
          %v2214 = vadd.f32 %v2137, %v2210
          %s2215 = scalar_lea.vmem %s3, 128
          %v2216 = vld [vmem:[%s2215] sm:$0xff]
          %v2217 = vld [vmem:[%s2215 + $0x8] sm:$0xff]
          %v2218 = vld [vmem:[%s2215 + $0x10] sm:$0xff]
          %v2219 = vld [vmem:[%s2215 + $0x18] sm:$0xff]
          %2220 = vmatpush.msra.mxu0 0.0
          %2221 = vmatpush.msra.mxu0 0.0
          %2222 = vmatpush.msra.mxu0 0.0
          %2223 = vmatpush.msra.mxu0 0.0
          %2224 = vmatpush.msra.mxu0 0.0
          %2225 = vmatpush.msra.mxu0 0.0
          %2226 = vmatpush.msra.mxu0 0.0
          %2227 = vmatpush.msra.mxu0 0.0
          %2228 = vmatpush.msra.mxu0 0.0
          %2229 = vmatpush.msra.mxu0 0.0
          %2230 = vmatpush.msra.mxu0 0.0
          %2231 = vmatpush.msra.mxu0 0.0
          %2232 = vmatpush.msra.mxu0 %v2219
          %2233 = vmatpush.msra.mxu0 %v2218
          %2234 = vmatpush.msra.mxu0 %v2217
          %2235 = vmatpush.msra.mxu0 %v2216
          %2236 = vmatmul.f32.gmra.mxu0 %v1978
          %v2237 = vpop.f32.mrf.mxu0
          %v2238 = vadd.f32 0.0, %v2237
          %2239 = vmatmul.f32.gmra.mxu0 %v1981
          %v2240 = vpop.f32.mrf.mxu0
          %v2241 = vadd.f32 0.0, %v2240
          %2242 = vmatmul.f32.gmra.mxu0 %v1984
          %v2243 = vpop.f32.mrf.mxu0
          %v2244 = vadd.f32 0.0, %v2243
          %2245 = vdwg.mxu0
          %v2246 = vadd.f32 %v2169, %v2238
          %v2247 = vadd.f32 %v2170, %v2241
          %v2248 = vadd.f32 %v2171, %v2244
          %s2249 = sadd.s32 %s1878, 49
          %s2250 = scalar_lea.vmem [#allocation2], %s2249
          %v2251 = vld [vmem:[%s2250] sm:$0xff]
          %v2252 = vld [vmem:[%s2250 + $0x8] sm:$0xff]
          %v2253 = vld [vmem:[%s2250 + $0x10] sm:$0x3f]
          %v2255 = vsel %vm1798, %v2251, 0
          %v2258 = vsel %vm1798, %v2252, 0
          %v2261 = vsel %vm1798, %v2253, 0
          %2263 = vmatpush.msra.mxu0 0.0
          %2264 = vmatpush.msra.mxu0 0.0
          %2265 = vmatpush.msra.mxu0 0.0
          %2266 = vmatpush.msra.mxu0 0.0
          %2267 = vmatpush.msra.mxu0 0.0
          %2268 = vmatpush.msra.mxu0 0.0
          %2269 = vmatpush.msra.mxu0 0.0
          %2270 = vmatpush.msra.mxu0 0.0
          %2271 = vmatpush.msra.mxu0 0.0
          %2272 = vmatpush.msra.mxu0 0.0
          %2273 = vmatpush.msra.mxu0 0.0
          %2274 = vmatpush.msra.mxu0 0.0
          %2275 = vmatpush.msra.mxu0 %v2219
          %2276 = vmatpush.msra.mxu0 %v2218
          %2277 = vmatpush.msra.mxu0 %v2217
          %2278 = vmatpush.msra.mxu0 %v2216
          %2279 = vmatmul.f32.gmra.mxu0 %v2255
          %v2280 = vpop.f32.mrf.mxu0
          %v2281 = vadd.f32 0.0, %v2280
          %2282 = vmatmul.f32.gmra.mxu0 %v2258
          %v2283 = vpop.f32.mrf.mxu0
          %v2284 = vadd.f32 0.0, %v2283
          %2285 = vmatmul.f32.gmra.mxu0 %v2261
          %v2286 = vpop.f32.mrf.mxu0
          %v2287 = vadd.f32 0.0, %v2286
          %2288 = vdwg.mxu0
          %v2289 = vadd.f32 %v2212, %v2281
          %v2290 = vadd.f32 %v2213, %v2284
          %v2291 = vadd.f32 %v2214, %v2287
          %s2292 = scalar_lea.vmem %s3, 160
          %v2293 = vld [vmem:[%s2292] sm:$0xff]
          %v2294 = vld [vmem:[%s2292 + $0x8] sm:$0xff]
          %v2295 = vld [vmem:[%s2292 + $0x10] sm:$0xff]
          %v2296 = vld [vmem:[%s2292 + $0x18] sm:$0xff]
          %2297 = vmatpush.msra.mxu0 0.0
          %2298 = vmatpush.msra.mxu0 0.0
          %2299 = vmatpush.msra.mxu0 0.0
          %2300 = vmatpush.msra.mxu0 0.0
          %2301 = vmatpush.msra.mxu0 0.0
          %2302 = vmatpush.msra.mxu0 0.0
          %2303 = vmatpush.msra.mxu0 0.0
          %2304 = vmatpush.msra.mxu0 0.0
          %2305 = vmatpush.msra.mxu0 0.0
          %2306 = vmatpush.msra.mxu0 0.0
          %2307 = vmatpush.msra.mxu0 0.0
          %2308 = vmatpush.msra.mxu0 0.0
          %2309 = vmatpush.msra.mxu0 %v2296
          %2310 = vmatpush.msra.mxu0 %v2295
          %2311 = vmatpush.msra.mxu0 %v2294
          %2312 = vmatpush.msra.mxu0 %v2293
          %2313 = vmatmul.f32.gmra.mxu0 %v2101
          %v2314 = vpop.f32.mrf.mxu0
          %v2315 = vadd.f32 0.0, %v2314
          %2316 = vmatmul.f32.gmra.mxu0 %v2104
          %v2317 = vpop.f32.mrf.mxu0
          %v2318 = vadd.f32 0.0, %v2317
          %2319 = vmatmul.f32.gmra.mxu0 %v2107
          %v2320 = vpop.f32.mrf.mxu0
          %v2321 = vadd.f32 0.0, %v2320
          %2322 = vdwg.mxu0
          %v2323 = vadd.f32 %v2246, %v2315
          %v2324 = vadd.f32 %v2247, %v2318
          %v2325 = vadd.f32 %v2248, %v2321
          %s2326 = sadd.s32 %s1878, 50
          %s2327 = scalar_lea.vmem [#allocation2], %s2326
          %v2328 = vld [vmem:[%s2327] sm:$0xff]
          %v2329 = vld [vmem:[%s2327 + $0x8] sm:$0xff]
          %v2330 = vld [vmem:[%s2327 + $0x10] sm:$0x3f]
          %v2332 = vsel %vm1798, %v2328, 0
          %v2335 = vsel %vm1798, %v2329, 0
          %v2338 = vsel %vm1798, %v2330, 0
          %2340 = vmatpush.msra.mxu0 0.0
          %2341 = vmatpush.msra.mxu0 0.0
          %2342 = vmatpush.msra.mxu0 0.0
          %2343 = vmatpush.msra.mxu0 0.0
          %2344 = vmatpush.msra.mxu0 0.0
          %2345 = vmatpush.msra.mxu0 0.0
          %2346 = vmatpush.msra.mxu0 0.0
          %2347 = vmatpush.msra.mxu0 0.0
          %2348 = vmatpush.msra.mxu0 0.0
          %2349 = vmatpush.msra.mxu0 0.0
          %2350 = vmatpush.msra.mxu0 0.0
          %2351 = vmatpush.msra.mxu0 0.0
          %2352 = vmatpush.msra.mxu0 %v2296
          %2353 = vmatpush.msra.mxu0 %v2295
          %2354 = vmatpush.msra.mxu0 %v2294
          %2355 = vmatpush.msra.mxu0 %v2293
          %2356 = vmatmul.f32.gmra.mxu0 %v2332
          %v2357 = vpop.f32.mrf.mxu0
          %v2358 = vadd.f32 0.0, %v2357
          %2359 = vmatmul.f32.gmra.mxu0 %v2335
          %v2360 = vpop.f32.mrf.mxu0
          %v2361 = vadd.f32 0.0, %v2360
          %2362 = vmatmul.f32.gmra.mxu0 %v2338
          %v2363 = vpop.f32.mrf.mxu0
          %v2364 = vadd.f32 0.0, %v2363
          %2365 = vdwg.mxu0
          %v2366 = vadd.f32 %v2289, %v2358
          %v2367 = vadd.f32 %v2290, %v2361
          %v2368 = vadd.f32 %v2291, %v2364
          %s2369 = scalar_lea.vmem %s3, 192
          %v2370 = vld [vmem:[%s2369] sm:$0xff]
          %v2371 = vld [vmem:[%s2369 + $0x8] sm:$0xff]
          %v2372 = vld [vmem:[%s2369 + $0x10] sm:$0xff]
          %v2373 = vld [vmem:[%s2369 + $0x18] sm:$0xff]
          %2374 = vmatpush.msra.mxu0 0.0
          %2375 = vmatpush.msra.mxu0 0.0
          %2376 = vmatpush.msra.mxu0 0.0
          %2377 = vmatpush.msra.mxu0 0.0
          %2378 = vmatpush.msra.mxu0 0.0
          %2379 = vmatpush.msra.mxu0 0.0
          %2380 = vmatpush.msra.mxu0 0.0
          %2381 = vmatpush.msra.mxu0 0.0
          %2382 = vmatpush.msra.mxu0 0.0
          %2383 = vmatpush.msra.mxu0 0.0
          %2384 = vmatpush.msra.mxu0 0.0
          %2385 = vmatpush.msra.mxu0 0.0
          %2386 = vmatpush.msra.mxu0 %v2373
          %2387 = vmatpush.msra.mxu0 %v2372
          %2388 = vmatpush.msra.mxu0 %v2371
          %2389 = vmatpush.msra.mxu0 %v2370
          %2390 = vmatmul.f32.gmra.mxu0 %v2178
          %v2391 = vpop.f32.mrf.mxu0
          %v2392 = vadd.f32 0.0, %v2391
          %2393 = vmatmul.f32.gmra.mxu0 %v2181
          %v2394 = vpop.f32.mrf.mxu0
          %v2395 = vadd.f32 0.0, %v2394
          %2396 = vmatmul.f32.gmra.mxu0 %v2184
          %v2397 = vpop.f32.mrf.mxu0
          %v2398 = vadd.f32 0.0, %v2397
          %2399 = vdwg.mxu0
          %v2400 = vadd.f32 %v2323, %v2392
          %v2401 = vadd.f32 %v2324, %v2395
          %v2402 = vadd.f32 %v2325, %v2398
          %s2403 = sadd.s32 %s1878, 72
          %s2404 = scalar_lea.vmem [#allocation2], %s2403
          %v2405 = vld [vmem:[%s2404] sm:$0xff]
          %v2406 = vld [vmem:[%s2404 + $0x8] sm:$0xff]
          %v2407 = vld [vmem:[%s2404 + $0x10] sm:$0x3f]
          %v2409 = vsel %vm1798, %v2405, 0
          %v2412 = vsel %vm1798, %v2406, 0
          %v2415 = vsel %vm1798, %v2407, 0
          %2417 = vmatpush.msra.mxu0 0.0
          %2418 = vmatpush.msra.mxu0 0.0
          %2419 = vmatpush.msra.mxu0 0.0
          %2420 = vmatpush.msra.mxu0 0.0
          %2421 = vmatpush.msra.mxu0 0.0
          %2422 = vmatpush.msra.mxu0 0.0
          %2423 = vmatpush.msra.mxu0 0.0
          %2424 = vmatpush.msra.mxu0 0.0
          %2425 = vmatpush.msra.mxu0 0.0
          %2426 = vmatpush.msra.mxu0 0.0
          %2427 = vmatpush.msra.mxu0 0.0
          %2428 = vmatpush.msra.mxu0 0.0
          %2429 = vmatpush.msra.mxu0 %v2373
          %2430 = vmatpush.msra.mxu0 %v2372
          %2431 = vmatpush.msra.mxu0 %v2371
          %2432 = vmatpush.msra.mxu0 %v2370
          %2433 = vmatmul.f32.gmra.mxu0 %v2409
          %v2434 = vpop.f32.mrf.mxu0
          %v2435 = vadd.f32 0.0, %v2434
          %2436 = vmatmul.f32.gmra.mxu0 %v2412
          %v2437 = vpop.f32.mrf.mxu0
          %v2438 = vadd.f32 0.0, %v2437
          %2439 = vmatmul.f32.gmra.mxu0 %v2415
          %v2440 = vpop.f32.mrf.mxu0
          %v2441 = vadd.f32 0.0, %v2440
          %2442 = vdwg.mxu0
          %v2443 = vadd.f32 %v2366, %v2435
          %v2444 = vadd.f32 %v2367, %v2438
          %v2445 = vadd.f32 %v2368, %v2441
          %s2446 = scalar_lea.vmem %s3, 224
          %v2447 = vld [vmem:[%s2446] sm:$0xff]
          %v2448 = vld [vmem:[%s2446 + $0x8] sm:$0xff]
          %v2449 = vld [vmem:[%s2446 + $0x10] sm:$0xff]
          %v2450 = vld [vmem:[%s2446 + $0x18] sm:$0xff]
          %2451 = vmatpush.msra.mxu0 0.0
          %2452 = vmatpush.msra.mxu0 0.0
          %2453 = vmatpush.msra.mxu0 0.0
          %2454 = vmatpush.msra.mxu0 0.0
          %2455 = vmatpush.msra.mxu0 0.0
          %2456 = vmatpush.msra.mxu0 0.0
          %2457 = vmatpush.msra.mxu0 0.0
          %2458 = vmatpush.msra.mxu0 0.0
          %2459 = vmatpush.msra.mxu0 0.0
          %2460 = vmatpush.msra.mxu0 0.0
          %2461 = vmatpush.msra.mxu0 0.0
          %2462 = vmatpush.msra.mxu0 0.0
          %2463 = vmatpush.msra.mxu0 %v2450
          %2464 = vmatpush.msra.mxu0 %v2449
          %2465 = vmatpush.msra.mxu0 %v2448
          %2466 = vmatpush.msra.mxu0 %v2447
          %2467 = vmatmul.f32.gmra.mxu0 %v2255
          %v2468 = vpop.f32.mrf.mxu0
          %v2469 = vadd.f32 0.0, %v2468
          %2470 = vmatmul.f32.gmra.mxu0 %v2258
          %v2471 = vpop.f32.mrf.mxu0
          %v2472 = vadd.f32 0.0, %v2471
          %2473 = vmatmul.f32.gmra.mxu0 %v2261
          %v2474 = vpop.f32.mrf.mxu0
          %v2475 = vadd.f32 0.0, %v2474
          %2476 = vdwg.mxu0
          %v2477 = vadd.f32 %v2400, %v2469
          %v2478 = vadd.f32 %v2401, %v2472
          %v2479 = vadd.f32 %v2402, %v2475
          %s2480 = sadd.s32 %s1878, 73
          %s2481 = scalar_lea.vmem [#allocation2], %s2480
          %v2482 = vld [vmem:[%s2481] sm:$0xff]
          %v2483 = vld [vmem:[%s2481 + $0x8] sm:$0xff]
          %v2484 = vld [vmem:[%s2481 + $0x10] sm:$0x3f]
          %v2486 = vsel %vm1798, %v2482, 0
          %v2489 = vsel %vm1798, %v2483, 0
          %v2492 = vsel %vm1798, %v2484, 0
          %2494 = vmatpush.msra.mxu0 0.0
          %2495 = vmatpush.msra.mxu0 0.0
          %2496 = vmatpush.msra.mxu0 0.0
          %2497 = vmatpush.msra.mxu0 0.0
          %2498 = vmatpush.msra.mxu0 0.0
          %2499 = vmatpush.msra.mxu0 0.0
          %2500 = vmatpush.msra.mxu0 0.0
          %2501 = vmatpush.msra.mxu0 0.0
          %2502 = vmatpush.msra.mxu0 0.0
          %2503 = vmatpush.msra.mxu0 0.0
          %2504 = vmatpush.msra.mxu0 0.0
          %2505 = vmatpush.msra.mxu0 0.0
          %2506 = vmatpush.msra.mxu0 %v2450
          %2507 = vmatpush.msra.mxu0 %v2449
          %2508 = vmatpush.msra.mxu0 %v2448
          %2509 = vmatpush.msra.mxu0 %v2447
          %2510 = vmatmul.f32.gmra.mxu0 %v2486
          %v2511 = vpop.f32.mrf.mxu0
          %v2512 = vadd.f32 0.0, %v2511
          %2513 = vmatmul.f32.gmra.mxu0 %v2489
          %v2514 = vpop.f32.mrf.mxu0
          %v2515 = vadd.f32 0.0, %v2514
          %2516 = vmatmul.f32.gmra.mxu0 %v2492
          %v2517 = vpop.f32.mrf.mxu0
          %v2518 = vadd.f32 0.0, %v2517
          %2519 = vdwg.mxu0
          %v2520 = vadd.f32 %v2443, %v2512
          %v2521 = vadd.f32 %v2444, %v2515
          %v2522 = vadd.f32 %v2445, %v2518
          %s2523 = scalar_lea.vmem %s3, 256
          %v2524 = vld [vmem:[%s2523] sm:$0xff]
          %v2525 = vld [vmem:[%s2523 + $0x8] sm:$0xff]
          %v2526 = vld [vmem:[%s2523 + $0x10] sm:$0xff]
          %v2527 = vld [vmem:[%s2523 + $0x18] sm:$0xff]
          %2528 = vmatpush.msra.mxu0 0.0
          %2529 = vmatpush.msra.mxu0 0.0
          %2530 = vmatpush.msra.mxu0 0.0
          %2531 = vmatpush.msra.mxu0 0.0
          %2532 = vmatpush.msra.mxu0 0.0
          %2533 = vmatpush.msra.mxu0 0.0
          %2534 = vmatpush.msra.mxu0 0.0
          %2535 = vmatpush.msra.mxu0 0.0
          %2536 = vmatpush.msra.mxu0 0.0
          %2537 = vmatpush.msra.mxu0 0.0
          %2538 = vmatpush.msra.mxu0 0.0
          %2539 = vmatpush.msra.mxu0 0.0
          %2540 = vmatpush.msra.mxu0 %v2527
          %2541 = vmatpush.msra.mxu0 %v2526
          %2542 = vmatpush.msra.mxu0 %v2525
          %2543 = vmatpush.msra.mxu0 %v2524
          %2544 = vmatmul.f32.gmra.mxu0 %v2332
          %v2545 = vpop.f32.mrf.mxu0
          %v2546 = vadd.f32 0.0, %v2545
          %2547 = vmatmul.f32.gmra.mxu0 %v2335
          %v2548 = vpop.f32.mrf.mxu0
          %v2549 = vadd.f32 0.0, %v2548
          %2550 = vmatmul.f32.gmra.mxu0 %v2338
          %v2551 = vpop.f32.mrf.mxu0
          %v2552 = vadd.f32 0.0, %v2551
          %2553 = vdwg.mxu0
          %v2554 = vadd.f32 %v2477, %v2546
          %v2555 = vadd.f32 %v2478, %v2549
          %v2556 = vadd.f32 %v2479, %v2552
          %s2557 = sadd.s32 %s1878, 74
          %s2558 = scalar_lea.vmem [#allocation2], %s2557
          %v2559 = vld [vmem:[%s2558] sm:$0xff]
          %v2560 = vld [vmem:[%s2558 + $0x8] sm:$0xff]
          %v2561 = vld [vmem:[%s2558 + $0x10] sm:$0x3f]
          %v2563 = vsel %vm1798, %v2559, 0
          %v2566 = vsel %vm1798, %v2560, 0
          %v2569 = vsel %vm1798, %v2561, 0
          %2571 = vmatpush.msra.mxu0 0.0
          %2572 = vmatpush.msra.mxu0 0.0
          %2573 = vmatpush.msra.mxu0 0.0
          %2574 = vmatpush.msra.mxu0 0.0
          %2575 = vmatpush.msra.mxu0 0.0
          %2576 = vmatpush.msra.mxu0 0.0
          %2577 = vmatpush.msra.mxu0 0.0
          %2578 = vmatpush.msra.mxu0 0.0
          %2579 = vmatpush.msra.mxu0 0.0
          %2580 = vmatpush.msra.mxu0 0.0
          %2581 = vmatpush.msra.mxu0 0.0
          %2582 = vmatpush.msra.mxu0 0.0
          %2583 = vmatpush.msra.mxu0 %v2527
          %2584 = vmatpush.msra.mxu0 %v2526
          %2585 = vmatpush.msra.mxu0 %v2525
          %2586 = vmatpush.msra.mxu0 %v2524
          %2587 = vmatmul.f32.gmra.mxu0 %v2563
          %v2588 = vpop.f32.mrf.mxu0
          %v2589 = vadd.f32 0.0, %v2588
          %2590 = vmatmul.f32.gmra.mxu0 %v2566
          %v2591 = vpop.f32.mrf.mxu0
          %v2592 = vadd.f32 0.0, %v2591
          %2593 = vmatmul.f32.gmra.mxu0 %v2569
          %v2594 = vpop.f32.mrf.mxu0
          %v2595 = vadd.f32 0.0, %v2594
          %2596 = vdwg.mxu0
          %v2597 = vadd.f32 %v2520, %v2589
          %v2598 = vadd.f32 %v2521, %v2592
          %v2599 = vadd.f32 %v2522, %v2595
          %v2600 = vmax.f32 %v2554, %v2597
          %v2601 = vmax.f32 %v2555, %v2598
          %v2602 = vmax.f32 %v2556, %v2599
          %v2604 = vperm.slane %v1871, 0
          %v2606 = vadd.f32 %v2600, %v2604
          %v2607 = vadd.f32 %v2601, %v2604
          %v2608 = vadd.f32 %v2602, %v2604
          %v2609 = vmax.f32 %v2606, 0.0
          %v2610 = vmax.f32 %v2607, 0.0
          %v2611 = vmax.f32 %v2608, 0.0
          %s2612 = smul.u32 %s1873, 22
          %s2613 = scalar_lea.vmem [#allocation6], %s2612
          %2614 = vst.msk [vmem:[%s2613] sm:$0xff] %vm1798, %v2609
          %2615 = vst.msk [vmem:[%s2613 + $0x8] sm:$0xff] %vm1798, %v2610
          %vm2616 = vcmask 259072
          %2617 = vst.msk [vmem:[%s2613 + $0x10] sm:$0x3f] %vm2616, %v2611
        $region68: #{tpu_custom_call.1} parent=55 // loop_footer
          %s1877 = sadd.s32 1, %s1873
        $region69: #{tpu_custom_call.1} parent=55 // loop_footer_branch
          %1872 = sbr.rel target = $region65
        $region70: #{tpu_custom_call.1} parent=55 // loop_exit
          _
        %v2618 = vld [vmem:[#allocation6] ss:$2 sm:$0xff]
        %s2619 = scalar_lea.vmem [#allocation6], 16
        %v2620 = vld [vmem:[%s2619] ss:$2 sm:$0xff]
        %s2621 = scalar_lea.vmem [#allocation6], 32
        %v2622 = vld [vmem:[%s2621] ss:$2 sm:$0xff]
        %s2623 = scalar_lea.vmem [#allocation6], 48
        %v2624 = vld [vmem:[%s2623] ss:$2 sm:$0xff]
        %s2625 = scalar_lea.vmem [#allocation6], 64
        %v2626 = vld [vmem:[%s2625] ss:$2 sm:$0xff]
        %s2627 = scalar_lea.vmem [#allocation6], 80
        %v2628 = vld [vmem:[%s2627] ss:$2 sm:$0xff]
        %s2629 = scalar_lea.vmem [#allocation6], 96
        %v2630 = vld [vmem:[%s2629] ss:$2 sm:$0xff]
        %s2631 = scalar_lea.vmem [#allocation6], 112
        %v2632 = vld [vmem:[%s2631] ss:$2 sm:$0xff]
        %s2633 = scalar_lea.vmem [#allocation6], 128
        %v2634 = vld [vmem:[%s2633] ss:$2 sm:$0xff]
        %s2635 = scalar_lea.vmem [#allocation6], 144
        %v2636 = vld [vmem:[%s2635] ss:$2 sm:$0xff]
        %s2637 = scalar_lea.vmem [#allocation6], 160
        %v2638 = vld [vmem:[%s2637] ss:$2 sm:$0xff]
        %s2639 = scalar_lea.vmem [#allocation6], 176
        %v2640 = vld [vmem:[%s2639] ss:$2 sm:$0xff]
        %s2641 = scalar_lea.vmem [#allocation6], 192
        %v2642 = vld [vmem:[%s2641] ss:$2 sm:$0xff]
        %s2643 = scalar_lea.vmem [#allocation6], 208
        %v2644 = vld [vmem:[%s2643] ss:$2 sm:$0xff]
        %s2645 = scalar_lea.vmem [#allocation6], 224
        %v2646 = vld [vmem:[%s2645] ss:$2 sm:$0xff]
        %s2647 = scalar_lea.vmem [#allocation6], 240
        %v2648 = vld [vmem:[%s2647] ss:$2 sm:$0x1]
        %s2649 = scalar_lea.vmem [#allocation6], 1
        %v2650 = vld [vmem:[%s2649] ss:$2 sm:$0xff]
        %s2651 = scalar_lea.vmem [#allocation6], 17
        %v2652 = vld [vmem:[%s2651] ss:$2 sm:$0xff]
        %s2653 = scalar_lea.vmem [#allocation6], 33
        %v2654 = vld [vmem:[%s2653] ss:$2 sm:$0xff]
        %s2655 = scalar_lea.vmem [#allocation6], 49
        %v2656 = vld [vmem:[%s2655] ss:$2 sm:$0xff]
        %s2657 = scalar_lea.vmem [#allocation6], 65
        %v2658 = vld [vmem:[%s2657] ss:$2 sm:$0xff]
        %s2659 = scalar_lea.vmem [#allocation6], 81
        %v2660 = vld [vmem:[%s2659] ss:$2 sm:$0xff]
        %s2661 = scalar_lea.vmem [#allocation6], 97
        %v2662 = vld [vmem:[%s2661] ss:$2 sm:$0xff]
        %s2663 = scalar_lea.vmem [#allocation6], 113
        %v2664 = vld [vmem:[%s2663] ss:$2 sm:$0xff]
        %s2665 = scalar_lea.vmem [#allocation6], 129
        %v2666 = vld [vmem:[%s2665] ss:$2 sm:$0xff]
        %s2667 = scalar_lea.vmem [#allocation6], 145
        %v2668 = vld [vmem:[%s2667] ss:$2 sm:$0xff]
        %s2669 = scalar_lea.vmem [#allocation6], 161
        %v2670 = vld [vmem:[%s2669] ss:$2 sm:$0xff]
        %s2671 = scalar_lea.vmem [#allocation6], 177
        %v2672 = vld [vmem:[%s2671] ss:$2 sm:$0xff]
        %s2673 = scalar_lea.vmem [#allocation6], 193
        %v2674 = vld [vmem:[%s2673] ss:$2 sm:$0xff]
        %s2675 = scalar_lea.vmem [#allocation6], 209
        %v2676 = vld [vmem:[%s2675] ss:$2 sm:$0xff]
        %s2677 = scalar_lea.vmem [#allocation6], 225
        %v2678 = vld [vmem:[%s2677] ss:$2 sm:$0xff]
        %s2679 = scalar_lea.vmem [#allocation6], 241
        %v2680 = vld [vmem:[%s2679] ss:$2 sm:$0x1]
        %v2681 = vmax.f32 %v2618, %v2650
        %v2682 = vmax.f32 %v2620, %v2652
        %v2683 = vmax.f32 %v2622, %v2654
        %v2684 = vmax.f32 %v2624, %v2656
        %v2685 = vmax.f32 %v2626, %v2658
        %v2686 = vmax.f32 %v2628, %v2660
        %v2687 = vmax.f32 %v2630, %v2662
        %v2688 = vmax.f32 %v2632, %v2664
        %v2689 = vmax.f32 %v2634, %v2666
        %v2690 = vmax.f32 %v2636, %v2668
        %v2691 = vmax.f32 %v2638, %v2670
        %v2692 = vmax.f32 %v2640, %v2672
        %v2693 = vmax.f32 %v2642, %v2674
        %v2694 = vmax.f32 %v2644, %v2676
        %v2695 = vmax.f32 %v2646, %v2678
        %v2696 = vmax.f32 %v2648, %v2680
        %2697 = vst.msk [vmem:[#allocation3] sm:$0xff] %vm1798, %v2681
        %2698 = vst.msk [vmem:[#allocation3 + $0x8] sm:$0xff] %vm1798, %v2682
        %2699 = vst.msk [vmem:[#allocation3 + $0x10] sm:$0xff] %vm1798, %v2683
        %2700 = vst.msk [vmem:[#allocation3 + $0x18] sm:$0xff] %vm1798, %v2684
        %2701 = vst.msk [vmem:[#allocation3 + $0x20] sm:$0xff] %vm1798, %v2685
        %2702 = vst.msk [vmem:[#allocation3 + $0x28] sm:$0xff] %vm1798, %v2686
        %2703 = vst.msk [vmem:[#allocation3 + $0x30] sm:$0xff] %vm1798, %v2687
        %2704 = vst.msk [vmem:[#allocation3 + $0x38] sm:$0xff] %vm1798, %v2688
        %2705 = vst.msk [vmem:[#allocation3 + $0x40] sm:$0xff] %vm1798, %v2689
        %2706 = vst.msk [vmem:[#allocation3 + $0x48] sm:$0xff] %vm1798, %v2690
        %2707 = vst.msk [vmem:[#allocation3 + $0x50] sm:$0xff] %vm1798, %v2691
        %2708 = vst.msk [vmem:[#allocation3 + $0x58] sm:$0xff] %vm1798, %v2692
        %2709 = vst.msk [vmem:[#allocation3 + $0x60] sm:$0xff] %vm1798, %v2693
        %2710 = vst.msk [vmem:[#allocation3 + $0x68] sm:$0xff] %vm1798, %v2694
        %2711 = vst.msk [vmem:[#allocation3 + $0x70] sm:$0xff] %vm1798, %v2695
        %vm2712 = vcmask 253952
        %2713 = vst.msk [vmem:[#allocation3 + $0x78] sm:$0x1] %vm2712, %v2696
        %v2714 = vld [vmem:[%s6] sm:$0x1]
        %v2715 = vld [vmem:[%s5] sm:$0xff]
        %v2716 = vld [vmem:[%s5 + $0x8] sm:$0xff]
        %v2717 = vld [vmem:[%s5 + $0x10] sm:$0xff]
        %v2718 = vld [vmem:[%s5 + $0x18] sm:$0xff]
        %v2719 = vld [vmem:[#allocation3] sm:$0xff]
        %v2720 = vld [vmem:[#allocation3 + $0xb] sm:$0xff]
        %s2721 = scalar_lea.vmem %s5, 32
        %v2722 = vld [vmem:[%s2721] sm:$0xff]
        %v2723 = vld [vmem:[%s2721 + $0x8] sm:$0xff]
        %v2724 = vld [vmem:[%s2721 + $0x10] sm:$0xff]
        %v2725 = vld [vmem:[%s2721 + $0x18] sm:$0xff]
        %v2726 = vld [vmem:[#allocation3 + $0x1] sm:$0xff]
        %v2728 = vsel %vm1798, %v2726, 0
        %2730 = vmatpush.msra.mxu0 0.0
        %2731 = vmatpush.msra.mxu0 0.0
        %2732 = vmatpush.msra.mxu0 0.0
        %2733 = vmatpush.msra.mxu0 0.0
        %2734 = vmatpush.msra.mxu0 0.0
        %2735 = vmatpush.msra.mxu0 0.0
        %2736 = vmatpush.msra.mxu0 0.0
        %2737 = vmatpush.msra.mxu0 0.0
        %2738 = vmatpush.msra.mxu0 0.0
        %2739 = vmatpush.msra.mxu0 0.0
        %2740 = vmatpush.msra.mxu0 0.0
        %2741 = vmatpush.msra.mxu0 0.0
        %2742 = vmatpush.msra.mxu0 %v2725
        %2743 = vmatpush.msra.mxu0 %v2724
        %2744 = vmatpush.msra.mxu0 %v2723
        %2745 = vmatpush.msra.mxu0 %v2722
        %2746 = vmatmul.f32.gmra.mxu0 %v2728
        %v2747 = vpop.f32.mrf.mxu0
        %v2748 = vadd.f32 0.0, %v2747
        %2749 = vdwg.mxu0
        %v2751 = vsel %vm1798, %v2719, 0
        %2753 = vmatpush.msra.mxu0 0.0
        %2754 = vmatpush.msra.mxu0 0.0
        %2755 = vmatpush.msra.mxu0 0.0
        %2756 = vmatpush.msra.mxu0 0.0
        %2757 = vmatpush.msra.mxu0 0.0
        %2758 = vmatpush.msra.mxu0 0.0
        %2759 = vmatpush.msra.mxu0 0.0
        %2760 = vmatpush.msra.mxu0 0.0
        %2761 = vmatpush.msra.mxu0 0.0
        %2762 = vmatpush.msra.mxu0 0.0
        %2763 = vmatpush.msra.mxu0 0.0
        %2764 = vmatpush.msra.mxu0 0.0
        %2765 = vmatpush.msra.mxu0 %v2718
        %2766 = vmatpush.msra.mxu0 %v2717
        %2767 = vmatpush.msra.mxu0 %v2716
        %2768 = vmatpush.msra.mxu0 %v2715
        %2769 = vmatmul.f32.gmra.mxu0 %v2751
        %v2770 = vpop.f32.mrf.mxu0
        %v2771 = vadd.f32 %v2748, %v2770
        %2772 = vdwg.mxu0
        %v2773 = vld [vmem:[#allocation3 + $0xc] sm:$0xff]
        %v2775 = vsel %vm1798, %v2773, 0
        %2777 = vmatpush.msra.mxu0 0.0
        %2778 = vmatpush.msra.mxu0 0.0
        %2779 = vmatpush.msra.mxu0 0.0
        %2780 = vmatpush.msra.mxu0 0.0
        %2781 = vmatpush.msra.mxu0 0.0
        %2782 = vmatpush.msra.mxu0 0.0
        %2783 = vmatpush.msra.mxu0 0.0
        %2784 = vmatpush.msra.mxu0 0.0
        %2785 = vmatpush.msra.mxu0 0.0
        %2786 = vmatpush.msra.mxu0 0.0
        %2787 = vmatpush.msra.mxu0 0.0
        %2788 = vmatpush.msra.mxu0 0.0
        %2789 = vmatpush.msra.mxu0 %v2725
        %2790 = vmatpush.msra.mxu0 %v2724
        %2791 = vmatpush.msra.mxu0 %v2723
        %2792 = vmatpush.msra.mxu0 %v2722
        %2793 = vmatmul.f32.gmra.mxu0 %v2775
        %v2794 = vpop.f32.mrf.mxu0
        %v2795 = vadd.f32 0.0, %v2794
        %2796 = vdwg.mxu0
        %v2798 = vsel %vm1798, %v2720, 0
        %2800 = vmatpush.msra.mxu0 0.0
        %2801 = vmatpush.msra.mxu0 0.0
        %2802 = vmatpush.msra.mxu0 0.0
        %2803 = vmatpush.msra.mxu0 0.0
        %2804 = vmatpush.msra.mxu0 0.0
        %2805 = vmatpush.msra.mxu0 0.0
        %2806 = vmatpush.msra.mxu0 0.0
        %2807 = vmatpush.msra.mxu0 0.0
        %2808 = vmatpush.msra.mxu0 0.0
        %2809 = vmatpush.msra.mxu0 0.0
        %2810 = vmatpush.msra.mxu0 0.0
        %2811 = vmatpush.msra.mxu0 0.0
        %2812 = vmatpush.msra.mxu0 %v2718
        %2813 = vmatpush.msra.mxu0 %v2717
        %2814 = vmatpush.msra.mxu0 %v2716
        %2815 = vmatpush.msra.mxu0 %v2715
        %2816 = vmatmul.f32.gmra.mxu0 %v2798
        %v2817 = vpop.f32.mrf.mxu0
        %v2818 = vadd.f32 %v2795, %v2817
        %2819 = vdwg.mxu0
        %s2820 = scalar_lea.vmem %s5, 64
        %v2821 = vld [vmem:[%s2820] sm:$0xff]
        %v2822 = vld [vmem:[%s2820 + $0x8] sm:$0xff]
        %v2823 = vld [vmem:[%s2820 + $0x10] sm:$0xff]
        %v2824 = vld [vmem:[%s2820 + $0x18] sm:$0xff]
        %v2825 = vld [vmem:[#allocation3 + $0x2] sm:$0xff]
        %v2827 = vsel %vm1798, %v2825, 0
        %2829 = vmatpush.msra.mxu0 0.0
        %2830 = vmatpush.msra.mxu0 0.0
        %2831 = vmatpush.msra.mxu0 0.0
        %2832 = vmatpush.msra.mxu0 0.0
        %2833 = vmatpush.msra.mxu0 0.0
        %2834 = vmatpush.msra.mxu0 0.0
        %2835 = vmatpush.msra.mxu0 0.0
        %2836 = vmatpush.msra.mxu0 0.0
        %2837 = vmatpush.msra.mxu0 0.0
        %2838 = vmatpush.msra.mxu0 0.0
        %2839 = vmatpush.msra.mxu0 0.0
        %2840 = vmatpush.msra.mxu0 0.0
        %2841 = vmatpush.msra.mxu0 %v2824
        %2842 = vmatpush.msra.mxu0 %v2823
        %2843 = vmatpush.msra.mxu0 %v2822
        %2844 = vmatpush.msra.mxu0 %v2821
        %2845 = vmatmul.f32.gmra.mxu0 %v2827
        %v2846 = vpop.f32.mrf.mxu0
        %v2847 = vadd.f32 0.0, %v2846
        %2848 = vdwg.mxu0
        %v2849 = vadd.f32 %v2771, %v2847
        %v2850 = vld [vmem:[#allocation3 + $0xd] sm:$0xff]
        %v2852 = vsel %vm1798, %v2850, 0
        %2854 = vmatpush.msra.mxu0 0.0
        %2855 = vmatpush.msra.mxu0 0.0
        %2856 = vmatpush.msra.mxu0 0.0
        %2857 = vmatpush.msra.mxu0 0.0
        %2858 = vmatpush.msra.mxu0 0.0
        %2859 = vmatpush.msra.mxu0 0.0
        %2860 = vmatpush.msra.mxu0 0.0
        %2861 = vmatpush.msra.mxu0 0.0
        %2862 = vmatpush.msra.mxu0 0.0
        %2863 = vmatpush.msra.mxu0 0.0
        %2864 = vmatpush.msra.mxu0 0.0
        %2865 = vmatpush.msra.mxu0 0.0
        %2866 = vmatpush.msra.mxu0 %v2824
        %2867 = vmatpush.msra.mxu0 %v2823
        %2868 = vmatpush.msra.mxu0 %v2822
        %2869 = vmatpush.msra.mxu0 %v2821
        %2870 = vmatmul.f32.gmra.mxu0 %v2852
        %v2871 = vpop.f32.mrf.mxu0
        %v2872 = vadd.f32 0.0, %v2871
        %2873 = vdwg.mxu0
        %v2874 = vadd.f32 %v2818, %v2872
        %s2875 = scalar_lea.vmem %s5, 96
        %v2876 = vld [vmem:[%s2875] sm:$0xff]
        %v2877 = vld [vmem:[%s2875 + $0x8] sm:$0xff]
        %v2878 = vld [vmem:[%s2875 + $0x10] sm:$0xff]
        %v2879 = vld [vmem:[%s2875 + $0x18] sm:$0xff]
        %2880 = vmatpush.msra.mxu0 0.0
        %2881 = vmatpush.msra.mxu0 0.0
        %2882 = vmatpush.msra.mxu0 0.0
        %2883 = vmatpush.msra.mxu0 0.0
        %2884 = vmatpush.msra.mxu0 0.0
        %2885 = vmatpush.msra.mxu0 0.0
        %2886 = vmatpush.msra.mxu0 0.0
        %2887 = vmatpush.msra.mxu0 0.0
        %2888 = vmatpush.msra.mxu0 0.0
        %2889 = vmatpush.msra.mxu0 0.0
        %2890 = vmatpush.msra.mxu0 0.0
        %2891 = vmatpush.msra.mxu0 0.0
        %2892 = vmatpush.msra.mxu0 %v2879
        %2893 = vmatpush.msra.mxu0 %v2878
        %2894 = vmatpush.msra.mxu0 %v2877
        %2895 = vmatpush.msra.mxu0 %v2876
        %2896 = vmatmul.f32.gmra.mxu0 %v2798
        %v2897 = vpop.f32.mrf.mxu0
        %v2898 = vadd.f32 0.0, %v2897
        %2899 = vdwg.mxu0
        %v2900 = vadd.f32 %v2849, %v2898
        %v2901 = vld [vmem:[#allocation3 + $0x16] sm:$0xff]
        %v2903 = vsel %vm1798, %v2901, 0
        %2905 = vmatpush.msra.mxu0 0.0
        %2906 = vmatpush.msra.mxu0 0.0
        %2907 = vmatpush.msra.mxu0 0.0
        %2908 = vmatpush.msra.mxu0 0.0
        %2909 = vmatpush.msra.mxu0 0.0
        %2910 = vmatpush.msra.mxu0 0.0
        %2911 = vmatpush.msra.mxu0 0.0
        %2912 = vmatpush.msra.mxu0 0.0
        %2913 = vmatpush.msra.mxu0 0.0
        %2914 = vmatpush.msra.mxu0 0.0
        %2915 = vmatpush.msra.mxu0 0.0
        %2916 = vmatpush.msra.mxu0 0.0
        %2917 = vmatpush.msra.mxu0 %v2879
        %2918 = vmatpush.msra.mxu0 %v2878
        %2919 = vmatpush.msra.mxu0 %v2877
        %2920 = vmatpush.msra.mxu0 %v2876
        %2921 = vmatmul.f32.gmra.mxu0 %v2903
        %v2922 = vpop.f32.mrf.mxu0
        %v2923 = vadd.f32 0.0, %v2922
        %2924 = vdwg.mxu0
        %v2925 = vadd.f32 %v2874, %v2923
        %s2926 = scalar_lea.vmem %s5, 128
        %v2927 = vld [vmem:[%s2926] sm:$0xff]
        %v2928 = vld [vmem:[%s2926 + $0x8] sm:$0xff]
        %v2929 = vld [vmem:[%s2926 + $0x10] sm:$0xff]
        %v2930 = vld [vmem:[%s2926 + $0x18] sm:$0xff]
        %2931 = vmatpush.msra.mxu0 0.0
        %2932 = vmatpush.msra.mxu0 0.0
        %2933 = vmatpush.msra.mxu0 0.0
        %2934 = vmatpush.msra.mxu0 0.0
        %2935 = vmatpush.msra.mxu0 0.0
        %2936 = vmatpush.msra.mxu0 0.0
        %2937 = vmatpush.msra.mxu0 0.0
        %2938 = vmatpush.msra.mxu0 0.0
        %2939 = vmatpush.msra.mxu0 0.0
        %2940 = vmatpush.msra.mxu0 0.0
        %2941 = vmatpush.msra.mxu0 0.0
        %2942 = vmatpush.msra.mxu0 0.0
        %2943 = vmatpush.msra.mxu0 %v2930
        %2944 = vmatpush.msra.mxu0 %v2929
        %2945 = vmatpush.msra.mxu0 %v2928
        %2946 = vmatpush.msra.mxu0 %v2927
        %2947 = vmatmul.f32.gmra.mxu0 %v2775
        %v2948 = vpop.f32.mrf.mxu0
        %v2949 = vadd.f32 0.0, %v2948
        %2950 = vdwg.mxu0
        %v2951 = vadd.f32 %v2900, %v2949
        %v2952 = vld [vmem:[#allocation3 + $0x17] sm:$0xff]
        %v2954 = vsel %vm1798, %v2952, 0
        %2956 = vmatpush.msra.mxu0 0.0
        %2957 = vmatpush.msra.mxu0 0.0
        %2958 = vmatpush.msra.mxu0 0.0
        %2959 = vmatpush.msra.mxu0 0.0
        %2960 = vmatpush.msra.mxu0 0.0
        %2961 = vmatpush.msra.mxu0 0.0
        %2962 = vmatpush.msra.mxu0 0.0
        %2963 = vmatpush.msra.mxu0 0.0
        %2964 = vmatpush.msra.mxu0 0.0
        %2965 = vmatpush.msra.mxu0 0.0
        %2966 = vmatpush.msra.mxu0 0.0
        %2967 = vmatpush.msra.mxu0 0.0
        %2968 = vmatpush.msra.mxu0 %v2930
        %2969 = vmatpush.msra.mxu0 %v2929
        %2970 = vmatpush.msra.mxu0 %v2928
        %2971 = vmatpush.msra.mxu0 %v2927
        %2972 = vmatmul.f32.gmra.mxu0 %v2954
        %v2973 = vpop.f32.mrf.mxu0
        %v2974 = vadd.f32 0.0, %v2973
        %2975 = vdwg.mxu0
        %v2976 = vadd.f32 %v2925, %v2974
        %s2977 = scalar_lea.vmem %s5, 160
        %v2978 = vld [vmem:[%s2977] sm:$0xff]
        %v2979 = vld [vmem:[%s2977 + $0x8] sm:$0xff]
        %v2980 = vld [vmem:[%s2977 + $0x10] sm:$0xff]
        %v2981 = vld [vmem:[%s2977 + $0x18] sm:$0xff]
        %2982 = vmatpush.msra.mxu0 0.0
        %2983 = vmatpush.msra.mxu0 0.0
        %2984 = vmatpush.msra.mxu0 0.0
        %2985 = vmatpush.msra.mxu0 0.0
        %2986 = vmatpush.msra.mxu0 0.0
        %2987 = vmatpush.msra.mxu0 0.0
        %2988 = vmatpush.msra.mxu0 0.0
        %2989 = vmatpush.msra.mxu0 0.0
        %2990 = vmatpush.msra.mxu0 0.0
        %2991 = vmatpush.msra.mxu0 0.0
        %2992 = vmatpush.msra.mxu0 0.0
        %2993 = vmatpush.msra.mxu0 0.0
        %2994 = vmatpush.msra.mxu0 %v2981
        %2995 = vmatpush.msra.mxu0 %v2980
        %2996 = vmatpush.msra.mxu0 %v2979
        %2997 = vmatpush.msra.mxu0 %v2978
        %2998 = vmatmul.f32.gmra.mxu0 %v2852
        %v2999 = vpop.f32.mrf.mxu0
        %v3000 = vadd.f32 0.0, %v2999
        %3001 = vdwg.mxu0
        %v3002 = vadd.f32 %v2951, %v3000
        %v3003 = vld [vmem:[#allocation3 + $0x18] sm:$0xff]
        %v3005 = vsel %vm1798, %v3003, 0
        %3007 = vmatpush.msra.mxu0 0.0
        %3008 = vmatpush.msra.mxu0 0.0
        %3009 = vmatpush.msra.mxu0 0.0
        %3010 = vmatpush.msra.mxu0 0.0
        %3011 = vmatpush.msra.mxu0 0.0
        %3012 = vmatpush.msra.mxu0 0.0
        %3013 = vmatpush.msra.mxu0 0.0
        %3014 = vmatpush.msra.mxu0 0.0
        %3015 = vmatpush.msra.mxu0 0.0
        %3016 = vmatpush.msra.mxu0 0.0
        %3017 = vmatpush.msra.mxu0 0.0
        %3018 = vmatpush.msra.mxu0 0.0
        %3019 = vmatpush.msra.mxu0 %v2981
        %3020 = vmatpush.msra.mxu0 %v2980
        %3021 = vmatpush.msra.mxu0 %v2979
        %3022 = vmatpush.msra.mxu0 %v2978
        %3023 = vmatmul.f32.gmra.mxu0 %v3005
        %v3024 = vpop.f32.mrf.mxu0
        %v3025 = vadd.f32 0.0, %v3024
        %3026 = vdwg.mxu0
        %v3027 = vadd.f32 %v2976, %v3025
        %s3028 = scalar_lea.vmem %s5, 192
        %v3029 = vld [vmem:[%s3028] sm:$0xff]
        %v3030 = vld [vmem:[%s3028 + $0x8] sm:$0xff]
        %v3031 = vld [vmem:[%s3028 + $0x10] sm:$0xff]
        %v3032 = vld [vmem:[%s3028 + $0x18] sm:$0xff]
        %3033 = vmatpush.msra.mxu0 0.0
        %3034 = vmatpush.msra.mxu0 0.0
        %3035 = vmatpush.msra.mxu0 0.0
        %3036 = vmatpush.msra.mxu0 0.0
        %3037 = vmatpush.msra.mxu0 0.0
        %3038 = vmatpush.msra.mxu0 0.0
        %3039 = vmatpush.msra.mxu0 0.0
        %3040 = vmatpush.msra.mxu0 0.0
        %3041 = vmatpush.msra.mxu0 0.0
        %3042 = vmatpush.msra.mxu0 0.0
        %3043 = vmatpush.msra.mxu0 0.0
        %3044 = vmatpush.msra.mxu0 0.0
        %3045 = vmatpush.msra.mxu0 %v3032
        %3046 = vmatpush.msra.mxu0 %v3031
        %3047 = vmatpush.msra.mxu0 %v3030
        %3048 = vmatpush.msra.mxu0 %v3029
        %3049 = vmatmul.f32.gmra.mxu0 %v2903
        %v3050 = vpop.f32.mrf.mxu0
        %v3051 = vadd.f32 0.0, %v3050
        %3052 = vdwg.mxu0
        %v3053 = vadd.f32 %v3002, %v3051
        %v3054 = vld [vmem:[#allocation3 + $0x21] sm:$0xff]
        %v3056 = vsel %vm1798, %v3054, 0
        %3058 = vmatpush.msra.mxu0 0.0
        %3059 = vmatpush.msra.mxu0 0.0
        %3060 = vmatpush.msra.mxu0 0.0
        %3061 = vmatpush.msra.mxu0 0.0
        %3062 = vmatpush.msra.mxu0 0.0
        %3063 = vmatpush.msra.mxu0 0.0
        %3064 = vmatpush.msra.mxu0 0.0
        %3065 = vmatpush.msra.mxu0 0.0
        %3066 = vmatpush.msra.mxu0 0.0
        %3067 = vmatpush.msra.mxu0 0.0
        %3068 = vmatpush.msra.mxu0 0.0
        %3069 = vmatpush.msra.mxu0 0.0
        %3070 = vmatpush.msra.mxu0 %v3032
        %3071 = vmatpush.msra.mxu0 %v3031
        %3072 = vmatpush.msra.mxu0 %v3030
        %3073 = vmatpush.msra.mxu0 %v3029
        %3074 = vmatmul.f32.gmra.mxu0 %v3056
        %v3075 = vpop.f32.mrf.mxu0
        %v3076 = vadd.f32 0.0, %v3075
        %3077 = vdwg.mxu0
        %v3078 = vadd.f32 %v3027, %v3076
        %s3079 = scalar_lea.vmem %s5, 224
        %v3080 = vld [vmem:[%s3079] sm:$0xff]
        %v3081 = vld [vmem:[%s3079 + $0x8] sm:$0xff]
        %v3082 = vld [vmem:[%s3079 + $0x10] sm:$0xff]
        %v3083 = vld [vmem:[%s3079 + $0x18] sm:$0xff]
        %3084 = vmatpush.msra.mxu0 0.0
        %3085 = vmatpush.msra.mxu0 0.0
        %3086 = vmatpush.msra.mxu0 0.0
        %3087 = vmatpush.msra.mxu0 0.0
        %3088 = vmatpush.msra.mxu0 0.0
        %3089 = vmatpush.msra.mxu0 0.0
        %3090 = vmatpush.msra.mxu0 0.0
        %3091 = vmatpush.msra.mxu0 0.0
        %3092 = vmatpush.msra.mxu0 0.0
        %3093 = vmatpush.msra.mxu0 0.0
        %3094 = vmatpush.msra.mxu0 0.0
        %3095 = vmatpush.msra.mxu0 0.0
        %3096 = vmatpush.msra.mxu0 %v3083
        %3097 = vmatpush.msra.mxu0 %v3082
        %3098 = vmatpush.msra.mxu0 %v3081
        %3099 = vmatpush.msra.mxu0 %v3080
        %3100 = vmatmul.f32.gmra.mxu0 %v2954
        %v3101 = vpop.f32.mrf.mxu0
        %v3102 = vadd.f32 0.0, %v3101
        %3103 = vdwg.mxu0
        %v3104 = vadd.f32 %v3053, %v3102
        %v3105 = vld [vmem:[#allocation3 + $0x22] sm:$0xff]
        %v3107 = vsel %vm1798, %v3105, 0
        %3109 = vmatpush.msra.mxu0 0.0
        %3110 = vmatpush.msra.mxu0 0.0
        %3111 = vmatpush.msra.mxu0 0.0
        %3112 = vmatpush.msra.mxu0 0.0
        %3113 = vmatpush.msra.mxu0 0.0
        %3114 = vmatpush.msra.mxu0 0.0
        %3115 = vmatpush.msra.mxu0 0.0
        %3116 = vmatpush.msra.mxu0 0.0
        %3117 = vmatpush.msra.mxu0 0.0
        %3118 = vmatpush.msra.mxu0 0.0
        %3119 = vmatpush.msra.mxu0 0.0
        %3120 = vmatpush.msra.mxu0 0.0
        %3121 = vmatpush.msra.mxu0 %v3083
        %3122 = vmatpush.msra.mxu0 %v3082
        %3123 = vmatpush.msra.mxu0 %v3081
        %3124 = vmatpush.msra.mxu0 %v3080
        %3125 = vmatmul.f32.gmra.mxu0 %v3107
        %v3126 = vpop.f32.mrf.mxu0
        %v3127 = vadd.f32 0.0, %v3126
        %3128 = vdwg.mxu0
        %v3129 = vadd.f32 %v3078, %v3127
        %s3130 = scalar_lea.vmem %s5, 256
        %v3131 = vld [vmem:[%s3130] sm:$0xff]
        %v3132 = vld [vmem:[%s3130 + $0x8] sm:$0xff]
        %v3133 = vld [vmem:[%s3130 + $0x10] sm:$0xff]
        %v3134 = vld [vmem:[%s3130 + $0x18] sm:$0xff]
        %3135 = vmatpush.msra.mxu0 0.0
        %3136 = vmatpush.msra.mxu0 0.0
        %3137 = vmatpush.msra.mxu0 0.0
        %3138 = vmatpush.msra.mxu0 0.0
        %3139 = vmatpush.msra.mxu0 0.0
        %3140 = vmatpush.msra.mxu0 0.0
        %3141 = vmatpush.msra.mxu0 0.0
        %3142 = vmatpush.msra.mxu0 0.0
        %3143 = vmatpush.msra.mxu0 0.0
        %3144 = vmatpush.msra.mxu0 0.0
        %3145 = vmatpush.msra.mxu0 0.0
        %3146 = vmatpush.msra.mxu0 0.0
        %3147 = vmatpush.msra.mxu0 %v3134
        %3148 = vmatpush.msra.mxu0 %v3133
        %3149 = vmatpush.msra.mxu0 %v3132
        %3150 = vmatpush.msra.mxu0 %v3131
        %3151 = vmatmul.f32.gmra.mxu0 %v3005
        %v3152 = vpop.f32.mrf.mxu0
        %v3153 = vadd.f32 0.0, %v3152
        %3154 = vdwg.mxu0
        %v3155 = vadd.f32 %v3104, %v3153
        %v3156 = vld [vmem:[#allocation3 + $0x23] sm:$0xff]
        %v3158 = vsel %vm1798, %v3156, 0
        %3160 = vmatpush.msra.mxu0 0.0
        %3161 = vmatpush.msra.mxu0 0.0
        %3162 = vmatpush.msra.mxu0 0.0
        %3163 = vmatpush.msra.mxu0 0.0
        %3164 = vmatpush.msra.mxu0 0.0
        %3165 = vmatpush.msra.mxu0 0.0
        %3166 = vmatpush.msra.mxu0 0.0
        %3167 = vmatpush.msra.mxu0 0.0
        %3168 = vmatpush.msra.mxu0 0.0
        %3169 = vmatpush.msra.mxu0 0.0
        %3170 = vmatpush.msra.mxu0 0.0
        %3171 = vmatpush.msra.mxu0 0.0
        %3172 = vmatpush.msra.mxu0 %v3134
        %3173 = vmatpush.msra.mxu0 %v3133
        %3174 = vmatpush.msra.mxu0 %v3132
        %3175 = vmatpush.msra.mxu0 %v3131
        %3176 = vmatmul.f32.gmra.mxu0 %v3158
        %v3177 = vpop.f32.mrf.mxu0
        %v3178 = vadd.f32 0.0, %v3177
        %3179 = vdwg.mxu0
        %v3180 = vadd.f32 %v3129, %v3178
        %v3181 = vmax.f32 %v3155, %v3180
        %v3183 = vperm.slane %v2714, 0
        %v3185 = vadd.f32 %v3181, %v3183
        %v3186 = vmax.f32 %v3185, 0.0
        %vm3187 = vcmask 523264
        %3188 = vst.msk [vmem:[#allocation7] sm:$0xff] %vm3187, %v3186
        %v3189 = vld [vmem:[%s5] sm:$0xff]
        %v3190 = vld [vmem:[%s5 + $0x8] sm:$0xff]
        %v3191 = vld [vmem:[%s5 + $0x10] sm:$0xff]
        %v3192 = vld [vmem:[%s5 + $0x18] sm:$0xff]
        %v3193 = vld [vmem:[#allocation3 + $0x16] sm:$0xff]
        %v3194 = vld [vmem:[#allocation3 + $0x21] sm:$0xff]
        %v3195 = vld [vmem:[%s2721] sm:$0xff]
        %v3196 = vld [vmem:[%s2721 + $0x8] sm:$0xff]
        %v3197 = vld [vmem:[%s2721 + $0x10] sm:$0xff]
        %v3198 = vld [vmem:[%s2721 + $0x18] sm:$0xff]
        %v3199 = vld [vmem:[#allocation3 + $0x17] sm:$0xff]
        %v3201 = vsel %vm1798, %v3199, 0
        %3203 = vmatpush.msra.mxu0 0.0
        %3204 = vmatpush.msra.mxu0 0.0
        %3205 = vmatpush.msra.mxu0 0.0
        %3206 = vmatpush.msra.mxu0 0.0
        %3207 = vmatpush.msra.mxu0 0.0
        %3208 = vmatpush.msra.mxu0 0.0
        %3209 = vmatpush.msra.mxu0 0.0
        %3210 = vmatpush.msra.mxu0 0.0
        %3211 = vmatpush.msra.mxu0 0.0
        %3212 = vmatpush.msra.mxu0 0.0
        %3213 = vmatpush.msra.mxu0 0.0
        %3214 = vmatpush.msra.mxu0 0.0
        %3215 = vmatpush.msra.mxu0 %v3198
        %3216 = vmatpush.msra.mxu0 %v3197
        %3217 = vmatpush.msra.mxu0 %v3196
        %3218 = vmatpush.msra.mxu0 %v3195
        %3219 = vmatmul.f32.gmra.mxu0 %v3201
        %v3220 = vpop.f32.mrf.mxu0
        %v3221 = vadd.f32 0.0, %v3220
        %3222 = vdwg.mxu0
        %v3224 = vsel %vm1798, %v3193, 0
        %3226 = vmatpush.msra.mxu0 0.0
        %3227 = vmatpush.msra.mxu0 0.0
        %3228 = vmatpush.msra.mxu0 0.0
        %3229 = vmatpush.msra.mxu0 0.0
        %3230 = vmatpush.msra.mxu0 0.0
        %3231 = vmatpush.msra.mxu0 0.0
        %3232 = vmatpush.msra.mxu0 0.0
        %3233 = vmatpush.msra.mxu0 0.0
        %3234 = vmatpush.msra.mxu0 0.0
        %3235 = vmatpush.msra.mxu0 0.0
        %3236 = vmatpush.msra.mxu0 0.0
        %3237 = vmatpush.msra.mxu0 0.0
        %3238 = vmatpush.msra.mxu0 %v3192
        %3239 = vmatpush.msra.mxu0 %v3191
        %3240 = vmatpush.msra.mxu0 %v3190
        %3241 = vmatpush.msra.mxu0 %v3189
        %3242 = vmatmul.f32.gmra.mxu0 %v3224
        %v3243 = vpop.f32.mrf.mxu0
        %v3244 = vadd.f32 %v3221, %v3243
        %3245 = vdwg.mxu0
        %v3246 = vld [vmem:[#allocation3 + $0x22] sm:$0xff]
        %v3248 = vsel %vm1798, %v3246, 0
        %3250 = vmatpush.msra.mxu0 0.0
        %3251 = vmatpush.msra.mxu0 0.0
        %3252 = vmatpush.msra.mxu0 0.0
        %3253 = vmatpush.msra.mxu0 0.0
        %3254 = vmatpush.msra.mxu0 0.0
        %3255 = vmatpush.msra.mxu0 0.0
        %3256 = vmatpush.msra.mxu0 0.0
        %3257 = vmatpush.msra.mxu0 0.0
        %3258 = vmatpush.msra.mxu0 0.0
        %3259 = vmatpush.msra.mxu0 0.0
        %3260 = vmatpush.msra.mxu0 0.0
        %3261 = vmatpush.msra.mxu0 0.0
        %3262 = vmatpush.msra.mxu0 %v3198
        %3263 = vmatpush.msra.mxu0 %v3197
        %3264 = vmatpush.msra.mxu0 %v3196
        %3265 = vmatpush.msra.mxu0 %v3195
        %3266 = vmatmul.f32.gmra.mxu0 %v3248
        %v3267 = vpop.f32.mrf.mxu0
        %v3268 = vadd.f32 0.0, %v3267
        %3269 = vdwg.mxu0
        %v3271 = vsel %vm1798, %v3194, 0
        %3273 = vmatpush.msra.mxu0 0.0
        %3274 = vmatpush.msra.mxu0 0.0
        %3275 = vmatpush.msra.mxu0 0.0
        %3276 = vmatpush.msra.mxu0 0.0
        %3277 = vmatpush.msra.mxu0 0.0
        %3278 = vmatpush.msra.mxu0 0.0
        %3279 = vmatpush.msra.mxu0 0.0
        %3280 = vmatpush.msra.mxu0 0.0
        %3281 = vmatpush.msra.mxu0 0.0
        %3282 = vmatpush.msra.mxu0 0.0
        %3283 = vmatpush.msra.mxu0 0.0
        %3284 = vmatpush.msra.mxu0 0.0
        %3285 = vmatpush.msra.mxu0 %v3192
        %3286 = vmatpush.msra.mxu0 %v3191
        %3287 = vmatpush.msra.mxu0 %v3190
        %3288 = vmatpush.msra.mxu0 %v3189
        %3289 = vmatmul.f32.gmra.mxu0 %v3271
        %v3290 = vpop.f32.mrf.mxu0
        %v3291 = vadd.f32 %v3268, %v3290
        %3292 = vdwg.mxu0
        %v3293 = vld [vmem:[%s2820] sm:$0xff]
        %v3294 = vld [vmem:[%s2820 + $0x8] sm:$0xff]
        %v3295 = vld [vmem:[%s2820 + $0x10] sm:$0xff]
        %v3296 = vld [vmem:[%s2820 + $0x18] sm:$0xff]
        %v3297 = vld [vmem:[#allocation3 + $0x18] sm:$0xff]
        %v3299 = vsel %vm1798, %v3297, 0
        %3301 = vmatpush.msra.mxu0 0.0
        %3302 = vmatpush.msra.mxu0 0.0
        %3303 = vmatpush.msra.mxu0 0.0
        %3304 = vmatpush.msra.mxu0 0.0
        %3305 = vmatpush.msra.mxu0 0.0
        %3306 = vmatpush.msra.mxu0 0.0
        %3307 = vmatpush.msra.mxu0 0.0
        %3308 = vmatpush.msra.mxu0 0.0
        %3309 = vmatpush.msra.mxu0 0.0
        %3310 = vmatpush.msra.mxu0 0.0
        %3311 = vmatpush.msra.mxu0 0.0
        %3312 = vmatpush.msra.mxu0 0.0
        %3313 = vmatpush.msra.mxu0 %v3296
        %3314 = vmatpush.msra.mxu0 %v3295
        %3315 = vmatpush.msra.mxu0 %v3294
        %3316 = vmatpush.msra.mxu0 %v3293
        %3317 = vmatmul.f32.gmra.mxu0 %v3299
        %v3318 = vpop.f32.mrf.mxu0
        %v3319 = vadd.f32 0.0, %v3318
        %3320 = vdwg.mxu0
        %v3321 = vadd.f32 %v3244, %v3319
        %v3322 = vld [vmem:[#allocation3 + $0x23] sm:$0xff]
        %v3324 = vsel %vm1798, %v3322, 0
        %3326 = vmatpush.msra.mxu0 0.0
        %3327 = vmatpush.msra.mxu0 0.0
        %3328 = vmatpush.msra.mxu0 0.0
        %3329 = vmatpush.msra.mxu0 0.0
        %3330 = vmatpush.msra.mxu0 0.0
        %3331 = vmatpush.msra.mxu0 0.0
        %3332 = vmatpush.msra.mxu0 0.0
        %3333 = vmatpush.msra.mxu0 0.0
        %3334 = vmatpush.msra.mxu0 0.0
        %3335 = vmatpush.msra.mxu0 0.0
        %3336 = vmatpush.msra.mxu0 0.0
        %3337 = vmatpush.msra.mxu0 0.0
        %3338 = vmatpush.msra.mxu0 %v3296
        %3339 = vmatpush.msra.mxu0 %v3295
        %3340 = vmatpush.msra.mxu0 %v3294
        %3341 = vmatpush.msra.mxu0 %v3293
        %3342 = vmatmul.f32.gmra.mxu0 %v3324
        %v3343 = vpop.f32.mrf.mxu0
        %v3344 = vadd.f32 0.0, %v3343
        %3345 = vdwg.mxu0
        %v3346 = vadd.f32 %v3291, %v3344
        %v3347 = vld [vmem:[%s2875] sm:$0xff]
        %v3348 = vld [vmem:[%s2875 + $0x8] sm:$0xff]
        %v3349 = vld [vmem:[%s2875 + $0x10] sm:$0xff]
        %v3350 = vld [vmem:[%s2875 + $0x18] sm:$0xff]
        %3351 = vmatpush.msra.mxu0 0.0
        %3352 = vmatpush.msra.mxu0 0.0
        %3353 = vmatpush.msra.mxu0 0.0
        %3354 = vmatpush.msra.mxu0 0.0
        %3355 = vmatpush.msra.mxu0 0.0
        %3356 = vmatpush.msra.mxu0 0.0
        %3357 = vmatpush.msra.mxu0 0.0
        %3358 = vmatpush.msra.mxu0 0.0
        %3359 = vmatpush.msra.mxu0 0.0
        %3360 = vmatpush.msra.mxu0 0.0
        %3361 = vmatpush.msra.mxu0 0.0
        %3362 = vmatpush.msra.mxu0 0.0
        %3363 = vmatpush.msra.mxu0 %v3350
        %3364 = vmatpush.msra.mxu0 %v3349
        %3365 = vmatpush.msra.mxu0 %v3348
        %3366 = vmatpush.msra.mxu0 %v3347
        %3367 = vmatmul.f32.gmra.mxu0 %v3271
        %v3368 = vpop.f32.mrf.mxu0
        %v3369 = vadd.f32 0.0, %v3368
        %3370 = vdwg.mxu0
        %v3371 = vadd.f32 %v3321, %v3369
        %v3372 = vld [vmem:[#allocation3 + $0x2c] sm:$0xff]
        %v3374 = vsel %vm1798, %v3372, 0
        %3376 = vmatpush.msra.mxu0 0.0
        %3377 = vmatpush.msra.mxu0 0.0
        %3378 = vmatpush.msra.mxu0 0.0
        %3379 = vmatpush.msra.mxu0 0.0
        %3380 = vmatpush.msra.mxu0 0.0
        %3381 = vmatpush.msra.mxu0 0.0
        %3382 = vmatpush.msra.mxu0 0.0
        %3383 = vmatpush.msra.mxu0 0.0
        %3384 = vmatpush.msra.mxu0 0.0
        %3385 = vmatpush.msra.mxu0 0.0
        %3386 = vmatpush.msra.mxu0 0.0
        %3387 = vmatpush.msra.mxu0 0.0
        %3388 = vmatpush.msra.mxu0 %v3350
        %3389 = vmatpush.msra.mxu0 %v3349
        %3390 = vmatpush.msra.mxu0 %v3348
        %3391 = vmatpush.msra.mxu0 %v3347
        %3392 = vmatmul.f32.gmra.mxu0 %v3374
        %v3393 = vpop.f32.mrf.mxu0
        %v3394 = vadd.f32 0.0, %v3393
        %3395 = vdwg.mxu0
        %v3396 = vadd.f32 %v3346, %v3394
        %v3397 = vld [vmem:[%s2926] sm:$0xff]
        %v3398 = vld [vmem:[%s2926 + $0x8] sm:$0xff]
        %v3399 = vld [vmem:[%s2926 + $0x10] sm:$0xff]
        %v3400 = vld [vmem:[%s2926 + $0x18] sm:$0xff]
        %3401 = vmatpush.msra.mxu0 0.0
        %3402 = vmatpush.msra.mxu0 0.0
        %3403 = vmatpush.msra.mxu0 0.0
        %3404 = vmatpush.msra.mxu0 0.0
        %3405 = vmatpush.msra.mxu0 0.0
        %3406 = vmatpush.msra.mxu0 0.0
        %3407 = vmatpush.msra.mxu0 0.0
        %3408 = vmatpush.msra.mxu0 0.0
        %3409 = vmatpush.msra.mxu0 0.0
        %3410 = vmatpush.msra.mxu0 0.0
        %3411 = vmatpush.msra.mxu0 0.0
        %3412 = vmatpush.msra.mxu0 0.0
        %3413 = vmatpush.msra.mxu0 %v3400
        %3414 = vmatpush.msra.mxu0 %v3399
        %3415 = vmatpush.msra.mxu0 %v3398
        %3416 = vmatpush.msra.mxu0 %v3397
        %3417 = vmatmul.f32.gmra.mxu0 %v3248
        %v3418 = vpop.f32.mrf.mxu0
        %v3419 = vadd.f32 0.0, %v3418
        %3420 = vdwg.mxu0
        %v3421 = vadd.f32 %v3371, %v3419
        %v3422 = vld [vmem:[#allocation3 + $0x2d] sm:$0xff]
        %v3424 = vsel %vm1798, %v3422, 0
        %3426 = vmatpush.msra.mxu0 0.0
        %3427 = vmatpush.msra.mxu0 0.0
        %3428 = vmatpush.msra.mxu0 0.0
        %3429 = vmatpush.msra.mxu0 0.0
        %3430 = vmatpush.msra.mxu0 0.0
        %3431 = vmatpush.msra.mxu0 0.0
        %3432 = vmatpush.msra.mxu0 0.0
        %3433 = vmatpush.msra.mxu0 0.0
        %3434 = vmatpush.msra.mxu0 0.0
        %3435 = vmatpush.msra.mxu0 0.0
        %3436 = vmatpush.msra.mxu0 0.0
        %3437 = vmatpush.msra.mxu0 0.0
        %3438 = vmatpush.msra.mxu0 %v3400
        %3439 = vmatpush.msra.mxu0 %v3399
        %3440 = vmatpush.msra.mxu0 %v3398
        %3441 = vmatpush.msra.mxu0 %v3397
        %3442 = vmatmul.f32.gmra.mxu0 %v3424
        %v3443 = vpop.f32.mrf.mxu0
        %v3444 = vadd.f32 0.0, %v3443
        %3445 = vdwg.mxu0
        %v3446 = vadd.f32 %v3396, %v3444
        %v3447 = vld [vmem:[%s2977] sm:$0xff]
        %v3448 = vld [vmem:[%s2977 + $0x8] sm:$0xff]
        %v3449 = vld [vmem:[%s2977 + $0x10] sm:$0xff]
        %v3450 = vld [vmem:[%s2977 + $0x18] sm:$0xff]
        %3451 = vmatpush.msra.mxu0 0.0
        %3452 = vmatpush.msra.mxu0 0.0
        %3453 = vmatpush.msra.mxu0 0.0
        %3454 = vmatpush.msra.mxu0 0.0
        %3455 = vmatpush.msra.mxu0 0.0
        %3456 = vmatpush.msra.mxu0 0.0
        %3457 = vmatpush.msra.mxu0 0.0
        %3458 = vmatpush.msra.mxu0 0.0
        %3459 = vmatpush.msra.mxu0 0.0
        %3460 = vmatpush.msra.mxu0 0.0
        %3461 = vmatpush.msra.mxu0 0.0
        %3462 = vmatpush.msra.mxu0 0.0
        %3463 = vmatpush.msra.mxu0 %v3450
        %3464 = vmatpush.msra.mxu0 %v3449
        %3465 = vmatpush.msra.mxu0 %v3448
        %3466 = vmatpush.msra.mxu0 %v3447
        %3467 = vmatmul.f32.gmra.mxu0 %v3324
        %v3468 = vpop.f32.mrf.mxu0
        %v3469 = vadd.f32 0.0, %v3468
        %3470 = vdwg.mxu0
        %v3471 = vadd.f32 %v3421, %v3469
        %v3472 = vld [vmem:[#allocation3 + $0x2e] sm:$0xff]
        %v3474 = vsel %vm1798, %v3472, 0
        %3476 = vmatpush.msra.mxu0 0.0
        %3477 = vmatpush.msra.mxu0 0.0
        %3478 = vmatpush.msra.mxu0 0.0
        %3479 = vmatpush.msra.mxu0 0.0
        %3480 = vmatpush.msra.mxu0 0.0
        %3481 = vmatpush.msra.mxu0 0.0
        %3482 = vmatpush.msra.mxu0 0.0
        %3483 = vmatpush.msra.mxu0 0.0
        %3484 = vmatpush.msra.mxu0 0.0
        %3485 = vmatpush.msra.mxu0 0.0
        %3486 = vmatpush.msra.mxu0 0.0
        %3487 = vmatpush.msra.mxu0 0.0
        %3488 = vmatpush.msra.mxu0 %v3450
        %3489 = vmatpush.msra.mxu0 %v3449
        %3490 = vmatpush.msra.mxu0 %v3448
        %3491 = vmatpush.msra.mxu0 %v3447
        %3492 = vmatmul.f32.gmra.mxu0 %v3474
        %v3493 = vpop.f32.mrf.mxu0
        %v3494 = vadd.f32 0.0, %v3493
        %3495 = vdwg.mxu0
        %v3496 = vadd.f32 %v3446, %v3494
        %v3497 = vld [vmem:[%s3028] sm:$0xff]
        %v3498 = vld [vmem:[%s3028 + $0x8] sm:$0xff]
        %v3499 = vld [vmem:[%s3028 + $0x10] sm:$0xff]
        %v3500 = vld [vmem:[%s3028 + $0x18] sm:$0xff]
        %3501 = vmatpush.msra.mxu0 0.0
        %3502 = vmatpush.msra.mxu0 0.0
        %3503 = vmatpush.msra.mxu0 0.0
        %3504 = vmatpush.msra.mxu0 0.0
        %3505 = vmatpush.msra.mxu0 0.0
        %3506 = vmatpush.msra.mxu0 0.0
        %3507 = vmatpush.msra.mxu0 0.0
        %3508 = vmatpush.msra.mxu0 0.0
        %3509 = vmatpush.msra.mxu0 0.0
        %3510 = vmatpush.msra.mxu0 0.0
        %3511 = vmatpush.msra.mxu0 0.0
        %3512 = vmatpush.msra.mxu0 0.0
        %3513 = vmatpush.msra.mxu0 %v3500
        %3514 = vmatpush.msra.mxu0 %v3499
        %3515 = vmatpush.msra.mxu0 %v3498
        %3516 = vmatpush.msra.mxu0 %v3497
        %3517 = vmatmul.f32.gmra.mxu0 %v3374
        %v3518 = vpop.f32.mrf.mxu0
        %v3519 = vadd.f32 0.0, %v3518
        %3520 = vdwg.mxu0
        %v3521 = vadd.f32 %v3471, %v3519
        %v3522 = vld [vmem:[#allocation3 + $0x37] sm:$0xff]
        %v3524 = vsel %vm1798, %v3522, 0
        %3526 = vmatpush.msra.mxu0 0.0
        %3527 = vmatpush.msra.mxu0 0.0
        %3528 = vmatpush.msra.mxu0 0.0
        %3529 = vmatpush.msra.mxu0 0.0
        %3530 = vmatpush.msra.mxu0 0.0
        %3531 = vmatpush.msra.mxu0 0.0
        %3532 = vmatpush.msra.mxu0 0.0
        %3533 = vmatpush.msra.mxu0 0.0
        %3534 = vmatpush.msra.mxu0 0.0
        %3535 = vmatpush.msra.mxu0 0.0
        %3536 = vmatpush.msra.mxu0 0.0
        %3537 = vmatpush.msra.mxu0 0.0
        %3538 = vmatpush.msra.mxu0 %v3500
        %3539 = vmatpush.msra.mxu0 %v3499
        %3540 = vmatpush.msra.mxu0 %v3498
        %3541 = vmatpush.msra.mxu0 %v3497
        %3542 = vmatmul.f32.gmra.mxu0 %v3524
        %v3543 = vpop.f32.mrf.mxu0
        %v3544 = vadd.f32 0.0, %v3543
        %3545 = vdwg.mxu0
        %v3546 = vadd.f32 %v3496, %v3544
        %v3547 = vld [vmem:[%s3079] sm:$0xff]
        %v3548 = vld [vmem:[%s3079 + $0x8] sm:$0xff]
        %v3549 = vld [vmem:[%s3079 + $0x10] sm:$0xff]
        %v3550 = vld [vmem:[%s3079 + $0x18] sm:$0xff]
        %3551 = vmatpush.msra.mxu0 0.0
        %3552 = vmatpush.msra.mxu0 0.0
        %3553 = vmatpush.msra.mxu0 0.0
        %3554 = vmatpush.msra.mxu0 0.0
        %3555 = vmatpush.msra.mxu0 0.0
        %3556 = vmatpush.msra.mxu0 0.0
        %3557 = vmatpush.msra.mxu0 0.0
        %3558 = vmatpush.msra.mxu0 0.0
        %3559 = vmatpush.msra.mxu0 0.0
        %3560 = vmatpush.msra.mxu0 0.0
        %3561 = vmatpush.msra.mxu0 0.0
        %3562 = vmatpush.msra.mxu0 0.0
        %3563 = vmatpush.msra.mxu0 %v3550
        %3564 = vmatpush.msra.mxu0 %v3549
        %3565 = vmatpush.msra.mxu0 %v3548
        %3566 = vmatpush.msra.mxu0 %v3547
        %3567 = vmatmul.f32.gmra.mxu0 %v3424
        %v3568 = vpop.f32.mrf.mxu0
        %v3569 = vadd.f32 0.0, %v3568
        %3570 = vdwg.mxu0
        %v3571 = vadd.f32 %v3521, %v3569
        %v3572 = vld [vmem:[#allocation3 + $0x38] sm:$0xff]
        %v3574 = vsel %vm1798, %v3572, 0
        %3576 = vmatpush.msra.mxu0 0.0
        %3577 = vmatpush.msra.mxu0 0.0
        %3578 = vmatpush.msra.mxu0 0.0
        %3579 = vmatpush.msra.mxu0 0.0
        %3580 = vmatpush.msra.mxu0 0.0
        %3581 = vmatpush.msra.mxu0 0.0
        %3582 = vmatpush.msra.mxu0 0.0
        %3583 = vmatpush.msra.mxu0 0.0
        %3584 = vmatpush.msra.mxu0 0.0
        %3585 = vmatpush.msra.mxu0 0.0
        %3586 = vmatpush.msra.mxu0 0.0
        %3587 = vmatpush.msra.mxu0 0.0
        %3588 = vmatpush.msra.mxu0 %v3550
        %3589 = vmatpush.msra.mxu0 %v3549
        %3590 = vmatpush.msra.mxu0 %v3548
        %3591 = vmatpush.msra.mxu0 %v3547
        %3592 = vmatmul.f32.gmra.mxu0 %v3574
        %v3593 = vpop.f32.mrf.mxu0
        %v3594 = vadd.f32 0.0, %v3593
        %3595 = vdwg.mxu0
        %v3596 = vadd.f32 %v3546, %v3594
        %v3597 = vld [vmem:[%s3130] sm:$0xff]
        %v3598 = vld [vmem:[%s3130 + $0x8] sm:$0xff]
        %v3599 = vld [vmem:[%s3130 + $0x10] sm:$0xff]
        %v3600 = vld [vmem:[%s3130 + $0x18] sm:$0xff]
        %3601 = vmatpush.msra.mxu0 0.0
        %3602 = vmatpush.msra.mxu0 0.0
        %3603 = vmatpush.msra.mxu0 0.0
        %3604 = vmatpush.msra.mxu0 0.0
        %3605 = vmatpush.msra.mxu0 0.0
        %3606 = vmatpush.msra.mxu0 0.0
        %3607 = vmatpush.msra.mxu0 0.0
        %3608 = vmatpush.msra.mxu0 0.0
        %3609 = vmatpush.msra.mxu0 0.0
        %3610 = vmatpush.msra.mxu0 0.0
        %3611 = vmatpush.msra.mxu0 0.0
        %3612 = vmatpush.msra.mxu0 0.0
        %3613 = vmatpush.msra.mxu0 %v3600
        %3614 = vmatpush.msra.mxu0 %v3599
        %3615 = vmatpush.msra.mxu0 %v3598
        %3616 = vmatpush.msra.mxu0 %v3597
        %3617 = vmatmul.f32.gmra.mxu0 %v3474
        %v3618 = vpop.f32.mrf.mxu0
        %v3619 = vadd.f32 0.0, %v3618
        %3620 = vdwg.mxu0
        %v3621 = vadd.f32 %v3571, %v3619
        %v3622 = vld [vmem:[#allocation3 + $0x39] sm:$0xff]
        %v3624 = vsel %vm1798, %v3622, 0
        %3626 = vmatpush.msra.mxu0 0.0
        %3627 = vmatpush.msra.mxu0 0.0
        %3628 = vmatpush.msra.mxu0 0.0
        %3629 = vmatpush.msra.mxu0 0.0
        %3630 = vmatpush.msra.mxu0 0.0
        %3631 = vmatpush.msra.mxu0 0.0
        %3632 = vmatpush.msra.mxu0 0.0
        %3633 = vmatpush.msra.mxu0 0.0
        %3634 = vmatpush.msra.mxu0 0.0
        %3635 = vmatpush.msra.mxu0 0.0
        %3636 = vmatpush.msra.mxu0 0.0
        %3637 = vmatpush.msra.mxu0 0.0
        %3638 = vmatpush.msra.mxu0 %v3600
        %3639 = vmatpush.msra.mxu0 %v3599
        %3640 = vmatpush.msra.mxu0 %v3598
        %3641 = vmatpush.msra.mxu0 %v3597
        %3642 = vmatmul.f32.gmra.mxu0 %v3624
        %v3643 = vpop.f32.mrf.mxu0
        %v3644 = vadd.f32 0.0, %v3643
        %3645 = vdwg.mxu0
        %v3646 = vadd.f32 %v3596, %v3644
        %v3647 = vmax.f32 %v3621, %v3646
        %v3648 = vadd.f32 %v3647, %v3183
        %v3649 = vmax.f32 %v3648, 0.0
        %3650 = vst.msk [vmem:[#allocation7 + $0x8] sm:$0xff] %vm3187, %v3649
        %v3651 = vld [vmem:[%s5] sm:$0xff]
        %v3652 = vld [vmem:[%s5 + $0x8] sm:$0xff]
        %v3653 = vld [vmem:[%s5 + $0x10] sm:$0xff]
        %v3654 = vld [vmem:[%s5 + $0x18] sm:$0xff]
        %v3655 = vld [vmem:[#allocation3 + $0x2c] sm:$0xff]
        %v3656 = vld [vmem:[#allocation3 + $0x37] sm:$0xff]
        %v3657 = vld [vmem:[%s2721] sm:$0xff]
        %v3658 = vld [vmem:[%s2721 + $0x8] sm:$0xff]
        %v3659 = vld [vmem:[%s2721 + $0x10] sm:$0xff]
        %v3660 = vld [vmem:[%s2721 + $0x18] sm:$0xff]
        %v3661 = vld [vmem:[#allocation3 + $0x2d] sm:$0xff]
        %v3663 = vsel %vm1798, %v3661, 0
        %3665 = vmatpush.msra.mxu0 0.0
        %3666 = vmatpush.msra.mxu0 0.0
        %3667 = vmatpush.msra.mxu0 0.0
        %3668 = vmatpush.msra.mxu0 0.0
        %3669 = vmatpush.msra.mxu0 0.0
        %3670 = vmatpush.msra.mxu0 0.0
        %3671 = vmatpush.msra.mxu0 0.0
        %3672 = vmatpush.msra.mxu0 0.0
        %3673 = vmatpush.msra.mxu0 0.0
        %3674 = vmatpush.msra.mxu0 0.0
        %3675 = vmatpush.msra.mxu0 0.0
        %3676 = vmatpush.msra.mxu0 0.0
        %3677 = vmatpush.msra.mxu0 %v3660
        %3678 = vmatpush.msra.mxu0 %v3659
        %3679 = vmatpush.msra.mxu0 %v3658
        %3680 = vmatpush.msra.mxu0 %v3657
        %3681 = vmatmul.f32.gmra.mxu0 %v3663
        %v3682 = vpop.f32.mrf.mxu0
        %v3683 = vadd.f32 0.0, %v3682
        %3684 = vdwg.mxu0
        %v3686 = vsel %vm1798, %v3655, 0
        %3688 = vmatpush.msra.mxu0 0.0
        %3689 = vmatpush.msra.mxu0 0.0
        %3690 = vmatpush.msra.mxu0 0.0
        %3691 = vmatpush.msra.mxu0 0.0
        %3692 = vmatpush.msra.mxu0 0.0
        %3693 = vmatpush.msra.mxu0 0.0
        %3694 = vmatpush.msra.mxu0 0.0
        %3695 = vmatpush.msra.mxu0 0.0
        %3696 = vmatpush.msra.mxu0 0.0
        %3697 = vmatpush.msra.mxu0 0.0
        %3698 = vmatpush.msra.mxu0 0.0
        %3699 = vmatpush.msra.mxu0 0.0
        %3700 = vmatpush.msra.mxu0 %v3654
        %3701 = vmatpush.msra.mxu0 %v3653
        %3702 = vmatpush.msra.mxu0 %v3652
        %3703 = vmatpush.msra.mxu0 %v3651
        %3704 = vmatmul.f32.gmra.mxu0 %v3686
        %v3705 = vpop.f32.mrf.mxu0
        %v3706 = vadd.f32 %v3683, %v3705
        %3707 = vdwg.mxu0
        %v3708 = vld [vmem:[#allocation3 + $0x38] sm:$0xff]
        %v3710 = vsel %vm1798, %v3708, 0
        %3712 = vmatpush.msra.mxu0 0.0
        %3713 = vmatpush.msra.mxu0 0.0
        %3714 = vmatpush.msra.mxu0 0.0
        %3715 = vmatpush.msra.mxu0 0.0
        %3716 = vmatpush.msra.mxu0 0.0
        %3717 = vmatpush.msra.mxu0 0.0
        %3718 = vmatpush.msra.mxu0 0.0
        %3719 = vmatpush.msra.mxu0 0.0
        %3720 = vmatpush.msra.mxu0 0.0
        %3721 = vmatpush.msra.mxu0 0.0
        %3722 = vmatpush.msra.mxu0 0.0
        %3723 = vmatpush.msra.mxu0 0.0
        %3724 = vmatpush.msra.mxu0 %v3660
        %3725 = vmatpush.msra.mxu0 %v3659
        %3726 = vmatpush.msra.mxu0 %v3658
        %3727 = vmatpush.msra.mxu0 %v3657
        %3728 = vmatmul.f32.gmra.mxu0 %v3710
        %v3729 = vpop.f32.mrf.mxu0
        %v3730 = vadd.f32 0.0, %v3729
        %3731 = vdwg.mxu0
        %v3733 = vsel %vm1798, %v3656, 0
        %3735 = vmatpush.msra.mxu0 0.0
        %3736 = vmatpush.msra.mxu0 0.0
        %3737 = vmatpush.msra.mxu0 0.0
        %3738 = vmatpush.msra.mxu0 0.0
        %3739 = vmatpush.msra.mxu0 0.0
        %3740 = vmatpush.msra.mxu0 0.0
        %3741 = vmatpush.msra.mxu0 0.0
        %3742 = vmatpush.msra.mxu0 0.0
        %3743 = vmatpush.msra.mxu0 0.0
        %3744 = vmatpush.msra.mxu0 0.0
        %3745 = vmatpush.msra.mxu0 0.0
        %3746 = vmatpush.msra.mxu0 0.0
        %3747 = vmatpush.msra.mxu0 %v3654
        %3748 = vmatpush.msra.mxu0 %v3653
        %3749 = vmatpush.msra.mxu0 %v3652
        %3750 = vmatpush.msra.mxu0 %v3651
        %3751 = vmatmul.f32.gmra.mxu0 %v3733
        %v3752 = vpop.f32.mrf.mxu0
        %v3753 = vadd.f32 %v3730, %v3752
        %3754 = vdwg.mxu0
        %v3755 = vld [vmem:[%s2820] sm:$0xff]
        %v3756 = vld [vmem:[%s2820 + $0x8] sm:$0xff]
        %v3757 = vld [vmem:[%s2820 + $0x10] sm:$0xff]
        %v3758 = vld [vmem:[%s2820 + $0x18] sm:$0xff]
        %v3759 = vld [vmem:[#allocation3 + $0x2e] sm:$0xff]
        %v3761 = vsel %vm1798, %v3759, 0
        %3763 = vmatpush.msra.mxu0 0.0
        %3764 = vmatpush.msra.mxu0 0.0
        %3765 = vmatpush.msra.mxu0 0.0
        %3766 = vmatpush.msra.mxu0 0.0
        %3767 = vmatpush.msra.mxu0 0.0
        %3768 = vmatpush.msra.mxu0 0.0
        %3769 = vmatpush.msra.mxu0 0.0
        %3770 = vmatpush.msra.mxu0 0.0
        %3771 = vmatpush.msra.mxu0 0.0
        %3772 = vmatpush.msra.mxu0 0.0
        %3773 = vmatpush.msra.mxu0 0.0
        %3774 = vmatpush.msra.mxu0 0.0
        %3775 = vmatpush.msra.mxu0 %v3758
        %3776 = vmatpush.msra.mxu0 %v3757
        %3777 = vmatpush.msra.mxu0 %v3756
        %3778 = vmatpush.msra.mxu0 %v3755
        %3779 = vmatmul.f32.gmra.mxu0 %v3761
        %v3780 = vpop.f32.mrf.mxu0
        %v3781 = vadd.f32 0.0, %v3780
        %3782 = vdwg.mxu0
        %v3783 = vadd.f32 %v3706, %v3781
        %v3784 = vld [vmem:[#allocation3 + $0x39] sm:$0xff]
        %v3786 = vsel %vm1798, %v3784, 0
        %3788 = vmatpush.msra.mxu0 0.0
        %3789 = vmatpush.msra.mxu0 0.0
        %3790 = vmatpush.msra.mxu0 0.0
        %3791 = vmatpush.msra.mxu0 0.0
        %3792 = vmatpush.msra.mxu0 0.0
        %3793 = vmatpush.msra.mxu0 0.0
        %3794 = vmatpush.msra.mxu0 0.0
        %3795 = vmatpush.msra.mxu0 0.0
        %3796 = vmatpush.msra.mxu0 0.0
        %3797 = vmatpush.msra.mxu0 0.0
        %3798 = vmatpush.msra.mxu0 0.0
        %3799 = vmatpush.msra.mxu0 0.0
        %3800 = vmatpush.msra.mxu0 %v3758
        %3801 = vmatpush.msra.mxu0 %v3757
        %3802 = vmatpush.msra.mxu0 %v3756
        %3803 = vmatpush.msra.mxu0 %v3755
        %3804 = vmatmul.f32.gmra.mxu0 %v3786
        %v3805 = vpop.f32.mrf.mxu0
        %v3806 = vadd.f32 0.0, %v3805
        %3807 = vdwg.mxu0
        %v3808 = vadd.f32 %v3753, %v3806
        %v3809 = vld [vmem:[%s2875] sm:$0xff]
        %v3810 = vld [vmem:[%s2875 + $0x8] sm:$0xff]
        %v3811 = vld [vmem:[%s2875 + $0x10] sm:$0xff]
        %v3812 = vld [vmem:[%s2875 + $0x18] sm:$0xff]
        %3813 = vmatpush.msra.mxu0 0.0
        %3814 = vmatpush.msra.mxu0 0.0
        %3815 = vmatpush.msra.mxu0 0.0
        %3816 = vmatpush.msra.mxu0 0.0
        %3817 = vmatpush.msra.mxu0 0.0
        %3818 = vmatpush.msra.mxu0 0.0
        %3819 = vmatpush.msra.mxu0 0.0
        %3820 = vmatpush.msra.mxu0 0.0
        %3821 = vmatpush.msra.mxu0 0.0
        %3822 = vmatpush.msra.mxu0 0.0
        %3823 = vmatpush.msra.mxu0 0.0
        %3824 = vmatpush.msra.mxu0 0.0
        %3825 = vmatpush.msra.mxu0 %v3812
        %3826 = vmatpush.msra.mxu0 %v3811
        %3827 = vmatpush.msra.mxu0 %v3810
        %3828 = vmatpush.msra.mxu0 %v3809
        %3829 = vmatmul.f32.gmra.mxu0 %v3733
        %v3830 = vpop.f32.mrf.mxu0
        %v3831 = vadd.f32 0.0, %v3830
        %3832 = vdwg.mxu0
        %v3833 = vadd.f32 %v3783, %v3831
        %v3834 = vld [vmem:[#allocation3 + $0x42] sm:$0xff]
        %v3836 = vsel %vm1798, %v3834, 0
        %3838 = vmatpush.msra.mxu0 0.0
        %3839 = vmatpush.msra.mxu0 0.0
        %3840 = vmatpush.msra.mxu0 0.0
        %3841 = vmatpush.msra.mxu0 0.0
        %3842 = vmatpush.msra.mxu0 0.0
        %3843 = vmatpush.msra.mxu0 0.0
        %3844 = vmatpush.msra.mxu0 0.0
        %3845 = vmatpush.msra.mxu0 0.0
        %3846 = vmatpush.msra.mxu0 0.0
        %3847 = vmatpush.msra.mxu0 0.0
        %3848 = vmatpush.msra.mxu0 0.0
        %3849 = vmatpush.msra.mxu0 0.0
        %3850 = vmatpush.msra.mxu0 %v3812
        %3851 = vmatpush.msra.mxu0 %v3811
        %3852 = vmatpush.msra.mxu0 %v3810
        %3853 = vmatpush.msra.mxu0 %v3809
        %3854 = vmatmul.f32.gmra.mxu0 %v3836
        %v3855 = vpop.f32.mrf.mxu0
        %v3856 = vadd.f32 0.0, %v3855
        %3857 = vdwg.mxu0
        %v3858 = vadd.f32 %v3808, %v3856
        %v3859 = vld [vmem:[%s2926] sm:$0xff]
        %v3860 = vld [vmem:[%s2926 + $0x8] sm:$0xff]
        %v3861 = vld [vmem:[%s2926 + $0x10] sm:$0xff]
        %v3862 = vld [vmem:[%s2926 + $0x18] sm:$0xff]
        %3863 = vmatpush.msra.mxu0 0.0
        %3864 = vmatpush.msra.mxu0 0.0
        %3865 = vmatpush.msra.mxu0 0.0
        %3866 = vmatpush.msra.mxu0 0.0
        %3867 = vmatpush.msra.mxu0 0.0
        %3868 = vmatpush.msra.mxu0 0.0
        %3869 = vmatpush.msra.mxu0 0.0
        %3870 = vmatpush.msra.mxu0 0.0
        %3871 = vmatpush.msra.mxu0 0.0
        %3872 = vmatpush.msra.mxu0 0.0
        %3873 = vmatpush.msra.mxu0 0.0
        %3874 = vmatpush.msra.mxu0 0.0
        %3875 = vmatpush.msra.mxu0 %v3862
        %3876 = vmatpush.msra.mxu0 %v3861
        %3877 = vmatpush.msra.mxu0 %v3860
        %3878 = vmatpush.msra.mxu0 %v3859
        %3879 = vmatmul.f32.gmra.mxu0 %v3710
        %v3880 = vpop.f32.mrf.mxu0
        %v3881 = vadd.f32 0.0, %v3880
        %3882 = vdwg.mxu0
        %v3883 = vadd.f32 %v3833, %v3881
        %v3884 = vld [vmem:[#allocation3 + $0x43] sm:$0xff]
        %v3886 = vsel %vm1798, %v3884, 0
        %3888 = vmatpush.msra.mxu0 0.0
        %3889 = vmatpush.msra.mxu0 0.0
        %3890 = vmatpush.msra.mxu0 0.0
        %3891 = vmatpush.msra.mxu0 0.0
        %3892 = vmatpush.msra.mxu0 0.0
        %3893 = vmatpush.msra.mxu0 0.0
        %3894 = vmatpush.msra.mxu0 0.0
        %3895 = vmatpush.msra.mxu0 0.0
        %3896 = vmatpush.msra.mxu0 0.0
        %3897 = vmatpush.msra.mxu0 0.0
        %3898 = vmatpush.msra.mxu0 0.0
        %3899 = vmatpush.msra.mxu0 0.0
        %3900 = vmatpush.msra.mxu0 %v3862
        %3901 = vmatpush.msra.mxu0 %v3861
        %3902 = vmatpush.msra.mxu0 %v3860
        %3903 = vmatpush.msra.mxu0 %v3859
        %3904 = vmatmul.f32.gmra.mxu0 %v3886
        %v3905 = vpop.f32.mrf.mxu0
        %v3906 = vadd.f32 0.0, %v3905
        %3907 = vdwg.mxu0
        %v3908 = vadd.f32 %v3858, %v3906
        %v3909 = vld [vmem:[%s2977] sm:$0xff]
        %v3910 = vld [vmem:[%s2977 + $0x8] sm:$0xff]
        %v3911 = vld [vmem:[%s2977 + $0x10] sm:$0xff]
        %v3912 = vld [vmem:[%s2977 + $0x18] sm:$0xff]
        %3913 = vmatpush.msra.mxu0 0.0
        %3914 = vmatpush.msra.mxu0 0.0
        %3915 = vmatpush.msra.mxu0 0.0
        %3916 = vmatpush.msra.mxu0 0.0
        %3917 = vmatpush.msra.mxu0 0.0
        %3918 = vmatpush.msra.mxu0 0.0
        %3919 = vmatpush.msra.mxu0 0.0
        %3920 = vmatpush.msra.mxu0 0.0
        %3921 = vmatpush.msra.mxu0 0.0
        %3922 = vmatpush.msra.mxu0 0.0
        %3923 = vmatpush.msra.mxu0 0.0
        %3924 = vmatpush.msra.mxu0 0.0
        %3925 = vmatpush.msra.mxu0 %v3912
        %3926 = vmatpush.msra.mxu0 %v3911
        %3927 = vmatpush.msra.mxu0 %v3910
        %3928 = vmatpush.msra.mxu0 %v3909
        %3929 = vmatmul.f32.gmra.mxu0 %v3786
        %v3930 = vpop.f32.mrf.mxu0
        %v3931 = vadd.f32 0.0, %v3930
        %3932 = vdwg.mxu0
        %v3933 = vadd.f32 %v3883, %v3931
        %v3934 = vld [vmem:[#allocation3 + $0x44] sm:$0xff]
        %v3936 = vsel %vm1798, %v3934, 0
        %3938 = vmatpush.msra.mxu0 0.0
        %3939 = vmatpush.msra.mxu0 0.0
        %3940 = vmatpush.msra.mxu0 0.0
        %3941 = vmatpush.msra.mxu0 0.0
        %3942 = vmatpush.msra.mxu0 0.0
        %3943 = vmatpush.msra.mxu0 0.0
        %3944 = vmatpush.msra.mxu0 0.0
        %3945 = vmatpush.msra.mxu0 0.0
        %3946 = vmatpush.msra.mxu0 0.0
        %3947 = vmatpush.msra.mxu0 0.0
        %3948 = vmatpush.msra.mxu0 0.0
        %3949 = vmatpush.msra.mxu0 0.0
        %3950 = vmatpush.msra.mxu0 %v3912
        %3951 = vmatpush.msra.mxu0 %v3911
        %3952 = vmatpush.msra.mxu0 %v3910
        %3953 = vmatpush.msra.mxu0 %v3909
        %3954 = vmatmul.f32.gmra.mxu0 %v3936
        %v3955 = vpop.f32.mrf.mxu0
        %v3956 = vadd.f32 0.0, %v3955
        %3957 = vdwg.mxu0
        %v3958 = vadd.f32 %v3908, %v3956
        %v3959 = vld [vmem:[%s3028] sm:$0xff]
        %v3960 = vld [vmem:[%s3028 + $0x8] sm:$0xff]
        %v3961 = vld [vmem:[%s3028 + $0x10] sm:$0xff]
        %v3962 = vld [vmem:[%s3028 + $0x18] sm:$0xff]
        %3963 = vmatpush.msra.mxu0 0.0
        %3964 = vmatpush.msra.mxu0 0.0
        %3965 = vmatpush.msra.mxu0 0.0
        %3966 = vmatpush.msra.mxu0 0.0
        %3967 = vmatpush.msra.mxu0 0.0
        %3968 = vmatpush.msra.mxu0 0.0
        %3969 = vmatpush.msra.mxu0 0.0
        %3970 = vmatpush.msra.mxu0 0.0
        %3971 = vmatpush.msra.mxu0 0.0
        %3972 = vmatpush.msra.mxu0 0.0
        %3973 = vmatpush.msra.mxu0 0.0
        %3974 = vmatpush.msra.mxu0 0.0
        %3975 = vmatpush.msra.mxu0 %v3962
        %3976 = vmatpush.msra.mxu0 %v3961
        %3977 = vmatpush.msra.mxu0 %v3960
        %3978 = vmatpush.msra.mxu0 %v3959
        %3979 = vmatmul.f32.gmra.mxu0 %v3836
        %v3980 = vpop.f32.mrf.mxu0
        %v3981 = vadd.f32 0.0, %v3980
        %3982 = vdwg.mxu0
        %v3983 = vadd.f32 %v3933, %v3981
        %v3984 = vld [vmem:[#allocation3 + $0x4d] sm:$0xff]
        %v3986 = vsel %vm1798, %v3984, 0
        %3988 = vmatpush.msra.mxu0 0.0
        %3989 = vmatpush.msra.mxu0 0.0
        %3990 = vmatpush.msra.mxu0 0.0
        %3991 = vmatpush.msra.mxu0 0.0
        %3992 = vmatpush.msra.mxu0 0.0
        %3993 = vmatpush.msra.mxu0 0.0
        %3994 = vmatpush.msra.mxu0 0.0
        %3995 = vmatpush.msra.mxu0 0.0
        %3996 = vmatpush.msra.mxu0 0.0
        %3997 = vmatpush.msra.mxu0 0.0
        %3998 = vmatpush.msra.mxu0 0.0
        %3999 = vmatpush.msra.mxu0 0.0
        %4000 = vmatpush.msra.mxu0 %v3962
        %4001 = vmatpush.msra.mxu0 %v3961
        %4002 = vmatpush.msra.mxu0 %v3960
        %4003 = vmatpush.msra.mxu0 %v3959
        %4004 = vmatmul.f32.gmra.mxu0 %v3986
        %v4005 = vpop.f32.mrf.mxu0
        %v4006 = vadd.f32 0.0, %v4005
        %4007 = vdwg.mxu0
        %v4008 = vadd.f32 %v3958, %v4006
        %v4009 = vld [vmem:[%s3079] sm:$0xff]
        %v4010 = vld [vmem:[%s3079 + $0x8] sm:$0xff]
        %v4011 = vld [vmem:[%s3079 + $0x10] sm:$0xff]
        %v4012 = vld [vmem:[%s3079 + $0x18] sm:$0xff]
        %4013 = vmatpush.msra.mxu0 0.0
        %4014 = vmatpush.msra.mxu0 0.0
        %4015 = vmatpush.msra.mxu0 0.0
        %4016 = vmatpush.msra.mxu0 0.0
        %4017 = vmatpush.msra.mxu0 0.0
        %4018 = vmatpush.msra.mxu0 0.0
        %4019 = vmatpush.msra.mxu0 0.0
        %4020 = vmatpush.msra.mxu0 0.0
        %4021 = vmatpush.msra.mxu0 0.0
        %4022 = vmatpush.msra.mxu0 0.0
        %4023 = vmatpush.msra.mxu0 0.0
        %4024 = vmatpush.msra.mxu0 0.0
        %4025 = vmatpush.msra.mxu0 %v4012
        %4026 = vmatpush.msra.mxu0 %v4011
        %4027 = vmatpush.msra.mxu0 %v4010
        %4028 = vmatpush.msra.mxu0 %v4009
        %4029 = vmatmul.f32.gmra.mxu0 %v3886
        %v4030 = vpop.f32.mrf.mxu0
        %v4031 = vadd.f32 0.0, %v4030
        %4032 = vdwg.mxu0
        %v4033 = vadd.f32 %v3983, %v4031
        %v4034 = vld [vmem:[#allocation3 + $0x4e] sm:$0xff]
        %v4036 = vsel %vm1798, %v4034, 0
        %4038 = vmatpush.msra.mxu0 0.0
        %4039 = vmatpush.msra.mxu0 0.0
        %4040 = vmatpush.msra.mxu0 0.0
        %4041 = vmatpush.msra.mxu0 0.0
        %4042 = vmatpush.msra.mxu0 0.0
        %4043 = vmatpush.msra.mxu0 0.0
        %4044 = vmatpush.msra.mxu0 0.0
        %4045 = vmatpush.msra.mxu0 0.0
        %4046 = vmatpush.msra.mxu0 0.0
        %4047 = vmatpush.msra.mxu0 0.0
        %4048 = vmatpush.msra.mxu0 0.0
        %4049 = vmatpush.msra.mxu0 0.0
        %4050 = vmatpush.msra.mxu0 %v4012
        %4051 = vmatpush.msra.mxu0 %v4011
        %4052 = vmatpush.msra.mxu0 %v4010
        %4053 = vmatpush.msra.mxu0 %v4009
        %4054 = vmatmul.f32.gmra.mxu0 %v4036
        %v4055 = vpop.f32.mrf.mxu0
        %v4056 = vadd.f32 0.0, %v4055
        %4057 = vdwg.mxu0
        %v4058 = vadd.f32 %v4008, %v4056
        %v4059 = vld [vmem:[%s3130] sm:$0xff]
        %v4060 = vld [vmem:[%s3130 + $0x8] sm:$0xff]
        %v4061 = vld [vmem:[%s3130 + $0x10] sm:$0xff]
        %v4062 = vld [vmem:[%s3130 + $0x18] sm:$0xff]
        %4063 = vmatpush.msra.mxu0 0.0
        %4064 = vmatpush.msra.mxu0 0.0
        %4065 = vmatpush.msra.mxu0 0.0
        %4066 = vmatpush.msra.mxu0 0.0
        %4067 = vmatpush.msra.mxu0 0.0
        %4068 = vmatpush.msra.mxu0 0.0
        %4069 = vmatpush.msra.mxu0 0.0
        %4070 = vmatpush.msra.mxu0 0.0
        %4071 = vmatpush.msra.mxu0 0.0
        %4072 = vmatpush.msra.mxu0 0.0
        %4073 = vmatpush.msra.mxu0 0.0
        %4074 = vmatpush.msra.mxu0 0.0
        %4075 = vmatpush.msra.mxu0 %v4062
        %4076 = vmatpush.msra.mxu0 %v4061
        %4077 = vmatpush.msra.mxu0 %v4060
        %4078 = vmatpush.msra.mxu0 %v4059
        %4079 = vmatmul.f32.gmra.mxu0 %v3936
        %v4080 = vpop.f32.mrf.mxu0
        %v4081 = vadd.f32 0.0, %v4080
        %4082 = vdwg.mxu0
        %v4083 = vadd.f32 %v4033, %v4081
        %v4084 = vld [vmem:[#allocation3 + $0x4f] sm:$0xff]
        %v4086 = vsel %vm1798, %v4084, 0
        %4088 = vmatpush.msra.mxu0 0.0
        %4089 = vmatpush.msra.mxu0 0.0
        %4090 = vmatpush.msra.mxu0 0.0
        %4091 = vmatpush.msra.mxu0 0.0
        %4092 = vmatpush.msra.mxu0 0.0
        %4093 = vmatpush.msra.mxu0 0.0
        %4094 = vmatpush.msra.mxu0 0.0
        %4095 = vmatpush.msra.mxu0 0.0
        %4096 = vmatpush.msra.mxu0 0.0
        %4097 = vmatpush.msra.mxu0 0.0
        %4098 = vmatpush.msra.mxu0 0.0
        %4099 = vmatpush.msra.mxu0 0.0
        %4100 = vmatpush.msra.mxu0 %v4062
        %4101 = vmatpush.msra.mxu0 %v4061
        %4102 = vmatpush.msra.mxu0 %v4060
        %4103 = vmatpush.msra.mxu0 %v4059
        %4104 = vmatmul.f32.gmra.mxu0 %v4086
        %v4105 = vpop.f32.mrf.mxu0
        %v4106 = vadd.f32 0.0, %v4105
        %4107 = vdwg.mxu0
        %v4108 = vadd.f32 %v4058, %v4106
        %v4109 = vmax.f32 %v4083, %v4108
        %v4110 = vadd.f32 %v4109, %v3183
        %v4111 = vmax.f32 %v4110, 0.0
        %4112 = vst.msk [vmem:[#allocation7 + $0x10] sm:$0xff] %vm3187, %v4111
        %v4113 = vld [vmem:[%s5] sm:$0xff]
        %v4114 = vld [vmem:[%s5 + $0x8] sm:$0xff]
        %v4115 = vld [vmem:[%s5 + $0x10] sm:$0xff]
        %v4116 = vld [vmem:[%s5 + $0x18] sm:$0xff]
        %v4117 = vld [vmem:[#allocation3 + $0x42] sm:$0xff]
        %v4118 = vld [vmem:[#allocation3 + $0x4d] sm:$0xff]
        %v4119 = vld [vmem:[%s2721] sm:$0xff]
        %v4120 = vld [vmem:[%s2721 + $0x8] sm:$0xff]
        %v4121 = vld [vmem:[%s2721 + $0x10] sm:$0xff]
        %v4122 = vld [vmem:[%s2721 + $0x18] sm:$0xff]
        %v4123 = vld [vmem:[#allocation3 + $0x43] sm:$0xff]
        %v4125 = vsel %vm1798, %v4123, 0
        %4127 = vmatpush.msra.mxu0 0.0
        %4128 = vmatpush.msra.mxu0 0.0
        %4129 = vmatpush.msra.mxu0 0.0
        %4130 = vmatpush.msra.mxu0 0.0
        %4131 = vmatpush.msra.mxu0 0.0
        %4132 = vmatpush.msra.mxu0 0.0
        %4133 = vmatpush.msra.mxu0 0.0
        %4134 = vmatpush.msra.mxu0 0.0
        %4135 = vmatpush.msra.mxu0 0.0
        %4136 = vmatpush.msra.mxu0 0.0
        %4137 = vmatpush.msra.mxu0 0.0
        %4138 = vmatpush.msra.mxu0 0.0
        %4139 = vmatpush.msra.mxu0 %v4122
        %4140 = vmatpush.msra.mxu0 %v4121
        %4141 = vmatpush.msra.mxu0 %v4120
        %4142 = vmatpush.msra.mxu0 %v4119
        %4143 = vmatmul.f32.gmra.mxu0 %v4125
        %v4144 = vpop.f32.mrf.mxu0
        %v4145 = vadd.f32 0.0, %v4144
        %4146 = vdwg.mxu0
        %v4148 = vsel %vm1798, %v4117, 0
        %4150 = vmatpush.msra.mxu0 0.0
        %4151 = vmatpush.msra.mxu0 0.0
        %4152 = vmatpush.msra.mxu0 0.0
        %4153 = vmatpush.msra.mxu0 0.0
        %4154 = vmatpush.msra.mxu0 0.0
        %4155 = vmatpush.msra.mxu0 0.0
        %4156 = vmatpush.msra.mxu0 0.0
        %4157 = vmatpush.msra.mxu0 0.0
        %4158 = vmatpush.msra.mxu0 0.0
        %4159 = vmatpush.msra.mxu0 0.0
        %4160 = vmatpush.msra.mxu0 0.0
        %4161 = vmatpush.msra.mxu0 0.0
        %4162 = vmatpush.msra.mxu0 %v4116
        %4163 = vmatpush.msra.mxu0 %v4115
        %4164 = vmatpush.msra.mxu0 %v4114
        %4165 = vmatpush.msra.mxu0 %v4113
        %4166 = vmatmul.f32.gmra.mxu0 %v4148
        %v4167 = vpop.f32.mrf.mxu0
        %v4168 = vadd.f32 %v4145, %v4167
        %4169 = vdwg.mxu0
        %v4170 = vld [vmem:[#allocation3 + $0x4e] sm:$0xff]
        %v4172 = vsel %vm1798, %v4170, 0
        %4174 = vmatpush.msra.mxu0 0.0
        %4175 = vmatpush.msra.mxu0 0.0
        %4176 = vmatpush.msra.mxu0 0.0
        %4177 = vmatpush.msra.mxu0 0.0
        %4178 = vmatpush.msra.mxu0 0.0
        %4179 = vmatpush.msra.mxu0 0.0
        %4180 = vmatpush.msra.mxu0 0.0
        %4181 = vmatpush.msra.mxu0 0.0
        %4182 = vmatpush.msra.mxu0 0.0
        %4183 = vmatpush.msra.mxu0 0.0
        %4184 = vmatpush.msra.mxu0 0.0
        %4185 = vmatpush.msra.mxu0 0.0
        %4186 = vmatpush.msra.mxu0 %v4122
        %4187 = vmatpush.msra.mxu0 %v4121
        %4188 = vmatpush.msra.mxu0 %v4120
        %4189 = vmatpush.msra.mxu0 %v4119
        %4190 = vmatmul.f32.gmra.mxu0 %v4172
        %v4191 = vpop.f32.mrf.mxu0
        %v4192 = vadd.f32 0.0, %v4191
        %4193 = vdwg.mxu0
        %v4195 = vsel %vm1798, %v4118, 0
        %4197 = vmatpush.msra.mxu0 0.0
        %4198 = vmatpush.msra.mxu0 0.0
        %4199 = vmatpush.msra.mxu0 0.0
        %4200 = vmatpush.msra.mxu0 0.0
        %4201 = vmatpush.msra.mxu0 0.0
        %4202 = vmatpush.msra.mxu0 0.0
        %4203 = vmatpush.msra.mxu0 0.0
        %4204 = vmatpush.msra.mxu0 0.0
        %4205 = vmatpush.msra.mxu0 0.0
        %4206 = vmatpush.msra.mxu0 0.0
        %4207 = vmatpush.msra.mxu0 0.0
        %4208 = vmatpush.msra.mxu0 0.0
        %4209 = vmatpush.msra.mxu0 %v4116
        %4210 = vmatpush.msra.mxu0 %v4115
        %4211 = vmatpush.msra.mxu0 %v4114
        %4212 = vmatpush.msra.mxu0 %v4113
        %4213 = vmatmul.f32.gmra.mxu0 %v4195
        %v4214 = vpop.f32.mrf.mxu0
        %v4215 = vadd.f32 %v4192, %v4214
        %4216 = vdwg.mxu0
        %v4217 = vld [vmem:[%s2820] sm:$0xff]
        %v4218 = vld [vmem:[%s2820 + $0x8] sm:$0xff]
        %v4219 = vld [vmem:[%s2820 + $0x10] sm:$0xff]
        %v4220 = vld [vmem:[%s2820 + $0x18] sm:$0xff]
        %v4221 = vld [vmem:[#allocation3 + $0x44] sm:$0xff]
        %v4223 = vsel %vm1798, %v4221, 0
        %4225 = vmatpush.msra.mxu0 0.0
        %4226 = vmatpush.msra.mxu0 0.0
        %4227 = vmatpush.msra.mxu0 0.0
        %4228 = vmatpush.msra.mxu0 0.0
        %4229 = vmatpush.msra.mxu0 0.0
        %4230 = vmatpush.msra.mxu0 0.0
        %4231 = vmatpush.msra.mxu0 0.0
        %4232 = vmatpush.msra.mxu0 0.0
        %4233 = vmatpush.msra.mxu0 0.0
        %4234 = vmatpush.msra.mxu0 0.0
        %4235 = vmatpush.msra.mxu0 0.0
        %4236 = vmatpush.msra.mxu0 0.0
        %4237 = vmatpush.msra.mxu0 %v4220
        %4238 = vmatpush.msra.mxu0 %v4219
        %4239 = vmatpush.msra.mxu0 %v4218
        %4240 = vmatpush.msra.mxu0 %v4217
        %4241 = vmatmul.f32.gmra.mxu0 %v4223
        %v4242 = vpop.f32.mrf.mxu0
        %v4243 = vadd.f32 0.0, %v4242
        %4244 = vdwg.mxu0
        %v4245 = vadd.f32 %v4168, %v4243
        %v4246 = vld [vmem:[#allocation3 + $0x4f] sm:$0xff]
        %v4248 = vsel %vm1798, %v4246, 0
        %4250 = vmatpush.msra.mxu0 0.0
        %4251 = vmatpush.msra.mxu0 0.0
        %4252 = vmatpush.msra.mxu0 0.0
        %4253 = vmatpush.msra.mxu0 0.0
        %4254 = vmatpush.msra.mxu0 0.0
        %4255 = vmatpush.msra.mxu0 0.0
        %4256 = vmatpush.msra.mxu0 0.0
        %4257 = vmatpush.msra.mxu0 0.0
        %4258 = vmatpush.msra.mxu0 0.0
        %4259 = vmatpush.msra.mxu0 0.0
        %4260 = vmatpush.msra.mxu0 0.0
        %4261 = vmatpush.msra.mxu0 0.0
        %4262 = vmatpush.msra.mxu0 %v4220
        %4263 = vmatpush.msra.mxu0 %v4219
        %4264 = vmatpush.msra.mxu0 %v4218
        %4265 = vmatpush.msra.mxu0 %v4217
        %4266 = vmatmul.f32.gmra.mxu0 %v4248
        %v4267 = vpop.f32.mrf.mxu0
        %v4268 = vadd.f32 0.0, %v4267
        %4269 = vdwg.mxu0
        %v4270 = vadd.f32 %v4215, %v4268
        %v4271 = vld [vmem:[%s2875] sm:$0xff]
        %v4272 = vld [vmem:[%s2875 + $0x8] sm:$0xff]
        %v4273 = vld [vmem:[%s2875 + $0x10] sm:$0xff]
        %v4274 = vld [vmem:[%s2875 + $0x18] sm:$0xff]
        %4275 = vmatpush.msra.mxu0 0.0
        %4276 = vmatpush.msra.mxu0 0.0
        %4277 = vmatpush.msra.mxu0 0.0
        %4278 = vmatpush.msra.mxu0 0.0
        %4279 = vmatpush.msra.mxu0 0.0
        %4280 = vmatpush.msra.mxu0 0.0
        %4281 = vmatpush.msra.mxu0 0.0
        %4282 = vmatpush.msra.mxu0 0.0
        %4283 = vmatpush.msra.mxu0 0.0
        %4284 = vmatpush.msra.mxu0 0.0
        %4285 = vmatpush.msra.mxu0 0.0
        %4286 = vmatpush.msra.mxu0 0.0
        %4287 = vmatpush.msra.mxu0 %v4274
        %4288 = vmatpush.msra.mxu0 %v4273
        %4289 = vmatpush.msra.mxu0 %v4272
        %4290 = vmatpush.msra.mxu0 %v4271
        %4291 = vmatmul.f32.gmra.mxu0 %v4195
        %v4292 = vpop.f32.mrf.mxu0
        %v4293 = vadd.f32 0.0, %v4292
        %4294 = vdwg.mxu0
        %v4295 = vadd.f32 %v4245, %v4293
        %v4296 = vld [vmem:[#allocation3 + $0x58] sm:$0xff]
        %v4298 = vsel %vm1798, %v4296, 0
        %4300 = vmatpush.msra.mxu0 0.0
        %4301 = vmatpush.msra.mxu0 0.0
        %4302 = vmatpush.msra.mxu0 0.0
        %4303 = vmatpush.msra.mxu0 0.0
        %4304 = vmatpush.msra.mxu0 0.0
        %4305 = vmatpush.msra.mxu0 0.0
        %4306 = vmatpush.msra.mxu0 0.0
        %4307 = vmatpush.msra.mxu0 0.0
        %4308 = vmatpush.msra.mxu0 0.0
        %4309 = vmatpush.msra.mxu0 0.0
        %4310 = vmatpush.msra.mxu0 0.0
        %4311 = vmatpush.msra.mxu0 0.0
        %4312 = vmatpush.msra.mxu0 %v4274
        %4313 = vmatpush.msra.mxu0 %v4273
        %4314 = vmatpush.msra.mxu0 %v4272
        %4315 = vmatpush.msra.mxu0 %v4271
        %4316 = vmatmul.f32.gmra.mxu0 %v4298
        %v4317 = vpop.f32.mrf.mxu0
        %v4318 = vadd.f32 0.0, %v4317
        %4319 = vdwg.mxu0
        %v4320 = vadd.f32 %v4270, %v4318
        %v4321 = vld [vmem:[%s2926] sm:$0xff]
        %v4322 = vld [vmem:[%s2926 + $0x8] sm:$0xff]
        %v4323 = vld [vmem:[%s2926 + $0x10] sm:$0xff]
        %v4324 = vld [vmem:[%s2926 + $0x18] sm:$0xff]
        %4325 = vmatpush.msra.mxu0 0.0
        %4326 = vmatpush.msra.mxu0 0.0
        %4327 = vmatpush.msra.mxu0 0.0
        %4328 = vmatpush.msra.mxu0 0.0
        %4329 = vmatpush.msra.mxu0 0.0
        %4330 = vmatpush.msra.mxu0 0.0
        %4331 = vmatpush.msra.mxu0 0.0
        %4332 = vmatpush.msra.mxu0 0.0
        %4333 = vmatpush.msra.mxu0 0.0
        %4334 = vmatpush.msra.mxu0 0.0
        %4335 = vmatpush.msra.mxu0 0.0
        %4336 = vmatpush.msra.mxu0 0.0
        %4337 = vmatpush.msra.mxu0 %v4324
        %4338 = vmatpush.msra.mxu0 %v4323
        %4339 = vmatpush.msra.mxu0 %v4322
        %4340 = vmatpush.msra.mxu0 %v4321
        %4341 = vmatmul.f32.gmra.mxu0 %v4172
        %v4342 = vpop.f32.mrf.mxu0
        %v4343 = vadd.f32 0.0, %v4342
        %4344 = vdwg.mxu0
        %v4345 = vadd.f32 %v4295, %v4343
        %v4346 = vld [vmem:[#allocation3 + $0x59] sm:$0xff]
        %v4348 = vsel %vm1798, %v4346, 0
        %4350 = vmatpush.msra.mxu0 0.0
        %4351 = vmatpush.msra.mxu0 0.0
        %4352 = vmatpush.msra.mxu0 0.0
        %4353 = vmatpush.msra.mxu0 0.0
        %4354 = vmatpush.msra.mxu0 0.0
        %4355 = vmatpush.msra.mxu0 0.0
        %4356 = vmatpush.msra.mxu0 0.0
        %4357 = vmatpush.msra.mxu0 0.0
        %4358 = vmatpush.msra.mxu0 0.0
        %4359 = vmatpush.msra.mxu0 0.0
        %4360 = vmatpush.msra.mxu0 0.0
        %4361 = vmatpush.msra.mxu0 0.0
        %4362 = vmatpush.msra.mxu0 %v4324
        %4363 = vmatpush.msra.mxu0 %v4323
        %4364 = vmatpush.msra.mxu0 %v4322
        %4365 = vmatpush.msra.mxu0 %v4321
        %4366 = vmatmul.f32.gmra.mxu0 %v4348
        %v4367 = vpop.f32.mrf.mxu0
        %v4368 = vadd.f32 0.0, %v4367
        %4369 = vdwg.mxu0
        %v4370 = vadd.f32 %v4320, %v4368
        %v4371 = vld [vmem:[%s2977] sm:$0xff]
        %v4372 = vld [vmem:[%s2977 + $0x8] sm:$0xff]
        %v4373 = vld [vmem:[%s2977 + $0x10] sm:$0xff]
        %v4374 = vld [vmem:[%s2977 + $0x18] sm:$0xff]
        %4375 = vmatpush.msra.mxu0 0.0
        %4376 = vmatpush.msra.mxu0 0.0
        %4377 = vmatpush.msra.mxu0 0.0
        %4378 = vmatpush.msra.mxu0 0.0
        %4379 = vmatpush.msra.mxu0 0.0
        %4380 = vmatpush.msra.mxu0 0.0
        %4381 = vmatpush.msra.mxu0 0.0
        %4382 = vmatpush.msra.mxu0 0.0
        %4383 = vmatpush.msra.mxu0 0.0
        %4384 = vmatpush.msra.mxu0 0.0
        %4385 = vmatpush.msra.mxu0 0.0
        %4386 = vmatpush.msra.mxu0 0.0
        %4387 = vmatpush.msra.mxu0 %v4374
        %4388 = vmatpush.msra.mxu0 %v4373
        %4389 = vmatpush.msra.mxu0 %v4372
        %4390 = vmatpush.msra.mxu0 %v4371
        %4391 = vmatmul.f32.gmra.mxu0 %v4248
        %v4392 = vpop.f32.mrf.mxu0
        %v4393 = vadd.f32 0.0, %v4392
        %4394 = vdwg.mxu0
        %v4395 = vadd.f32 %v4345, %v4393
        %v4396 = vld [vmem:[#allocation3 + $0x5a] sm:$0xff]
        %v4398 = vsel %vm1798, %v4396, 0
        %4400 = vmatpush.msra.mxu0 0.0
        %4401 = vmatpush.msra.mxu0 0.0
        %4402 = vmatpush.msra.mxu0 0.0
        %4403 = vmatpush.msra.mxu0 0.0
        %4404 = vmatpush.msra.mxu0 0.0
        %4405 = vmatpush.msra.mxu0 0.0
        %4406 = vmatpush.msra.mxu0 0.0
        %4407 = vmatpush.msra.mxu0 0.0
        %4408 = vmatpush.msra.mxu0 0.0
        %4409 = vmatpush.msra.mxu0 0.0
        %4410 = vmatpush.msra.mxu0 0.0
        %4411 = vmatpush.msra.mxu0 0.0
        %4412 = vmatpush.msra.mxu0 %v4374
        %4413 = vmatpush.msra.mxu0 %v4373
        %4414 = vmatpush.msra.mxu0 %v4372
        %4415 = vmatpush.msra.mxu0 %v4371
        %4416 = vmatmul.f32.gmra.mxu0 %v4398
        %v4417 = vpop.f32.mrf.mxu0
        %v4418 = vadd.f32 0.0, %v4417
        %4419 = vdwg.mxu0
        %v4420 = vadd.f32 %v4370, %v4418
        %v4421 = vld [vmem:[%s3028] sm:$0xff]
        %v4422 = vld [vmem:[%s3028 + $0x8] sm:$0xff]
        %v4423 = vld [vmem:[%s3028 + $0x10] sm:$0xff]
        %v4424 = vld [vmem:[%s3028 + $0x18] sm:$0xff]
        %4425 = vmatpush.msra.mxu0 0.0
        %4426 = vmatpush.msra.mxu0 0.0
        %4427 = vmatpush.msra.mxu0 0.0
        %4428 = vmatpush.msra.mxu0 0.0
        %4429 = vmatpush.msra.mxu0 0.0
        %4430 = vmatpush.msra.mxu0 0.0
        %4431 = vmatpush.msra.mxu0 0.0
        %4432 = vmatpush.msra.mxu0 0.0
        %4433 = vmatpush.msra.mxu0 0.0
        %4434 = vmatpush.msra.mxu0 0.0
        %4435 = vmatpush.msra.mxu0 0.0
        %4436 = vmatpush.msra.mxu0 0.0
        %4437 = vmatpush.msra.mxu0 %v4424
        %4438 = vmatpush.msra.mxu0 %v4423
        %4439 = vmatpush.msra.mxu0 %v4422
        %4440 = vmatpush.msra.mxu0 %v4421
        %4441 = vmatmul.f32.gmra.mxu0 %v4298
        %v4442 = vpop.f32.mrf.mxu0
        %v4443 = vadd.f32 0.0, %v4442
        %4444 = vdwg.mxu0
        %v4445 = vadd.f32 %v4395, %v4443
        %v4446 = vld [vmem:[#allocation3 + $0x63] sm:$0xff]
        %v4448 = vsel %vm1798, %v4446, 0
        %4450 = vmatpush.msra.mxu0 0.0
        %4451 = vmatpush.msra.mxu0 0.0
        %4452 = vmatpush.msra.mxu0 0.0
        %4453 = vmatpush.msra.mxu0 0.0
        %4454 = vmatpush.msra.mxu0 0.0
        %4455 = vmatpush.msra.mxu0 0.0
        %4456 = vmatpush.msra.mxu0 0.0
        %4457 = vmatpush.msra.mxu0 0.0
        %4458 = vmatpush.msra.mxu0 0.0
        %4459 = vmatpush.msra.mxu0 0.0
        %4460 = vmatpush.msra.mxu0 0.0
        %4461 = vmatpush.msra.mxu0 0.0
        %4462 = vmatpush.msra.mxu0 %v4424
        %4463 = vmatpush.msra.mxu0 %v4423
        %4464 = vmatpush.msra.mxu0 %v4422
        %4465 = vmatpush.msra.mxu0 %v4421
        %4466 = vmatmul.f32.gmra.mxu0 %v4448
        %v4467 = vpop.f32.mrf.mxu0
        %v4468 = vadd.f32 0.0, %v4467
        %4469 = vdwg.mxu0
        %v4470 = vadd.f32 %v4420, %v4468
        %v4471 = vld [vmem:[%s3079] sm:$0xff]
        %v4472 = vld [vmem:[%s3079 + $0x8] sm:$0xff]
        %v4473 = vld [vmem:[%s3079 + $0x10] sm:$0xff]
        %v4474 = vld [vmem:[%s3079 + $0x18] sm:$0xff]
        %4475 = vmatpush.msra.mxu0 0.0
        %4476 = vmatpush.msra.mxu0 0.0
        %4477 = vmatpush.msra.mxu0 0.0
        %4478 = vmatpush.msra.mxu0 0.0
        %4479 = vmatpush.msra.mxu0 0.0
        %4480 = vmatpush.msra.mxu0 0.0
        %4481 = vmatpush.msra.mxu0 0.0
        %4482 = vmatpush.msra.mxu0 0.0
        %4483 = vmatpush.msra.mxu0 0.0
        %4484 = vmatpush.msra.mxu0 0.0
        %4485 = vmatpush.msra.mxu0 0.0
        %4486 = vmatpush.msra.mxu0 0.0
        %4487 = vmatpush.msra.mxu0 %v4474
        %4488 = vmatpush.msra.mxu0 %v4473
        %4489 = vmatpush.msra.mxu0 %v4472
        %4490 = vmatpush.msra.mxu0 %v4471
        %4491 = vmatmul.f32.gmra.mxu0 %v4348
        %v4492 = vpop.f32.mrf.mxu0
        %v4493 = vadd.f32 0.0, %v4492
        %4494 = vdwg.mxu0
        %v4495 = vadd.f32 %v4445, %v4493
        %v4496 = vld [vmem:[#allocation3 + $0x64] sm:$0xff]
        %v4498 = vsel %vm1798, %v4496, 0
        %4500 = vmatpush.msra.mxu0 0.0
        %4501 = vmatpush.msra.mxu0 0.0
        %4502 = vmatpush.msra.mxu0 0.0
        %4503 = vmatpush.msra.mxu0 0.0
        %4504 = vmatpush.msra.mxu0 0.0
        %4505 = vmatpush.msra.mxu0 0.0
        %4506 = vmatpush.msra.mxu0 0.0
        %4507 = vmatpush.msra.mxu0 0.0
        %4508 = vmatpush.msra.mxu0 0.0
        %4509 = vmatpush.msra.mxu0 0.0
        %4510 = vmatpush.msra.mxu0 0.0
        %4511 = vmatpush.msra.mxu0 0.0
        %4512 = vmatpush.msra.mxu0 %v4474
        %4513 = vmatpush.msra.mxu0 %v4473
        %4514 = vmatpush.msra.mxu0 %v4472
        %4515 = vmatpush.msra.mxu0 %v4471
        %4516 = vmatmul.f32.gmra.mxu0 %v4498
        %v4517 = vpop.f32.mrf.mxu0
        %v4518 = vadd.f32 0.0, %v4517
        %4519 = vdwg.mxu0
        %v4520 = vadd.f32 %v4470, %v4518
        %v4521 = vld [vmem:[%s3130] sm:$0xff]
        %v4522 = vld [vmem:[%s3130 + $0x8] sm:$0xff]
        %v4523 = vld [vmem:[%s3130 + $0x10] sm:$0xff]
        %v4524 = vld [vmem:[%s3130 + $0x18] sm:$0xff]
        %4525 = vmatpush.msra.mxu0 0.0
        %4526 = vmatpush.msra.mxu0 0.0
        %4527 = vmatpush.msra.mxu0 0.0
        %4528 = vmatpush.msra.mxu0 0.0
        %4529 = vmatpush.msra.mxu0 0.0
        %4530 = vmatpush.msra.mxu0 0.0
        %4531 = vmatpush.msra.mxu0 0.0
        %4532 = vmatpush.msra.mxu0 0.0
        %4533 = vmatpush.msra.mxu0 0.0
        %4534 = vmatpush.msra.mxu0 0.0
        %4535 = vmatpush.msra.mxu0 0.0
        %4536 = vmatpush.msra.mxu0 0.0
        %4537 = vmatpush.msra.mxu0 %v4524
        %4538 = vmatpush.msra.mxu0 %v4523
        %4539 = vmatpush.msra.mxu0 %v4522
        %4540 = vmatpush.msra.mxu0 %v4521
        %4541 = vmatmul.f32.gmra.mxu0 %v4398
        %v4542 = vpop.f32.mrf.mxu0
        %v4543 = vadd.f32 0.0, %v4542
        %4544 = vdwg.mxu0
        %v4545 = vadd.f32 %v4495, %v4543
        %v4546 = vld [vmem:[#allocation3 + $0x65] sm:$0xff]
        %v4548 = vsel %vm1798, %v4546, 0
        %4550 = vmatpush.msra.mxu0 0.0
        %4551 = vmatpush.msra.mxu0 0.0
        %4552 = vmatpush.msra.mxu0 0.0
        %4553 = vmatpush.msra.mxu0 0.0
        %4554 = vmatpush.msra.mxu0 0.0
        %4555 = vmatpush.msra.mxu0 0.0
        %4556 = vmatpush.msra.mxu0 0.0
        %4557 = vmatpush.msra.mxu0 0.0
        %4558 = vmatpush.msra.mxu0 0.0
        %4559 = vmatpush.msra.mxu0 0.0
        %4560 = vmatpush.msra.mxu0 0.0
        %4561 = vmatpush.msra.mxu0 0.0
        %4562 = vmatpush.msra.mxu0 %v4524
        %4563 = vmatpush.msra.mxu0 %v4523
        %4564 = vmatpush.msra.mxu0 %v4522
        %4565 = vmatpush.msra.mxu0 %v4521
        %4566 = vmatmul.f32.gmra.mxu0 %v4548
        %v4567 = vpop.f32.mrf.mxu0
        %v4568 = vadd.f32 0.0, %v4567
        %4569 = vdwg.mxu0
        %v4570 = vadd.f32 %v4520, %v4568
        %v4571 = vmax.f32 %v4545, %v4570
        %v4572 = vadd.f32 %v4571, %v3183
        %v4573 = vmax.f32 %v4572, 0.0
        %4574 = vst.msk [vmem:[#allocation7 + $0x18] sm:$0xff] %vm3187, %v4573
        %v4575 = vld [vmem:[#allocation7] ss:$2 sm:$0xff]
        %s4576 = scalar_lea.vmem [#allocation7], 16
        %v4577 = vld [vmem:[%s4576] ss:$2 sm:$0xff]
        %s4578 = scalar_lea.vmem [#allocation7], 1
        %v4579 = vld [vmem:[%s4578] ss:$2 sm:$0xff]
        %s4580 = scalar_lea.vmem [#allocation7], 17
        %v4581 = vld [vmem:[%s4580] ss:$2 sm:$0xff]
        %v4582 = vmax.f32 %v4575, %v4579
        %v4583 = vmax.f32 %v4577, %v4581
        %4584 = vst.msk [vmem:[#allocation4] sm:$0xff] %vm3187, %v4582
        %4585 = vst.msk [vmem:[#allocation4 + $0x8] sm:$0xff] %vm3187, %v4583
        %v4586 = vld [vmem:[%s8] sm:$0x1]
        %v4587 = vld [vmem:[%s7] sm:$0xff]
        %v4588 = vld [vmem:[%s7 + $0x8] sm:$0xff]
        %v4589 = vld [vmem:[%s7 + $0x10] sm:$0xff]
        %v4590 = vld [vmem:[%s7 + $0x18] sm:$0xff]
        %v4591 = vld [vmem:[%s7 + $0x20] sm:$0xff]
        %v4592 = vld [vmem:[%s7 + $0x28] sm:$0xff]
        %v4593 = vld [vmem:[%s7 + $0x30] sm:$0xff]
        %v4594 = vld [vmem:[%s7 + $0x38] sm:$0xff]
        %v4595 = vld [vmem:[#allocation4] sm:$0x3]
        %v4596 = vld [vmem:[#allocation4 + $0x4] sm:$0x3]
        %s4597 = scalar_lea.vmem %s7, 64
        %v4598 = vld [vmem:[%s4597] sm:$0xff]
        %v4599 = vld [vmem:[%s4597 + $0x8] sm:$0xff]
        %v4600 = vld [vmem:[%s4597 + $0x10] sm:$0xff]
        %v4601 = vld [vmem:[%s4597 + $0x18] sm:$0xff]
        %v4602 = vld [vmem:[%s4597 + $0x20] sm:$0xff]
        %v4603 = vld [vmem:[%s4597 + $0x28] sm:$0xff]
        %v4604 = vld [vmem:[%s4597 + $0x30] sm:$0xff]
        %v4605 = vld [vmem:[%s4597 + $0x38] sm:$0xff]
        %v4606 = vld [vmem:[#allocation4 + $0x1] sm:$0x3]
        %v4608 = vsel %vm3187, %v4606, 0
        %4610 = vmatpush.msra.mxu0 0.0
        %4611 = vmatpush.msra.mxu0 0.0
        %4612 = vmatpush.msra.mxu0 0.0
        %4613 = vmatpush.msra.mxu0 0.0
        %4614 = vmatpush.msra.mxu0 0.0
        %4615 = vmatpush.msra.mxu0 0.0
        %4616 = vmatpush.msra.mxu0 0.0
        %4617 = vmatpush.msra.mxu0 0.0
        %4618 = vmatpush.msra.mxu0 %v4605
        %4619 = vmatpush.msra.mxu0 %v4604
        %4620 = vmatpush.msra.mxu0 %v4603
        %4621 = vmatpush.msra.mxu0 %v4602
        %4622 = vmatpush.msra.mxu0 %v4601
        %4623 = vmatpush.msra.mxu0 %v4600
        %4624 = vmatpush.msra.mxu0 %v4599
        %4625 = vmatpush.msra.mxu0 %v4598
        %4626 = vmatmul.f32.gmra.mxu0 %v4608
        %v4627 = vpop.f32.mrf.mxu0
        %v4628 = vadd.f32 0.0, %v4627
        %4629 = vdwg.mxu0
        %v4631 = vsel %vm3187, %v4595, 0
        %4633 = vmatpush.msra.mxu0 0.0
        %4634 = vmatpush.msra.mxu0 0.0
        %4635 = vmatpush.msra.mxu0 0.0
        %4636 = vmatpush.msra.mxu0 0.0
        %4637 = vmatpush.msra.mxu0 0.0
        %4638 = vmatpush.msra.mxu0 0.0
        %4639 = vmatpush.msra.mxu0 0.0
        %4640 = vmatpush.msra.mxu0 0.0
        %4641 = vmatpush.msra.mxu0 %v4594
        %4642 = vmatpush.msra.mxu0 %v4593
        %4643 = vmatpush.msra.mxu0 %v4592
        %4644 = vmatpush.msra.mxu0 %v4591
        %4645 = vmatpush.msra.mxu0 %v4590
        %4646 = vmatpush.msra.mxu0 %v4589
        %4647 = vmatpush.msra.mxu0 %v4588
        %4648 = vmatpush.msra.mxu0 %v4587
        %4649 = vmatmul.f32.gmra.mxu0 %v4631
        %v4650 = vpop.f32.mrf.mxu0
        %v4651 = vadd.f32 %v4628, %v4650
        %4652 = vdwg.mxu0
        %v4653 = vld [vmem:[#allocation4 + $0x5] sm:$0x3]
        %v4655 = vsel %vm3187, %v4653, 0
        %4657 = vmatpush.msra.mxu0 0.0
        %4658 = vmatpush.msra.mxu0 0.0
        %4659 = vmatpush.msra.mxu0 0.0
        %4660 = vmatpush.msra.mxu0 0.0
        %4661 = vmatpush.msra.mxu0 0.0
        %4662 = vmatpush.msra.mxu0 0.0
        %4663 = vmatpush.msra.mxu0 0.0
        %4664 = vmatpush.msra.mxu0 0.0
        %4665 = vmatpush.msra.mxu0 %v4605
        %4666 = vmatpush.msra.mxu0 %v4604
        %4667 = vmatpush.msra.mxu0 %v4603
        %4668 = vmatpush.msra.mxu0 %v4602
        %4669 = vmatpush.msra.mxu0 %v4601
        %4670 = vmatpush.msra.mxu0 %v4600
        %4671 = vmatpush.msra.mxu0 %v4599
        %4672 = vmatpush.msra.mxu0 %v4598
        %4673 = vmatmul.f32.gmra.mxu0 %v4655
        %v4674 = vpop.f32.mrf.mxu0
        %v4675 = vadd.f32 0.0, %v4674
        %4676 = vdwg.mxu0
        %v4678 = vsel %vm3187, %v4596, 0
        %4680 = vmatpush.msra.mxu0 0.0
        %4681 = vmatpush.msra.mxu0 0.0
        %4682 = vmatpush.msra.mxu0 0.0
        %4683 = vmatpush.msra.mxu0 0.0
        %4684 = vmatpush.msra.mxu0 0.0
        %4685 = vmatpush.msra.mxu0 0.0
        %4686 = vmatpush.msra.mxu0 0.0
        %4687 = vmatpush.msra.mxu0 0.0
        %4688 = vmatpush.msra.mxu0 %v4594
        %4689 = vmatpush.msra.mxu0 %v4593
        %4690 = vmatpush.msra.mxu0 %v4592
        %4691 = vmatpush.msra.mxu0 %v4591
        %4692 = vmatpush.msra.mxu0 %v4590
        %4693 = vmatpush.msra.mxu0 %v4589
        %4694 = vmatpush.msra.mxu0 %v4588
        %4695 = vmatpush.msra.mxu0 %v4587
        %4696 = vmatmul.f32.gmra.mxu0 %v4678
        %v4697 = vpop.f32.mrf.mxu0
        %v4698 = vadd.f32 %v4675, %v4697
        %4699 = vdwg.mxu0
        %s4700 = scalar_lea.vmem %s7, 128
        %v4701 = vld [vmem:[%s4700] sm:$0xff]
        %v4702 = vld [vmem:[%s4700 + $0x8] sm:$0xff]
        %v4703 = vld [vmem:[%s4700 + $0x10] sm:$0xff]
        %v4704 = vld [vmem:[%s4700 + $0x18] sm:$0xff]
        %v4705 = vld [vmem:[%s4700 + $0x20] sm:$0xff]
        %v4706 = vld [vmem:[%s4700 + $0x28] sm:$0xff]
        %v4707 = vld [vmem:[%s4700 + $0x30] sm:$0xff]
        %v4708 = vld [vmem:[%s4700 + $0x38] sm:$0xff]
        %v4709 = vld [vmem:[#allocation4 + $0x2] sm:$0x3]
        %v4711 = vsel %vm3187, %v4709, 0
        %4713 = vmatpush.msra.mxu0 0.0
        %4714 = vmatpush.msra.mxu0 0.0
        %4715 = vmatpush.msra.mxu0 0.0
        %4716 = vmatpush.msra.mxu0 0.0
        %4717 = vmatpush.msra.mxu0 0.0
        %4718 = vmatpush.msra.mxu0 0.0
        %4719 = vmatpush.msra.mxu0 0.0
        %4720 = vmatpush.msra.mxu0 0.0
        %4721 = vmatpush.msra.mxu0 %v4708
        %4722 = vmatpush.msra.mxu0 %v4707
        %4723 = vmatpush.msra.mxu0 %v4706
        %4724 = vmatpush.msra.mxu0 %v4705
        %4725 = vmatpush.msra.mxu0 %v4704
        %4726 = vmatpush.msra.mxu0 %v4703
        %4727 = vmatpush.msra.mxu0 %v4702
        %4728 = vmatpush.msra.mxu0 %v4701
        %4729 = vmatmul.f32.gmra.mxu0 %v4711
        %v4730 = vpop.f32.mrf.mxu0
        %v4731 = vadd.f32 0.0, %v4730
        %4732 = vdwg.mxu0
        %v4733 = vadd.f32 %v4651, %v4731
        %v4734 = vld [vmem:[#allocation4 + $0x6] sm:$0x3]
        %v4736 = vsel %vm3187, %v4734, 0
        %4738 = vmatpush.msra.mxu0 0.0
        %4739 = vmatpush.msra.mxu0 0.0
        %4740 = vmatpush.msra.mxu0 0.0
        %4741 = vmatpush.msra.mxu0 0.0
        %4742 = vmatpush.msra.mxu0 0.0
        %4743 = vmatpush.msra.mxu0 0.0
        %4744 = vmatpush.msra.mxu0 0.0
        %4745 = vmatpush.msra.mxu0 0.0
        %4746 = vmatpush.msra.mxu0 %v4708
        %4747 = vmatpush.msra.mxu0 %v4707
        %4748 = vmatpush.msra.mxu0 %v4706
        %4749 = vmatpush.msra.mxu0 %v4705
        %4750 = vmatpush.msra.mxu0 %v4704
        %4751 = vmatpush.msra.mxu0 %v4703
        %4752 = vmatpush.msra.mxu0 %v4702
        %4753 = vmatpush.msra.mxu0 %v4701
        %4754 = vmatmul.f32.gmra.mxu0 %v4736
        %v4755 = vpop.f32.mrf.mxu0
        %v4756 = vadd.f32 0.0, %v4755
        %4757 = vdwg.mxu0
        %v4758 = vadd.f32 %v4698, %v4756
        %s4759 = scalar_lea.vmem %s7, 192
        %v4760 = vld [vmem:[%s4759] sm:$0xff]
        %v4761 = vld [vmem:[%s4759 + $0x8] sm:$0xff]
        %v4762 = vld [vmem:[%s4759 + $0x10] sm:$0xff]
        %v4763 = vld [vmem:[%s4759 + $0x18] sm:$0xff]
        %v4764 = vld [vmem:[%s4759 + $0x20] sm:$0xff]
        %v4765 = vld [vmem:[%s4759 + $0x28] sm:$0xff]
        %v4766 = vld [vmem:[%s4759 + $0x30] sm:$0xff]
        %v4767 = vld [vmem:[%s4759 + $0x38] sm:$0xff]
        %4768 = vmatpush.msra.mxu0 0.0
        %4769 = vmatpush.msra.mxu0 0.0
        %4770 = vmatpush.msra.mxu0 0.0
        %4771 = vmatpush.msra.mxu0 0.0
        %4772 = vmatpush.msra.mxu0 0.0
        %4773 = vmatpush.msra.mxu0 0.0
        %4774 = vmatpush.msra.mxu0 0.0
        %4775 = vmatpush.msra.mxu0 0.0
        %4776 = vmatpush.msra.mxu0 %v4767
        %4777 = vmatpush.msra.mxu0 %v4766
        %4778 = vmatpush.msra.mxu0 %v4765
        %4779 = vmatpush.msra.mxu0 %v4764
        %4780 = vmatpush.msra.mxu0 %v4763
        %4781 = vmatpush.msra.mxu0 %v4762
        %4782 = vmatpush.msra.mxu0 %v4761
        %4783 = vmatpush.msra.mxu0 %v4760
        %4784 = vmatmul.f32.gmra.mxu0 %v4678
        %v4785 = vpop.f32.mrf.mxu0
        %v4786 = vadd.f32 0.0, %v4785
        %4787 = vdwg.mxu0
        %v4788 = vadd.f32 %v4733, %v4786
        %v4789 = vld [vmem:[#allocation4 + $0x8] sm:$0x3]
        %v4791 = vsel %vm3187, %v4789, 0
        %4793 = vmatpush.msra.mxu0 0.0
        %4794 = vmatpush.msra.mxu0 0.0
        %4795 = vmatpush.msra.mxu0 0.0
        %4796 = vmatpush.msra.mxu0 0.0
        %4797 = vmatpush.msra.mxu0 0.0
        %4798 = vmatpush.msra.mxu0 0.0
        %4799 = vmatpush.msra.mxu0 0.0
        %4800 = vmatpush.msra.mxu0 0.0
        %4801 = vmatpush.msra.mxu0 %v4767
        %4802 = vmatpush.msra.mxu0 %v4766
        %4803 = vmatpush.msra.mxu0 %v4765
        %4804 = vmatpush.msra.mxu0 %v4764
        %4805 = vmatpush.msra.mxu0 %v4763
        %4806 = vmatpush.msra.mxu0 %v4762
        %4807 = vmatpush.msra.mxu0 %v4761
        %4808 = vmatpush.msra.mxu0 %v4760
        %4809 = vmatmul.f32.gmra.mxu0 %v4791
        %v4810 = vpop.f32.mrf.mxu0
        %v4811 = vadd.f32 0.0, %v4810
        %4812 = vdwg.mxu0
        %v4813 = vadd.f32 %v4758, %v4811
        %s4814 = scalar_lea.vmem %s7, 256
        %v4815 = vld [vmem:[%s4814] sm:$0xff]
        %v4816 = vld [vmem:[%s4814 + $0x8] sm:$0xff]
        %v4817 = vld [vmem:[%s4814 + $0x10] sm:$0xff]
        %v4818 = vld [vmem:[%s4814 + $0x18] sm:$0xff]
        %v4819 = vld [vmem:[%s4814 + $0x20] sm:$0xff]
        %v4820 = vld [vmem:[%s4814 + $0x28] sm:$0xff]
        %v4821 = vld [vmem:[%s4814 + $0x30] sm:$0xff]
        %v4822 = vld [vmem:[%s4814 + $0x38] sm:$0xff]
        %4823 = vmatpush.msra.mxu0 0.0
        %4824 = vmatpush.msra.mxu0 0.0
        %4825 = vmatpush.msra.mxu0 0.0
        %4826 = vmatpush.msra.mxu0 0.0
        %4827 = vmatpush.msra.mxu0 0.0
        %4828 = vmatpush.msra.mxu0 0.0
        %4829 = vmatpush.msra.mxu0 0.0
        %4830 = vmatpush.msra.mxu0 0.0
        %4831 = vmatpush.msra.mxu0 %v4822
        %4832 = vmatpush.msra.mxu0 %v4821
        %4833 = vmatpush.msra.mxu0 %v4820
        %4834 = vmatpush.msra.mxu0 %v4819
        %4835 = vmatpush.msra.mxu0 %v4818
        %4836 = vmatpush.msra.mxu0 %v4817
        %4837 = vmatpush.msra.mxu0 %v4816
        %4838 = vmatpush.msra.mxu0 %v4815
        %4839 = vmatmul.f32.gmra.mxu0 %v4655
        %v4840 = vpop.f32.mrf.mxu0
        %v4841 = vadd.f32 0.0, %v4840
        %4842 = vdwg.mxu0
        %v4843 = vadd.f32 %v4788, %v4841
        %v4844 = vld [vmem:[#allocation4 + $0x9] sm:$0x3]
        %v4846 = vsel %vm3187, %v4844, 0
        %4848 = vmatpush.msra.mxu0 0.0
        %4849 = vmatpush.msra.mxu0 0.0
        %4850 = vmatpush.msra.mxu0 0.0
        %4851 = vmatpush.msra.mxu0 0.0
        %4852 = vmatpush.msra.mxu0 0.0
        %4853 = vmatpush.msra.mxu0 0.0
        %4854 = vmatpush.msra.mxu0 0.0
        %4855 = vmatpush.msra.mxu0 0.0
        %4856 = vmatpush.msra.mxu0 %v4822
        %4857 = vmatpush.msra.mxu0 %v4821
        %4858 = vmatpush.msra.mxu0 %v4820
        %4859 = vmatpush.msra.mxu0 %v4819
        %4860 = vmatpush.msra.mxu0 %v4818
        %4861 = vmatpush.msra.mxu0 %v4817
        %4862 = vmatpush.msra.mxu0 %v4816
        %4863 = vmatpush.msra.mxu0 %v4815
        %4864 = vmatmul.f32.gmra.mxu0 %v4846
        %v4865 = vpop.f32.mrf.mxu0
        %v4866 = vadd.f32 0.0, %v4865
        %4867 = vdwg.mxu0
        %v4868 = vadd.f32 %v4813, %v4866
        %s4869 = scalar_lea.vmem %s7, 320
        %v4870 = vld [vmem:[%s4869] sm:$0xff]
        %v4871 = vld [vmem:[%s4869 + $0x8] sm:$0xff]
        %v4872 = vld [vmem:[%s4869 + $0x10] sm:$0xff]
        %v4873 = vld [vmem:[%s4869 + $0x18] sm:$0xff]
        %v4874 = vld [vmem:[%s4869 + $0x20] sm:$0xff]
        %v4875 = vld [vmem:[%s4869 + $0x28] sm:$0xff]
        %v4876 = vld [vmem:[%s4869 + $0x30] sm:$0xff]
        %v4877 = vld [vmem:[%s4869 + $0x38] sm:$0xff]
        %4878 = vmatpush.msra.mxu0 0.0
        %4879 = vmatpush.msra.mxu0 0.0
        %4880 = vmatpush.msra.mxu0 0.0
        %4881 = vmatpush.msra.mxu0 0.0
        %4882 = vmatpush.msra.mxu0 0.0
        %4883 = vmatpush.msra.mxu0 0.0
        %4884 = vmatpush.msra.mxu0 0.0
        %4885 = vmatpush.msra.mxu0 0.0
        %4886 = vmatpush.msra.mxu0 %v4877
        %4887 = vmatpush.msra.mxu0 %v4876
        %4888 = vmatpush.msra.mxu0 %v4875
        %4889 = vmatpush.msra.mxu0 %v4874
        %4890 = vmatpush.msra.mxu0 %v4873
        %4891 = vmatpush.msra.mxu0 %v4872
        %4892 = vmatpush.msra.mxu0 %v4871
        %4893 = vmatpush.msra.mxu0 %v4870
        %4894 = vmatmul.f32.gmra.mxu0 %v4736
        %v4895 = vpop.f32.mrf.mxu0
        %v4896 = vadd.f32 0.0, %v4895
        %4897 = vdwg.mxu0
        %v4898 = vadd.f32 %v4843, %v4896
        %v4899 = vld [vmem:[#allocation4 + $0xa] sm:$0x3]
        %v4901 = vsel %vm3187, %v4899, 0
        %4903 = vmatpush.msra.mxu0 0.0
        %4904 = vmatpush.msra.mxu0 0.0
        %4905 = vmatpush.msra.mxu0 0.0
        %4906 = vmatpush.msra.mxu0 0.0
        %4907 = vmatpush.msra.mxu0 0.0
        %4908 = vmatpush.msra.mxu0 0.0
        %4909 = vmatpush.msra.mxu0 0.0
        %4910 = vmatpush.msra.mxu0 0.0
        %4911 = vmatpush.msra.mxu0 %v4877
        %4912 = vmatpush.msra.mxu0 %v4876
        %4913 = vmatpush.msra.mxu0 %v4875
        %4914 = vmatpush.msra.mxu0 %v4874
        %4915 = vmatpush.msra.mxu0 %v4873
        %4916 = vmatpush.msra.mxu0 %v4872
        %4917 = vmatpush.msra.mxu0 %v4871
        %4918 = vmatpush.msra.mxu0 %v4870
        %4919 = vmatmul.f32.gmra.mxu0 %v4901
        %v4920 = vpop.f32.mrf.mxu0
        %v4921 = vadd.f32 0.0, %v4920
        %4922 = vdwg.mxu0
        %v4923 = vadd.f32 %v4868, %v4921
        %s4924 = scalar_lea.vmem %s7, 384
        %v4925 = vld [vmem:[%s4924] sm:$0xff]
        %v4926 = vld [vmem:[%s4924 + $0x8] sm:$0xff]
        %v4927 = vld [vmem:[%s4924 + $0x10] sm:$0xff]
        %v4928 = vld [vmem:[%s4924 + $0x18] sm:$0xff]
        %v4929 = vld [vmem:[%s4924 + $0x20] sm:$0xff]
        %v4930 = vld [vmem:[%s4924 + $0x28] sm:$0xff]
        %v4931 = vld [vmem:[%s4924 + $0x30] sm:$0xff]
        %v4932 = vld [vmem:[%s4924 + $0x38] sm:$0xff]
        %4933 = vmatpush.msra.mxu0 0.0
        %4934 = vmatpush.msra.mxu0 0.0
        %4935 = vmatpush.msra.mxu0 0.0
        %4936 = vmatpush.msra.mxu0 0.0
        %4937 = vmatpush.msra.mxu0 0.0
        %4938 = vmatpush.msra.mxu0 0.0
        %4939 = vmatpush.msra.mxu0 0.0
        %4940 = vmatpush.msra.mxu0 0.0
        %4941 = vmatpush.msra.mxu0 %v4932
        %4942 = vmatpush.msra.mxu0 %v4931
        %4943 = vmatpush.msra.mxu0 %v4930
        %4944 = vmatpush.msra.mxu0 %v4929
        %4945 = vmatpush.msra.mxu0 %v4928
        %4946 = vmatpush.msra.mxu0 %v4927
        %4947 = vmatpush.msra.mxu0 %v4926
        %4948 = vmatpush.msra.mxu0 %v4925
        %4949 = vmatmul.f32.gmra.mxu0 %v4791
        %v4950 = vpop.f32.mrf.mxu0
        %v4951 = vadd.f32 0.0, %v4950
        %4952 = vdwg.mxu0
        %v4953 = vadd.f32 %v4898, %v4951
        %v4954 = vld [vmem:[#allocation4 + $0xc] sm:$0x3]
        %v4956 = vsel %vm3187, %v4954, 0
        %4958 = vmatpush.msra.mxu0 0.0
        %4959 = vmatpush.msra.mxu0 0.0
        %4960 = vmatpush.msra.mxu0 0.0
        %4961 = vmatpush.msra.mxu0 0.0
        %4962 = vmatpush.msra.mxu0 0.0
        %4963 = vmatpush.msra.mxu0 0.0
        %4964 = vmatpush.msra.mxu0 0.0
        %4965 = vmatpush.msra.mxu0 0.0
        %4966 = vmatpush.msra.mxu0 %v4932
        %4967 = vmatpush.msra.mxu0 %v4931
        %4968 = vmatpush.msra.mxu0 %v4930
        %4969 = vmatpush.msra.mxu0 %v4929
        %4970 = vmatpush.msra.mxu0 %v4928
        %4971 = vmatpush.msra.mxu0 %v4927
        %4972 = vmatpush.msra.mxu0 %v4926
        %4973 = vmatpush.msra.mxu0 %v4925
        %4974 = vmatmul.f32.gmra.mxu0 %v4956
        %v4975 = vpop.f32.mrf.mxu0
        %v4976 = vadd.f32 0.0, %v4975
        %4977 = vdwg.mxu0
        %v4978 = vadd.f32 %v4923, %v4976
        %s4979 = scalar_lea.vmem %s7, 448
        %v4980 = vld [vmem:[%s4979] sm:$0xff]
        %v4981 = vld [vmem:[%s4979 + $0x8] sm:$0xff]
        %v4982 = vld [vmem:[%s4979 + $0x10] sm:$0xff]
        %v4983 = vld [vmem:[%s4979 + $0x18] sm:$0xff]
        %v4984 = vld [vmem:[%s4979 + $0x20] sm:$0xff]
        %v4985 = vld [vmem:[%s4979 + $0x28] sm:$0xff]
        %v4986 = vld [vmem:[%s4979 + $0x30] sm:$0xff]
        %v4987 = vld [vmem:[%s4979 + $0x38] sm:$0xff]
        %4988 = vmatpush.msra.mxu0 0.0
        %4989 = vmatpush.msra.mxu0 0.0
        %4990 = vmatpush.msra.mxu0 0.0
        %4991 = vmatpush.msra.mxu0 0.0
        %4992 = vmatpush.msra.mxu0 0.0
        %4993 = vmatpush.msra.mxu0 0.0
        %4994 = vmatpush.msra.mxu0 0.0
        %4995 = vmatpush.msra.mxu0 0.0
        %4996 = vmatpush.msra.mxu0 %v4987
        %4997 = vmatpush.msra.mxu0 %v4986
        %4998 = vmatpush.msra.mxu0 %v4985
        %4999 = vmatpush.msra.mxu0 %v4984
        %5000 = vmatpush.msra.mxu0 %v4983
        %5001 = vmatpush.msra.mxu0 %v4982
        %5002 = vmatpush.msra.mxu0 %v4981
        %5003 = vmatpush.msra.mxu0 %v4980
        %5004 = vmatmul.f32.gmra.mxu0 %v4846
        %v5005 = vpop.f32.mrf.mxu0
        %v5006 = vadd.f32 0.0, %v5005
        %5007 = vdwg.mxu0
        %v5008 = vadd.f32 %v4953, %v5006
        %v5009 = vld [vmem:[#allocation4 + $0xd] sm:$0x3]
        %v5011 = vsel %vm3187, %v5009, 0
        %5013 = vmatpush.msra.mxu0 0.0
        %5014 = vmatpush.msra.mxu0 0.0
        %5015 = vmatpush.msra.mxu0 0.0
        %5016 = vmatpush.msra.mxu0 0.0
        %5017 = vmatpush.msra.mxu0 0.0
        %5018 = vmatpush.msra.mxu0 0.0
        %5019 = vmatpush.msra.mxu0 0.0
        %5020 = vmatpush.msra.mxu0 0.0
        %5021 = vmatpush.msra.mxu0 %v4987
        %5022 = vmatpush.msra.mxu0 %v4986
        %5023 = vmatpush.msra.mxu0 %v4985
        %5024 = vmatpush.msra.mxu0 %v4984
        %5025 = vmatpush.msra.mxu0 %v4983
        %5026 = vmatpush.msra.mxu0 %v4982
        %5027 = vmatpush.msra.mxu0 %v4981
        %5028 = vmatpush.msra.mxu0 %v4980
        %5029 = vmatmul.f32.gmra.mxu0 %v5011
        %v5030 = vpop.f32.mrf.mxu0
        %v5031 = vadd.f32 0.0, %v5030
        %5032 = vdwg.mxu0
        %v5033 = vadd.f32 %v4978, %v5031
        %s5034 = scalar_lea.vmem %s7, 512
        %v5035 = vld [vmem:[%s5034] sm:$0xff]
        %v5036 = vld [vmem:[%s5034 + $0x8] sm:$0xff]
        %v5037 = vld [vmem:[%s5034 + $0x10] sm:$0xff]
        %v5038 = vld [vmem:[%s5034 + $0x18] sm:$0xff]
        %v5039 = vld [vmem:[%s5034 + $0x20] sm:$0xff]
        %v5040 = vld [vmem:[%s5034 + $0x28] sm:$0xff]
        %v5041 = vld [vmem:[%s5034 + $0x30] sm:$0xff]
        %v5042 = vld [vmem:[%s5034 + $0x38] sm:$0xff]
        %5043 = vmatpush.msra.mxu0 0.0
        %5044 = vmatpush.msra.mxu0 0.0
        %5045 = vmatpush.msra.mxu0 0.0
        %5046 = vmatpush.msra.mxu0 0.0
        %5047 = vmatpush.msra.mxu0 0.0
        %5048 = vmatpush.msra.mxu0 0.0
        %5049 = vmatpush.msra.mxu0 0.0
        %5050 = vmatpush.msra.mxu0 0.0
        %5051 = vmatpush.msra.mxu0 %v5042
        %5052 = vmatpush.msra.mxu0 %v5041
        %5053 = vmatpush.msra.mxu0 %v5040
        %5054 = vmatpush.msra.mxu0 %v5039
        %5055 = vmatpush.msra.mxu0 %v5038
        %5056 = vmatpush.msra.mxu0 %v5037
        %5057 = vmatpush.msra.mxu0 %v5036
        %5058 = vmatpush.msra.mxu0 %v5035
        %5059 = vmatmul.f32.gmra.mxu0 %v4901
        %v5060 = vpop.f32.mrf.mxu0
        %v5061 = vadd.f32 0.0, %v5060
        %5062 = vdwg.mxu0
        %v5063 = vadd.f32 %v5008, %v5061
        %v5064 = vld [vmem:[#allocation4 + $0xe] sm:$0x3]
        %v5066 = vsel %vm3187, %v5064, 0
        %5068 = vmatpush.msra.mxu0 0.0
        %5069 = vmatpush.msra.mxu0 0.0
        %5070 = vmatpush.msra.mxu0 0.0
        %5071 = vmatpush.msra.mxu0 0.0
        %5072 = vmatpush.msra.mxu0 0.0
        %5073 = vmatpush.msra.mxu0 0.0
        %5074 = vmatpush.msra.mxu0 0.0
        %5075 = vmatpush.msra.mxu0 0.0
        %5076 = vmatpush.msra.mxu0 %v5042
        %5077 = vmatpush.msra.mxu0 %v5041
        %5078 = vmatpush.msra.mxu0 %v5040
        %5079 = vmatpush.msra.mxu0 %v5039
        %5080 = vmatpush.msra.mxu0 %v5038
        %5081 = vmatpush.msra.mxu0 %v5037
        %5082 = vmatpush.msra.mxu0 %v5036
        %5083 = vmatpush.msra.mxu0 %v5035
        %5084 = vmatmul.f32.gmra.mxu0 %v5066
        %v5085 = vpop.f32.mrf.mxu0
        %v5086 = vadd.f32 0.0, %v5085
        %5087 = vdwg.mxu0
        %v5088 = vadd.f32 %v5033, %v5086
        %v5089 = vmax.f32 %v5063, %v5088
        %v5091 = vperm.slane %v4586, 0
        %v5093 = vadd.f32 %v5089, %v5091
        %v5094 = vmax.f32 %v5093, 0.0
        %5095 = vst [vmem:[#allocation8] sm:$0x3] %v5094
        %v5096 = vld [vmem:[#allocation8] ss:$2 sm:$0x1]
        %s5097 = scalar_lea.vmem [#allocation8], 1
        %v5098 = vld [vmem:[%s5097] ss:$2 sm:$0x1]
        %v5099 = vmax.f32 %v5096, %v5098
        %5100 = vst [vmem:[%s324] sm:$0x1] %v5099
        %s5101 = sand.u32 %s225, 1
        %s5102 = scalar_lea.sflag [#allocation10], %s5101
        %s5103 = sand.u32 %s225, 1
        %s5104 = scalar_lea.vmem [#allocation9], %s5103
        // Predicated region
        $region71: #{tpu_custom_call.1} parent=55 // pred_check
          %p5105 = pneg %p235
        $region72: #{tpu_custom_call.1} parent=55 // pred_check_branch
          %5107 = sbr.rel (%p5105) target = $region74
        $region73: #{tpu_custom_call.1} parent=55 // pred_region
          %5109 = vsyncadd %s5102, 0
          %s5110 = scalar_lea.hbm %s9, %s23
          %s5112 = sshll.u32 %s5104, 4
          %s5113 = int_to_ptr.vmem [resolvable:$true] %s5112
          %s5114 = sshll.u32 %s5110, 4
          %s5115 = int_to_ptr.hbm [resolvable:$true] %s5114
          %5117 = dma.vmem_to_hbm [thread:$0]  %s5113, 16, %s5115, %s5102
        $region74: #{tpu_custom_call.1} parent=55 // pred_fallthru
          _
      $region56: #{tpu_custom_call.1} parent=5 // pred_fallthru
        _
      %p5118 = scmp.le.s32.totalorder 2, %s18
      // Predicated region
      $region75: #{tpu_custom_call.1} parent=5 // pred_check
        %p5119 = pneg %p5118
      $region76: #{tpu_custom_call.1} parent=5 // pred_check_branch
        %5121 = sbr.rel (%p5119) target = $region78
      $region77: #{tpu_custom_call.1} parent=5 // pred_region
        %s5122 = ssub.s32 %s18, 2
        // Predicated region
        $region79: #{tpu_custom_call.1} parent=77 // pred_check
          %p5123 = pneg %p241
        $region80: #{tpu_custom_call.1} parent=77 // pred_check_branch
          %5125 = sbr.rel (%p5123) target = $region82
        $region81: #{tpu_custom_call.1} parent=77 // pred_region
          %s5126 = sand.u32 %s226, 1
          %s5127 = scalar_lea.sflag [#allocation10], %s5126
          %s5128 = sand.u32 %s226, 1
          %s5129 = scalar_lea.vmem [#allocation9], %s5128
          %5131 = dma.done %s5127, 16
        $region82: #{tpu_custom_call.1} parent=77 // pred_fallthru
          _
      $region78: #{tpu_custom_call.1} parent=5 // pred_fallthru
        _
    $region6: #{tpu_custom_call.1} parent=1 // loop_footer
      %s22 = sadd.s32 1, %s18
    $region7: #{tpu_custom_call.1} parent=1 // loop_footer_branch
      %17 = sbr.rel target = $region3
    $region8: #{tpu_custom_call.1} parent=1 // loop_exit
      _
    %5132 = vsyncpa [#allocation10], 1
    %s5133 = scalar_lea.sflag [#allocation10], 1
    %5134 = vsyncpa %s5133, 1

</llo_original>
